<compile_context>
chip_gen: v7x
topology: tpu7x:2x2x1
jax: 0.10.0
libtpu: 0.0.40
codegen_flags: <defaults>
</compile_context>

<pallas_src>
import functools

import jax
import jax.numpy as jnp
from jax import lax
from jax.experimental import pallas as pl
from jax.experimental.pallas import tpu as pltpu

HIDDEN = 32        # hidden_dim
EDGE_DIM = 8       # edge_dim  (conv edge feature dim = 2*EDGE_DIM = 16)
NUM_HEADS = 4
NUM_LAYERS = 2
NUM_CLASSES = 3


def _vmem_spec():
    return pl.BlockSpec(memory_space=pltpu.MemorySpace.VMEM)


# --------------------------- small generic linear kernel ---------------------------
def _linear_kernel(x_ref, w_ref, b_ref, o_ref):
    o_ref[...] = (jnp.dot(x_ref[...], w_ref[...], preferred_element_type=jnp.float32)
                  + b_ref[...])


def linear(x, w, b):
    m, n = x.shape[0], w.shape[1]
    return pl.pallas_call(
        _linear_kernel,
        out_shape=jax.ShapeDtypeStruct((m, n), jnp.float32),
        in_specs=[_vmem_spec()] * 3,
        out_specs=_vmem_spec(),
    )(x, w, b)


# ------------------------ vectorized GATv2Conv + BatchNorm1d ------------------------
def _gat_layer(h, eflat, adj3, mask3, wlr, blr, we, attblk, expand, bias,
               gamma, beta, *, n, heads, hc, apply_act):
    # fused lin_l / lin_r projection: one [N, 2*HC] matmul, then lane slices
    xlr = jnp.dot(h, wlr, preferred_element_type=jnp.float32) + blr          # [N, 2HC]
    xl = xlr[:, :hc]                                                         # source proj
    xr = xlr[:, hc:]                                                         # target proj

    # edge projection over all N*N dense edges in one matmul
    ep = jnp.dot(eflat, we, preferred_element_type=jnp.float32)              # [N*N, HC]
    s = ep.reshape(n, n, hc) + xl[None, :, :] + xr[:, None, :]               # [T, S, HC]
    s = jnp.where(s > 0, s, 0.2 * s)                                         # GATv2 leaky_relu

    # per-head attention logits: one [N*N, HC] @ [HC, H] matmul
    logits = jnp.dot(s.reshape(n * n, hc), attblk,
                     preferred_element_type=jnp.float32).reshape(n, n, heads)
    logits = logits + mask3                                                  # additive -1e30 mask

    # masked softmax over source axis (axis=1), per head
    m = jnp.max(logits, axis=1, keepdims=True)
    p = jnp.exp(logits - m) * adj3
    denom = jnp.sum(p, axis=1, keepdims=True)                                # >= 1 (self loops)
    alpha = p * pl.reciprocal(denom, approx=True)                            # [T, S, H]

    # attention-weighted aggregation of source features xl
    if heads == 1:
        msg = alpha * xl[None, :, :]                                         # [T, S, HC]
    else:
        aexp = jnp.dot(alpha.reshape(n * n, heads), expand,
                       preferred_element_type=jnp.float32).reshape(n, n, hc)
        msg = aexp * xl[None, :, :]
    out = jnp.sum(msg, axis=1) + bias                                        # [T, HC]
    # (concat / head-mean "post" matmul is identity for this config -> removed)

    # BatchNorm1d (training-mode batch statistics, eps = 1e-5)
    mean = jnp.mean(out, axis=0, keepdims=True)
    var = jnp.mean((out - mean) ** 2, axis=0, keepdims=True)
    out = (out - mean) * lax.rsqrt(var + 1e-5)
    out = out * gamma + beta
    if apply_act:
        out = jnp.where(out > 0, out, 0.01 * out)                            # F.leaky_relu
    return out


def _fused_forward_kernel(
        # node features
        aemb_ref, abits_ref, alw_ref, alb_ref,
        # graph structure / dense edge features
        adj_ref, eflat_ref,
        # layer 0 conv + norm params
        wlr0_ref, blr0_ref, we0_ref, att0_ref, exp0_ref, cb0_ref, g0_ref, be0_ref,
        # layer 1 conv + norm params
        wlr1_ref, blr1_ref, we1_ref, att1_ref, exp1_ref, cb1_ref, g1_ref, be1_ref,
        # pooling matrix + MLP head
        pool_ref, w1_ref, b1_ref, w2_ref, b2_ref, w3_ref, b3_ref, w4_ref, b4_ref,
        out_ref, *, n_nodes, heads0, heads1):
    n = n_nodes

    # node features = [embedding(atom id)  ||  linear(unpacked 56 bits)]
    hbits = jnp.dot(abits_ref[...], alw_ref[...],
                    preferred_element_type=jnp.float32) + alb_ref[...]
    h = jnp.concatenate([aemb_ref[...], hbits], axis=1)                      # [N, 32]

    adj = adj_ref[...]                                                       # [T, S]
    adj3 = adj[:, :, None]
    mask3 = (adj3 - 1.0) * 1e30                                              # 0 / -1e30, once
    eflat = eflat_ref[...]                                                   # [N*N, De]

    h = _gat_layer(h, eflat, adj3, mask3, wlr0_ref[...], blr0_ref[...], we0_ref[...],
                   att0_ref[...], exp0_ref[...], cb0_ref[...], g0_ref[...], be0_ref[...],
                   n=n, heads=heads0, hc=HIDDEN, apply_act=True)
    h = _gat_layer(h, eflat, adj3, mask3, wlr1_ref[...], blr1_ref[...], we1_ref[...],
                   att1_ref[...], exp1_ref[...], cb1_ref[...], g1_ref[...], be1_ref[...],
                   n=n, heads=heads1, hc=HIDDEN, apply_act=False)

    # global_mean_pool: count-normalized one-hot [G, N] @ h [N, 32]
    z = jnp.dot(pool_ref[...], h, preferred_element_type=jnp.float32)        # [G, 32]

    # MLP head: bf16 weights resident in VMEM, bf16 x bf16 MXU matmuls, f32 accumulate.
    # TODO(synk): training-mode Dropout(0.1) is stochastic; implemented as identity (eval).
    for w_ref, b_ref, act in ((w1_ref, b1_ref, True), (w2_ref, b2_ref, True),
                              (w3_ref, b3_ref, True), (w4_ref, b4_ref, False)):
        z = jnp.dot(z.astype(jnp.bfloat16), w_ref[...],
                    preferred_element_type=jnp.float32) + b_ref[...]
        if act:
            z = jnp.maximum(z, 0.0)
    out_ref[...] = z


def gatv2_forward_fused(params, aemb, abits, adj, eflat, pool_mat):
    n = aemb.shape[0]
    g = pool_mat.shape[0]
    c0, c1 = params["convs"]
    n0, n1 = params["norms"]
    args = (aemb, abits, params["atom_lin_w"], params["atom_lin_b"],
            adj, eflat,
            c0["wlr"], c0["blr"], c0["we"], c0["attblk"], c0["expand"],
            c0["bias"], n0["gamma"], n0["beta"],
            c1["wlr"], c1["blr"], c1["we"], c1["attblk"], c1["expand"],
            c1["bias"], n1["gamma"], n1["beta"],
            pool_mat)
    for w, b in params["mlp"]:
        args = args + (w, b)
    return pl.pallas_call(
        functools.partial(_fused_forward_kernel, n_nodes=n,
                          heads0=NUM_HEADS, heads1=1),
        out_shape=jax.ShapeDtypeStruct((g, NUM_CLASSES), jnp.float32),
        in_specs=[_vmem_spec()] * len(args),
        out_specs=_vmem_spec(),
        compiler_params=pltpu.CompilerParams(vmem_limit_bytes=32 * 1024 * 1024),
    )(*args)


# ----------------------------- parameter init (deterministic) -----------------------------
def glorot(key, shape):
    std = (2.0 / (shape[0] + shape[1])) ** 0.5
    return std * jax.random.normal(key, shape, jnp.float32)


def init_params(key):
    ks = iter(jax.random.split(key, 64))
    p = {}
    p["atom_emb"] = 0.1 * jax.random.normal(next(ks), (120, HIDDEN // 2), jnp.float32)
    p["atom_lin_w"] = glorot(next(ks), (56, HIDDEN // 2))
    p["atom_lin_b"] = jnp.zeros((1, HIDDEN // 2), jnp.float32)
    p["edge_emb"] = 0.1 * jax.random.normal(next(ks), (22, EDGE_DIM), jnp.float32)
    p["edge_lin_w"] = glorot(next(ks), (8, EDGE_DIM))
    p["edge_lin_b"] = jnp.zeros((1, EDGE_DIM), jnp.float32)

    de = 2 * EDGE_DIM
    p["convs"], p["norms"] = [], []
    for layer in range(NUM_LAYERS):
        if layer == 0:
            heads, c = NUM_HEADS, HIDDEN // NUM_HEADS
        else:
            heads, c = 1, HIDDEN
        hc = heads * c
        att = glorot(next(ks), (heads, c))
        attblk = jnp.zeros((hc, heads), jnp.float32)
        expand = jnp.zeros((heads, hc), jnp.float32)
        for h in range(heads):
            attblk = attblk.at[h * c:(h + 1) * c, h].set(att[h])
            expand = expand.at[h, h * c:(h + 1) * c].set(1.0)
        wl = glorot(next(ks), (HIDDEN, hc))
        wr = glorot(next(ks), (HIDDEN, hc))
        p["convs"].append(dict(
            wlr=jnp.concatenate([wl, wr], axis=1),           # fused lin_l || lin_r
            blr=jnp.zeros((1, 2 * hc), jnp.float32),
            we=glorot(next(ks), (de, hc)),
            attblk=attblk, expand=expand,
            bias=jnp.zeros((1, hc), jnp.float32)))
        p["norms"].append(dict(gamma=jnp.ones((1, HIDDEN), jnp.float32),
                               beta=jnp.zeros((1, HIDDEN), jnp.float32)))
    # MLP head weights in bf16 (weight-HBM-bandwidth bound at tiny batch); biases f32
    p["mlp"] = [
        (glorot(next(ks), (HIDDEN, 1024)).astype(jnp.bfloat16),
         jnp.zeros((1, 1024), jnp.float32)),
        (glorot(next(ks), (1024, 1024)).astype(jnp.bfloat16),
         jnp.zeros((1, 1024), jnp.float32)),
        (glorot(next(ks), (1024, 512)).astype(jnp.bfloat16),
         jnp.zeros((1, 512), jnp.float32)),
        (glorot(next(ks), (512, NUM_CLASSES)).astype(jnp.bfloat16),
         jnp.zeros((1, NUM_CLASSES), jnp.float32)),
    ]
    return p


# ----------------------------- forward (glue + kernels) -----------------------------
def unpackbits_u8(v):
    # np.unpackbits convention: MSB first, along last axis
    shifts = jnp.arange(7, -1, -1, dtype=v.dtype)
    bits = (v[..., None] >> shifts) & 1
    return bits.reshape(v.shape[:-1] + (v.shape[-1] * 8,))


@functools.partial(jax.jit, static_argnums=(5,))
def gat_forward(params, x, edge_index, edge_attr, batch, num_graphs):
    # plain-JAX glue: gathers, bit unpack, edge-list -> dense scatter (data-dependent)
    atom_bits = unpackbits_u8(x[:, 1:]).astype(jnp.float32)                  # [N, 56]
    aemb = jnp.take(params["atom_emb"], x[:, 0], axis=0)                     # [N, 16]

    edge_bits = unpackbits_u8(edge_attr[:, 1:]).astype(jnp.float32)          # [E, 8]
    ef = jnp.concatenate(
        [jnp.take(params["edge_emb"], edge_attr[:, 0], axis=0),
         linear(edge_bits, params["edge_lin_w"], params["edge_lin_b"])], axis=1)

    n = x.shape[0]
    src, tgt = edge_index[0], edge_index[1]
    de = ef.shape[1]
    # GATv2 self loops, fill_value="mean": per-target mean of incoming edge attrs
    deg = jnp.zeros((n, 1), jnp.float32).at[tgt].add(
        jnp.ones((src.shape[0], 1), jnp.float32))
    loop_attr = jnp.zeros((n, de), jnp.float32).at[tgt].add(ef) / jnp.maximum(deg, 1.0)
    # dense tensors, layout [target, source, ...]
    adj = jnp.zeros((n, n), jnp.float32).at[tgt, src].set(1.0)
    e_dense = jnp.zeros((n, n, de), jnp.float32).at[tgt, src].set(ef)
    diag = jnp.arange(n)
    adj = adj.at[diag, diag].set(1.0)
    e_dense = e_dense.at[diag, diag].set(loop_attr)
    eflat = e_dense.reshape(n * n, de)                                       # [N*N, De]

    # global_mean_pool matrix (count-normalized one-hot over graphs)
    onehot = (batch[None, :] == jnp.arange(num_graphs)[:, None]).astype(jnp.float32)
    pool_mat = onehot / jnp.maximum(onehot.sum(axis=1, keepdims=True), 1.0)

    # one fused Pallas kernel: 2x (GATv2Conv + BatchNorm) + pool + MLP head
    return gatv2_forward_fused(params, aemb, atom_bits, adj, eflat, pool_mat)


if __name__ == "__main__":
    key = jax.random.PRNGKey(0)
    pkey, dkey = jax.random.split(key)
    params = init_params(pkey)

    n_nodes, n_graphs = 16, 2
    k1, k2, k3, k4 = jax.random.split(dkey, 4)
    x = jnp.concatenate(
        [jax.random.randint(k1, (n_nodes, 1), 0, 120),
         jax.random.randint(k2, (n_nodes, 7), 0, 256)], axis=1).astype(jnp.int32)
    # bidirectional ring edges inside each of two 8-node graphs
    src_list, tgt_list = [], []
    for g in range(n_graphs):
        base = g * 8
        for i in range(8):
            a, b = base + i, base + (i + 1) % 8
            src_list += [a, b]
            tgt_list += [b, a]
    edge_index = jnp.array([src_list, tgt_list], dtype=jnp.int32)            # [2, E]
    n_edges = edge_index.shape[1]
    edge_attr = jnp.concatenate(
        [jax.random.randint(k3, (n_edges, 1), 0, 22),
         jax.random.randint(k4, (n_edges, 1), 0, 256)], axis=1).astype(jnp.int32)
    batch = jnp.repeat(jnp.arange(n_graphs, dtype=jnp.int32), 8)

    out = gat_forward(params, x, edge_index, edge_attr, batch, n_graphs)
    out = jax.block_until_ready(out)
    assert out.shape == (n_graphs, NUM_CLASSES)
    assert bool(jnp.all(jnp.isfinite(out)))
    print("KERNEL_OK")
</pallas_src>

<mosaic_0001>
module attributes {stable_mosaic.version = 11 : i64} {
  func.func private @main(%arg0: i32) attributes {dimension_semantics = [#tpu.dimension_semantics<core_parallel>], iteration_bounds = array<i64: 2>, tpu.core_type = #tpu.core_type<sc_scalar_subcore>, window_params = []} {
    return
  }
}

module attributes {stable_mosaic.version = 11 : i64} {
  func.func private @main(%arg0: i32) attributes {dimension_semantics = [#tpu.dimension_semantics<core_parallel>], iteration_bounds = array<i64: 2>, tpu.core_type = #tpu.core_type<sc_scalar_subcore>, window_params = []} {
    return
  }
}

module attributes {stable_mosaic.version = 11 : i64} {
  func.func @_linear_kernel(%arg0: memref<32x8xf32, #tpu.memory_space<vmem>>, %arg1: memref<8x8xf32, #tpu.memory_space<vmem>>, %arg2: memref<1x8xf32, #tpu.memory_space<vmem>>, %arg3: memref<32x8xf32, #tpu.memory_space<vmem>>) attributes {dimension_semantics = [], scalar_prefetch = 0 : i64, scratch_operands = 0 : i64, tpu.core_type = #tpu.core_type<tc>} {
    %c0 = arith.constant 0 : index
    %c0_0 = arith.constant 0 : index
    %0 = vector.load %arg0[%c0, %c0_0] : memref<32x8xf32, #tpu.memory_space<vmem>>, vector<32x8xf32>
    %c0_1 = arith.constant 0 : index
    %c0_2 = arith.constant 0 : index
    %1 = vector.load %arg1[%c0_1, %c0_2] : memref<8x8xf32, #tpu.memory_space<vmem>>, vector<8x8xf32>
    %cst = arith.constant dense<0.000000e+00> : vector<32x8xf32>
    %2 = tpu.matmul %0, %1, %cst {dimension_numbers = #tpu.dot_dimension_numbers<[1], [0], [0], [1], [0, 0, 1, 1], [], []>} : vector<32x8xf32>, vector<8x8xf32>, vector<32x8xf32> -> vector<32x8xf32>
    %c0_3 = arith.constant 0 : index
    %c0_4 = arith.constant 0 : index
    %3 = vector.load %arg2[%c0_3, %c0_4] : memref<1x8xf32, #tpu.memory_space<vmem>>, vector<1x8xf32>
    %4 = vector.broadcast %3 : vector<1x8xf32> to vector<32x8xf32>
    %5 = arith.addf %2, %4 : vector<32x8xf32>
    %c0_5 = arith.constant 0 : index
    %c0_6 = arith.constant 0 : index
    %6 = vector.load %arg3[%c0_5, %c0_6] : memref<32x8xf32, #tpu.memory_space<vmem>>, vector<32x8xf32>
    tpu.vector_store %arg3[%c0_5, %c0_6], %5 {strides = array<i32>} : memref<32x8xf32, #tpu.memory_space<vmem>>, vector<32x8xf32>,
    return
  }
}

module attributes {stable_mosaic.version = 11 : i64} {
  func.func @_fused_forward_kernel(%arg0: memref<16x16xf32, #tpu.memory_space<vmem>>, %arg1: memref<16x56xf32, #tpu.memory_space<vmem>>, %arg2: memref<56x16xf32, #tpu.memory_space<vmem>>, %arg3: memref<1x16xf32, #tpu.memory_space<vmem>>, %arg4: memref<16x16xf32, #tpu.memory_space<vmem>>, %arg5: memref<256x16xf32, #tpu.memory_space<vmem>>, %arg6: memref<32x64xf32, #tpu.memory_space<vmem>>, %arg7: memref<1x64xf32, #tpu.memory_space<vmem>>, %arg8: memref<16x32xf32, #tpu.memory_space<vmem>>, %arg9: memref<32x4xf32, #tpu.memory_space<vmem>>, %arg10: memref<4x32xf32, #tpu.memory_space<vmem>>, %arg11: memref<1x32xf32, #tpu.memory_space<vmem>>, %arg12: memref<1x32xf32, #tpu.memory_space<vmem>>, %arg13: memref<1x32xf32, #tpu.memory_space<vmem>>, %arg14: memref<32x64xf32, #tpu.memory_space<vmem>>, %arg15: memref<1x64xf32, #tpu.memory_space<vmem>>, %arg16: memref<16x32xf32, #tpu.memory_space<vmem>>, %arg17: memref<32x1xf32, #tpu.memory_space<vmem>>, %arg18: memref<1x32xf32, #tpu.memory_space<vmem>>, %arg19: memref<1x32xf32, #tpu.memory_space<vmem>>, %arg20: memref<1x32xf32, #tpu.memory_space<vmem>>, %arg21: memref<1x32xf32, #tpu.memory_space<vmem>>, %arg22: memref<2x16xf32, #tpu.memory_space<vmem>>, %arg23: memref<32x1024xbf16, #tpu.memory_space<vmem>>, %arg24: memref<1x1024xf32, #tpu.memory_space<vmem>>, %arg25: memref<1024x1024xbf16, #tpu.memory_space<vmem>>, %arg26: memref<1x1024xf32, #tpu.memory_space<vmem>>, %arg27: memref<1024x512xbf16, #tpu.memory_space<vmem>>, %arg28: memref<1x512xf32, #tpu.memory_space<vmem>>, %arg29: memref<512x3xbf16, #tpu.memory_space<vmem>>, %arg30: memref<1x3xf32, #tpu.memory_space<vmem>>, %arg31: memref<2x3xf32, #tpu.memory_space<vmem>>) attributes {dimension_semantics = [], scalar_prefetch = 0 : i64, scratch_operands = 0 : i64, tpu.core_type = #tpu.core_type<tc>} {
    %c0 = arith.constant 0 : index
    %c0_0 = arith.constant 0 : index
    %0 = vector.load %arg1[%c0, %c0_0] : memref<16x56xf32, #tpu.memory_space<vmem>>, vector<16x56xf32>
    %c0_1 = arith.constant 0 : index
    %c0_2 = arith.constant 0 : index
    %1 = vector.load %arg2[%c0_1, %c0_2] : memref<56x16xf32, #tpu.memory_space<vmem>>, vector<56x16xf32>
    %cst = arith.constant dense<0.000000e+00> : vector<16x16xf32>
    %2 = tpu.matmul %0, %1, %cst {dimension_numbers = #tpu.dot_dimension_numbers<[1], [0], [0], [1], [0, 0, 1, 1], [], []>} : vector<16x56xf32>, vector<56x16xf32>, vector<16x16xf32> -> vector<16x16xf32>
    %c0_3 = arith.constant 0 : index
    %c0_4 = arith.constant 0 : index
    %3 = vector.load %arg3[%c0_3, %c0_4] : memref<1x16xf32, #tpu.memory_space<vmem>>, vector<1x16xf32>
    %4 = vector.broadcast %3 : vector<1x16xf32> to vector<16x16xf32>
    %5 = arith.addf %2, %4 : vector<16x16xf32>
    %c0_5 = arith.constant 0 : index
    %c0_6 = arith.constant 0 : index
    %6 = vector.load %arg0[%c0_5, %c0_6] : memref<16x16xf32, #tpu.memory_space<vmem>>, vector<16x16xf32>
    %7 = tpu.concatenate %6, %5 in 1 : vector<16x16xf32>, vector<16x16xf32> -> vector<16x32xf32>
    %c0_7 = arith.constant 0 : index
    %c0_8 = arith.constant 0 : index
    %8 = vector.load %arg4[%c0_7, %c0_8] : memref<16x16xf32, #tpu.memory_space<vmem>>, vector<16x16xf32>
    %9 = vector.shape_cast %8 : vector<16x16xf32> to vector<16x16x1xf32>
    %cst_9 = arith.constant 1.000000e+00 : f32
    %10 = vector.broadcast %cst_9 : f32 to vector<16x16x1xf32>
    %11 = arith.subf %9, %10 : vector<16x16x1xf32>
    %cst_10 = arith.constant 1.000000e+30 : f32
    %12 = vector.broadcast %cst_10 : f32 to vector<16x16x1xf32>
    %13 = arith.mulf %11, %12 : vector<16x16x1xf32>
    %c0_11 = arith.constant 0 : index
    %c0_12 = arith.constant 0 : index
    %14 = vector.load %arg5[%c0_11, %c0_12] : memref<256x16xf32, #tpu.memory_space<vmem>>, vector<256x16xf32>
    %c0_13 = arith.constant 0 : index
    %c0_14 = arith.constant 0 : index
    %15 = vector.load %arg6[%c0_13, %c0_14] : memref<32x64xf32, #tpu.memory_space<vmem>>, vector<32x64xf32>
    %c0_15 = arith.constant 0 : index
    %c0_16 = arith.constant 0 : index
    %16 = vector.load %arg7[%c0_15, %c0_16] : memref<1x64xf32, #tpu.memory_space<vmem>>, vector<1x64xf32>
    %c0_17 = arith.constant 0 : index
    %c0_18 = arith.constant 0 : index
    %17 = vector.load %arg8[%c0_17, %c0_18] : memref<16x32xf32, #tpu.memory_space<vmem>>, vector<16x32xf32>
    %c0_19 = arith.constant 0 : index
    %c0_20 = arith.constant 0 : index
    %18 = vector.load %arg9[%c0_19, %c0_20] : memref<32x4xf32, #tpu.memory_space<vmem>>, vector<32x4xf32>
    %c0_21 = arith.constant 0 : index
    %c0_22 = arith.constant 0 : index
    %19 = vector.load %arg10[%c0_21, %c0_22] : memref<4x32xf32, #tpu.memory_space<vmem>>, vector<4x32xf32>
    %c0_23 = arith.constant 0 : index
    %c0_24 = arith.constant 0 : index
    %20 = vector.load %arg11[%c0_23, %c0_24] : memref<1x32xf32, #tpu.memory_space<vmem>>, vector<1x32xf32>
    %c0_25 = arith.constant 0 : index
    %c0_26 = arith.constant 0 : index
    %21 = vector.load %arg12[%c0_25, %c0_26] : memref<1x32xf32, #tpu.memory_space<vmem>>, vector<1x32xf32>
    %c0_27 = arith.constant 0 : index
    %c0_28 = arith.constant 0 : index
    %22 = vector.load %arg13[%c0_27, %c0_28] : memref<1x32xf32, #tpu.memory_space<vmem>>, vector<1x32xf32>
    %cst_29 = arith.constant dense<0.000000e+00> : vector<16x64xf32>
    %23 = tpu.matmul %7, %15, %cst_29 {dimension_numbers = #tpu.dot_dimension_numbers<[1], [0], [0], [1], [0, 0, 1, 1], [], []>} : vector<16x32xf32>, vector<32x64xf32>, vector<16x64xf32> -> vector<16x64xf32>
    %24 = vector.broadcast %16 : vector<1x64xf32> to vector<16x64xf32>
    %25 = arith.addf %23, %24 : vector<16x64xf32>
    %26 = vector.extract_strided_slice %25 {offsets = [0, 0], sizes = [16, 32], strides = [1, 1]} : vector<16x64xf32> to vector<16x32xf32>
    %27 = vector.extract_strided_slice %25 {offsets = [0, 32], sizes = [16, 32], strides = [1, 1]} : vector<16x64xf32> to vector<16x32xf32>
    %cst_30 = arith.constant dense<0.000000e+00> : vector<256x32xf32>
    %28 = tpu.matmul %14, %17, %cst_30 {dimension_numbers = #tpu.dot_dimension_numbers<[1], [0], [0], [1], [0, 0, 1, 1], [], []>} : vector<256x16xf32>, vector<16x32xf32>, vector<256x32xf32> -> vector<256x32xf32>
    %29 = vector.shape_cast %28 : vector<256x32xf32> to vector<16x16x32xf32>
    %30 = vector.shape_cast %26 : vector<16x32xf32> to vector<1x16x32xf32>
    %31 = vector.broadcast %30 : vector<1x16x32xf32> to vector<16x16x32xf32>
    %32 = arith.addf %29, %31 : vector<16x16x32xf32>
    %33 = vector.shape_cast %27 : vector<16x32xf32> to vector<16x1x32xf32>
    %34 = vector.broadcast %33 : vector<16x1x32xf32> to vector<16x16x32xf32>
    %35 = arith.addf %32, %34 : vector<16x16x32xf32>
    %cst_31 = arith.constant 0.000000e+00 : f32
    %36 = vector.broadcast %cst_31 : f32 to vector<16x16x32xf32>
    %37 = arith.cmpf ogt, %35, %36 : vector<16x16x32xf32>
    %cst_32 = arith.constant 2.000000e-01 : f32
    %38 = vector.broadcast %cst_32 : f32 to vector<16x16x32xf32>
    %39 = arith.mulf %38, %35 : vector<16x16x32xf32>
    %40 = arith.select %37, %35, %39 : vector<16x16x32xi1>, vector<16x16x32xf32>
    %41 = vector.shape_cast %40 : vector<16x16x32xf32> to vector<256x32xf32>
    %cst_33 = arith.constant dense<0.000000e+00> : vector<256x4xf32>
    %42 = tpu.matmul %41, %18, %cst_33 {dimension_numbers = #tpu.dot_dimension_numbers<[1], [0], [0], [1], [0, 0, 1, 1], [], []>} : vector<256x32xf32>, vector<32x4xf32>, vector<256x4xf32> -> vector<256x4xf32>
    %43 = vector.shape_cast %42 : vector<256x4xf32> to vector<16x16x4xf32>
    %44 = vector.broadcast %13 : vector<16x16x1xf32> to vector<16x16x4xf32>
    %45 = arith.addf %43, %44 : vector<16x16x4xf32>
    %cst_34 = arith.constant dense<0xFF800000> : vector<16x4xf32>
    %46 = vector.multi_reduction <maximumf>, %45, %cst_34 [1] : vector<16x16x4xf32> to vector<16x4xf32>
    %47 = vector.shape_cast %46 : vector<16x4xf32> to vector<16x1x4xf32>
    %48 = vector.broadcast %47 : vector<16x1x4xf32> to vector<16x16x4xf32>
    %49 = arith.subf %45, %48 : vector<16x16x4xf32>
    %50 = math.exp %49 : vector<16x16x4xf32>
    %51 = vector.broadcast %9 : vector<16x16x1xf32> to vector<16x16x4xf32>
    %52 = arith.mulf %50, %51 : vector<16x16x4xf32>
    %cst_35 = arith.constant dense<0.000000e+00> : vector<16x4xf32>
    %53 = vector.multi_reduction <add>, %52, %cst_35 [1] : vector<16x16x4xf32> to vector<16x4xf32>
    %54 = vector.shape_cast %53 : vector<16x4xf32> to vector<16x1x4xf32>
    %55 = tpu.reciprocal %54 {approx = true} : vector<16x1x4xf32> -> vector<16x1x4xf32>
    %56 = vector.broadcast %55 : vector<16x1x4xf32> to vector<16x16x4xf32>
    %57 = arith.mulf %52, %56 : vector<16x16x4xf32>
    %58 = vector.shape_cast %57 : vector<16x16x4xf32> to vector<256x4xf32>
    %cst_36 = arith.constant dense<0.000000e+00> : vector<256x32xf32>
    %59 = tpu.matmul %58, %19, %cst_36 {dimension_numbers = #tpu.dot_dimension_numbers<[1], [0], [0], [1], [0, 0, 1, 1], [], []>} : vector<256x4xf32>, vector<4x32xf32>, vector<256x32xf32> -> vector<256x32xf32>
    %60 = vector.shape_cast %59 : vector<256x32xf32> to vector<16x16x32xf32>
    %61 = vector.shape_cast %26 : vector<16x32xf32> to vector<1x16x32xf32>
    %62 = vector.broadcast %61 : vector<1x16x32xf32> to vector<16x16x32xf32>
    %63 = arith.mulf %60, %62 : vector<16x16x32xf32>
    %cst_37 = arith.constant dense<0.000000e+00> : vector<16x32xf32>
    %64 = vector.multi_reduction <add>, %63, %cst_37 [1] : vector<16x16x32xf32> to vector<16x32xf32>
    %65 = vector.broadcast %20 : vector<1x32xf32> to vector<16x32xf32>
    %66 = arith.addf %64, %65 : vector<16x32xf32>
    %cst_38 = arith.constant dense<0.000000e+00> : vector<32xf32>
    %67 = vector.multi_reduction <add>, %66, %cst_38 [0] : vector<16x32xf32> to vector<32xf32>
    %68 = vector.shape_cast %67 : vector<32xf32> to vector<1x32xf32>
    %cst_39 = arith.constant 1.600000e+01 : f32
    %69 = vector.broadcast %cst_39 : f32 to vector<1x32xf32>
    %70 = arith.divf %68, %69 : vector<1x32xf32>
    %71 = vector.broadcast %70 : vector<1x32xf32> to vector<16x32xf32>
    %72 = arith.subf %66, %71 : vector<16x32xf32>
    %73 = arith.mulf %72, %72 : vector<16x32xf32>
    %cst_40 = arith.constant dense<0.000000e+00> : vector<32xf32>
    %74 = vector.multi_reduction <add>, %73, %cst_40 [0] : vector<16x32xf32> to vector<32xf32>
    %75 = vector.shape_cast %74 : vector<32xf32> to vector<1x32xf32>
    %cst_41 = arith.constant 1.600000e+01 : f32
    %76 = vector.broadcast %cst_41 : f32 to vector<1x32xf32>
    %77 = arith.divf %75, %76 : vector<1x32xf32>
    %78 = vector.broadcast %70 : vector<1x32xf32> to vector<16x32xf32>
    %79 = arith.subf %66, %78 : vector<16x32xf32>
    %cst_42 = arith.constant 9.99999974E-6 : f32
    %80 = vector.broadcast %cst_42 : f32 to vector<1x32xf32>
    %81 = arith.addf %77, %80 : vector<1x32xf32>
    %82 = math.rsqrt %81 : vector<1x32xf32>
    %83 = vector.broadcast %82 : vector<1x32xf32> to vector<16x32xf32>
    %84 = arith.mulf %79, %83 : vector<16x32xf32>
    %85 = vector.broadcast %21 : vector<1x32xf32> to vector<16x32xf32>
    %86 = arith.mulf %84, %85 : vector<16x32xf32>
    %87 = vector.broadcast %22 : vector<1x32xf32> to vector<16x32xf32>
    %88 = arith.addf %86, %87 : vector<16x32xf32>
    %cst_43 = arith.constant 0.000000e+00 : f32
    %89 = vector.broadcast %cst_43 : f32 to vector<16x32xf32>
    %90 = arith.cmpf ogt, %88, %89 : vector<16x32xf32>
    %cst_44 = arith.constant 0.00999999977 : f32
    %91 = vector.broadcast %cst_44 : f32 to vector<16x32xf32>
    %92 = arith.mulf %91, %88 : vector<16x32xf32>
    %93 = arith.select %90, %88, %92 : vector<16x32xi1>, vector<16x32xf32>
    %c0_45 = arith.constant 0 : index
    %c0_46 = arith.constant 0 : index
    %94 = vector.load %arg14[%c0_45, %c0_46] : memref<32x64xf32, #tpu.memory_space<vmem>>, vector<32x64xf32>
    %c0_47 = arith.constant 0 : index
    %c0_48 = arith.constant 0 : index
    %95 = vector.load %arg15[%c0_47, %c0_48] : memref<1x64xf32, #tpu.memory_space<vmem>>, vector<1x64xf32>
    %c0_49 = arith.constant 0 : index
    %c0_50 = arith.constant 0 : index
    %96 = vector.load %arg16[%c0_49, %c0_50] : memref<16x32xf32, #tpu.memory_space<vmem>>, vector<16x32xf32>
    %c0_51 = arith.constant 0 : index
    %c0_52 = arith.constant 0 : index
    %97 = vector.load %arg17[%c0_51, %c0_52] : memref<32x1xf32, #tpu.memory_space<vmem>>, vector<32x1xf32>
    %c0_53 = arith.constant 0 : index
    %c0_54 = arith.constant 0 : index
    %98 = vector.load %arg19[%c0_53, %c0_54] : memref<1x32xf32, #tpu.memory_space<vmem>>, vector<1x32xf32>
    %c0_55 = arith.constant 0 : index
    %c0_56 = arith.constant 0 : index
    %99 = vector.load %arg20[%c0_55, %c0_56] : memref<1x32xf32, #tpu.memory_space<vmem>>, vector<1x32xf32>
    %c0_57 = arith.constant 0 : index
    %c0_58 = arith.constant 0 : index
    %100 = vector.load %arg21[%c0_57, %c0_58] : memref<1x32xf32, #tpu.memory_space<vmem>>, vector<1x32xf32>
    %cst_59 = arith.constant dense<0.000000e+00> : vector<16x64xf32>
    %101 = tpu.matmul %93, %94, %cst_59 {dimension_numbers = #tpu.dot_dimension_numbers<[1], [0], [0], [1], [0, 0, 1, 1], [], []>} : vector<16x32xf32>, vector<32x64xf32>, vector<16x64xf32> -> vector<16x64xf32>
    %102 = vector.broadcast %95 : vector<1x64xf32> to vector<16x64xf32>
    %103 = arith.addf %101, %102 : vector<16x64xf32>
    %104 = vector.extract_strided_slice %103 {offsets = [0, 0], sizes = [16, 32], strides = [1, 1]} : vector<16x64xf32> to vector<16x32xf32>
    %105 = vector.extract_strided_slice %103 {offsets = [0, 32], sizes = [16, 32], strides = [1, 1]} : vector<16x64xf32> to vector<16x32xf32>
    %cst_60 = arith.constant dense<0.000000e+00> : vector<256x32xf32>
    %106 = tpu.matmul %14, %96, %cst_60 {dimension_numbers = #tpu.dot_dimension_numbers<[1], [0], [0], [1], [0, 0, 1, 1], [], []>} : vector<256x16xf32>, vector<16x32xf32>, vector<256x32xf32> -> vector<256x32xf32>
    %107 = vector.shape_cast %106 : vector<256x32xf32> to vector<16x16x32xf32>
    %108 = vector.shape_cast %104 : vector<16x32xf32> to vector<1x16x32xf32>
    %109 = vector.broadcast %108 : vector<1x16x32xf32> to vector<16x16x32xf32>
    %110 = arith.addf %107, %109 : vector<16x16x32xf32>
    %111 = vector.shape_cast %105 : vector<16x32xf32> to vector<16x1x32xf32>
    %112 = vector.broadcast %111 : vector<16x1x32xf32> to vector<16x16x32xf32>
    %113 = arith.addf %110, %112 : vector<16x16x32xf32>
    %cst_61 = arith.constant 0.000000e+00 : f32
    %114 = vector.broadcast %cst_61 : f32 to vector<16x16x32xf32>
    %115 = arith.cmpf ogt, %113, %114 : vector<16x16x32xf32>
    %cst_62 = arith.constant 2.000000e-01 : f32
    %116 = vector.broadcast %cst_62 : f32 to vector<16x16x32xf32>
    %117 = arith.mulf %116, %113 : vector<16x16x32xf32>
    %118 = arith.select %115, %113, %117 : vector<16x16x32xi1>, vector<16x16x32xf32>
    %119 = vector.shape_cast %118 : vector<16x16x32xf32> to vector<256x32xf32>
    %cst_63 = arith.constant dense<0.000000e+00> : vector<256x1xf32>
    %120 = tpu.matmul %119, %97, %cst_63 {dimension_numbers = #tpu.dot_dimension_numbers<[1], [0], [0], [1], [0, 0, 1, 1], [], []>} : vector<256x32xf32>, vector<32x1xf32>, vector<256x1xf32> -> vector<256x1xf32>
    %121 = vector.shape_cast %120 : vector<256x1xf32> to vector<16x16x1xf32>
    %122 = arith.addf %121, %13 : vector<16x16x1xf32>
    %cst_64 = arith.constant dense<0xFF800000> : vector<16x1xf32>
    %123 = vector.multi_reduction <maximumf>, %122, %cst_64 [1] : vector<16x16x1xf32> to vector<16x1xf32>
    %124 = vector.shape_cast %123 : vector<16x1xf32> to vector<16x1x1xf32>
    %125 = vector.broadcast %124 : vector<16x1x1xf32> to vector<16x16x1xf32>
    %126 = arith.subf %122, %125 : vector<16x16x1xf32>
    %127 = math.exp %126 : vector<16x16x1xf32>
    %128 = arith.mulf %127, %9 : vector<16x16x1xf32>
    %cst_65 = arith.constant dense<0.000000e+00> : vector<16x1xf32>
    %129 = vector.multi_reduction <add>, %128, %cst_65 [1] : vector<16x16x1xf32> to vector<16x1xf32>
    %130 = vector.shape_cast %129 : vector<16x1xf32> to vector<16x1x1xf32>
    %131 = tpu.reciprocal %130 {approx = true} : vector<16x1x1xf32> -> vector<16x1x1xf32>
    %132 = vector.broadcast %131 : vector<16x1x1xf32> to vector<16x16x1xf32>
    %133 = arith.mulf %128, %132 : vector<16x16x1xf32>
    %134 = vector.shape_cast %104 : vector<16x32xf32> to vector<1x16x32xf32>
    %135 = vector.broadcast %133 : vector<16x16x1xf32> to vector<16x16x32xf32>
    %136 = vector.broadcast %134 : vector<1x16x32xf32> to vector<16x16x32xf32>
    %137 = arith.mulf %135, %136 : vector<16x16x32xf32>
    %cst_66 = arith.constant dense<0.000000e+00> : vector<16x32xf32>
    %138 = vector.multi_reduction <add>, %137, %cst_66 [1] : vector<16x16x32xf32> to vector<16x32xf32>
    %139 = vector.broadcast %98 : vector<1x32xf32> to vector<16x32xf32>
    %140 = arith.addf %138, %139 : vector<16x32xf32>
    %cst_67 = arith.constant dense<0.000000e+00> : vector<32xf32>
    %141 = vector.multi_reduction <add>, %140, %cst_67 [0] : vector<16x32xf32> to vector<32xf32>
    %142 = vector.shape_cast %141 : vector<32xf32> to vector<1x32xf32>
    %cst_68 = arith.constant 1.600000e+01 : f32
    %143 = vector.broadcast %cst_68 : f32 to vector<1x32xf32>
    %144 = arith.divf %142, %143 : vector<1x32xf32>
    %145 = vector.broadcast %144 : vector<1x32xf32> to vector<16x32xf32>
    %146 = arith.subf %140, %145 : vector<16x32xf32>
    %147 = arith.mulf %146, %146 : vector<16x32xf32>
    %cst_69 = arith.constant dense<0.000000e+00> : vector<32xf32>
    %148 = vector.multi_reduction <add>, %147, %cst_69 [0] : vector<16x32xf32> to vector<32xf32>
    %149 = vector.shape_cast %148 : vector<32xf32> to vector<1x32xf32>
    %cst_70 = arith.constant 1.600000e+01 : f32
    %150 = vector.broadcast %cst_70 : f32 to vector<1x32xf32>
    %151 = arith.divf %149, %150 : vector<1x32xf32>
    %152 = vector.broadcast %144 : vector<1x32xf32> to vector<16x32xf32>
    %153 = arith.subf %140, %152 : vector<16x32xf32>
    %cst_71 = arith.constant 9.99999974E-6 : f32
    %154 = vector.broadcast %cst_71 : f32 to vector<1x32xf32>
    %155 = arith.addf %151, %154 : vector<1x32xf32>
    %156 = math.rsqrt %155 : vector<1x32xf32>
    %157 = vector.broadcast %156 : vector<1x32xf32> to vector<16x32xf32>
    %158 = arith.mulf %153, %157 : vector<16x32xf32>
    %159 = vector.broadcast %99 : vector<1x32xf32> to vector<16x32xf32>
    %160 = arith.mulf %158, %159 : vector<16x32xf32>
    %161 = vector.broadcast %100 : vector<1x32xf32> to vector<16x32xf32>
    %162 = arith.addf %160, %161 : vector<16x32xf32>
    %c0_72 = arith.constant 0 : index
    %c0_73 = arith.constant 0 : index
    %163 = vector.load %arg22[%c0_72, %c0_73] : memref<2x16xf32, #tpu.memory_space<vmem>>, vector<2x16xf32>
    %cst_74 = arith.constant dense<0.000000e+00> : vector<2x32xf32>
    %164 = tpu.matmul %163, %162, %cst_74 {dimension_numbers = #tpu.dot_dimension_numbers<[1], [0], [0], [1], [0, 0, 1, 1], [], []>} : vector<2x16xf32>, vector<16x32xf32>, vector<2x32xf32> -> vector<2x32xf32>
    %165 = arith.truncf %164 : vector<2x32xf32> to vector<2x32xbf16>
    %c0_75 = arith.constant 0 : index
    %c0_76 = arith.constant 0 : index
    %166 = vector.load %arg23[%c0_75, %c0_76] : memref<32x1024xbf16, #tpu.memory_space<vmem>>, vector<32x1024xbf16>
    %cst_77 = arith.constant dense<0.000000e+00> : vector<2x1024xf32>
    %167 = tpu.matmul %165, %166, %cst_77 {dimension_numbers = #tpu.dot_dimension_numbers<[1], [0], [0], [1], [0, 0, 1, 1], [], []>} : vector<2x32xbf16>, vector<32x1024xbf16>, vector<2x1024xf32> -> vector<2x1024xf32>
    %c0_78 = arith.constant 0 : index
    %c0_79 = arith.constant 0 : index
    %168 = vector.load %arg24[%c0_78, %c0_79] : memref<1x1024xf32, #tpu.memory_space<vmem>>, vector<1x1024xf32>
    %169 = vector.broadcast %168 : vector<1x1024xf32> to vector<2x1024xf32>
    %170 = arith.addf %167, %169 : vector<2x1024xf32>
    %cst_80 = arith.constant 0.000000e+00 : f32
    %171 = vector.broadcast %cst_80 : f32 to vector<2x1024xf32>
    %172 = arith.maximumf %170, %171 : vector<2x1024xf32>
    %173 = arith.truncf %172 : vector<2x1024xf32> to vector<2x1024xbf16>
    %c0_81 = arith.constant 0 : index
    %c0_82 = arith.constant 0 : index
    %174 = vector.load %arg25[%c0_81, %c0_82] : memref<1024x1024xbf16, #tpu.memory_space<vmem>>, vector<1024x1024xbf16>
    %cst_83 = arith.constant dense<0.000000e+00> : vector<2x1024xf32>
    %175 = tpu.matmul %173, %174, %cst_83 {dimension_numbers = #tpu.dot_dimension_numbers<[1], [0], [0], [1], [0, 0, 1, 1], [], []>} : vector<2x1024xbf16>, vector<1024x1024xbf16>, vector<2x1024xf32> -> vector<2x1024xf32>
    %c0_84 = arith.constant 0 : index
    %c0_85 = arith.constant 0 : index
    %176 = vector.load %arg26[%c0_84, %c0_85] : memref<1x1024xf32, #tpu.memory_space<vmem>>, vector<1x1024xf32>
    %177 = vector.broadcast %176 : vector<1x1024xf32> to vector<2x1024xf32>
    %178 = arith.addf %175, %177 : vector<2x1024xf32>
    %cst_86 = arith.constant 0.000000e+00 : f32
    %179 = vector.broadcast %cst_86 : f32 to vector<2x1024xf32>
    %180 = arith.maximumf %178, %179 : vector<2x1024xf32>
    %181 = arith.truncf %180 : vector<2x1024xf32> to vector<2x1024xbf16>
    %c0_87 = arith.constant 0 : index
    %c0_88 = arith.constant 0 : index
    %182 = vector.load %arg27[%c0_87, %c0_88] : memref<1024x512xbf16, #tpu.memory_space<vmem>>, vector<1024x512xbf16>
    %cst_89 = arith.constant dense<0.000000e+00> : vector<2x512xf32>
    %183 = tpu.matmul %181, %182, %cst_89 {dimension_numbers = #tpu.dot_dimension_numbers<[1], [0], [0], [1], [0, 0, 1, 1], [], []>} : vector<2x1024xbf16>, vector<1024x512xbf16>, vector<2x512xf32> -> vector<2x512xf32>
    %c0_90 = arith.constant 0 : index
    %c0_91 = arith.constant 0 : index
    %184 = vector.load %arg28[%c0_90, %c0_91] : memref<1x512xf32, #tpu.memory_space<vmem>>, vector<1x512xf32>
    %185 = vector.broadcast %184 : vector<1x512xf32> to vector<2x512xf32>
    %186 = arith.addf %183, %185 : vector<2x512xf32>
    %cst_92 = arith.constant 0.000000e+00 : f32
    %187 = vector.broadcast %cst_92 : f32 to vector<2x512xf32>
    %188 = arith.maximumf %186, %187 : vector<2x512xf32>
    %189 = arith.truncf %188 : vector<2x512xf32> to vector<2x512xbf16>
    %c0_93 = arith.constant 0 : index
    %c0_94 = arith.constant 0 : index
    %190 = vector.load %arg29[%c0_93, %c0_94] : memref<512x3xbf16, #tpu.memory_space<vmem>>, vector<512x3xbf16>
    %cst_95 = arith.constant dense<0.000000e+00> : vector<2x3xf32>
    %191 = tpu.matmul %189, %190, %cst_95 {dimension_numbers = #tpu.dot_dimension_numbers<[1], [0], [0], [1], [0, 0, 1, 1], [], []>} : vector<2x512xbf16>, vector<512x3xbf16>, vector<2x3xf32> -> vector<2x3xf32>
    %c0_96 = arith.constant 0 : index
    %c0_97 = arith.constant 0 : index
    %192 = vector.load %arg30[%c0_96, %c0_97] : memref<1x3xf32, #tpu.memory_space<vmem>>, vector<1x3xf32>
    %193 = vector.broadcast %192 : vector<1x3xf32> to vector<2x3xf32>
    %194 = arith.addf %191, %193 : vector<2x3xf32>
    %c0_98 = arith.constant 0 : index
    %c0_99 = arith.constant 0 : index
    %195 = vector.load %arg31[%c0_98, %c0_99] : memref<2x3xf32, #tpu.memory_space<vmem>>, vector<2x3xf32>
    tpu.vector_store %arg31[%c0_98, %c0_99], %194 {strides = array<i32>} : memref<2x3xf32, #tpu.memory_space<vmem>>, vector<2x3xf32>,
    return
  }
}

</mosaic_0001>

<llo_original>
// kernel: gat_forward.2
$region0: #{gat_forward.2}
  #allocation0 [shape = 'u32[]', space=smem, size = 0x4, offset = 0x4, fixed_abs, tag = 'smem constant byte address 0x4 - core index']
  #allocation1 [shape = 'u32[144,128]{1,0:T(1,128)}', space=vmem, size = 0x12000, scoped, tag = 'internal scratch']
  %s0 = inlined_call_operand.vmem [shape: f32[32,8], index: 0, kind: input, shape index: {}]
  %s1 = inlined_call_operand.hbm [shape: f32[8,8], index: 1, kind: input, shape index: {}]
  %s2 = inlined_call_operand.hbm [shape: f32[1,8], index: 2, kind: input, shape index: {}]
  %s3 = inlined_call_operand.vmem [shape: f32[32,8], index: 3, kind: output, shape index: {}]
  %s4 = sld [smem:[#allocation0]]
  $region30: #{gat_forward.2} parent=0
    _
  %s6 = ssub.s32 1, %s4
  %s7 = scalar_select 0, %s6, %s4
  $region1: #{gat_forward.2} parent=0
    #allocation2 [shape = 'u8[4096]{0}', space=vmem, size = 0x1000, scoped, tag = 'input window, operand 1, single buffered']
    #allocation3 [shape = 's32[1]{0}', space=sflag, size = 0x4, scoped, tag = 'scoped memory for gat_forward.2']
    #allocation4 [shape = 'u8[512]{0}', space=vmem, size = 0x400, scoped, tag = 'input window, operand 2, single buffered']
    #allocation5 [shape = 's32[1]{0}', space=sflag, size = 0x4, scoped, tag = 'scoped memory for gat_forward.2']
    %8 = vsyncpa [#allocation3], 0
    %9 = vsyncpa [#allocation5], 0
    // Predicated region
    $region2: #{gat_forward.2} parent=1 // pred_check
      _
    $region3: #{gat_forward.2} parent=1 // pred_check_branch
      %11 = sbr.rel (0) target = $region5
    $region4: #{gat_forward.2} parent=1 // pred_region
      _
    $region5: #{gat_forward.2} parent=1 // pred_fallthru
      _
    // Predicated region
    $region6: #{gat_forward.2} parent=1 // pred_check
      _
    $region7: #{gat_forward.2} parent=1 // pred_check_branch
      %13 = sbr.rel (0) target = $region9
    $region8: #{gat_forward.2} parent=1 // pred_region
      %s15 = ssub.s32 128, 128
      %16 = vsyncadd [#allocation3], %s15
      %s18 = sshll.u32 [#allocation2], 4
      %s19 = int_to_ptr.vmem [resolvable:$true] %s18
      %21 = dma.hbm_to_vmem [thread:$0]  %s1, 128, %s19, [#allocation3]
    $region9: #{gat_forward.2} parent=1 // pred_fallthru
      _
    // Predicated region
    $region10: #{gat_forward.2} parent=1 // pred_check
      _
    $region11: #{gat_forward.2} parent=1 // pred_check_branch
      %23 = sbr.rel (0) target = $region13
    $region12: #{gat_forward.2} parent=1 // pred_region
      %s25 = ssub.s32 16, 16
      %26 = vsyncadd [#allocation5], %s25
      %s28 = sshll.u32 [#allocation4], 4
      %s29 = int_to_ptr.vmem [resolvable:$true] %s28
      %31 = dma.hbm_to_vmem [thread:$0]  %s2, 16, %s29, [#allocation5]
    $region13: #{gat_forward.2} parent=1 // pred_fallthru
      _
    // Predicated region
    $region14: #{gat_forward.2} parent=1 // pred_check
      _
    $region15: #{gat_forward.2} parent=1 // pred_check_branch
      %33 = sbr.rel (0) target = $region17
    $region16: #{gat_forward.2} parent=1 // pred_region
      %34 = dma.done [#allocation3], 128
    $region17: #{gat_forward.2} parent=1 // pred_fallthru
      _
    // Predicated region
    $region18: #{gat_forward.2} parent=1 // pred_check
      _
    $region19: #{gat_forward.2} parent=1 // pred_check_branch
      %36 = sbr.rel (0) target = $region21
    $region20: #{gat_forward.2} parent=1 // pred_region
      %37 = dma.done [#allocation5], 16
    $region21: #{gat_forward.2} parent=1 // pred_fallthru
      _
    %v38 = vld [vmem:[%s0] sm:$0xff]
    %v39 = vld [vmem:[%s0 + $0x8] sm:$0xff]
    %v40 = vld [vmem:[%s0 + $0x10] sm:$0xff]
    %v41 = vld [vmem:[%s0 + $0x18] sm:$0xff]
    %v42 = vld [vmem:[#allocation2] sm:$0xff]
    %v43 = vld [vmem:[#allocation4] sm:$0x1]
    %v45 = vlaneseq
    %v46 = vshrl.u32 %v45, 7
    %v47 = vsub.s32 0, %v46
    %v48 = vrot.slane %v43, %v47
    %vm50 = vcmask 64512
    %v52 = vsel %vm50, %v38, 0
    %v55 = vsel %vm50, %v39, 0
    %v58 = vsel %vm50, %v40, 0
    %v61 = vsel %vm50, %v41, 0
    %63 = vmatprep.subr.mxu0 0.0
    %64 = vmatpush1.msra.mxu0 %v42
    %65 = vmatprep.subr.mxu0 0.0
    %66 = vmatpush1.msra.mxu0 0.0
    %67 = vmatprep.subr.mxu0 0.0
    %68 = vmatpush1.msra.mxu0 0.0
    %69 = vmatprep.subr.mxu0 0.0
    %70 = vmatpush1.msra.mxu0 0.0
    %71 = vmatprep.subr.mxu0 0.0
    %72 = vmatpush1.msra.mxu0 0.0
    %73 = vmatprep.subr.mxu0 0.0
    %74 = vmatpush1.msra.mxu0 0.0
    %75 = vmatprep.subr.mxu0 0.0
    %76 = vmatpush1.msra.mxu0 0.0
    %77 = vmatprep.subr.mxu0 0.0
    %78 = vmatpush1.msra.mxu0 0.0
    %79 = vmatprep.subr.mxu0 0.0
    %80 = vmatpush1.msra.mxu0 0.0
    %81 = vmatprep.subr.mxu0 0.0
    %82 = vmatpush1.msra.mxu0 0.0
    %83 = vmatprep.subr.mxu0 0.0
    %84 = vmatpush1.msra.mxu0 0.0
    %85 = vmatprep.subr.mxu0 0.0
    %86 = vmatpush1.msra.mxu0 0.0
    %87 = vmatprep.subr.mxu0 0.0
    %88 = vmatpush1.msra.mxu0 0.0
    %89 = vmatprep.subr.mxu0 0.0
    %90 = vmatpush1.msra.mxu0 0.0
    %91 = vmatprep.subr.mxu0 0.0
    %92 = vmatpush1.msra.mxu0 0.0
    %93 = vmatprep.subr.mxu0 0.0
    %94 = vmatpush1.msra.mxu0 0.0
    %95 = vmatprep.subr.mxu0 0.0
    %96 = vmatpush1.msra.mxu0 0.0
    %97 = vmatprep.subr.mxu0 0.0
    %98 = vmatpush1.msra.mxu0 0.0
    %99 = vmatprep.subr.mxu0 0.0
    %100 = vmatpush1.msra.mxu0 0.0
    %101 = vmatprep.subr.mxu0 0.0
    %102 = vmatpush1.msra.mxu0 0.0
    %103 = vmatprep.subr.mxu0 0.0
    %104 = vmatpush1.msra.mxu0 0.0
    %105 = vmatprep.subr.mxu0 0.0
    %106 = vmatpush1.msra.mxu0 0.0
    %107 = vmatprep.subr.mxu0 0.0
    %108 = vmatpush1.msra.mxu0 0.0
    %109 = vmatprep.subr.mxu0 0.0
    %110 = vmatpush1.msra.mxu0 0.0
    %111 = vmatprep.subr.mxu0 0.0
    %112 = vmatpush1.msra.mxu0 0.0
    %113 = vmatprep.subr.mxu0 0.0
    %114 = vmatpush1.msra.mxu0 0.0
    %115 = vmatprep.subr.mxu0 0.0
    %116 = vmatpush1.msra.mxu0 0.0
    %117 = vmatprep.subr.mxu0 0.0
    %118 = vmatpush1.msra.mxu0 0.0
    %119 = vmatprep.subr.mxu0 0.0
    %120 = vmatpush1.msra.mxu0 0.0
    %121 = vmatprep.subr.mxu0 0.0
    %122 = vmatpush1.msra.mxu0 0.0
    %123 = vmatprep.subr.mxu0 0.0
    %124 = vmatpush1.msra.mxu0 0.0
    %125 = vmatprep.subr.mxu0 0.0
    %126 = vmatpush1.msra.mxu0 0.0
    %127 = vmatprep.mubr.f32.mxu0 0.0
    %128 = vmatmul.mubr.f32.gmra.mrb[0].mxu0 %v52
    %v129 = vpop.f32.mrb[0].mxu0
    %v130 = vadd.f32 %v48, %v129
    %v131 = vpop.f32.mrb[0].mxu0
    %132 = vmatprep.mubr.f32.mxu0 0.0
    %133 = vmatmul.mubr.f32.gmra.mrb[0].mxu0 %v55
    %v134 = vpop.f32.mrb[0].mxu0
    %v135 = vadd.f32 %v48, %v134
    %v136 = vpop.f32.mrb[0].mxu0
    %137 = vmatprep.mubr.f32.mxu0 0.0
    %138 = vmatmul.mubr.f32.gmra.mrb[0].mxu0 %v58
    %v139 = vpop.f32.mrb[0].mxu0
    %v140 = vadd.f32 %v48, %v139
    %v141 = vpop.f32.mrb[0].mxu0
    %142 = vmatprep.mubr.f32.mxu0 0.0
    %143 = vmatmul.mubr.f32.gmra.mrb[0].mxu0 %v61
    %v144 = vpop.f32.mrb[0].mxu0
    %v145 = vadd.f32 %v48, %v144
    %v146 = vpop.f32.mrb[0].mxu0
    %147 = vdwg.mxu0
    %148 = vst.msk [vmem:[%s3] sm:$0xff] %vm50, %v130
    %149 = vst.msk [vmem:[%s3 + $0x8] sm:$0xff] %vm50, %v135
    %150 = vst.msk [vmem:[%s3 + $0x10] sm:$0xff] %vm50, %v140
    %151 = vst.msk [vmem:[%s3 + $0x18] sm:$0xff] %vm50, %v145
    // Predicated region
    $region22: #{gat_forward.2} parent=1 // pred_check
      _
    $region23: #{gat_forward.2} parent=1 // pred_check_branch
      %153 = sbr.rel (0) target = $region25
    $region24: #{gat_forward.2} parent=1 // pred_region
      _
    $region25: #{gat_forward.2} parent=1 // pred_fallthru
      _
    // Predicated region
    $region26: #{gat_forward.2} parent=1 // pred_check
      _
    $region27: #{gat_forward.2} parent=1 // pred_check_branch
      %155 = sbr.rel (0) target = $region29
    $region28: #{gat_forward.2} parent=1 // pred_region
      _
    $region29: #{gat_forward.2} parent=1 // pred_fallthru
      _
    %156 = vsyncpa [#allocation3], 1
    %157 = vsyncpa [#allocation5], 1

// kernel: gat_forward.3
$region0: #{gat_forward.3}
  #allocation0 [shape = 'u32[]', space=smem, size = 0x4, offset = 0x4, fixed_abs, tag = 'smem constant byte address 0x4 - core index']
  #allocation1 [shape = 'u32[144,128]{1,0:T(1,128)}', space=vmem, size = 0x12000, scoped, tag = 'internal scratch']
  %s0 = inlined_call_operand.smem [shape: u32[32], index: -1, kind: input, shape index: {}]
  %s1 = sld [smem:[%s0]]
  %s2 = scalar_lea.smem %s0, 1
  %s3 = sld [smem:[%s2]]
  %s4 = scalar_lea.smem %s0, 2
  %s5 = sld [smem:[%s4]]
  %s6 = scalar_lea.smem %s0, 3
  %s7 = sld [smem:[%s6]]
  %s8 = scalar_lea.smem %s0, 4
  %s9 = sld [smem:[%s8]]
  %s10 = scalar_lea.smem %s0, 5
  %s11 = sld [smem:[%s10]]
  %s12 = scalar_lea.smem %s0, 6
  %s13 = sld [smem:[%s12]]
  %s14 = scalar_lea.smem %s0, 7
  %s15 = sld [smem:[%s14]]
  %s16 = scalar_lea.smem %s0, 8
  %s17 = sld [smem:[%s16]]
  %s18 = scalar_lea.smem %s0, 9
  %s19 = sld [smem:[%s18]]
  %s20 = scalar_lea.smem %s0, 10
  %s21 = sld [smem:[%s20]]
  %s22 = scalar_lea.smem %s0, 11
  %s23 = sld [smem:[%s22]]
  %s24 = scalar_lea.smem %s0, 12
  %s25 = sld [smem:[%s24]]
  %s26 = scalar_lea.smem %s0, 13
  %s27 = sld [smem:[%s26]]
  %s28 = scalar_lea.smem %s0, 14
  %s29 = sld [smem:[%s28]]
  %s30 = scalar_lea.smem %s0, 15
  %s31 = sld [smem:[%s30]]
  %s32 = scalar_lea.smem %s0, 16
  %s33 = sld [smem:[%s32]]
  %s34 = scalar_lea.smem %s0, 17
  %s35 = sld [smem:[%s34]]
  %s36 = scalar_lea.smem %s0, 18
  %s37 = sld [smem:[%s36]]
  %s38 = scalar_lea.smem %s0, 19
  %s39 = sld [smem:[%s38]]
  %s40 = scalar_lea.smem %s0, 20
  %s41 = sld [smem:[%s40]]
  %s42 = scalar_lea.smem %s0, 21
  %s43 = sld [smem:[%s42]]
  %s44 = scalar_lea.smem %s0, 22
  %s45 = sld [smem:[%s44]]
  %s46 = scalar_lea.smem %s0, 23
  %s47 = sld [smem:[%s46]]
  %s48 = scalar_lea.smem %s0, 24
  %s49 = sld [smem:[%s48]]
  %s50 = scalar_lea.smem %s0, 25
  %s51 = sld [smem:[%s50]]
  %s52 = scalar_lea.smem %s0, 26
  %s53 = sld [smem:[%s52]]
  %s54 = scalar_lea.smem %s0, 27
  %s55 = sld [smem:[%s54]]
  %s56 = scalar_lea.smem %s0, 28
  %s57 = sld [smem:[%s56]]
  %s58 = scalar_lea.smem %s0, 29
  %s59 = sld [smem:[%s58]]
  %s60 = scalar_lea.smem %s0, 30
  %s61 = sld [smem:[%s60]]
  %s62 = scalar_lea.smem %s0, 31
  %s63 = sld [smem:[%s62]]
  %s64 = sld [smem:[#allocation0]]
  $region134: #{gat_forward.3} parent=0
    _
  %s66 = ssub.s32 1, %s64
  %s67 = scalar_select 0, %s66, %s64
  $region1: #{gat_forward.3} parent=0
    #allocation2 [shape = 'u8[1024]{0}', space=vmem, size = 0x400, scoped, tag = 'output window, operand 0, single buffered']
    #allocation3 [shape = 's32[1]{0}', space=sflag, size = 0x4, scoped, tag = 'scoped memory for gat_forward.3']
    %68 = vsyncpa [#allocation3], 0
    // Predicated region
    $region2: #{gat_forward.3} parent=1 // pred_check
      _
    $region3: #{gat_forward.3} parent=1 // pred_check_branch
      %70 = sbr.rel (0) target = $region5
    $region4: #{gat_forward.3} parent=1 // pred_region
      _
    $region5: #{gat_forward.3} parent=1 // pred_fallthru
      _
    // Predicated region
    $region6: #{gat_forward.3} parent=1 // pred_check
      _
    $region7: #{gat_forward.3} parent=1 // pred_check_branch
      %72 = sbr.rel (0) target = $region9
    $region8: #{gat_forward.3} parent=1 // pred_region
      _
    $region9: #{gat_forward.3} parent=1 // pred_fallthru
      _
    // Predicated region
    $region10: #{gat_forward.3} parent=1 // pred_check
      _
    $region11: #{gat_forward.3} parent=1 // pred_check_branch
      %74 = sbr.rel (0) target = $region13
    $region12: #{gat_forward.3} parent=1 // pred_region
      _
    $region13: #{gat_forward.3} parent=1 // pred_fallthru
      _
    // Predicated region
    $region14: #{gat_forward.3} parent=1 // pred_check
      _
    $region15: #{gat_forward.3} parent=1 // pred_check_branch
      %76 = sbr.rel (0) target = $region17
    $region16: #{gat_forward.3} parent=1 // pred_region
      _
    $region17: #{gat_forward.3} parent=1 // pred_fallthru
      _
    // Predicated region
    $region18: #{gat_forward.3} parent=1 // pred_check
      _
    $region19: #{gat_forward.3} parent=1 // pred_check_branch
      %78 = sbr.rel (0) target = $region21
    $region20: #{gat_forward.3} parent=1 // pred_region
      _
    $region21: #{gat_forward.3} parent=1 // pred_fallthru
      _
    // Predicated region
    $region22: #{gat_forward.3} parent=1 // pred_check
      _
    $region23: #{gat_forward.3} parent=1 // pred_check_branch
      %80 = sbr.rel (0) target = $region25
    $region24: #{gat_forward.3} parent=1 // pred_region
      _
    $region25: #{gat_forward.3} parent=1 // pred_fallthru
      _
    // Predicated region
    $region26: #{gat_forward.3} parent=1 // pred_check
      _
    $region27: #{gat_forward.3} parent=1 // pred_check_branch
      %82 = sbr.rel (0) target = $region29
    $region28: #{gat_forward.3} parent=1 // pred_region
      _
    $region29: #{gat_forward.3} parent=1 // pred_fallthru
      _
    // Predicated region
    $region30: #{gat_forward.3} parent=1 // pred_check
      _
    $region31: #{gat_forward.3} parent=1 // pred_check_branch
      %84 = sbr.rel (0) target = $region33
    $region32: #{gat_forward.3} parent=1 // pred_region
      _
    $region33: #{gat_forward.3} parent=1 // pred_fallthru
      _
    // Predicated region
    $region34: #{gat_forward.3} parent=1 // pred_check
      _
    $region35: #{gat_forward.3} parent=1 // pred_check_branch
      %86 = sbr.rel (0) target = $region37
    $region36: #{gat_forward.3} parent=1 // pred_region
      _
    $region37: #{gat_forward.3} parent=1 // pred_fallthru
      _
    // Predicated region
    $region38: #{gat_forward.3} parent=1 // pred_check
      _
    $region39: #{gat_forward.3} parent=1 // pred_check_branch
      %88 = sbr.rel (0) target = $region41
    $region40: #{gat_forward.3} parent=1 // pred_region
      _
    $region41: #{gat_forward.3} parent=1 // pred_fallthru
      _
    // Predicated region
    $region42: #{gat_forward.3} parent=1 // pred_check
      _
    $region43: #{gat_forward.3} parent=1 // pred_check_branch
      %90 = sbr.rel (0) target = $region45
    $region44: #{gat_forward.3} parent=1 // pred_region
      _
    $region45: #{gat_forward.3} parent=1 // pred_fallthru
      _
    // Predicated region
    $region46: #{gat_forward.3} parent=1 // pred_check
      _
    $region47: #{gat_forward.3} parent=1 // pred_check_branch
      %92 = sbr.rel (0) target = $region49
    $region48: #{gat_forward.3} parent=1 // pred_region
      _
    $region49: #{gat_forward.3} parent=1 // pred_fallthru
      _
    // Predicated region
    $region50: #{gat_forward.3} parent=1 // pred_check
      _
    $region51: #{gat_forward.3} parent=1 // pred_check_branch
      %94 = sbr.rel (0) target = $region53
    $region52: #{gat_forward.3} parent=1 // pred_region
      _
    $region53: #{gat_forward.3} parent=1 // pred_fallthru
      _
    // Predicated region
    $region54: #{gat_forward.3} parent=1 // pred_check
      _
    $region55: #{gat_forward.3} parent=1 // pred_check_branch
      %96 = sbr.rel (0) target = $region57
    $region56: #{gat_forward.3} parent=1 // pred_region
      _
    $region57: #{gat_forward.3} parent=1 // pred_fallthru
      _
    // Predicated region
    $region58: #{gat_forward.3} parent=1 // pred_check
      _
    $region59: #{gat_forward.3} parent=1 // pred_check_branch
      %98 = sbr.rel (0) target = $region61
    $region60: #{gat_forward.3} parent=1 // pred_region
      _
    $region61: #{gat_forward.3} parent=1 // pred_fallthru
      _
    // Predicated region
    $region62: #{gat_forward.3} parent=1 // pred_check
      _
    $region63: #{gat_forward.3} parent=1 // pred_check_branch
      %100 = sbr.rel (0) target = $region65
    $region64: #{gat_forward.3} parent=1 // pred_region
      _
    $region65: #{gat_forward.3} parent=1 // pred_fallthru
      _
    // Predicated region
    $region66: #{gat_forward.3} parent=1 // pred_check
      _
    $region67: #{gat_forward.3} parent=1 // pred_check_branch
      %102 = sbr.rel (0) target = $region69
    $region68: #{gat_forward.3} parent=1 // pred_region
      _
    $region69: #{gat_forward.3} parent=1 // pred_fallthru
      _
    // Predicated region
    $region70: #{gat_forward.3} parent=1 // pred_check
      _
    $region71: #{gat_forward.3} parent=1 // pred_check_branch
      %104 = sbr.rel (0) target = $region73
    $region72: #{gat_forward.3} parent=1 // pred_region
      _
    $region73: #{gat_forward.3} parent=1 // pred_fallthru
      _
    // Predicated region
    $region74: #{gat_forward.3} parent=1 // pred_check
      _
    $region75: #{gat_forward.3} parent=1 // pred_check_branch
      %106 = sbr.rel (0) target = $region77
    $region76: #{gat_forward.3} parent=1 // pred_region
      _
    $region77: #{gat_forward.3} parent=1 // pred_fallthru
      _
    // Predicated region
    $region78: #{gat_forward.3} parent=1 // pred_check
      _
    $region79: #{gat_forward.3} parent=1 // pred_check_branch
      %108 = sbr.rel (0) target = $region81
    $region80: #{gat_forward.3} parent=1 // pred_region
      _
    $region81: #{gat_forward.3} parent=1 // pred_fallthru
      _
    // Predicated region
    $region82: #{gat_forward.3} parent=1 // pred_check
      _
    $region83: #{gat_forward.3} parent=1 // pred_check_branch
      %110 = sbr.rel (0) target = $region85
    $region84: #{gat_forward.3} parent=1 // pred_region
      _
    $region85: #{gat_forward.3} parent=1 // pred_fallthru
      _
    // Predicated region
    $region86: #{gat_forward.3} parent=1 // pred_check
      _
    $region87: #{gat_forward.3} parent=1 // pred_check_branch
      %112 = sbr.rel (0) target = $region89
    $region88: #{gat_forward.3} parent=1 // pred_region
      _
    $region89: #{gat_forward.3} parent=1 // pred_fallthru
      _
    // Predicated region
    $region90: #{gat_forward.3} parent=1 // pred_check
      _
    $region91: #{gat_forward.3} parent=1 // pred_check_branch
      %114 = sbr.rel (0) target = $region93
    $region92: #{gat_forward.3} parent=1 // pred_region
      _
    $region93: #{gat_forward.3} parent=1 // pred_fallthru
      _
    // Predicated region
    $region94: #{gat_forward.3} parent=1 // pred_check
      _
    $region95: #{gat_forward.3} parent=1 // pred_check_branch
      %116 = sbr.rel (0) target = $region97
    $region96: #{gat_forward.3} parent=1 // pred_region
      _
    $region97: #{gat_forward.3} parent=1 // pred_fallthru
      _
    // Predicated region
    $region98: #{gat_forward.3} parent=1 // pred_check
      _
    $region99: #{gat_forward.3} parent=1 // pred_check_branch
      %118 = sbr.rel (0) target = $region101
    $region100: #{gat_forward.3} parent=1 // pred_region
      _
    $region101: #{gat_forward.3} parent=1 // pred_fallthru
      _
    // Predicated region
    $region102: #{gat_forward.3} parent=1 // pred_check
      _
    $region103: #{gat_forward.3} parent=1 // pred_check_branch
      %120 = sbr.rel (0) target = $region105
    $region104: #{gat_forward.3} parent=1 // pred_region
      _
    $region105: #{gat_forward.3} parent=1 // pred_fallthru
      _
    // Predicated region
    $region106: #{gat_forward.3} parent=1 // pred_check
      _
    $region107: #{gat_forward.3} parent=1 // pred_check_branch
      %122 = sbr.rel (0) target = $region109
    $region108: #{gat_forward.3} parent=1 // pred_region
      _
    $region109: #{gat_forward.3} parent=1 // pred_fallthru
      _
    // Predicated region
    $region110: #{gat_forward.3} parent=1 // pred_check
      _
    $region111: #{gat_forward.3} parent=1 // pred_check_branch
      %124 = sbr.rel (0) target = $region113
    $region112: #{gat_forward.3} parent=1 // pred_region
      _
    $region113: #{gat_forward.3} parent=1 // pred_fallthru
      _
    // Predicated region
    $region114: #{gat_forward.3} parent=1 // pred_check
      _
    $region115: #{gat_forward.3} parent=1 // pred_check_branch
      %126 = sbr.rel (0) target = $region117
    $region116: #{gat_forward.3} parent=1 // pred_region
      _
    $region117: #{gat_forward.3} parent=1 // pred_fallthru
      _
    // Predicated region
    $region118: #{gat_forward.3} parent=1 // pred_check
      _
    $region119: #{gat_forward.3} parent=1 // pred_check_branch
      %128 = sbr.rel (0) target = $region121
    $region120: #{gat_forward.3} parent=1 // pred_region
      _
    $region121: #{gat_forward.3} parent=1 // pred_fallthru
      _
    // Predicated region
    $region122: #{gat_forward.3} parent=1 // pred_check
      _
    $region123: #{gat_forward.3} parent=1 // pred_check_branch
      %130 = sbr.rel (0) target = $region125
    $region124: #{gat_forward.3} parent=1 // pred_region
      _
    $region125: #{gat_forward.3} parent=1 // pred_fallthru
      _
    %v132 = vld [vmem:[%s3] sm:$0xff]
    %v133 = vld [vmem:[%s3 + $0x8] sm:$0xff]
    %v134 = vld [vmem:[%s5] sm:$0xff]
    %v135 = vld [vmem:[%s5 + $0x8] sm:$0xff]
    %v136 = vld [vmem:[%s5 + $0x10] sm:$0xff]
    %v137 = vld [vmem:[%s5 + $0x18] sm:$0xff]
    %v138 = vld [vmem:[%s5 + $0x20] sm:$0xff]
    %v139 = vld [vmem:[%s5 + $0x28] sm:$0xff]
    %v140 = vld [vmem:[%s5 + $0x30] sm:$0xff]
    %v141 = vld [vmem:[%s7] sm:$0x1]
    %v143 = vlaneseq
    %v144 = vshrl.u32 %v143, 7
    %v145 = vsub.s32 0, %v144
    %v146 = vrot.slane %v141, %v145
    %vm148 = vcmask 457728
    %v150 = vsel %vm148, %v132, 0
    %v153 = vsel %vm148, %v133, 0
    %155 = vmatprep.subr.mxu0 0.0
    %156 = vmatpush1.msra.mxu0 %v134
    %157 = vmatprep.subr.mxu0 0.0
    %158 = vmatpush1.msra.mxu0 %v135
    %159 = vmatprep.subr.mxu0 0.0
    %160 = vmatpush1.msra.mxu0 %v136
    %161 = vmatprep.subr.mxu0 0.0
    %162 = vmatpush1.msra.mxu0 %v137
    %163 = vmatprep.subr.mxu0 0.0
    %164 = vmatpush1.msra.mxu0 %v138
    %165 = vmatprep.subr.mxu0 0.0
    %166 = vmatpush1.msra.mxu0 %v139
    %167 = vmatprep.subr.mxu0 0.0
    %168 = vmatpush1.msra.mxu0 %v140
    %169 = vmatprep.subr.mxu0 0.0
    %170 = vmatpush1.msra.mxu0 0.0
    %171 = vmatprep.subr.mxu0 0.0
    %172 = vmatpush1.msra.mxu0 0.0
    %173 = vmatprep.subr.mxu0 0.0
    %174 = vmatpush1.msra.mxu0 0.0
    %175 = vmatprep.subr.mxu0 0.0
    %176 = vmatpush1.msra.mxu0 0.0
    %177 = vmatprep.subr.mxu0 0.0
    %178 = vmatpush1.msra.mxu0 0.0
    %179 = vmatprep.subr.mxu0 0.0
    %180 = vmatpush1.msra.mxu0 0.0
    %181 = vmatprep.subr.mxu0 0.0
    %182 = vmatpush1.msra.mxu0 0.0
    %183 = vmatprep.subr.mxu0 0.0
    %184 = vmatpush1.msra.mxu0 0.0
    %185 = vmatprep.subr.mxu0 0.0
    %186 = vmatpush1.msra.mxu0 0.0
    %187 = vmatprep.subr.mxu0 0.0
    %188 = vmatpush1.msra.mxu0 0.0
    %189 = vmatprep.subr.mxu0 0.0
    %190 = vmatpush1.msra.mxu0 0.0
    %191 = vmatprep.subr.mxu0 0.0
    %192 = vmatpush1.msra.mxu0 0.0
    %193 = vmatprep.subr.mxu0 0.0
    %194 = vmatpush1.msra.mxu0 0.0
    %195 = vmatprep.subr.mxu0 0.0
    %196 = vmatpush1.msra.mxu0 0.0
    %197 = vmatprep.subr.mxu0 0.0
    %198 = vmatpush1.msra.mxu0 0.0
    %199 = vmatprep.subr.mxu0 0.0
    %200 = vmatpush1.msra.mxu0 0.0
    %201 = vmatprep.subr.mxu0 0.0
    %202 = vmatpush1.msra.mxu0 0.0
    %203 = vmatprep.subr.mxu0 0.0
    %204 = vmatpush1.msra.mxu0 0.0
    %205 = vmatprep.subr.mxu0 0.0
    %206 = vmatpush1.msra.mxu0 0.0
    %207 = vmatprep.subr.mxu0 0.0
    %208 = vmatpush1.msra.mxu0 0.0
    %209 = vmatprep.subr.mxu0 0.0
    %210 = vmatpush1.msra.mxu0 0.0
    %211 = vmatprep.subr.mxu0 0.0
    %212 = vmatpush1.msra.mxu0 0.0
    %213 = vmatprep.subr.mxu0 0.0
    %214 = vmatpush1.msra.mxu0 0.0
    %215 = vmatprep.subr.mxu0 0.0
    %216 = vmatpush1.msra.mxu0 0.0
    %217 = vmatprep.subr.mxu0 0.0
    %218 = vmatpush1.msra.mxu0 0.0
    %219 = vmatprep.mubr.f32.mxu0 0.0
    %220 = vmatmul.mubr.f32.gmra.mrb[0].mxu0 %v150
    %v221 = vpop.f32.mrb[0].mxu0
    %v222 = vadd.f32 %v146, %v221
    %v223 = vpop.f32.mrb[0].mxu0
    %224 = vmatprep.mubr.f32.mxu0 0.0
    %225 = vmatmul.mubr.f32.gmra.mrb[0].mxu0 %v153
    %v226 = vpop.f32.mrb[0].mxu0
    %v227 = vadd.f32 %v146, %v226
    %v228 = vpop.f32.mrb[0].mxu0
    %229 = vdwg.mxu0
    %v230 = vld [vmem:[%s1] sm:$0xff]
    %v231 = vld [vmem:[%s1 + $0x8] sm:$0xff]
    %234 = vrot.lane.b32.xlu0 %v222, 16
    %v235 = vpop.permute.xlu0 %234
    %236 = vrot.lane.b32.xlu0 %v227, 16
    %v237 = vpop.permute.xlu0 %236
    %vm240 = vcmask 130048
    %v241 = vsel %vm240, %v230, %v235
    %v242 = vsel %vm240, %v231, %v237
    %v243 = vld [vmem:[%s9] sm:$0xff]
    %v244 = vld [vmem:[%s9 + $0x8] sm:$0xff]
    %v245 = vlaneseq
    %v246 = vshrl.u32 %v245, 7
    %v247 = vsub.s32 0, %v246
    %v248 = vrot.slane %v243, %v247
    %250 = vbcast.lane.b32.xlu0 %v248, 256
    %v251 = vpop.permute.xlu0 %250
    %s253 = sor.u32 256, 8
    %254 = vbcast.lane.b32.xlu0 %v248, %s253
    %v255 = vpop.permute.xlu0 %254
    %v256 = vlaneseq
    %v257 = vshrl.u32 %v256, 7
    %v258 = vsub.s32 1, %v257
    %v259 = vrot.slane %v243, %v258
    %261 = vbcast.lane.b32.xlu0 %v259, 256
    %v262 = vpop.permute.xlu0 %261
    %s264 = sor.u32 256, 8
    %265 = vbcast.lane.b32.xlu0 %v259, %s264
    %v266 = vpop.permute.xlu0 %265
    %v267 = vlaneseq
    %v268 = vshrl.u32 %v267, 7
    %v269 = vsub.s32 2, %v268
    %v270 = vrot.slane %v243, %v269
    %272 = vbcast.lane.b32.xlu0 %v270, 256
    %v273 = vpop.permute.xlu0 %272
    %s275 = sor.u32 256, 8
    %276 = vbcast.lane.b32.xlu0 %v270, %s275
    %v277 = vpop.permute.xlu0 %276
    %v278 = vlaneseq
    %v279 = vshrl.u32 %v278, 7
    %v280 = vsub.s32 3, %v279
    %v281 = vrot.slane %v243, %v280
    %283 = vbcast.lane.b32.xlu0 %v281, 256
    %v284 = vpop.permute.xlu0 %283
    %s286 = sor.u32 256, 8
    %287 = vbcast.lane.b32.xlu0 %v281, %s286
    %v288 = vpop.permute.xlu0 %287
    %v289 = vlaneseq
    %v290 = vshrl.u32 %v289, 7
    %v291 = vsub.s32 4, %v290
    %v292 = vrot.slane %v243, %v291
    %294 = vbcast.lane.b32.xlu0 %v292, 256
    %v295 = vpop.permute.xlu0 %294
    %s297 = sor.u32 256, 8
    %298 = vbcast.lane.b32.xlu0 %v292, %s297
    %v299 = vpop.permute.xlu0 %298
    %v300 = vlaneseq
    %v301 = vshrl.u32 %v300, 7
    %v302 = vsub.s32 5, %v301
    %v303 = vrot.slane %v243, %v302
    %305 = vbcast.lane.b32.xlu0 %v303, 256
    %v306 = vpop.permute.xlu0 %305
    %s308 = sor.u32 256, 8
    %309 = vbcast.lane.b32.xlu0 %v303, %s308
    %v310 = vpop.permute.xlu0 %309
    %v311 = vlaneseq
    %v312 = vshrl.u32 %v311, 7
    %v313 = vsub.s32 6, %v312
    %v314 = vrot.slane %v243, %v313
    %316 = vbcast.lane.b32.xlu0 %v314, 256
    %v317 = vpop.permute.xlu0 %316
    %s319 = sor.u32 256, 8
    %320 = vbcast.lane.b32.xlu0 %v314, %s319
    %v321 = vpop.permute.xlu0 %320
    %v322 = vlaneseq
    %v323 = vshrl.u32 %v322, 7
    %v324 = vsub.s32 7, %v323
    %v325 = vrot.slane %v243, %v324
    %327 = vbcast.lane.b32.xlu0 %v325, 256
    %v328 = vpop.permute.xlu0 %327
    %s330 = sor.u32 256, 8
    %331 = vbcast.lane.b32.xlu0 %v325, %s330
    %v332 = vpop.permute.xlu0 %331
    %v333 = vlaneseq
    %v334 = vshrl.u32 %v333, 7
    %v335 = vsub.s32 0, %v334
    %v336 = vrot.slane %v244, %v335
    %338 = vbcast.lane.b32.xlu0 %v336, 256
    %v339 = vpop.permute.xlu0 %338
    %s341 = sor.u32 256, 8
    %342 = vbcast.lane.b32.xlu0 %v336, %s341
    %v343 = vpop.permute.xlu0 %342
    %v344 = vlaneseq
    %v345 = vshrl.u32 %v344, 7
    %v346 = vsub.s32 1, %v345
    %v347 = vrot.slane %v244, %v346
    %349 = vbcast.lane.b32.xlu0 %v347, 256
    %v350 = vpop.permute.xlu0 %349
    %s352 = sor.u32 256, 8
    %353 = vbcast.lane.b32.xlu0 %v347, %s352
    %v354 = vpop.permute.xlu0 %353
    %v355 = vlaneseq
    %v356 = vshrl.u32 %v355, 7
    %v357 = vsub.s32 2, %v356
    %v358 = vrot.slane %v244, %v357
    %360 = vbcast.lane.b32.xlu0 %v358, 256
    %v361 = vpop.permute.xlu0 %360
    %s363 = sor.u32 256, 8
    %364 = vbcast.lane.b32.xlu0 %v358, %s363
    %v365 = vpop.permute.xlu0 %364
    %v366 = vlaneseq
    %v367 = vshrl.u32 %v366, 7
    %v368 = vsub.s32 3, %v367
    %v369 = vrot.slane %v244, %v368
    %371 = vbcast.lane.b32.xlu0 %v369, 256
    %v372 = vpop.permute.xlu0 %371
    %s374 = sor.u32 256, 8
    %375 = vbcast.lane.b32.xlu0 %v369, %s374
    %v376 = vpop.permute.xlu0 %375
    %v377 = vlaneseq
    %v378 = vshrl.u32 %v377, 7
    %v379 = vsub.s32 4, %v378
    %v380 = vrot.slane %v244, %v379
    %382 = vbcast.lane.b32.xlu0 %v380, 256
    %v383 = vpop.permute.xlu0 %382
    %s385 = sor.u32 256, 8
    %386 = vbcast.lane.b32.xlu0 %v380, %s385
    %v387 = vpop.permute.xlu0 %386
    %v388 = vlaneseq
    %v389 = vshrl.u32 %v388, 7
    %v390 = vsub.s32 5, %v389
    %v391 = vrot.slane %v244, %v390
    %393 = vbcast.lane.b32.xlu0 %v391, 256
    %v394 = vpop.permute.xlu0 %393
    %s396 = sor.u32 256, 8
    %397 = vbcast.lane.b32.xlu0 %v391, %s396
    %v398 = vpop.permute.xlu0 %397
    %v399 = vlaneseq
    %v400 = vshrl.u32 %v399, 7
    %v401 = vsub.s32 6, %v400
    %v402 = vrot.slane %v244, %v401
    %404 = vbcast.lane.b32.xlu0 %v402, 256
    %v405 = vpop.permute.xlu0 %404
    %s407 = sor.u32 256, 8
    %408 = vbcast.lane.b32.xlu0 %v402, %s407
    %v409 = vpop.permute.xlu0 %408
    %v410 = vlaneseq
    %v411 = vshrl.u32 %v410, 7
    %v412 = vsub.s32 7, %v411
    %v413 = vrot.slane %v244, %v412
    %415 = vbcast.lane.b32.xlu0 %v413, 256
    %v416 = vpop.permute.xlu0 %415
    %s418 = sor.u32 256, 8
    %419 = vbcast.lane.b32.xlu0 %v413, %s418
    %v420 = vpop.permute.xlu0 %419
    %v421 = vsub.f32 %v251, 1.0
    %v422 = vsub.f32 %v255, 1.0
    %v423 = vsub.f32 %v262, 1.0
    %v424 = vsub.f32 %v266, 1.0
    %v425 = vsub.f32 %v273, 1.0
    %v426 = vsub.f32 %v277, 1.0
    %v427 = vsub.f32 %v284, 1.0
    %v428 = vsub.f32 %v288, 1.0
    %v429 = vsub.f32 %v295, 1.0
    %v430 = vsub.f32 %v299, 1.0
    %v431 = vsub.f32 %v306, 1.0
    %v432 = vsub.f32 %v310, 1.0
    %v433 = vsub.f32 %v317, 1.0
    %v434 = vsub.f32 %v321, 1.0
    %v435 = vsub.f32 %v328, 1.0
    %v436 = vsub.f32 %v332, 1.0
    %v437 = vsub.f32 %v339, 1.0
    %v438 = vsub.f32 %v343, 1.0
    %v439 = vsub.f32 %v350, 1.0
    %v440 = vsub.f32 %v354, 1.0
    %v441 = vsub.f32 %v361, 1.0
    %v442 = vsub.f32 %v365, 1.0
    %v443 = vsub.f32 %v372, 1.0
    %v444 = vsub.f32 %v376, 1.0
    %v445 = vsub.f32 %v383, 1.0
    %v446 = vsub.f32 %v387, 1.0
    %v447 = vsub.f32 %v394, 1.0
    %v448 = vsub.f32 %v398, 1.0
    %v449 = vsub.f32 %v405, 1.0
    %v450 = vsub.f32 %v409, 1.0
    %v451 = vsub.f32 %v416, 1.0
    %v452 = vsub.f32 %v420, 1.0
    %v453 = vmul.f32 %v421, 1e+30
    %v454 = vmul.f32 %v422, 1e+30
    %v455 = vmul.f32 %v423, 1e+30
    %v456 = vmul.f32 %v424, 1e+30
    %v457 = vmul.f32 %v425, 1e+30
    %v458 = vmul.f32 %v426, 1e+30
    %v459 = vmul.f32 %v427, 1e+30
    %v460 = vmul.f32 %v428, 1e+30
    %v461 = vmul.f32 %v429, 1e+30
    %v462 = vmul.f32 %v430, 1e+30
    %v463 = vmul.f32 %v431, 1e+30
    %v464 = vmul.f32 %v432, 1e+30
    %v465 = vmul.f32 %v433, 1e+30
    %v466 = vmul.f32 %v434, 1e+30
    %v467 = vmul.f32 %v435, 1e+30
    %v468 = vmul.f32 %v436, 1e+30
    %v469 = vmul.f32 %v437, 1e+30
    %v470 = vmul.f32 %v438, 1e+30
    %v471 = vmul.f32 %v439, 1e+30
    %v472 = vmul.f32 %v440, 1e+30
    %v473 = vmul.f32 %v441, 1e+30
    %v474 = vmul.f32 %v442, 1e+30
    %v475 = vmul.f32 %v443, 1e+30
    %v476 = vmul.f32 %v444, 1e+30
    %v477 = vmul.f32 %v445, 1e+30
    %v478 = vmul.f32 %v446, 1e+30
    %v479 = vmul.f32 %v447, 1e+30
    %v480 = vmul.f32 %v448, 1e+30
    %v481 = vmul.f32 %v449, 1e+30
    %v482 = vmul.f32 %v450, 1e+30
    %v483 = vmul.f32 %v451, 1e+30
    %v484 = vmul.f32 %v452, 1e+30
    %v485 = vld [vmem:[%s11] sm:$0xff]
    %v486 = vld [vmem:[%s11 + $0x8] sm:$0xff]
    %v487 = vld [vmem:[%s11 + $0x10] sm:$0xff]
    %v488 = vld [vmem:[%s11 + $0x18] sm:$0xff]
    %v489 = vld [vmem:[%s11 + $0x20] sm:$0xff]
    %v490 = vld [vmem:[%s11 + $0x28] sm:$0xff]
    %v491 = vld [vmem:[%s11 + $0x30] sm:$0xff]
    %v492 = vld [vmem:[%s11 + $0x38] sm:$0xff]
    %v493 = vld [vmem:[%s11 + $0x40] sm:$0xff]
    %v494 = vld [vmem:[%s11 + $0x48] sm:$0xff]
    %v495 = vld [vmem:[%s11 + $0x50] sm:$0xff]
    %v496 = vld [vmem:[%s11 + $0x58] sm:$0xff]
    %v497 = vld [vmem:[%s11 + $0x60] sm:$0xff]
    %v498 = vld [vmem:[%s11 + $0x68] sm:$0xff]
    %v499 = vld [vmem:[%s11 + $0x70] sm:$0xff]
    %v500 = vld [vmem:[%s11 + $0x78] sm:$0xff]
    %v501 = vld [vmem:[%s11 + $0x80] sm:$0xff]
    %v502 = vld [vmem:[%s11 + $0x88] sm:$0xff]
    %v503 = vld [vmem:[%s11 + $0x90] sm:$0xff]
    %v504 = vld [vmem:[%s11 + $0x98] sm:$0xff]
    %v505 = vld [vmem:[%s11 + $0xa0] sm:$0xff]
    %v506 = vld [vmem:[%s11 + $0xa8] sm:$0xff]
    %v507 = vld [vmem:[%s11 + $0xb0] sm:$0xff]
    %v508 = vld [vmem:[%s11 + $0xb8] sm:$0xff]
    %v509 = vld [vmem:[%s11 + $0xc0] sm:$0xff]
    %v510 = vld [vmem:[%s11 + $0xc8] sm:$0xff]
    %v511 = vld [vmem:[%s11 + $0xd0] sm:$0xff]
    %v512 = vld [vmem:[%s11 + $0xd8] sm:$0xff]
    %v513 = vld [vmem:[%s11 + $0xe0] sm:$0xff]
    %v514 = vld [vmem:[%s11 + $0xe8] sm:$0xff]
    %v515 = vld [vmem:[%s11 + $0xf0] sm:$0xff]
    %v516 = vld [vmem:[%s11 + $0xf8] sm:$0xff]
    %v517 = vld [vmem:[%s13] sm:$0xff]
    %v518 = vld [vmem:[%s13 + $0x8] sm:$0xff]
    %v519 = vld [vmem:[%s13 + $0x10] sm:$0xff]
    %v520 = vld [vmem:[%s13 + $0x18] sm:$0xff]
    %v521 = vld [vmem:[%s15] sm:$0x1]
    %v522 = vld [vmem:[%s17] sm:$0xff]
    %v523 = vld [vmem:[%s17 + $0x8] sm:$0xff]
    %v524 = vld [vmem:[%s19] sm:$0xff]
    %v525 = vld [vmem:[%s19 + $0x8] sm:$0xff]
    %v526 = vld [vmem:[%s19 + $0x10] sm:$0xff]
    %v527 = vld [vmem:[%s19 + $0x18] sm:$0xff]
    %v528 = vld [vmem:[%s21] sm:$0xf]
    %v529 = vld [vmem:[%s23] sm:$0x1]
    %v530 = vld [vmem:[%s25] sm:$0x1]
    %v531 = vld [vmem:[%s27] sm:$0x1]
    %v533 = vlaneseq
    %v534 = vshrl.u32 %v533, 7
    %v535 = vsub.s32 0, %v534
    %v536 = vrot.slane %v521, %v535
    %vm538 = vcmask 261120
    %v540 = vsel %vm538, %v241, 0
    %v543 = vsel %vm538, %v242, 0
    %545 = vmatprep.subr.mxu0 0.0
    %546 = vmatpush1.msra.mxu0 %v517
    %547 = vmatprep.subr.mxu0 0.0
    %548 = vmatpush1.msra.mxu0 %v518
    %549 = vmatprep.subr.mxu0 0.0
    %550 = vmatpush1.msra.mxu0 %v519
    %551 = vmatprep.subr.mxu0 0.0
    %552 = vmatpush1.msra.mxu0 %v520
    %553 = vmatprep.subr.mxu0 0.0
    %554 = vmatpush1.msra.mxu0 0.0
    %555 = vmatprep.subr.mxu0 0.0
    %556 = vmatpush1.msra.mxu0 0.0
    %557 = vmatprep.subr.mxu0 0.0
    %558 = vmatpush1.msra.mxu0 0.0
    %559 = vmatprep.subr.mxu0 0.0
    %560 = vmatpush1.msra.mxu0 0.0
    %561 = vmatprep.subr.mxu0 0.0
    %562 = vmatpush1.msra.mxu0 0.0
    %563 = vmatprep.subr.mxu0 0.0
    %564 = vmatpush1.msra.mxu0 0.0
    %565 = vmatprep.subr.mxu0 0.0
    %566 = vmatpush1.msra.mxu0 0.0
    %567 = vmatprep.subr.mxu0 0.0
    %568 = vmatpush1.msra.mxu0 0.0
    %569 = vmatprep.subr.mxu0 0.0
    %570 = vmatpush1.msra.mxu0 0.0
    %571 = vmatprep.subr.mxu0 0.0
    %572 = vmatpush1.msra.mxu0 0.0
    %573 = vmatprep.subr.mxu0 0.0
    %574 = vmatpush1.msra.mxu0 0.0
    %575 = vmatprep.subr.mxu0 0.0
    %576 = vmatpush1.msra.mxu0 0.0
    %577 = vmatprep.subr.mxu0 0.0
    %578 = vmatpush1.msra.mxu0 0.0
    %579 = vmatprep.subr.mxu0 0.0
    %580 = vmatpush1.msra.mxu0 0.0
    %581 = vmatprep.subr.mxu0 0.0
    %582 = vmatpush1.msra.mxu0 0.0
    %583 = vmatprep.subr.mxu0 0.0
    %584 = vmatpush1.msra.mxu0 0.0
    %585 = vmatprep.subr.mxu0 0.0
    %586 = vmatpush1.msra.mxu0 0.0
    %587 = vmatprep.subr.mxu0 0.0
    %588 = vmatpush1.msra.mxu0 0.0
    %589 = vmatprep.subr.mxu0 0.0
    %590 = vmatpush1.msra.mxu0 0.0
    %591 = vmatprep.subr.mxu0 0.0
    %592 = vmatpush1.msra.mxu0 0.0
    %593 = vmatprep.subr.mxu0 0.0
    %594 = vmatpush1.msra.mxu0 0.0
    %595 = vmatprep.subr.mxu0 0.0
    %596 = vmatpush1.msra.mxu0 0.0
    %597 = vmatprep.subr.mxu0 0.0
    %598 = vmatpush1.msra.mxu0 0.0
    %599 = vmatprep.subr.mxu0 0.0
    %600 = vmatpush1.msra.mxu0 0.0
    %601 = vmatprep.subr.mxu0 0.0
    %602 = vmatpush1.msra.mxu0 0.0
    %603 = vmatprep.subr.mxu0 0.0
    %604 = vmatpush1.msra.mxu0 0.0
    %605 = vmatprep.subr.mxu0 0.0
    %606 = vmatpush1.msra.mxu0 0.0
    %607 = vmatprep.subr.mxu0 0.0
    %608 = vmatpush1.msra.mxu0 0.0
    %609 = vmatprep.mubr.f32.mxu0 0.0
    %610 = vmatmul.mubr.f32.gmra.mrb[0].mxu0 %v540
    %v611 = vpop.f32.mrb[0].mxu0
    %v612 = vadd.f32 %v536, %v611
    %v613 = vpop.f32.mrb[0].mxu0
    %614 = vmatprep.mubr.f32.mxu0 0.0
    %615 = vmatmul.mubr.f32.gmra.mrb[0].mxu0 %v543
    %v616 = vpop.f32.mrb[0].mxu0
    %v617 = vadd.f32 %v536, %v616
    %v618 = vpop.f32.mrb[0].mxu0
    %619 = vdwg.mxu0
    %v621 = vsel %vm240, %v485, 0
    %v624 = vsel %vm240, %v486, 0
    %v627 = vsel %vm240, %v487, 0
    %v630 = vsel %vm240, %v488, 0
    %v633 = vsel %vm240, %v489, 0
    %v636 = vsel %vm240, %v490, 0
    %v639 = vsel %vm240, %v491, 0
    %v642 = vsel %vm240, %v492, 0
    %v645 = vsel %vm240, %v493, 0
    %v648 = vsel %vm240, %v494, 0
    %v651 = vsel %vm240, %v495, 0
    %v654 = vsel %vm240, %v496, 0
    %v657 = vsel %vm240, %v497, 0
    %v660 = vsel %vm240, %v498, 0
    %v663 = vsel %vm240, %v499, 0
    %v666 = vsel %vm240, %v500, 0
    %v669 = vsel %vm240, %v501, 0
    %v672 = vsel %vm240, %v502, 0
    %v675 = vsel %vm240, %v503, 0
    %v678 = vsel %vm240, %v504, 0
    %v681 = vsel %vm240, %v505, 0
    %v684 = vsel %vm240, %v506, 0
    %v687 = vsel %vm240, %v507, 0
    %v690 = vsel %vm240, %v508, 0
    %v693 = vsel %vm240, %v509, 0
    %v696 = vsel %vm240, %v510, 0
    %v699 = vsel %vm240, %v511, 0
    %v702 = vsel %vm240, %v512, 0
    %v705 = vsel %vm240, %v513, 0
    %v708 = vsel %vm240, %v514, 0
    %v711 = vsel %vm240, %v515, 0
    %v714 = vsel %vm240, %v516, 0
    %716 = vmatprep.subr.mxu0 0.0
    %717 = vmatpush1.msra.mxu0 %v522
    %718 = vmatprep.subr.mxu0 0.0
    %719 = vmatpush1.msra.mxu0 %v523
    %720 = vmatprep.subr.mxu0 0.0
    %721 = vmatpush1.msra.mxu0 0.0
    %722 = vmatprep.subr.mxu0 0.0
    %723 = vmatpush1.msra.mxu0 0.0
    %724 = vmatprep.subr.mxu0 0.0
    %725 = vmatpush1.msra.mxu0 0.0
    %726 = vmatprep.subr.mxu0 0.0
    %727 = vmatpush1.msra.mxu0 0.0
    %728 = vmatprep.subr.mxu0 0.0
    %729 = vmatpush1.msra.mxu0 0.0
    %730 = vmatprep.subr.mxu0 0.0
    %731 = vmatpush1.msra.mxu0 0.0
    %732 = vmatprep.subr.mxu0 0.0
    %733 = vmatpush1.msra.mxu0 0.0
    %734 = vmatprep.subr.mxu0 0.0
    %735 = vmatpush1.msra.mxu0 0.0
    %736 = vmatprep.subr.mxu0 0.0
    %737 = vmatpush1.msra.mxu0 0.0
    %738 = vmatprep.subr.mxu0 0.0
    %739 = vmatpush1.msra.mxu0 0.0
    %740 = vmatprep.subr.mxu0 0.0
    %741 = vmatpush1.msra.mxu0 0.0
    %742 = vmatprep.subr.mxu0 0.0
    %743 = vmatpush1.msra.mxu0 0.0
    %744 = vmatprep.subr.mxu0 0.0
    %745 = vmatpush1.msra.mxu0 0.0
    %746 = vmatprep.subr.mxu0 0.0
    %747 = vmatpush1.msra.mxu0 0.0
    %748 = vmatprep.subr.mxu0 0.0
    %749 = vmatpush1.msra.mxu0 0.0
    %750 = vmatprep.subr.mxu0 0.0
    %751 = vmatpush1.msra.mxu0 0.0
    %752 = vmatprep.subr.mxu0 0.0
    %753 = vmatpush1.msra.mxu0 0.0
    %754 = vmatprep.subr.mxu0 0.0
    %755 = vmatpush1.msra.mxu0 0.0
    %756 = vmatprep.subr.mxu0 0.0
    %757 = vmatpush1.msra.mxu0 0.0
    %758 = vmatprep.subr.mxu0 0.0
    %759 = vmatpush1.msra.mxu0 0.0
    %760 = vmatprep.subr.mxu0 0.0
    %761 = vmatpush1.msra.mxu0 0.0
    %762 = vmatprep.subr.mxu0 0.0
    %763 = vmatpush1.msra.mxu0 0.0
    %764 = vmatprep.subr.mxu0 0.0
    %765 = vmatpush1.msra.mxu0 0.0
    %766 = vmatprep.subr.mxu0 0.0
    %767 = vmatpush1.msra.mxu0 0.0
    %768 = vmatprep.subr.mxu0 0.0
    %769 = vmatpush1.msra.mxu0 0.0
    %770 = vmatprep.subr.mxu0 0.0
    %771 = vmatpush1.msra.mxu0 0.0
    %772 = vmatprep.subr.mxu0 0.0
    %773 = vmatpush1.msra.mxu0 0.0
    %774 = vmatprep.subr.mxu0 0.0
    %775 = vmatpush1.msra.mxu0 0.0
    %776 = vmatprep.subr.mxu0 0.0
    %777 = vmatpush1.msra.mxu0 0.0
    %778 = vmatprep.subr.mxu0 0.0
    %779 = vmatpush1.msra.mxu0 0.0
    %780 = vmatprep.mubr.f32.mxu0 0.0
    %781 = vmatmul.mubr.f32.gmra.mrb[0].mxu0 %v621
    %v782 = vpop.f32.mrb[0].mxu0
    %v783 = vadd.f32 0.0, %v782
    %v784 = vpop.f32.mrb[0].mxu0
    %785 = vmatprep.mubr.f32.mxu0 0.0
    %786 = vmatmul.mubr.f32.gmra.mrb[0].mxu0 %v624
    %v787 = vpop.f32.mrb[0].mxu0
    %v788 = vadd.f32 0.0, %v787
    %v789 = vpop.f32.mrb[0].mxu0
    %790 = vmatprep.mubr.f32.mxu0 0.0
    %791 = vmatmul.mubr.f32.gmra.mrb[0].mxu0 %v627
    %v792 = vpop.f32.mrb[0].mxu0
    %v793 = vadd.f32 0.0, %v792
    %v794 = vpop.f32.mrb[0].mxu0
    %795 = vmatprep.mubr.f32.mxu0 0.0
    %796 = vmatmul.mubr.f32.gmra.mrb[0].mxu0 %v630
    %v797 = vpop.f32.mrb[0].mxu0
    %v798 = vadd.f32 0.0, %v797
    %v799 = vpop.f32.mrb[0].mxu0
    %800 = vmatprep.mubr.f32.mxu0 0.0
    %801 = vmatmul.mubr.f32.gmra.mrb[0].mxu0 %v633
    %v802 = vpop.f32.mrb[0].mxu0
    %v803 = vadd.f32 0.0, %v802
    %v804 = vpop.f32.mrb[0].mxu0
    %805 = vmatprep.mubr.f32.mxu0 0.0
    %806 = vmatmul.mubr.f32.gmra.mrb[0].mxu0 %v636
    %v807 = vpop.f32.mrb[0].mxu0
    %v808 = vadd.f32 0.0, %v807
    %v809 = vpop.f32.mrb[0].mxu0
    %810 = vmatprep.mubr.f32.mxu0 0.0
    %811 = vmatmul.mubr.f32.gmra.mrb[0].mxu0 %v639
    %v812 = vpop.f32.mrb[0].mxu0
    %v813 = vadd.f32 0.0, %v812
    %v814 = vpop.f32.mrb[0].mxu0
    %815 = vmatprep.mubr.f32.mxu0 0.0
    %816 = vmatmul.mubr.f32.gmra.mrb[0].mxu0 %v642
    %v817 = vpop.f32.mrb[0].mxu0
    %v818 = vadd.f32 0.0, %v817
    %v819 = vpop.f32.mrb[0].mxu0
    %820 = vmatprep.mubr.f32.mxu0 0.0
    %821 = vmatmul.mubr.f32.gmra.mrb[0].mxu0 %v645
    %v822 = vpop.f32.mrb[0].mxu0
    %v823 = vadd.f32 0.0, %v822
    %v824 = vpop.f32.mrb[0].mxu0
    %825 = vmatprep.mubr.f32.mxu0 0.0
    %826 = vmatmul.mubr.f32.gmra.mrb[0].mxu0 %v648
    %v827 = vpop.f32.mrb[0].mxu0
    %v828 = vadd.f32 0.0, %v827
    %v829 = vpop.f32.mrb[0].mxu0
    %830 = vmatprep.mubr.f32.mxu0 0.0
    %831 = vmatmul.mubr.f32.gmra.mrb[0].mxu0 %v651
    %v832 = vpop.f32.mrb[0].mxu0
    %v833 = vadd.f32 0.0, %v832
    %v834 = vpop.f32.mrb[0].mxu0
    %835 = vmatprep.mubr.f32.mxu0 0.0
    %836 = vmatmul.mubr.f32.gmra.mrb[0].mxu0 %v654
    %v837 = vpop.f32.mrb[0].mxu0
    %v838 = vadd.f32 0.0, %v837
    %v839 = vpop.f32.mrb[0].mxu0
    %840 = vmatprep.mubr.f32.mxu0 0.0
    %841 = vmatmul.mubr.f32.gmra.mrb[0].mxu0 %v657
    %v842 = vpop.f32.mrb[0].mxu0
    %v843 = vadd.f32 0.0, %v842
    %v844 = vpop.f32.mrb[0].mxu0
    %845 = vmatprep.mubr.f32.mxu0 0.0
    %846 = vmatmul.mubr.f32.gmra.mrb[0].mxu0 %v660
    %v847 = vpop.f32.mrb[0].mxu0
    %v848 = vadd.f32 0.0, %v847
    %v849 = vpop.f32.mrb[0].mxu0
    %850 = vmatprep.mubr.f32.mxu0 0.0
    %851 = vmatmul.mubr.f32.gmra.mrb[0].mxu0 %v663
    %v852 = vpop.f32.mrb[0].mxu0
    %v853 = vadd.f32 0.0, %v852
    %v854 = vpop.f32.mrb[0].mxu0
    %855 = vmatprep.mubr.f32.mxu0 0.0
    %856 = vmatmul.mubr.f32.gmra.mrb[0].mxu0 %v666
    %v857 = vpop.f32.mrb[0].mxu0
    %v858 = vadd.f32 0.0, %v857
    %v859 = vpop.f32.mrb[0].mxu0
    %860 = vmatprep.mubr.f32.mxu0 0.0
    %861 = vmatmul.mubr.f32.gmra.mrb[0].mxu0 %v669
    %v862 = vpop.f32.mrb[0].mxu0
    %v863 = vadd.f32 0.0, %v862
    %v864 = vpop.f32.mrb[0].mxu0
    %865 = vmatprep.mubr.f32.mxu0 0.0
    %866 = vmatmul.mubr.f32.gmra.mrb[0].mxu0 %v672
    %v867 = vpop.f32.mrb[0].mxu0
    %v868 = vadd.f32 0.0, %v867
    %v869 = vpop.f32.mrb[0].mxu0
    %870 = vmatprep.mubr.f32.mxu0 0.0
    %871 = vmatmul.mubr.f32.gmra.mrb[0].mxu0 %v675
    %v872 = vpop.f32.mrb[0].mxu0
    %v873 = vadd.f32 0.0, %v872
    %v874 = vpop.f32.mrb[0].mxu0
    %875 = vmatprep.mubr.f32.mxu0 0.0
    %876 = vmatmul.mubr.f32.gmra.mrb[0].mxu0 %v678
    %v877 = vpop.f32.mrb[0].mxu0
    %v878 = vadd.f32 0.0, %v877
    %v879 = vpop.f32.mrb[0].mxu0
    %880 = vmatprep.mubr.f32.mxu0 0.0
    %881 = vmatmul.mubr.f32.gmra.mrb[0].mxu0 %v681
    %v882 = vpop.f32.mrb[0].mxu0
    %v883 = vadd.f32 0.0, %v882
    %v884 = vpop.f32.mrb[0].mxu0
    %885 = vmatprep.mubr.f32.mxu0 0.0
    %886 = vmatmul.mubr.f32.gmra.mrb[0].mxu0 %v684
    %v887 = vpop.f32.mrb[0].mxu0
    %v888 = vadd.f32 0.0, %v887
    %v889 = vpop.f32.mrb[0].mxu0
    %890 = vmatprep.mubr.f32.mxu0 0.0
    %891 = vmatmul.mubr.f32.gmra.mrb[0].mxu0 %v687
    %v892 = vpop.f32.mrb[0].mxu0
    %v893 = vadd.f32 0.0, %v892
    %v894 = vpop.f32.mrb[0].mxu0
    %895 = vmatprep.mubr.f32.mxu0 0.0
    %896 = vmatmul.mubr.f32.gmra.mrb[0].mxu0 %v690
    %v897 = vpop.f32.mrb[0].mxu0
    %v898 = vadd.f32 0.0, %v897
    %v899 = vpop.f32.mrb[0].mxu0
    %900 = vmatprep.mubr.f32.mxu0 0.0
    %901 = vmatmul.mubr.f32.gmra.mrb[0].mxu0 %v693
    %v902 = vpop.f32.mrb[0].mxu0
    %v903 = vadd.f32 0.0, %v902
    %v904 = vpop.f32.mrb[0].mxu0
    %905 = vmatprep.mubr.f32.mxu0 0.0
    %906 = vmatmul.mubr.f32.gmra.mrb[0].mxu0 %v696
    %v907 = vpop.f32.mrb[0].mxu0
    %v908 = vadd.f32 0.0, %v907
    %v909 = vpop.f32.mrb[0].mxu0
    %910 = vmatprep.mubr.f32.mxu0 0.0
    %911 = vmatmul.mubr.f32.gmra.mrb[0].mxu0 %v699
    %v912 = vpop.f32.mrb[0].mxu0
    %v913 = vadd.f32 0.0, %v912
    %v914 = vpop.f32.mrb[0].mxu0
    %915 = vmatprep.mubr.f32.mxu0 0.0
    %916 = vmatmul.mubr.f32.gmra.mrb[0].mxu0 %v702
    %v917 = vpop.f32.mrb[0].mxu0
    %v918 = vadd.f32 0.0, %v917
    %v919 = vpop.f32.mrb[0].mxu0
    %920 = vmatprep.mubr.f32.mxu0 0.0
    %921 = vmatmul.mubr.f32.gmra.mrb[0].mxu0 %v705
    %v922 = vpop.f32.mrb[0].mxu0
    %v923 = vadd.f32 0.0, %v922
    %v924 = vpop.f32.mrb[0].mxu0
    %925 = vmatprep.mubr.f32.mxu0 0.0
    %926 = vmatmul.mubr.f32.gmra.mrb[0].mxu0 %v708
    %v927 = vpop.f32.mrb[0].mxu0
    %v928 = vadd.f32 0.0, %v927
    %v929 = vpop.f32.mrb[0].mxu0
    %930 = vmatprep.mubr.f32.mxu0 0.0
    %931 = vmatmul.mubr.f32.gmra.mrb[0].mxu0 %v711
    %v932 = vpop.f32.mrb[0].mxu0
    %v933 = vadd.f32 0.0, %v932
    %v934 = vpop.f32.mrb[0].mxu0
    %935 = vmatprep.mubr.f32.mxu0 0.0
    %936 = vmatmul.mubr.f32.gmra.mrb[0].mxu0 %v714
    %v937 = vpop.f32.mrb[0].mxu0
    %v938 = vadd.f32 0.0, %v937
    %v939 = vpop.f32.mrb[0].mxu0
    %940 = vdwg.mxu0
    %v941 = vadd.f32 %v783, %v612
    %v942 = vadd.f32 %v788, %v617
    %v943 = vadd.f32 %v793, %v612
    %v944 = vadd.f32 %v798, %v617
    %v945 = vadd.f32 %v803, %v612
    %v946 = vadd.f32 %v808, %v617
    %v947 = vadd.f32 %v813, %v612
    %v948 = vadd.f32 %v818, %v617
    %v949 = vadd.f32 %v823, %v612
    %v950 = vadd.f32 %v828, %v617
    %v951 = vadd.f32 %v833, %v612
    %v952 = vadd.f32 %v838, %v617
    %v953 = vadd.f32 %v843, %v612
    %v954 = vadd.f32 %v848, %v617
    %v955 = vadd.f32 %v853, %v612
    %v956 = vadd.f32 %v858, %v617
    %v957 = vadd.f32 %v863, %v612
    %v958 = vadd.f32 %v868, %v617
    %v959 = vadd.f32 %v873, %v612
    %v960 = vadd.f32 %v878, %v617
    %v961 = vadd.f32 %v883, %v612
    %v962 = vadd.f32 %v888, %v617
    %v963 = vadd.f32 %v893, %v612
    %v964 = vadd.f32 %v898, %v617
    %v965 = vadd.f32 %v903, %v612
    %v966 = vadd.f32 %v908, %v617
    %v967 = vadd.f32 %v913, %v612
    %v968 = vadd.f32 %v918, %v617
    %v969 = vadd.f32 %v923, %v612
    %v970 = vadd.f32 %v928, %v617
    %v971 = vadd.f32 %v933, %v612
    %v972 = vadd.f32 %v938, %v617
    %v975 = vcombine.high %v612, %v612
    %v977 = vunpack.c.l.s4 1966171168
    %v978 = vunpack.c.0.s8 %v977
    %v979 = vlaneseq
    %v980 = vshrl.u32 %v979, 7
    %v981 = vsub.s32 %v978, %v980
    %v982 = vrot.slane %v612, %v981
    %v984 = vunpack.c.l.s4 1966171168
    %v985 = vunpack.c.0.s8 %v984
    %v986 = vlaneseq
    %v987 = vshrl.u32 %v986, 7
    %v988 = vsub.s32 %v985, %v987
    %v989 = vrot.slane %v975, %v988
    %v990 = vcombine.high %v982, %v982
    %v991 = vcombine.high %v989, %v989
    %v993 = vunpack.c.l.s4 1966171168
    %v994 = vunpack.c.0.s8 %v993
    %v995 = vlaneseq
    %v996 = vshrl.u32 %v995, 7
    %v997 = vsub.s32 %v994, %v996
    %v998 = vrot.slane %v982, %v997
    %v1000 = vunpack.c.l.s4 1966171168
    %v1001 = vunpack.c.0.s8 %v1000
    %v1002 = vlaneseq
    %v1003 = vshrl.u32 %v1002, 7
    %v1004 = vsub.s32 %v1001, %v1003
    %v1005 = vrot.slane %v989, %v1004
    %v1007 = vunpack.c.l.s4 1966171168
    %v1008 = vunpack.c.0.s8 %v1007
    %v1009 = vlaneseq
    %v1010 = vshrl.u32 %v1009, 7
    %v1011 = vsub.s32 %v1008, %v1010
    %v1012 = vrot.slane %v990, %v1011
    %v1014 = vunpack.c.l.s4 1966171168
    %v1015 = vunpack.c.0.s8 %v1014
    %v1016 = vlaneseq
    %v1017 = vshrl.u32 %v1016, 7
    %v1018 = vsub.s32 %v1015, %v1017
    %v1019 = vrot.slane %v991, %v1018
    %v1020 = vcombine.high %v998, %v998
    %v1021 = vcombine.high %v1005, %v1005
    %v1022 = vcombine.high %v1012, %v1012
    %v1023 = vcombine.high %v1019, %v1019
    %v1024 = vcombine.high %v617, %v617
    %v1026 = vunpack.c.l.s4 1966171168
    %v1027 = vunpack.c.0.s8 %v1026
    %v1028 = vlaneseq
    %v1029 = vshrl.u32 %v1028, 7
    %v1030 = vsub.s32 %v1027, %v1029
    %v1031 = vrot.slane %v617, %v1030
    %v1033 = vunpack.c.l.s4 1966171168
    %v1034 = vunpack.c.0.s8 %v1033
    %v1035 = vlaneseq
    %v1036 = vshrl.u32 %v1035, 7
    %v1037 = vsub.s32 %v1034, %v1036
    %v1038 = vrot.slane %v1024, %v1037
    %v1039 = vcombine.high %v1031, %v1031
    %v1040 = vcombine.high %v1038, %v1038
    %v1042 = vunpack.c.l.s4 1966171168
    %v1043 = vunpack.c.0.s8 %v1042
    %v1044 = vlaneseq
    %v1045 = vshrl.u32 %v1044, 7
    %v1046 = vsub.s32 %v1043, %v1045
    %v1047 = vrot.slane %v1031, %v1046
    %v1049 = vunpack.c.l.s4 1966171168
    %v1050 = vunpack.c.0.s8 %v1049
    %v1051 = vlaneseq
    %v1052 = vshrl.u32 %v1051, 7
    %v1053 = vsub.s32 %v1050, %v1052
    %v1054 = vrot.slane %v1038, %v1053
    %v1056 = vunpack.c.l.s4 1966171168
    %v1057 = vunpack.c.0.s8 %v1056
    %v1058 = vlaneseq
    %v1059 = vshrl.u32 %v1058, 7
    %v1060 = vsub.s32 %v1057, %v1059
    %v1061 = vrot.slane %v1039, %v1060
    %v1063 = vunpack.c.l.s4 1966171168
    %v1064 = vunpack.c.0.s8 %v1063
    %v1065 = vlaneseq
    %v1066 = vshrl.u32 %v1065, 7
    %v1067 = vsub.s32 %v1064, %v1066
    %v1068 = vrot.slane %v1040, %v1067
    %v1069 = vcombine.high %v1047, %v1047
    %v1070 = vcombine.high %v1054, %v1054
    %v1071 = vcombine.high %v1061, %v1061
    %v1072 = vcombine.high %v1068, %v1068
    %v1073 = vlaneseq
    %v1074 = vshrl.u32 %v1073, 7
    %v1075 = vsub.s32 0, %v1074
    %v1076 = vrot.slane %v998, %v1075
    %v1077 = vlaneseq
    %v1078 = vshrl.u32 %v1077, 7
    %v1079 = vsub.s32 0, %v1078
    %v1080 = vrot.slane %v1012, %v1079
    %v1081 = vlaneseq
    %v1082 = vshrl.u32 %v1081, 7
    %v1083 = vsub.s32 0, %v1082
    %v1084 = vrot.slane %v1020, %v1083
    %v1085 = vlaneseq
    %v1086 = vshrl.u32 %v1085, 7
    %v1087 = vsub.s32 0, %v1086
    %v1088 = vrot.slane %v1022, %v1087
    %v1089 = vlaneseq
    %v1090 = vshrl.u32 %v1089, 7
    %v1091 = vsub.s32 0, %v1090
    %v1092 = vrot.slane %v1005, %v1091
    %v1093 = vlaneseq
    %v1094 = vshrl.u32 %v1093, 7
    %v1095 = vsub.s32 0, %v1094
    %v1096 = vrot.slane %v1019, %v1095
    %v1097 = vlaneseq
    %v1098 = vshrl.u32 %v1097, 7
    %v1099 = vsub.s32 0, %v1098
    %v1100 = vrot.slane %v1021, %v1099
    %v1101 = vlaneseq
    %v1102 = vshrl.u32 %v1101, 7
    %v1103 = vsub.s32 0, %v1102
    %v1104 = vrot.slane %v1023, %v1103
    %v1105 = vlaneseq
    %v1106 = vshrl.u32 %v1105, 7
    %v1107 = vsub.s32 0, %v1106
    %v1108 = vrot.slane %v1047, %v1107
    %v1109 = vlaneseq
    %v1110 = vshrl.u32 %v1109, 7
    %v1111 = vsub.s32 0, %v1110
    %v1112 = vrot.slane %v1061, %v1111
    %v1113 = vlaneseq
    %v1114 = vshrl.u32 %v1113, 7
    %v1115 = vsub.s32 0, %v1114
    %v1116 = vrot.slane %v1069, %v1115
    %v1117 = vlaneseq
    %v1118 = vshrl.u32 %v1117, 7
    %v1119 = vsub.s32 0, %v1118
    %v1120 = vrot.slane %v1071, %v1119
    %v1121 = vlaneseq
    %v1122 = vshrl.u32 %v1121, 7
    %v1123 = vsub.s32 0, %v1122
    %v1124 = vrot.slane %v1054, %v1123
    %v1125 = vlaneseq
    %v1126 = vshrl.u32 %v1125, 7
    %v1127 = vsub.s32 0, %v1126
    %v1128 = vrot.slane %v1068, %v1127
    %v1129 = vlaneseq
    %v1130 = vshrl.u32 %v1129, 7
    %v1131 = vsub.s32 0, %v1130
    %v1132 = vrot.slane %v1070, %v1131
    %v1133 = vlaneseq
    %v1134 = vshrl.u32 %v1133, 7
    %v1135 = vsub.s32 0, %v1134
    %v1136 = vrot.slane %v1072, %v1135
    %1137 = vrot.lane.b32.xlu0 %v1076, 96
    %v1138 = vpop.permute.xlu0 %1137
    %1139 = vrot.lane.b32.xlu0 %v1080, 96
    %v1140 = vpop.permute.xlu0 %1139
    %1141 = vrot.lane.b32.xlu0 %v1084, 96
    %v1142 = vpop.permute.xlu0 %1141
    %1143 = vrot.lane.b32.xlu0 %v1088, 96
    %v1144 = vpop.permute.xlu0 %1143
    %1145 = vrot.lane.b32.xlu0 %v1092, 96
    %v1146 = vpop.permute.xlu0 %1145
    %1147 = vrot.lane.b32.xlu0 %v1096, 96
    %v1148 = vpop.permute.xlu0 %1147
    %1149 = vrot.lane.b32.xlu0 %v1100, 96
    %v1150 = vpop.permute.xlu0 %1149
    %1151 = vrot.lane.b32.xlu0 %v1104, 96
    %v1152 = vpop.permute.xlu0 %1151
    %1153 = vrot.lane.b32.xlu0 %v1108, 96
    %v1154 = vpop.permute.xlu0 %1153
    %1155 = vrot.lane.b32.xlu0 %v1112, 96
    %v1156 = vpop.permute.xlu0 %1155
    %1157 = vrot.lane.b32.xlu0 %v1116, 96
    %v1158 = vpop.permute.xlu0 %1157
    %1159 = vrot.lane.b32.xlu0 %v1120, 96
    %v1160 = vpop.permute.xlu0 %1159
    %1161 = vrot.lane.b32.xlu0 %v1124, 96
    %v1162 = vpop.permute.xlu0 %1161
    %1163 = vrot.lane.b32.xlu0 %v1128, 96
    %v1164 = vpop.permute.xlu0 %1163
    %1165 = vrot.lane.b32.xlu0 %v1132, 96
    %v1166 = vpop.permute.xlu0 %1165
    %1167 = vrot.lane.b32.xlu0 %v1136, 96
    %v1168 = vpop.permute.xlu0 %1167
    %v1185 = vadd.f32 %v941, %v1138
    %v1186 = vadd.f32 %v942, %v1138
    %v1187 = vadd.f32 %v943, %v1140
    %v1188 = vadd.f32 %v944, %v1140
    %v1189 = vadd.f32 %v945, %v1142
    %v1190 = vadd.f32 %v946, %v1142
    %v1191 = vadd.f32 %v947, %v1144
    %v1192 = vadd.f32 %v948, %v1144
    %v1193 = vadd.f32 %v949, %v1146
    %v1194 = vadd.f32 %v950, %v1146
    %v1195 = vadd.f32 %v951, %v1148
    %v1196 = vadd.f32 %v952, %v1148
    %v1197 = vadd.f32 %v953, %v1150
    %v1198 = vadd.f32 %v954, %v1150
    %v1199 = vadd.f32 %v955, %v1152
    %v1200 = vadd.f32 %v956, %v1152
    %v1201 = vadd.f32 %v957, %v1154
    %v1202 = vadd.f32 %v958, %v1154
    %v1203 = vadd.f32 %v959, %v1156
    %v1204 = vadd.f32 %v960, %v1156
    %v1205 = vadd.f32 %v961, %v1158
    %v1206 = vadd.f32 %v962, %v1158
    %v1207 = vadd.f32 %v963, %v1160
    %v1208 = vadd.f32 %v964, %v1160
    %v1209 = vadd.f32 %v965, %v1162
    %v1210 = vadd.f32 %v966, %v1162
    %v1211 = vadd.f32 %v967, %v1164
    %v1212 = vadd.f32 %v968, %v1164
    %v1213 = vadd.f32 %v969, %v1166
    %v1214 = vadd.f32 %v970, %v1166
    %v1215 = vadd.f32 %v971, %v1168
    %v1216 = vadd.f32 %v972, %v1168
    %vm1217 = vcmp.gt.f32.partialorder %v1185, 0.0
    %vm1218 = vcmp.gt.f32.partialorder %v1186, 0.0
    %vm1219 = vcmp.gt.f32.partialorder %v1187, 0.0
    %vm1220 = vcmp.gt.f32.partialorder %v1188, 0.0
    %vm1221 = vcmp.gt.f32.partialorder %v1189, 0.0
    %vm1222 = vcmp.gt.f32.partialorder %v1190, 0.0
    %vm1223 = vcmp.gt.f32.partialorder %v1191, 0.0
    %vm1224 = vcmp.gt.f32.partialorder %v1192, 0.0
    %vm1225 = vcmp.gt.f32.partialorder %v1193, 0.0
    %vm1226 = vcmp.gt.f32.partialorder %v1194, 0.0
    %vm1227 = vcmp.gt.f32.partialorder %v1195, 0.0
    %vm1228 = vcmp.gt.f32.partialorder %v1196, 0.0
    %vm1229 = vcmp.gt.f32.partialorder %v1197, 0.0
    %vm1230 = vcmp.gt.f32.partialorder %v1198, 0.0
    %vm1231 = vcmp.gt.f32.partialorder %v1199, 0.0
    %vm1232 = vcmp.gt.f32.partialorder %v1200, 0.0
    %vm1233 = vcmp.gt.f32.partialorder %v1201, 0.0
    %vm1234 = vcmp.gt.f32.partialorder %v1202, 0.0
    %vm1235 = vcmp.gt.f32.partialorder %v1203, 0.0
    %vm1236 = vcmp.gt.f32.partialorder %v1204, 0.0
    %vm1237 = vcmp.gt.f32.partialorder %v1205, 0.0
    %vm1238 = vcmp.gt.f32.partialorder %v1206, 0.0
    %vm1239 = vcmp.gt.f32.partialorder %v1207, 0.0
    %vm1240 = vcmp.gt.f32.partialorder %v1208, 0.0
    %vm1241 = vcmp.gt.f32.partialorder %v1209, 0.0
    %vm1242 = vcmp.gt.f32.partialorder %v1210, 0.0
    %vm1243 = vcmp.gt.f32.partialorder %v1211, 0.0
    %vm1244 = vcmp.gt.f32.partialorder %v1212, 0.0
    %vm1245 = vcmp.gt.f32.partialorder %v1213, 0.0
    %vm1246 = vcmp.gt.f32.partialorder %v1214, 0.0
    %vm1247 = vcmp.gt.f32.partialorder %v1215, 0.0
    %vm1248 = vcmp.gt.f32.partialorder %v1216, 0.0
    %v1249 = vmul.f32 %v1185, 0.2
    %v1250 = vmul.f32 %v1186, 0.2
    %v1251 = vmul.f32 %v1187, 0.2
    %v1252 = vmul.f32 %v1188, 0.2
    %v1253 = vmul.f32 %v1189, 0.2
    %v1254 = vmul.f32 %v1190, 0.2
    %v1255 = vmul.f32 %v1191, 0.2
    %v1256 = vmul.f32 %v1192, 0.2
    %v1257 = vmul.f32 %v1193, 0.2
    %v1258 = vmul.f32 %v1194, 0.2
    %v1259 = vmul.f32 %v1195, 0.2
    %v1260 = vmul.f32 %v1196, 0.2
    %v1261 = vmul.f32 %v1197, 0.2
    %v1262 = vmul.f32 %v1198, 0.2
    %v1263 = vmul.f32 %v1199, 0.2
    %v1264 = vmul.f32 %v1200, 0.2
    %v1265 = vmul.f32 %v1201, 0.2
    %v1266 = vmul.f32 %v1202, 0.2
    %v1267 = vmul.f32 %v1203, 0.2
    %v1268 = vmul.f32 %v1204, 0.2
    %v1269 = vmul.f32 %v1205, 0.2
    %v1270 = vmul.f32 %v1206, 0.2
    %v1271 = vmul.f32 %v1207, 0.2
    %v1272 = vmul.f32 %v1208, 0.2
    %v1273 = vmul.f32 %v1209, 0.2
    %v1274 = vmul.f32 %v1210, 0.2
    %v1275 = vmul.f32 %v1211, 0.2
    %v1276 = vmul.f32 %v1212, 0.2
    %v1277 = vmul.f32 %v1213, 0.2
    %v1278 = vmul.f32 %v1214, 0.2
    %v1279 = vmul.f32 %v1215, 0.2
    %v1280 = vmul.f32 %v1216, 0.2
    %v1281 = vsel %vm1217, %v1185, %v1249
    %v1282 = vsel %vm1218, %v1186, %v1250
    %v1283 = vsel %vm1219, %v1187, %v1251
    %v1284 = vsel %vm1220, %v1188, %v1252
    %v1285 = vsel %vm1221, %v1189, %v1253
    %v1286 = vsel %vm1222, %v1190, %v1254
    %v1287 = vsel %vm1223, %v1191, %v1255
    %v1288 = vsel %vm1224, %v1192, %v1256
    %v1289 = vsel %vm1225, %v1193, %v1257
    %v1290 = vsel %vm1226, %v1194, %v1258
    %v1291 = vsel %vm1227, %v1195, %v1259
    %v1292 = vsel %vm1228, %v1196, %v1260
    %v1293 = vsel %vm1229, %v1197, %v1261
    %v1294 = vsel %vm1230, %v1198, %v1262
    %v1295 = vsel %vm1231, %v1199, %v1263
    %v1296 = vsel %vm1232, %v1200, %v1264
    %v1297 = vsel %vm1233, %v1201, %v1265
    %v1298 = vsel %vm1234, %v1202, %v1266
    %v1299 = vsel %vm1235, %v1203, %v1267
    %v1300 = vsel %vm1236, %v1204, %v1268
    %v1301 = vsel %vm1237, %v1205, %v1269
    %v1302 = vsel %vm1238, %v1206, %v1270
    %v1303 = vsel %vm1239, %v1207, %v1271
    %v1304 = vsel %vm1240, %v1208, %v1272
    %v1305 = vsel %vm1241, %v1209, %v1273
    %v1306 = vsel %vm1242, %v1210, %v1274
    %v1307 = vsel %vm1243, %v1211, %v1275
    %v1308 = vsel %vm1244, %v1212, %v1276
    %v1309 = vsel %vm1245, %v1213, %v1277
    %v1310 = vsel %vm1246, %v1214, %v1278
    %v1311 = vsel %vm1247, %v1215, %v1279
    %v1312 = vsel %vm1248, %v1216, %v1280
    %v1314 = vsel %vm538, %v1281, 0
    %v1317 = vsel %vm538, %v1282, 0
    %v1320 = vsel %vm538, %v1283, 0
    %v1323 = vsel %vm538, %v1284, 0
    %v1326 = vsel %vm538, %v1285, 0
    %v1329 = vsel %vm538, %v1286, 0
    %v1332 = vsel %vm538, %v1287, 0
    %v1335 = vsel %vm538, %v1288, 0
    %v1338 = vsel %vm538, %v1289, 0
    %v1341 = vsel %vm538, %v1290, 0
    %v1344 = vsel %vm538, %v1291, 0
    %v1347 = vsel %vm538, %v1292, 0
    %v1350 = vsel %vm538, %v1293, 0
    %v1353 = vsel %vm538, %v1294, 0
    %v1356 = vsel %vm538, %v1295, 0
    %v1359 = vsel %vm538, %v1296, 0
    %v1362 = vsel %vm538, %v1297, 0
    %v1365 = vsel %vm538, %v1298, 0
    %v1368 = vsel %vm538, %v1299, 0
    %v1371 = vsel %vm538, %v1300, 0
    %v1374 = vsel %vm538, %v1301, 0
    %v1377 = vsel %vm538, %v1302, 0
    %v1380 = vsel %vm538, %v1303, 0
    %v1383 = vsel %vm538, %v1304, 0
    %v1386 = vsel %vm538, %v1305, 0
    %v1389 = vsel %vm538, %v1306, 0
    %v1392 = vsel %vm538, %v1307, 0
    %v1395 = vsel %vm538, %v1308, 0
    %v1398 = vsel %vm538, %v1309, 0
    %v1401 = vsel %vm538, %v1310, 0
    %v1404 = vsel %vm538, %v1311, 0
    %v1407 = vsel %vm538, %v1312, 0
    %1409 = vmatprep.subr.mxu0 0.0
    %1410 = vmatpush1.msra.mxu0 %v524
    %1411 = vmatprep.subr.mxu0 0.0
    %1412 = vmatpush1.msra.mxu0 %v525
    %1413 = vmatprep.subr.mxu0 0.0
    %1414 = vmatpush1.msra.mxu0 %v526
    %1415 = vmatprep.subr.mxu0 0.0
    %1416 = vmatpush1.msra.mxu0 %v527
    %1417 = vmatprep.subr.mxu0 0.0
    %1418 = vmatpush1.msra.mxu0 0.0
    %1419 = vmatprep.subr.mxu0 0.0
    %1420 = vmatpush1.msra.mxu0 0.0
    %1421 = vmatprep.subr.mxu0 0.0
    %1422 = vmatpush1.msra.mxu0 0.0
    %1423 = vmatprep.subr.mxu0 0.0
    %1424 = vmatpush1.msra.mxu0 0.0
    %1425 = vmatprep.subr.mxu0 0.0
    %1426 = vmatpush1.msra.mxu0 0.0
    %1427 = vmatprep.subr.mxu0 0.0
    %1428 = vmatpush1.msra.mxu0 0.0
    %1429 = vmatprep.subr.mxu0 0.0
    %1430 = vmatpush1.msra.mxu0 0.0
    %1431 = vmatprep.subr.mxu0 0.0
    %1432 = vmatpush1.msra.mxu0 0.0
    %1433 = vmatprep.subr.mxu0 0.0
    %1434 = vmatpush1.msra.mxu0 0.0
    %1435 = vmatprep.subr.mxu0 0.0
    %1436 = vmatpush1.msra.mxu0 0.0
    %1437 = vmatprep.subr.mxu0 0.0
    %1438 = vmatpush1.msra.mxu0 0.0
    %1439 = vmatprep.subr.mxu0 0.0
    %1440 = vmatpush1.msra.mxu0 0.0
    %1441 = vmatprep.subr.mxu0 0.0
    %1442 = vmatpush1.msra.mxu0 0.0
    %1443 = vmatprep.subr.mxu0 0.0
    %1444 = vmatpush1.msra.mxu0 0.0
    %1445 = vmatprep.subr.mxu0 0.0
    %1446 = vmatpush1.msra.mxu0 0.0
    %1447 = vmatprep.subr.mxu0 0.0
    %1448 = vmatpush1.msra.mxu0 0.0
    %1449 = vmatprep.subr.mxu0 0.0
    %1450 = vmatpush1.msra.mxu0 0.0
    %1451 = vmatprep.subr.mxu0 0.0
    %1452 = vmatpush1.msra.mxu0 0.0
    %1453 = vmatprep.subr.mxu0 0.0
    %1454 = vmatpush1.msra.mxu0 0.0
    %1455 = vmatprep.subr.mxu0 0.0
    %1456 = vmatpush1.msra.mxu0 0.0
    %1457 = vmatprep.subr.mxu0 0.0
    %1458 = vmatpush1.msra.mxu0 0.0
    %1459 = vmatprep.subr.mxu0 0.0
    %1460 = vmatpush1.msra.mxu0 0.0
    %1461 = vmatprep.subr.mxu0 0.0
    %1462 = vmatpush1.msra.mxu0 0.0
    %1463 = vmatprep.subr.mxu0 0.0
    %1464 = vmatpush1.msra.mxu0 0.0
    %1465 = vmatprep.subr.mxu0 0.0
    %1466 = vmatpush1.msra.mxu0 0.0
    %1467 = vmatprep.subr.mxu0 0.0
    %1468 = vmatpush1.msra.mxu0 0.0
    %1469 = vmatprep.subr.mxu0 0.0
    %1470 = vmatpush1.msra.mxu0 0.0
    %1471 = vmatprep.subr.mxu0 0.0
    %1472 = vmatpush1.msra.mxu0 0.0
    %1473 = vmatprep.mubr.f32.mxu0 0.0
    %1474 = vmatmul.mubr.f32.gmra.mrb[0].mxu0 %v1314
    %v1475 = vpop.f32.mrb[0].mxu0
    %v1476 = vadd.f32 0.0, %v1475
    %v1477 = vpop.f32.mrb[0].mxu0
    %1478 = vmatprep.mubr.f32.mxu0 0.0
    %1479 = vmatmul.mubr.f32.gmra.mrb[0].mxu0 %v1317
    %v1480 = vpop.f32.mrb[0].mxu0
    %v1481 = vadd.f32 0.0, %v1480
    %v1482 = vpop.f32.mrb[0].mxu0
    %1483 = vmatprep.mubr.f32.mxu0 0.0
    %1484 = vmatmul.mubr.f32.gmra.mrb[0].mxu0 %v1320
    %v1485 = vpop.f32.mrb[0].mxu0
    %v1486 = vadd.f32 0.0, %v1485
    %v1487 = vpop.f32.mrb[0].mxu0
    %1488 = vmatprep.mubr.f32.mxu0 0.0
    %1489 = vmatmul.mubr.f32.gmra.mrb[0].mxu0 %v1323
    %v1490 = vpop.f32.mrb[0].mxu0
    %v1491 = vadd.f32 0.0, %v1490
    %v1492 = vpop.f32.mrb[0].mxu0
    %1493 = vmatprep.mubr.f32.mxu0 0.0
    %1494 = vmatmul.mubr.f32.gmra.mrb[0].mxu0 %v1326
    %v1495 = vpop.f32.mrb[0].mxu0
    %v1496 = vadd.f32 0.0, %v1495
    %v1497 = vpop.f32.mrb[0].mxu0
    %1498 = vmatprep.mubr.f32.mxu0 0.0
    %1499 = vmatmul.mubr.f32.gmra.mrb[0].mxu0 %v1329
    %v1500 = vpop.f32.mrb[0].mxu0
    %v1501 = vadd.f32 0.0, %v1500
    %v1502 = vpop.f32.mrb[0].mxu0
    %1503 = vmatprep.mubr.f32.mxu0 0.0
    %1504 = vmatmul.mubr.f32.gmra.mrb[0].mxu0 %v1332
    %v1505 = vpop.f32.mrb[0].mxu0
    %v1506 = vadd.f32 0.0, %v1505
    %v1507 = vpop.f32.mrb[0].mxu0
    %1508 = vmatprep.mubr.f32.mxu0 0.0
    %1509 = vmatmul.mubr.f32.gmra.mrb[0].mxu0 %v1335
    %v1510 = vpop.f32.mrb[0].mxu0
    %v1511 = vadd.f32 0.0, %v1510
    %v1512 = vpop.f32.mrb[0].mxu0
    %1513 = vmatprep.mubr.f32.mxu0 0.0
    %1514 = vmatmul.mubr.f32.gmra.mrb[0].mxu0 %v1338
    %v1515 = vpop.f32.mrb[0].mxu0
    %v1516 = vadd.f32 0.0, %v1515
    %v1517 = vpop.f32.mrb[0].mxu0
    %1518 = vmatprep.mubr.f32.mxu0 0.0
    %1519 = vmatmul.mubr.f32.gmra.mrb[0].mxu0 %v1341
    %v1520 = vpop.f32.mrb[0].mxu0
    %v1521 = vadd.f32 0.0, %v1520
    %v1522 = vpop.f32.mrb[0].mxu0
    %1523 = vmatprep.mubr.f32.mxu0 0.0
    %1524 = vmatmul.mubr.f32.gmra.mrb[0].mxu0 %v1344
    %v1525 = vpop.f32.mrb[0].mxu0
    %v1526 = vadd.f32 0.0, %v1525
    %v1527 = vpop.f32.mrb[0].mxu0
    %1528 = vmatprep.mubr.f32.mxu0 0.0
    %1529 = vmatmul.mubr.f32.gmra.mrb[0].mxu0 %v1347
    %v1530 = vpop.f32.mrb[0].mxu0
    %v1531 = vadd.f32 0.0, %v1530
    %v1532 = vpop.f32.mrb[0].mxu0
    %1533 = vmatprep.mubr.f32.mxu0 0.0
    %1534 = vmatmul.mubr.f32.gmra.mrb[0].mxu0 %v1350
    %v1535 = vpop.f32.mrb[0].mxu0
    %v1536 = vadd.f32 0.0, %v1535
    %v1537 = vpop.f32.mrb[0].mxu0
    %1538 = vmatprep.mubr.f32.mxu0 0.0
    %1539 = vmatmul.mubr.f32.gmra.mrb[0].mxu0 %v1353
    %v1540 = vpop.f32.mrb[0].mxu0
    %v1541 = vadd.f32 0.0, %v1540
    %v1542 = vpop.f32.mrb[0].mxu0
    %1543 = vmatprep.mubr.f32.mxu0 0.0
    %1544 = vmatmul.mubr.f32.gmra.mrb[0].mxu0 %v1356
    %v1545 = vpop.f32.mrb[0].mxu0
    %v1546 = vadd.f32 0.0, %v1545
    %v1547 = vpop.f32.mrb[0].mxu0
    %1548 = vmatprep.mubr.f32.mxu0 0.0
    %1549 = vmatmul.mubr.f32.gmra.mrb[0].mxu0 %v1359
    %v1550 = vpop.f32.mrb[0].mxu0
    %v1551 = vadd.f32 0.0, %v1550
    %v1552 = vpop.f32.mrb[0].mxu0
    %1553 = vmatprep.mubr.f32.mxu0 0.0
    %1554 = vmatmul.mubr.f32.gmra.mrb[0].mxu0 %v1362
    %v1555 = vpop.f32.mrb[0].mxu0
    %v1556 = vadd.f32 0.0, %v1555
    %v1557 = vpop.f32.mrb[0].mxu0
    %1558 = vmatprep.mubr.f32.mxu0 0.0
    %1559 = vmatmul.mubr.f32.gmra.mrb[0].mxu0 %v1365
    %v1560 = vpop.f32.mrb[0].mxu0
    %v1561 = vadd.f32 0.0, %v1560
    %v1562 = vpop.f32.mrb[0].mxu0
    %1563 = vmatprep.mubr.f32.mxu0 0.0
    %1564 = vmatmul.mubr.f32.gmra.mrb[0].mxu0 %v1368
    %v1565 = vpop.f32.mrb[0].mxu0
    %v1566 = vadd.f32 0.0, %v1565
    %v1567 = vpop.f32.mrb[0].mxu0
    %1568 = vmatprep.mubr.f32.mxu0 0.0
    %1569 = vmatmul.mubr.f32.gmra.mrb[0].mxu0 %v1371
    %v1570 = vpop.f32.mrb[0].mxu0
    %v1571 = vadd.f32 0.0, %v1570
    %v1572 = vpop.f32.mrb[0].mxu0
    %1573 = vmatprep.mubr.f32.mxu0 0.0
    %1574 = vmatmul.mubr.f32.gmra.mrb[0].mxu0 %v1374
    %v1575 = vpop.f32.mrb[0].mxu0
    %v1576 = vadd.f32 0.0, %v1575
    %v1577 = vpop.f32.mrb[0].mxu0
    %1578 = vmatprep.mubr.f32.mxu0 0.0
    %1579 = vmatmul.mubr.f32.gmra.mrb[0].mxu0 %v1377
    %v1580 = vpop.f32.mrb[0].mxu0
    %v1581 = vadd.f32 0.0, %v1580
    %v1582 = vpop.f32.mrb[0].mxu0
    %1583 = vmatprep.mubr.f32.mxu0 0.0
    %1584 = vmatmul.mubr.f32.gmra.mrb[0].mxu0 %v1380
    %v1585 = vpop.f32.mrb[0].mxu0
    %v1586 = vadd.f32 0.0, %v1585
    %v1587 = vpop.f32.mrb[0].mxu0
    %1588 = vmatprep.mubr.f32.mxu0 0.0
    %1589 = vmatmul.mubr.f32.gmra.mrb[0].mxu0 %v1383
    %v1590 = vpop.f32.mrb[0].mxu0
    %v1591 = vadd.f32 0.0, %v1590
    %v1592 = vpop.f32.mrb[0].mxu0
    %1593 = vmatprep.mubr.f32.mxu0 0.0
    %1594 = vmatmul.mubr.f32.gmra.mrb[0].mxu0 %v1386
    %v1595 = vpop.f32.mrb[0].mxu0
    %v1596 = vadd.f32 0.0, %v1595
    %v1597 = vpop.f32.mrb[0].mxu0
    %1598 = vmatprep.mubr.f32.mxu0 0.0
    %1599 = vmatmul.mubr.f32.gmra.mrb[0].mxu0 %v1389
    %v1600 = vpop.f32.mrb[0].mxu0
    %v1601 = vadd.f32 0.0, %v1600
    %v1602 = vpop.f32.mrb[0].mxu0
    %1603 = vmatprep.mubr.f32.mxu0 0.0
    %1604 = vmatmul.mubr.f32.gmra.mrb[0].mxu0 %v1392
    %v1605 = vpop.f32.mrb[0].mxu0
    %v1606 = vadd.f32 0.0, %v1605
    %v1607 = vpop.f32.mrb[0].mxu0
    %1608 = vmatprep.mubr.f32.mxu0 0.0
    %1609 = vmatmul.mubr.f32.gmra.mrb[0].mxu0 %v1395
    %v1610 = vpop.f32.mrb[0].mxu0
    %v1611 = vadd.f32 0.0, %v1610
    %v1612 = vpop.f32.mrb[0].mxu0
    %1613 = vmatprep.mubr.f32.mxu0 0.0
    %1614 = vmatmul.mubr.f32.gmra.mrb[0].mxu0 %v1398
    %v1615 = vpop.f32.mrb[0].mxu0
    %v1616 = vadd.f32 0.0, %v1615
    %v1617 = vpop.f32.mrb[0].mxu0
    %1618 = vmatprep.mubr.f32.mxu0 0.0
    %1619 = vmatmul.mubr.f32.gmra.mrb[0].mxu0 %v1401
    %v1620 = vpop.f32.mrb[0].mxu0
    %v1621 = vadd.f32 0.0, %v1620
    %v1622 = vpop.f32.mrb[0].mxu0
    %1623 = vmatprep.mubr.f32.mxu0 0.0
    %1624 = vmatmul.mubr.f32.gmra.mrb[0].mxu0 %v1404
    %v1625 = vpop.f32.mrb[0].mxu0
    %v1626 = vadd.f32 0.0, %v1625
    %v1627 = vpop.f32.mrb[0].mxu0
    %1628 = vmatprep.mubr.f32.mxu0 0.0
    %1629 = vmatmul.mubr.f32.gmra.mrb[0].mxu0 %v1407
    %v1630 = vpop.f32.mrb[0].mxu0
    %v1631 = vadd.f32 0.0, %v1630
    %v1632 = vpop.f32.mrb[0].mxu0
    %1633 = vdwg.mxu0
    %v1634 = vadd.f32 %v1476, %v453
    %v1635 = vadd.f32 %v1481, %v454
    %v1636 = vadd.f32 %v1486, %v455
    %v1637 = vadd.f32 %v1491, %v456
    %v1638 = vadd.f32 %v1496, %v457
    %v1639 = vadd.f32 %v1501, %v458
    %v1640 = vadd.f32 %v1506, %v459
    %v1641 = vadd.f32 %v1511, %v460
    %v1642 = vadd.f32 %v1516, %v461
    %v1643 = vadd.f32 %v1521, %v462
    %v1644 = vadd.f32 %v1526, %v463
    %v1645 = vadd.f32 %v1531, %v464
    %v1646 = vadd.f32 %v1536, %v465
    %v1647 = vadd.f32 %v1541, %v466
    %v1648 = vadd.f32 %v1546, %v467
    %v1649 = vadd.f32 %v1551, %v468
    %v1650 = vadd.f32 %v1556, %v469
    %v1651 = vadd.f32 %v1561, %v470
    %v1652 = vadd.f32 %v1566, %v471
    %v1653 = vadd.f32 %v1571, %v472
    %v1654 = vadd.f32 %v1576, %v473
    %v1655 = vadd.f32 %v1581, %v474
    %v1656 = vadd.f32 %v1586, %v475
    %v1657 = vadd.f32 %v1591, %v476
    %v1658 = vadd.f32 %v1596, %v477
    %v1659 = vadd.f32 %v1601, %v478
    %v1660 = vadd.f32 %v1606, %v479
    %v1661 = vadd.f32 %v1611, %v480
    %v1662 = vadd.f32 %v1616, %v481
    %v1663 = vadd.f32 %v1621, %v482
    %v1664 = vadd.f32 %v1626, %v483
    %v1665 = vadd.f32 %v1631, %v484
    %vm1666 = vcmask 31744
    %v1667 = vsel %vm1666, %v1634, -inf
    %v1668 = vsel %vm1666, %v1635, -inf
    %v1669 = vmax.f32 %v1667, %v1668
    %v1670 = vrot.slane %v1669, 4
    %v1671 = vmax.f32 %v1669, %v1670
    %v1672 = vrot.slane %v1671, 2
    %v1673 = vmax.f32 %v1671, %v1672
    %v1674 = vrot.slane %v1673, 1
    %v1675 = vmax.f32 %v1673, %v1674
    %v1676 = vsel %vm1666, %v1636, -inf
    %v1677 = vsel %vm1666, %v1637, -inf
    %v1678 = vmax.f32 %v1676, %v1677
    %v1679 = vrot.slane %v1678, 4
    %v1680 = vmax.f32 %v1678, %v1679
    %v1681 = vrot.slane %v1680, 2
    %v1682 = vmax.f32 %v1680, %v1681
    %v1683 = vrot.slane %v1682, 1
    %v1684 = vmax.f32 %v1682, %v1683
    %v1685 = vsel %vm1666, %v1638, -inf
    %v1686 = vsel %vm1666, %v1639, -inf
    %v1687 = vmax.f32 %v1685, %v1686
    %v1688 = vrot.slane %v1687, 4
    %v1689 = vmax.f32 %v1687, %v1688
    %v1690 = vrot.slane %v1689, 2
    %v1691 = vmax.f32 %v1689, %v1690
    %v1692 = vrot.slane %v1691, 1
    %v1693 = vmax.f32 %v1691, %v1692
    %v1694 = vsel %vm1666, %v1640, -inf
    %v1695 = vsel %vm1666, %v1641, -inf
    %v1696 = vmax.f32 %v1694, %v1695
    %v1697 = vrot.slane %v1696, 4
    %v1698 = vmax.f32 %v1696, %v1697
    %v1699 = vrot.slane %v1698, 2
    %v1700 = vmax.f32 %v1698, %v1699
    %v1701 = vrot.slane %v1700, 1
    %v1702 = vmax.f32 %v1700, %v1701
    %v1703 = vsel %vm1666, %v1642, -inf
    %v1704 = vsel %vm1666, %v1643, -inf
    %v1705 = vmax.f32 %v1703, %v1704
    %v1706 = vrot.slane %v1705, 4
    %v1707 = vmax.f32 %v1705, %v1706
    %v1708 = vrot.slane %v1707, 2
    %v1709 = vmax.f32 %v1707, %v1708
    %v1710 = vrot.slane %v1709, 1
    %v1711 = vmax.f32 %v1709, %v1710
    %v1712 = vsel %vm1666, %v1644, -inf
    %v1713 = vsel %vm1666, %v1645, -inf
    %v1714 = vmax.f32 %v1712, %v1713
    %v1715 = vrot.slane %v1714, 4
    %v1716 = vmax.f32 %v1714, %v1715
    %v1717 = vrot.slane %v1716, 2
    %v1718 = vmax.f32 %v1716, %v1717
    %v1719 = vrot.slane %v1718, 1
    %v1720 = vmax.f32 %v1718, %v1719
    %v1721 = vsel %vm1666, %v1646, -inf
    %v1722 = vsel %vm1666, %v1647, -inf
    %v1723 = vmax.f32 %v1721, %v1722
    %v1724 = vrot.slane %v1723, 4
    %v1725 = vmax.f32 %v1723, %v1724
    %v1726 = vrot.slane %v1725, 2
    %v1727 = vmax.f32 %v1725, %v1726
    %v1728 = vrot.slane %v1727, 1
    %v1729 = vmax.f32 %v1727, %v1728
    %v1730 = vsel %vm1666, %v1648, -inf
    %v1731 = vsel %vm1666, %v1649, -inf
    %v1732 = vmax.f32 %v1730, %v1731
    %v1733 = vrot.slane %v1732, 4
    %v1734 = vmax.f32 %v1732, %v1733
    %v1735 = vrot.slane %v1734, 2
    %v1736 = vmax.f32 %v1734, %v1735
    %v1737 = vrot.slane %v1736, 1
    %v1738 = vmax.f32 %v1736, %v1737
    %v1739 = vsel %vm1666, %v1650, -inf
    %v1740 = vsel %vm1666, %v1651, -inf
    %v1741 = vmax.f32 %v1739, %v1740
    %v1742 = vrot.slane %v1741, 4
    %v1743 = vmax.f32 %v1741, %v1742
    %v1744 = vrot.slane %v1743, 2
    %v1745 = vmax.f32 %v1743, %v1744
    %v1746 = vrot.slane %v1745, 1
    %v1747 = vmax.f32 %v1745, %v1746
    %v1748 = vsel %vm1666, %v1652, -inf
    %v1749 = vsel %vm1666, %v1653, -inf
    %v1750 = vmax.f32 %v1748, %v1749
    %v1751 = vrot.slane %v1750, 4
    %v1752 = vmax.f32 %v1750, %v1751
    %v1753 = vrot.slane %v1752, 2
    %v1754 = vmax.f32 %v1752, %v1753
    %v1755 = vrot.slane %v1754, 1
    %v1756 = vmax.f32 %v1754, %v1755
    %v1757 = vsel %vm1666, %v1654, -inf
    %v1758 = vsel %vm1666, %v1655, -inf
    %v1759 = vmax.f32 %v1757, %v1758
    %v1760 = vrot.slane %v1759, 4
    %v1761 = vmax.f32 %v1759, %v1760
    %v1762 = vrot.slane %v1761, 2
    %v1763 = vmax.f32 %v1761, %v1762
    %v1764 = vrot.slane %v1763, 1
    %v1765 = vmax.f32 %v1763, %v1764
    %v1766 = vsel %vm1666, %v1656, -inf
    %v1767 = vsel %vm1666, %v1657, -inf
    %v1768 = vmax.f32 %v1766, %v1767
    %v1769 = vrot.slane %v1768, 4
    %v1770 = vmax.f32 %v1768, %v1769
    %v1771 = vrot.slane %v1770, 2
    %v1772 = vmax.f32 %v1770, %v1771
    %v1773 = vrot.slane %v1772, 1
    %v1774 = vmax.f32 %v1772, %v1773
    %v1775 = vsel %vm1666, %v1658, -inf
    %v1776 = vsel %vm1666, %v1659, -inf
    %v1777 = vmax.f32 %v1775, %v1776
    %v1778 = vrot.slane %v1777, 4
    %v1779 = vmax.f32 %v1777, %v1778
    %v1780 = vrot.slane %v1779, 2
    %v1781 = vmax.f32 %v1779, %v1780
    %v1782 = vrot.slane %v1781, 1
    %v1783 = vmax.f32 %v1781, %v1782
    %v1784 = vsel %vm1666, %v1660, -inf
    %v1785 = vsel %vm1666, %v1661, -inf
    %v1786 = vmax.f32 %v1784, %v1785
    %v1787 = vrot.slane %v1786, 4
    %v1788 = vmax.f32 %v1786, %v1787
    %v1789 = vrot.slane %v1788, 2
    %v1790 = vmax.f32 %v1788, %v1789
    %v1791 = vrot.slane %v1790, 1
    %v1792 = vmax.f32 %v1790, %v1791
    %v1793 = vsel %vm1666, %v1662, -inf
    %v1794 = vsel %vm1666, %v1663, -inf
    %v1795 = vmax.f32 %v1793, %v1794
    %v1796 = vrot.slane %v1795, 4
    %v1797 = vmax.f32 %v1795, %v1796
    %v1798 = vrot.slane %v1797, 2
    %v1799 = vmax.f32 %v1797, %v1798
    %v1800 = vrot.slane %v1799, 1
    %v1801 = vmax.f32 %v1799, %v1800
    %v1802 = vsel %vm1666, %v1664, -inf
    %v1803 = vsel %vm1666, %v1665, -inf
    %v1804 = vmax.f32 %v1802, %v1803
    %v1805 = vrot.slane %v1804, 4
    %v1806 = vmax.f32 %v1804, %v1805
    %v1807 = vrot.slane %v1806, 2
    %v1808 = vmax.f32 %v1806, %v1807
    %v1809 = vrot.slane %v1808, 1
    %v1810 = vmax.f32 %v1808, %v1809
    %v1811 = vsub.f32 %v1634, %v1675
    %v1812 = vsub.f32 %v1635, %v1675
    %v1813 = vsub.f32 %v1636, %v1684
    %v1814 = vsub.f32 %v1637, %v1684
    %v1815 = vsub.f32 %v1638, %v1693
    %v1816 = vsub.f32 %v1639, %v1693
    %v1817 = vsub.f32 %v1640, %v1702
    %v1818 = vsub.f32 %v1641, %v1702
    %v1819 = vsub.f32 %v1642, %v1711
    %v1820 = vsub.f32 %v1643, %v1711
    %v1821 = vsub.f32 %v1644, %v1720
    %v1822 = vsub.f32 %v1645, %v1720
    %v1823 = vsub.f32 %v1646, %v1729
    %v1824 = vsub.f32 %v1647, %v1729
    %v1825 = vsub.f32 %v1648, %v1738
    %v1826 = vsub.f32 %v1649, %v1738
    %v1827 = vsub.f32 %v1650, %v1747
    %v1828 = vsub.f32 %v1651, %v1747
    %v1829 = vsub.f32 %v1652, %v1756
    %v1830 = vsub.f32 %v1653, %v1756
    %v1831 = vsub.f32 %v1654, %v1765
    %v1832 = vsub.f32 %v1655, %v1765
    %v1833 = vsub.f32 %v1656, %v1774
    %v1834 = vsub.f32 %v1657, %v1774
    %v1835 = vsub.f32 %v1658, %v1783
    %v1836 = vsub.f32 %v1659, %v1783
    %v1837 = vsub.f32 %v1660, %v1792
    %v1838 = vsub.f32 %v1661, %v1792
    %v1839 = vsub.f32 %v1662, %v1801
    %v1840 = vsub.f32 %v1663, %v1801
    %v1841 = vsub.f32 %v1664, %v1810
    %v1842 = vsub.f32 %v1665, %v1810
    %v1843 = vmul.f32 %v1811, 1.442695
    %v1844 = vpow.pop %v1843
    %v1845 = vmul.f32 %v1812, 1.442695
    %v1846 = vpow.pop %v1845
    %v1847 = vmul.f32 %v1813, 1.442695
    %v1848 = vpow.pop %v1847
    %v1849 = vmul.f32 %v1814, 1.442695
    %v1850 = vpow.pop %v1849
    %v1851 = vmul.f32 %v1815, 1.442695
    %v1852 = vpow.pop %v1851
    %v1853 = vmul.f32 %v1816, 1.442695
    %v1854 = vpow.pop %v1853
    %v1855 = vmul.f32 %v1817, 1.442695
    %v1856 = vpow.pop %v1855
    %v1857 = vmul.f32 %v1818, 1.442695
    %v1858 = vpow.pop %v1857
    %v1859 = vmul.f32 %v1819, 1.442695
    %v1860 = vpow.pop %v1859
    %v1861 = vmul.f32 %v1820, 1.442695
    %v1862 = vpow.pop %v1861
    %v1863 = vmul.f32 %v1821, 1.442695
    %v1864 = vpow.pop %v1863
    %v1865 = vmul.f32 %v1822, 1.442695
    %v1866 = vpow.pop %v1865
    %v1867 = vmul.f32 %v1823, 1.442695
    %v1868 = vpow.pop %v1867
    %v1869 = vmul.f32 %v1824, 1.442695
    %v1870 = vpow.pop %v1869
    %v1871 = vmul.f32 %v1825, 1.442695
    %v1872 = vpow.pop %v1871
    %v1873 = vmul.f32 %v1826, 1.442695
    %v1874 = vpow.pop %v1873
    %v1875 = vmul.f32 %v1827, 1.442695
    %v1876 = vpow.pop %v1875
    %v1877 = vmul.f32 %v1828, 1.442695
    %v1878 = vpow.pop %v1877
    %v1879 = vmul.f32 %v1829, 1.442695
    %v1880 = vpow.pop %v1879
    %v1881 = vmul.f32 %v1830, 1.442695
    %v1882 = vpow.pop %v1881
    %v1883 = vmul.f32 %v1831, 1.442695
    %v1884 = vpow.pop %v1883
    %v1885 = vmul.f32 %v1832, 1.442695
    %v1886 = vpow.pop %v1885
    %v1887 = vmul.f32 %v1833, 1.442695
    %v1888 = vpow.pop %v1887
    %v1889 = vmul.f32 %v1834, 1.442695
    %v1890 = vpow.pop %v1889
    %v1891 = vmul.f32 %v1835, 1.442695
    %v1892 = vpow.pop %v1891
    %v1893 = vmul.f32 %v1836, 1.442695
    %v1894 = vpow.pop %v1893
    %v1895 = vmul.f32 %v1837, 1.442695
    %v1896 = vpow.pop %v1895
    %v1897 = vmul.f32 %v1838, 1.442695
    %v1898 = vpow.pop %v1897
    %v1899 = vmul.f32 %v1839, 1.442695
    %v1900 = vpow.pop %v1899
    %v1901 = vmul.f32 %v1840, 1.442695
    %v1902 = vpow.pop %v1901
    %v1903 = vmul.f32 %v1841, 1.442695
    %v1904 = vpow.pop %v1903
    %v1905 = vmul.f32 %v1842, 1.442695
    %v1906 = vpow.pop %v1905
    %v1907 = vmul.f32 %v1844, %v251
    %v1908 = vmul.f32 %v1846, %v255
    %v1909 = vmul.f32 %v1848, %v262
    %v1910 = vmul.f32 %v1850, %v266
    %v1911 = vmul.f32 %v1852, %v273
    %v1912 = vmul.f32 %v1854, %v277
    %v1913 = vmul.f32 %v1856, %v284
    %v1914 = vmul.f32 %v1858, %v288
    %v1915 = vmul.f32 %v1860, %v295
    %v1916 = vmul.f32 %v1862, %v299
    %v1917 = vmul.f32 %v1864, %v306
    %v1918 = vmul.f32 %v1866, %v310
    %v1919 = vmul.f32 %v1868, %v317
    %v1920 = vmul.f32 %v1870, %v321
    %v1921 = vmul.f32 %v1872, %v328
    %v1922 = vmul.f32 %v1874, %v332
    %v1923 = vmul.f32 %v1876, %v339
    %v1924 = vmul.f32 %v1878, %v343
    %v1925 = vmul.f32 %v1880, %v350
    %v1926 = vmul.f32 %v1882, %v354
    %v1927 = vmul.f32 %v1884, %v361
    %v1928 = vmul.f32 %v1886, %v365
    %v1929 = vmul.f32 %v1888, %v372
    %v1930 = vmul.f32 %v1890, %v376
    %v1931 = vmul.f32 %v1892, %v383
    %v1932 = vmul.f32 %v1894, %v387
    %v1933 = vmul.f32 %v1896, %v394
    %v1934 = vmul.f32 %v1898, %v398
    %v1935 = vmul.f32 %v1900, %v405
    %v1936 = vmul.f32 %v1902, %v409
    %v1937 = vmul.f32 %v1904, %v416
    %v1938 = vmul.f32 %v1906, %v420
    %v1939 = vsel %vm1666, %v1907, 0.0
    %v1940 = vsel %vm1666, %v1908, 0.0
    %v1941 = vadd.f32 %v1939, %v1940
    %v1942 = vrot.slane %v1941, 4
    %v1943 = vadd.f32 %v1941, %v1942
    %v1944 = vrot.slane %v1943, 2
    %v1945 = vadd.f32 %v1943, %v1944
    %v1946 = vrot.slane %v1945, 1
    %v1947 = vadd.f32 %v1945, %v1946
    %v1948 = vsel %vm1666, %v1909, 0.0
    %v1949 = vsel %vm1666, %v1910, 0.0
    %v1950 = vadd.f32 %v1948, %v1949
    %v1951 = vrot.slane %v1950, 4
    %v1952 = vadd.f32 %v1950, %v1951
    %v1953 = vrot.slane %v1952, 2
    %v1954 = vadd.f32 %v1952, %v1953
    %v1955 = vrot.slane %v1954, 1
    %v1956 = vadd.f32 %v1954, %v1955
    %v1957 = vsel %vm1666, %v1911, 0.0
    %v1958 = vsel %vm1666, %v1912, 0.0
    %v1959 = vadd.f32 %v1957, %v1958
    %v1960 = vrot.slane %v1959, 4
    %v1961 = vadd.f32 %v1959, %v1960
    %v1962 = vrot.slane %v1961, 2
    %v1963 = vadd.f32 %v1961, %v1962
    %v1964 = vrot.slane %v1963, 1
    %v1965 = vadd.f32 %v1963, %v1964
    %v1966 = vsel %vm1666, %v1913, 0.0
    %v1967 = vsel %vm1666, %v1914, 0.0
    %v1968 = vadd.f32 %v1966, %v1967
    %v1969 = vrot.slane %v1968, 4
    %v1970 = vadd.f32 %v1968, %v1969
    %v1971 = vrot.slane %v1970, 2
    %v1972 = vadd.f32 %v1970, %v1971
    %v1973 = vrot.slane %v1972, 1
    %v1974 = vadd.f32 %v1972, %v1973
    %v1975 = vsel %vm1666, %v1915, 0.0
    %v1976 = vsel %vm1666, %v1916, 0.0
    %v1977 = vadd.f32 %v1975, %v1976
    %v1978 = vrot.slane %v1977, 4
    %v1979 = vadd.f32 %v1977, %v1978
    %v1980 = vrot.slane %v1979, 2
    %v1981 = vadd.f32 %v1979, %v1980
    %v1982 = vrot.slane %v1981, 1
    %v1983 = vadd.f32 %v1981, %v1982
    %v1984 = vsel %vm1666, %v1917, 0.0
    %v1985 = vsel %vm1666, %v1918, 0.0
    %v1986 = vadd.f32 %v1984, %v1985
    %v1987 = vrot.slane %v1986, 4
    %v1988 = vadd.f32 %v1986, %v1987
    %v1989 = vrot.slane %v1988, 2
    %v1990 = vadd.f32 %v1988, %v1989
    %v1991 = vrot.slane %v1990, 1
    %v1992 = vadd.f32 %v1990, %v1991
    %v1993 = vsel %vm1666, %v1919, 0.0
    %v1994 = vsel %vm1666, %v1920, 0.0
    %v1995 = vadd.f32 %v1993, %v1994
    %v1996 = vrot.slane %v1995, 4
    %v1997 = vadd.f32 %v1995, %v1996
    %v1998 = vrot.slane %v1997, 2
    %v1999 = vadd.f32 %v1997, %v1998
    %v2000 = vrot.slane %v1999, 1
    %v2001 = vadd.f32 %v1999, %v2000
    %v2002 = vsel %vm1666, %v1921, 0.0
    %v2003 = vsel %vm1666, %v1922, 0.0
    %v2004 = vadd.f32 %v2002, %v2003
    %v2005 = vrot.slane %v2004, 4
    %v2006 = vadd.f32 %v2004, %v2005
    %v2007 = vrot.slane %v2006, 2
    %v2008 = vadd.f32 %v2006, %v2007
    %v2009 = vrot.slane %v2008, 1
    %v2010 = vadd.f32 %v2008, %v2009
    %v2011 = vsel %vm1666, %v1923, 0.0
    %v2012 = vsel %vm1666, %v1924, 0.0
    %v2013 = vadd.f32 %v2011, %v2012
    %v2014 = vrot.slane %v2013, 4
    %v2015 = vadd.f32 %v2013, %v2014
    %v2016 = vrot.slane %v2015, 2
    %v2017 = vadd.f32 %v2015, %v2016
    %v2018 = vrot.slane %v2017, 1
    %v2019 = vadd.f32 %v2017, %v2018
    %v2020 = vsel %vm1666, %v1925, 0.0
    %v2021 = vsel %vm1666, %v1926, 0.0
    %v2022 = vadd.f32 %v2020, %v2021
    %v2023 = vrot.slane %v2022, 4
    %v2024 = vadd.f32 %v2022, %v2023
    %v2025 = vrot.slane %v2024, 2
    %v2026 = vadd.f32 %v2024, %v2025
    %v2027 = vrot.slane %v2026, 1
    %v2028 = vadd.f32 %v2026, %v2027
    %v2029 = vsel %vm1666, %v1927, 0.0
    %v2030 = vsel %vm1666, %v1928, 0.0
    %v2031 = vadd.f32 %v2029, %v2030
    %v2032 = vrot.slane %v2031, 4
    %v2033 = vadd.f32 %v2031, %v2032
    %v2034 = vrot.slane %v2033, 2
    %v2035 = vadd.f32 %v2033, %v2034
    %v2036 = vrot.slane %v2035, 1
    %v2037 = vadd.f32 %v2035, %v2036
    %v2038 = vsel %vm1666, %v1929, 0.0
    %v2039 = vsel %vm1666, %v1930, 0.0
    %v2040 = vadd.f32 %v2038, %v2039
    %v2041 = vrot.slane %v2040, 4
    %v2042 = vadd.f32 %v2040, %v2041
    %v2043 = vrot.slane %v2042, 2
    %v2044 = vadd.f32 %v2042, %v2043
    %v2045 = vrot.slane %v2044, 1
    %v2046 = vadd.f32 %v2044, %v2045
    %v2047 = vsel %vm1666, %v1931, 0.0
    %v2048 = vsel %vm1666, %v1932, 0.0
    %v2049 = vadd.f32 %v2047, %v2048
    %v2050 = vrot.slane %v2049, 4
    %v2051 = vadd.f32 %v2049, %v2050
    %v2052 = vrot.slane %v2051, 2
    %v2053 = vadd.f32 %v2051, %v2052
    %v2054 = vrot.slane %v2053, 1
    %v2055 = vadd.f32 %v2053, %v2054
    %v2056 = vsel %vm1666, %v1933, 0.0
    %v2057 = vsel %vm1666, %v1934, 0.0
    %v2058 = vadd.f32 %v2056, %v2057
    %v2059 = vrot.slane %v2058, 4
    %v2060 = vadd.f32 %v2058, %v2059
    %v2061 = vrot.slane %v2060, 2
    %v2062 = vadd.f32 %v2060, %v2061
    %v2063 = vrot.slane %v2062, 1
    %v2064 = vadd.f32 %v2062, %v2063
    %v2065 = vsel %vm1666, %v1935, 0.0
    %v2066 = vsel %vm1666, %v1936, 0.0
    %v2067 = vadd.f32 %v2065, %v2066
    %v2068 = vrot.slane %v2067, 4
    %v2069 = vadd.f32 %v2067, %v2068
    %v2070 = vrot.slane %v2069, 2
    %v2071 = vadd.f32 %v2069, %v2070
    %v2072 = vrot.slane %v2071, 1
    %v2073 = vadd.f32 %v2071, %v2072
    %v2074 = vsel %vm1666, %v1937, 0.0
    %v2075 = vsel %vm1666, %v1938, 0.0
    %v2076 = vadd.f32 %v2074, %v2075
    %v2077 = vrot.slane %v2076, 4
    %v2078 = vadd.f32 %v2076, %v2077
    %v2079 = vrot.slane %v2078, 2
    %v2080 = vadd.f32 %v2078, %v2079
    %v2081 = vrot.slane %v2080, 1
    %v2082 = vadd.f32 %v2080, %v2081
    %v2083 = vrcp.pop %v1947
    %v2084 = vrcp.pop %v1956
    %v2085 = vrcp.pop %v1965
    %v2086 = vrcp.pop %v1974
    %v2087 = vrcp.pop %v1983
    %v2088 = vrcp.pop %v1992
    %v2089 = vrcp.pop %v2001
    %v2090 = vrcp.pop %v2010
    %v2091 = vrcp.pop %v2019
    %v2092 = vrcp.pop %v2028
    %v2093 = vrcp.pop %v2037
    %v2094 = vrcp.pop %v2046
    %v2095 = vrcp.pop %v2055
    %v2096 = vrcp.pop %v2064
    %v2097 = vrcp.pop %v2073
    %v2098 = vrcp.pop %v2082
    %v2099 = vmul.f32 %v1907, %v2083
    %v2100 = vmul.f32 %v1908, %v2083
    %v2101 = vmul.f32 %v1909, %v2084
    %v2102 = vmul.f32 %v1910, %v2084
    %v2103 = vmul.f32 %v1911, %v2085
    %v2104 = vmul.f32 %v1912, %v2085
    %v2105 = vmul.f32 %v1913, %v2086
    %v2106 = vmul.f32 %v1914, %v2086
    %v2107 = vmul.f32 %v1915, %v2087
    %v2108 = vmul.f32 %v1916, %v2087
    %v2109 = vmul.f32 %v1917, %v2088
    %v2110 = vmul.f32 %v1918, %v2088
    %v2111 = vmul.f32 %v1919, %v2089
    %v2112 = vmul.f32 %v1920, %v2089
    %v2113 = vmul.f32 %v1921, %v2090
    %v2114 = vmul.f32 %v1922, %v2090
    %v2115 = vmul.f32 %v1923, %v2091
    %v2116 = vmul.f32 %v1924, %v2091
    %v2117 = vmul.f32 %v1925, %v2092
    %v2118 = vmul.f32 %v1926, %v2092
    %v2119 = vmul.f32 %v1927, %v2093
    %v2120 = vmul.f32 %v1928, %v2093
    %v2121 = vmul.f32 %v1929, %v2094
    %v2122 = vmul.f32 %v1930, %v2094
    %v2123 = vmul.f32 %v1931, %v2095
    %v2124 = vmul.f32 %v1932, %v2095
    %v2125 = vmul.f32 %v1933, %v2096
    %v2126 = vmul.f32 %v1934, %v2096
    %v2127 = vmul.f32 %v1935, %v2097
    %v2128 = vmul.f32 %v1936, %v2097
    %v2129 = vmul.f32 %v1937, %v2098
    %v2130 = vmul.f32 %v1938, %v2098
    %v2132 = vsel %vm1666, %v2099, 0
    %v2135 = vsel %vm1666, %v2100, 0
    %v2138 = vsel %vm1666, %v2101, 0
    %v2141 = vsel %vm1666, %v2102, 0
    %v2144 = vsel %vm1666, %v2103, 0
    %v2147 = vsel %vm1666, %v2104, 0
    %v2150 = vsel %vm1666, %v2105, 0
    %v2153 = vsel %vm1666, %v2106, 0
    %v2156 = vsel %vm1666, %v2107, 0
    %v2159 = vsel %vm1666, %v2108, 0
    %v2162 = vsel %vm1666, %v2109, 0
    %v2165 = vsel %vm1666, %v2110, 0
    %v2168 = vsel %vm1666, %v2111, 0
    %v2171 = vsel %vm1666, %v2112, 0
    %v2174 = vsel %vm1666, %v2113, 0
    %v2177 = vsel %vm1666, %v2114, 0
    %v2180 = vsel %vm1666, %v2115, 0
    %v2183 = vsel %vm1666, %v2116, 0
    %v2186 = vsel %vm1666, %v2117, 0
    %v2189 = vsel %vm1666, %v2118, 0
    %v2192 = vsel %vm1666, %v2119, 0
    %v2195 = vsel %vm1666, %v2120, 0
    %v2198 = vsel %vm1666, %v2121, 0
    %v2201 = vsel %vm1666, %v2122, 0
    %v2204 = vsel %vm1666, %v2123, 0
    %v2207 = vsel %vm1666, %v2124, 0
    %v2210 = vsel %vm1666, %v2125, 0
    %v2213 = vsel %vm1666, %v2126, 0
    %v2216 = vsel %vm1666, %v2127, 0
    %v2219 = vsel %vm1666, %v2128, 0
    %v2222 = vsel %vm1666, %v2129, 0
    %v2225 = vsel %vm1666, %v2130, 0
    %vm2227 = vcmask 1043456
    %v2229 = vsel %vm2227, %v528, 0
    %2231 = vmatprep.subr.mxu0 0.0
    %2232 = vmatpush1.msra.mxu0 %v2229
    %2233 = vmatprep.subr.mxu0 0.0
    %2234 = vmatpush1.msra.mxu0 0.0
    %2235 = vmatprep.subr.mxu0 0.0
    %2236 = vmatpush1.msra.mxu0 0.0
    %2237 = vmatprep.subr.mxu0 0.0
    %2238 = vmatpush1.msra.mxu0 0.0
    %2239 = vmatprep.subr.mxu0 0.0
    %2240 = vmatpush1.msra.mxu0 0.0
    %2241 = vmatprep.subr.mxu0 0.0
    %2242 = vmatpush1.msra.mxu0 0.0
    %2243 = vmatprep.subr.mxu0 0.0
    %2244 = vmatpush1.msra.mxu0 0.0
    %2245 = vmatprep.subr.mxu0 0.0
    %2246 = vmatpush1.msra.mxu0 0.0
    %2247 = vmatprep.subr.mxu0 0.0
    %2248 = vmatpush1.msra.mxu0 0.0
    %2249 = vmatprep.subr.mxu0 0.0
    %2250 = vmatpush1.msra.mxu0 0.0
    %2251 = vmatprep.subr.mxu0 0.0
    %2252 = vmatpush1.msra.mxu0 0.0
    %2253 = vmatprep.subr.mxu0 0.0
    %2254 = vmatpush1.msra.mxu0 0.0
    %2255 = vmatprep.subr.mxu0 0.0
    %2256 = vmatpush1.msra.mxu0 0.0
    %2257 = vmatprep.subr.mxu0 0.0
    %2258 = vmatpush1.msra.mxu0 0.0
    %2259 = vmatprep.subr.mxu0 0.0
    %2260 = vmatpush1.msra.mxu0 0.0
    %2261 = vmatprep.subr.mxu0 0.0
    %2262 = vmatpush1.msra.mxu0 0.0
    %2263 = vmatprep.subr.mxu0 0.0
    %2264 = vmatpush1.msra.mxu0 0.0
    %2265 = vmatprep.subr.mxu0 0.0
    %2266 = vmatpush1.msra.mxu0 0.0
    %2267 = vmatprep.subr.mxu0 0.0
    %2268 = vmatpush1.msra.mxu0 0.0
    %2269 = vmatprep.subr.mxu0 0.0
    %2270 = vmatpush1.msra.mxu0 0.0
    %2271 = vmatprep.subr.mxu0 0.0
    %2272 = vmatpush1.msra.mxu0 0.0
    %2273 = vmatprep.subr.mxu0 0.0
    %2274 = vmatpush1.msra.mxu0 0.0
    %2275 = vmatprep.subr.mxu0 0.0
    %2276 = vmatpush1.msra.mxu0 0.0
    %2277 = vmatprep.subr.mxu0 0.0
    %2278 = vmatpush1.msra.mxu0 0.0
    %2279 = vmatprep.subr.mxu0 0.0
    %2280 = vmatpush1.msra.mxu0 0.0
    %2281 = vmatprep.subr.mxu0 0.0
    %2282 = vmatpush1.msra.mxu0 0.0
    %2283 = vmatprep.subr.mxu0 0.0
    %2284 = vmatpush1.msra.mxu0 0.0
    %2285 = vmatprep.subr.mxu0 0.0
    %2286 = vmatpush1.msra.mxu0 0.0
    %2287 = vmatprep.subr.mxu0 0.0
    %2288 = vmatpush1.msra.mxu0 0.0
    %2289 = vmatprep.subr.mxu0 0.0
    %2290 = vmatpush1.msra.mxu0 0.0
    %2291 = vmatprep.subr.mxu0 0.0
    %2292 = vmatpush1.msra.mxu0 0.0
    %2293 = vmatprep.subr.mxu0 0.0
    %2294 = vmatpush1.msra.mxu0 0.0
    %2295 = vmatprep.mubr.f32.mxu0 0.0
    %2296 = vmatmul.mubr.f32.gmra.mrb[0].mxu0 %v2132
    %v2297 = vpop.f32.mrb[0].mxu0
    %v2298 = vadd.f32 0.0, %v2297
    %v2299 = vpop.f32.mrb[0].mxu0
    %2300 = vmatprep.mubr.f32.mxu0 0.0
    %2301 = vmatmul.mubr.f32.gmra.mrb[0].mxu0 %v2135
    %v2302 = vpop.f32.mrb[0].mxu0
    %v2303 = vadd.f32 0.0, %v2302
    %v2304 = vpop.f32.mrb[0].mxu0
    %2305 = vmatprep.mubr.f32.mxu0 0.0
    %2306 = vmatmul.mubr.f32.gmra.mrb[0].mxu0 %v2138
    %v2307 = vpop.f32.mrb[0].mxu0
    %v2308 = vadd.f32 0.0, %v2307
    %v2309 = vpop.f32.mrb[0].mxu0
    %2310 = vmatprep.mubr.f32.mxu0 0.0
    %2311 = vmatmul.mubr.f32.gmra.mrb[0].mxu0 %v2141
    %v2312 = vpop.f32.mrb[0].mxu0
    %v2313 = vadd.f32 0.0, %v2312
    %v2314 = vpop.f32.mrb[0].mxu0
    %2315 = vmatprep.mubr.f32.mxu0 0.0
    %2316 = vmatmul.mubr.f32.gmra.mrb[0].mxu0 %v2144
    %v2317 = vpop.f32.mrb[0].mxu0
    %v2318 = vadd.f32 0.0, %v2317
    %v2319 = vpop.f32.mrb[0].mxu0
    %2320 = vmatprep.mubr.f32.mxu0 0.0
    %2321 = vmatmul.mubr.f32.gmra.mrb[0].mxu0 %v2147
    %v2322 = vpop.f32.mrb[0].mxu0
    %v2323 = vadd.f32 0.0, %v2322
    %v2324 = vpop.f32.mrb[0].mxu0
    %2325 = vmatprep.mubr.f32.mxu0 0.0
    %2326 = vmatmul.mubr.f32.gmra.mrb[0].mxu0 %v2150
    %v2327 = vpop.f32.mrb[0].mxu0
    %v2328 = vadd.f32 0.0, %v2327
    %v2329 = vpop.f32.mrb[0].mxu0
    %2330 = vmatprep.mubr.f32.mxu0 0.0
    %2331 = vmatmul.mubr.f32.gmra.mrb[0].mxu0 %v2153
    %v2332 = vpop.f32.mrb[0].mxu0
    %v2333 = vadd.f32 0.0, %v2332
    %v2334 = vpop.f32.mrb[0].mxu0
    %2335 = vmatprep.mubr.f32.mxu0 0.0
    %2336 = vmatmul.mubr.f32.gmra.mrb[0].mxu0 %v2156
    %v2337 = vpop.f32.mrb[0].mxu0
    %v2338 = vadd.f32 0.0, %v2337
    %v2339 = vpop.f32.mrb[0].mxu0
    %2340 = vmatprep.mubr.f32.mxu0 0.0
    %2341 = vmatmul.mubr.f32.gmra.mrb[0].mxu0 %v2159
    %v2342 = vpop.f32.mrb[0].mxu0
    %v2343 = vadd.f32 0.0, %v2342
    %v2344 = vpop.f32.mrb[0].mxu0
    %2345 = vmatprep.mubr.f32.mxu0 0.0
    %2346 = vmatmul.mubr.f32.gmra.mrb[0].mxu0 %v2162
    %v2347 = vpop.f32.mrb[0].mxu0
    %v2348 = vadd.f32 0.0, %v2347
    %v2349 = vpop.f32.mrb[0].mxu0
    %2350 = vmatprep.mubr.f32.mxu0 0.0
    %2351 = vmatmul.mubr.f32.gmra.mrb[0].mxu0 %v2165
    %v2352 = vpop.f32.mrb[0].mxu0
    %v2353 = vadd.f32 0.0, %v2352
    %v2354 = vpop.f32.mrb[0].mxu0
    %2355 = vmatprep.mubr.f32.mxu0 0.0
    %2356 = vmatmul.mubr.f32.gmra.mrb[0].mxu0 %v2168
    %v2357 = vpop.f32.mrb[0].mxu0
    %v2358 = vadd.f32 0.0, %v2357
    %v2359 = vpop.f32.mrb[0].mxu0
    %2360 = vmatprep.mubr.f32.mxu0 0.0
    %2361 = vmatmul.mubr.f32.gmra.mrb[0].mxu0 %v2171
    %v2362 = vpop.f32.mrb[0].mxu0
    %v2363 = vadd.f32 0.0, %v2362
    %v2364 = vpop.f32.mrb[0].mxu0
    %2365 = vmatprep.mubr.f32.mxu0 0.0
    %2366 = vmatmul.mubr.f32.gmra.mrb[0].mxu0 %v2174
    %v2367 = vpop.f32.mrb[0].mxu0
    %v2368 = vadd.f32 0.0, %v2367
    %v2369 = vpop.f32.mrb[0].mxu0
    %2370 = vmatprep.mubr.f32.mxu0 0.0
    %2371 = vmatmul.mubr.f32.gmra.mrb[0].mxu0 %v2177
    %v2372 = vpop.f32.mrb[0].mxu0
    %v2373 = vadd.f32 0.0, %v2372
    %v2374 = vpop.f32.mrb[0].mxu0
    %2375 = vmatprep.mubr.f32.mxu0 0.0
    %2376 = vmatmul.mubr.f32.gmra.mrb[0].mxu0 %v2180
    %v2377 = vpop.f32.mrb[0].mxu0
    %v2378 = vadd.f32 0.0, %v2377
    %v2379 = vpop.f32.mrb[0].mxu0
    %2380 = vmatprep.mubr.f32.mxu0 0.0
    %2381 = vmatmul.mubr.f32.gmra.mrb[0].mxu0 %v2183
    %v2382 = vpop.f32.mrb[0].mxu0
    %v2383 = vadd.f32 0.0, %v2382
    %v2384 = vpop.f32.mrb[0].mxu0
    %2385 = vmatprep.mubr.f32.mxu0 0.0
    %2386 = vmatmul.mubr.f32.gmra.mrb[0].mxu0 %v2186
    %v2387 = vpop.f32.mrb[0].mxu0
    %v2388 = vadd.f32 0.0, %v2387
    %v2389 = vpop.f32.mrb[0].mxu0
    %2390 = vmatprep.mubr.f32.mxu0 0.0
    %2391 = vmatmul.mubr.f32.gmra.mrb[0].mxu0 %v2189
    %v2392 = vpop.f32.mrb[0].mxu0
    %v2393 = vadd.f32 0.0, %v2392
    %v2394 = vpop.f32.mrb[0].mxu0
    %2395 = vmatprep.mubr.f32.mxu0 0.0
    %2396 = vmatmul.mubr.f32.gmra.mrb[0].mxu0 %v2192
    %v2397 = vpop.f32.mrb[0].mxu0
    %v2398 = vadd.f32 0.0, %v2397
    %v2399 = vpop.f32.mrb[0].mxu0
    %2400 = vmatprep.mubr.f32.mxu0 0.0
    %2401 = vmatmul.mubr.f32.gmra.mrb[0].mxu0 %v2195
    %v2402 = vpop.f32.mrb[0].mxu0
    %v2403 = vadd.f32 0.0, %v2402
    %v2404 = vpop.f32.mrb[0].mxu0
    %2405 = vmatprep.mubr.f32.mxu0 0.0
    %2406 = vmatmul.mubr.f32.gmra.mrb[0].mxu0 %v2198
    %v2407 = vpop.f32.mrb[0].mxu0
    %v2408 = vadd.f32 0.0, %v2407
    %v2409 = vpop.f32.mrb[0].mxu0
    %2410 = vmatprep.mubr.f32.mxu0 0.0
    %2411 = vmatmul.mubr.f32.gmra.mrb[0].mxu0 %v2201
    %v2412 = vpop.f32.mrb[0].mxu0
    %v2413 = vadd.f32 0.0, %v2412
    %v2414 = vpop.f32.mrb[0].mxu0
    %2415 = vmatprep.mubr.f32.mxu0 0.0
    %2416 = vmatmul.mubr.f32.gmra.mrb[0].mxu0 %v2204
    %v2417 = vpop.f32.mrb[0].mxu0
    %v2418 = vadd.f32 0.0, %v2417
    %v2419 = vpop.f32.mrb[0].mxu0
    %2420 = vmatprep.mubr.f32.mxu0 0.0
    %2421 = vmatmul.mubr.f32.gmra.mrb[0].mxu0 %v2207
    %v2422 = vpop.f32.mrb[0].mxu0
    %v2423 = vadd.f32 0.0, %v2422
    %v2424 = vpop.f32.mrb[0].mxu0
    %2425 = vmatprep.mubr.f32.mxu0 0.0
    %2426 = vmatmul.mubr.f32.gmra.mrb[0].mxu0 %v2210
    %v2427 = vpop.f32.mrb[0].mxu0
    %v2428 = vadd.f32 0.0, %v2427
    %v2429 = vpop.f32.mrb[0].mxu0
    %2430 = vmatprep.mubr.f32.mxu0 0.0
    %2431 = vmatmul.mubr.f32.gmra.mrb[0].mxu0 %v2213
    %v2432 = vpop.f32.mrb[0].mxu0
    %v2433 = vadd.f32 0.0, %v2432
    %v2434 = vpop.f32.mrb[0].mxu0
    %2435 = vmatprep.mubr.f32.mxu0 0.0
    %2436 = vmatmul.mubr.f32.gmra.mrb[0].mxu0 %v2216
    %v2437 = vpop.f32.mrb[0].mxu0
    %v2438 = vadd.f32 0.0, %v2437
    %v2439 = vpop.f32.mrb[0].mxu0
    %2440 = vmatprep.mubr.f32.mxu0 0.0
    %2441 = vmatmul.mubr.f32.gmra.mrb[0].mxu0 %v2219
    %v2442 = vpop.f32.mrb[0].mxu0
    %v2443 = vadd.f32 0.0, %v2442
    %v2444 = vpop.f32.mrb[0].mxu0
    %2445 = vmatprep.mubr.f32.mxu0 0.0
    %2446 = vmatmul.mubr.f32.gmra.mrb[0].mxu0 %v2222
    %v2447 = vpop.f32.mrb[0].mxu0
    %v2448 = vadd.f32 0.0, %v2447
    %v2449 = vpop.f32.mrb[0].mxu0
    %2450 = vmatprep.mubr.f32.mxu0 0.0
    %2451 = vmatmul.mubr.f32.gmra.mrb[0].mxu0 %v2225
    %v2452 = vpop.f32.mrb[0].mxu0
    %v2453 = vadd.f32 0.0, %v2452
    %v2454 = vpop.f32.mrb[0].mxu0
    %2455 = vdwg.mxu0
    %v2456 = vmul.f32 %v2298, %v612
    %v2457 = vmul.f32 %v2303, %v617
    %v2458 = vmul.f32 %v2308, %v612
    %v2459 = vmul.f32 %v2313, %v617
    %v2460 = vmul.f32 %v2318, %v612
    %v2461 = vmul.f32 %v2323, %v617
    %v2462 = vmul.f32 %v2328, %v612
    %v2463 = vmul.f32 %v2333, %v617
    %v2464 = vmul.f32 %v2338, %v612
    %v2465 = vmul.f32 %v2343, %v617
    %v2466 = vmul.f32 %v2348, %v612
    %v2467 = vmul.f32 %v2353, %v617
    %v2468 = vmul.f32 %v2358, %v612
    %v2469 = vmul.f32 %v2363, %v617
    %v2470 = vmul.f32 %v2368, %v612
    %v2471 = vmul.f32 %v2373, %v617
    %v2472 = vmul.f32 %v2378, %v612
    %v2473 = vmul.f32 %v2383, %v617
    %v2474 = vmul.f32 %v2388, %v612
    %v2475 = vmul.f32 %v2393, %v617
    %v2476 = vmul.f32 %v2398, %v612
    %v2477 = vmul.f32 %v2403, %v617
    %v2478 = vmul.f32 %v2408, %v612
    %v2479 = vmul.f32 %v2413, %v617
    %v2480 = vmul.f32 %v2418, %v612
    %v2481 = vmul.f32 %v2423, %v617
    %v2482 = vmul.f32 %v2428, %v612
    %v2483 = vmul.f32 %v2433, %v617
    %v2484 = vmul.f32 %v2438, %v612
    %v2485 = vmul.f32 %v2443, %v617
    %v2486 = vmul.f32 %v2448, %v612
    %v2487 = vmul.f32 %v2453, %v617
    %v2488 = vsel %vm538, %v2456, 0.0
    %v2489 = vsel %vm538, %v2457, 0.0
    %v2490 = vadd.f32 %v2488, %v2489
    %v2491 = vrot.slane %v2490, 4
    %v2492 = vadd.f32 %v2490, %v2491
    %v2493 = vrot.slane %v2492, 2
    %v2494 = vadd.f32 %v2492, %v2493
    %v2495 = vrot.slane %v2494, 1
    %v2496 = vadd.f32 %v2494, %v2495
    %v2497 = vsel %vm538, %v2458, 0.0
    %v2498 = vsel %vm538, %v2459, 0.0
    %v2499 = vadd.f32 %v2497, %v2498
    %v2500 = vrot.slane %v2499, 4
    %v2501 = vadd.f32 %v2499, %v2500
    %v2502 = vrot.slane %v2501, 2
    %v2503 = vadd.f32 %v2501, %v2502
    %v2504 = vrot.slane %v2503, 1
    %v2505 = vadd.f32 %v2503, %v2504
    %v2506 = vsel %vm538, %v2460, 0.0
    %v2507 = vsel %vm538, %v2461, 0.0
    %v2508 = vadd.f32 %v2506, %v2507
    %v2509 = vrot.slane %v2508, 4
    %v2510 = vadd.f32 %v2508, %v2509
    %v2511 = vrot.slane %v2510, 2
    %v2512 = vadd.f32 %v2510, %v2511
    %v2513 = vrot.slane %v2512, 1
    %v2514 = vadd.f32 %v2512, %v2513
    %v2515 = vsel %vm538, %v2462, 0.0
    %v2516 = vsel %vm538, %v2463, 0.0
    %v2517 = vadd.f32 %v2515, %v2516
    %v2518 = vrot.slane %v2517, 4
    %v2519 = vadd.f32 %v2517, %v2518
    %v2520 = vrot.slane %v2519, 2
    %v2521 = vadd.f32 %v2519, %v2520
    %v2522 = vrot.slane %v2521, 1
    %v2523 = vadd.f32 %v2521, %v2522
    %v2524 = vsel %vm538, %v2464, 0.0
    %v2525 = vsel %vm538, %v2465, 0.0
    %v2526 = vadd.f32 %v2524, %v2525
    %v2527 = vrot.slane %v2526, 4
    %v2528 = vadd.f32 %v2526, %v2527
    %v2529 = vrot.slane %v2528, 2
    %v2530 = vadd.f32 %v2528, %v2529
    %v2531 = vrot.slane %v2530, 1
    %v2532 = vadd.f32 %v2530, %v2531
    %v2533 = vsel %vm538, %v2466, 0.0
    %v2534 = vsel %vm538, %v2467, 0.0
    %v2535 = vadd.f32 %v2533, %v2534
    %v2536 = vrot.slane %v2535, 4
    %v2537 = vadd.f32 %v2535, %v2536
    %v2538 = vrot.slane %v2537, 2
    %v2539 = vadd.f32 %v2537, %v2538
    %v2540 = vrot.slane %v2539, 1
    %v2541 = vadd.f32 %v2539, %v2540
    %v2542 = vsel %vm538, %v2468, 0.0
    %v2543 = vsel %vm538, %v2469, 0.0
    %v2544 = vadd.f32 %v2542, %v2543
    %v2545 = vrot.slane %v2544, 4
    %v2546 = vadd.f32 %v2544, %v2545
    %v2547 = vrot.slane %v2546, 2
    %v2548 = vadd.f32 %v2546, %v2547
    %v2549 = vrot.slane %v2548, 1
    %v2550 = vadd.f32 %v2548, %v2549
    %v2551 = vsel %vm538, %v2470, 0.0
    %v2552 = vsel %vm538, %v2471, 0.0
    %v2553 = vadd.f32 %v2551, %v2552
    %v2554 = vrot.slane %v2553, 4
    %v2555 = vadd.f32 %v2553, %v2554
    %v2556 = vrot.slane %v2555, 2
    %v2557 = vadd.f32 %v2555, %v2556
    %v2558 = vrot.slane %v2557, 1
    %v2559 = vadd.f32 %v2557, %v2558
    %v2560 = vsel %vm538, %v2472, 0.0
    %v2561 = vsel %vm538, %v2473, 0.0
    %v2562 = vadd.f32 %v2560, %v2561
    %v2563 = vrot.slane %v2562, 4
    %v2564 = vadd.f32 %v2562, %v2563
    %v2565 = vrot.slane %v2564, 2
    %v2566 = vadd.f32 %v2564, %v2565
    %v2567 = vrot.slane %v2566, 1
    %v2568 = vadd.f32 %v2566, %v2567
    %v2569 = vsel %vm538, %v2474, 0.0
    %v2570 = vsel %vm538, %v2475, 0.0
    %v2571 = vadd.f32 %v2569, %v2570
    %v2572 = vrot.slane %v2571, 4
    %v2573 = vadd.f32 %v2571, %v2572
    %v2574 = vrot.slane %v2573, 2
    %v2575 = vadd.f32 %v2573, %v2574
    %v2576 = vrot.slane %v2575, 1
    %v2577 = vadd.f32 %v2575, %v2576
    %v2578 = vsel %vm538, %v2476, 0.0
    %v2579 = vsel %vm538, %v2477, 0.0
    %v2580 = vadd.f32 %v2578, %v2579
    %v2581 = vrot.slane %v2580, 4
    %v2582 = vadd.f32 %v2580, %v2581
    %v2583 = vrot.slane %v2582, 2
    %v2584 = vadd.f32 %v2582, %v2583
    %v2585 = vrot.slane %v2584, 1
    %v2586 = vadd.f32 %v2584, %v2585
    %v2587 = vsel %vm538, %v2478, 0.0
    %v2588 = vsel %vm538, %v2479, 0.0
    %v2589 = vadd.f32 %v2587, %v2588
    %v2590 = vrot.slane %v2589, 4
    %v2591 = vadd.f32 %v2589, %v2590
    %v2592 = vrot.slane %v2591, 2
    %v2593 = vadd.f32 %v2591, %v2592
    %v2594 = vrot.slane %v2593, 1
    %v2595 = vadd.f32 %v2593, %v2594
    %v2596 = vsel %vm538, %v2480, 0.0
    %v2597 = vsel %vm538, %v2481, 0.0
    %v2598 = vadd.f32 %v2596, %v2597
    %v2599 = vrot.slane %v2598, 4
    %v2600 = vadd.f32 %v2598, %v2599
    %v2601 = vrot.slane %v2600, 2
    %v2602 = vadd.f32 %v2600, %v2601
    %v2603 = vrot.slane %v2602, 1
    %v2604 = vadd.f32 %v2602, %v2603
    %v2605 = vsel %vm538, %v2482, 0.0
    %v2606 = vsel %vm538, %v2483, 0.0
    %v2607 = vadd.f32 %v2605, %v2606
    %v2608 = vrot.slane %v2607, 4
    %v2609 = vadd.f32 %v2607, %v2608
    %v2610 = vrot.slane %v2609, 2
    %v2611 = vadd.f32 %v2609, %v2610
    %v2612 = vrot.slane %v2611, 1
    %v2613 = vadd.f32 %v2611, %v2612
    %v2614 = vsel %vm538, %v2484, 0.0
    %v2615 = vsel %vm538, %v2485, 0.0
    %v2616 = vadd.f32 %v2614, %v2615
    %v2617 = vrot.slane %v2616, 4
    %v2618 = vadd.f32 %v2616, %v2617
    %v2619 = vrot.slane %v2618, 2
    %v2620 = vadd.f32 %v2618, %v2619
    %v2621 = vrot.slane %v2620, 1
    %v2622 = vadd.f32 %v2620, %v2621
    %v2623 = vsel %vm538, %v2486, 0.0
    %v2624 = vsel %vm538, %v2487, 0.0
    %v2625 = vadd.f32 %v2623, %v2624
    %v2626 = vrot.slane %v2625, 4
    %v2627 = vadd.f32 %v2625, %v2626
    %v2628 = vrot.slane %v2627, 2
    %v2629 = vadd.f32 %v2627, %v2628
    %v2630 = vrot.slane %v2629, 1
    %v2631 = vadd.f32 %v2629, %v2630
    %v2633 = vlaneseq
    %v2634 = vshrl.u32 %v2633, 7
    %v2635 = vsub.s32 0, %v2634
    %v2636 = vrot.slane %v529, %v2635
    %v2638 = vadd.f32 %v2496, %v2636
    %v2639 = vadd.f32 %v2505, %v2636
    %v2640 = vadd.f32 %v2514, %v2636
    %v2641 = vadd.f32 %v2523, %v2636
    %v2642 = vadd.f32 %v2532, %v2636
    %v2643 = vadd.f32 %v2541, %v2636
    %v2644 = vadd.f32 %v2550, %v2636
    %v2645 = vadd.f32 %v2559, %v2636
    %v2646 = vadd.f32 %v2568, %v2636
    %v2647 = vadd.f32 %v2577, %v2636
    %v2648 = vadd.f32 %v2586, %v2636
    %v2649 = vadd.f32 %v2595, %v2636
    %v2650 = vadd.f32 %v2604, %v2636
    %v2651 = vadd.f32 %v2613, %v2636
    %v2652 = vadd.f32 %v2622, %v2636
    %v2653 = vadd.f32 %v2631, %v2636
    %v2670 = vrot.slane %v2639, 7
    %vm2671 = vcmask 1041409
    %v2672 = vsel %vm2671, %v2670, %v2638
    %v2673 = vrot.slane %v2640, 6
    %vm2674 = vcmask 1042434
    %v2675 = vsel %vm2674, %v2673, %v2672
    %v2676 = vrot.slane %v2641, 5
    %vm2677 = vcmask 1043459
    %v2678 = vsel %vm2677, %v2676, %v2675
    %v2679 = vrot.slane %v2642, 4
    %vm2680 = vcmask 1044484
    %v2681 = vsel %vm2680, %v2679, %v2678
    %v2682 = vrot.slane %v2643, 3
    %vm2683 = vcmask 1045509
    %v2684 = vsel %vm2683, %v2682, %v2681
    %v2685 = vrot.slane %v2644, 2
    %vm2686 = vcmask 1046534
    %v2687 = vsel %vm2686, %v2685, %v2684
    %v2688 = vrot.slane %v2645, 1
    %vm2689 = vcmask 1047559
    %v2690 = vsel %vm2689, %v2688, %v2687
    %v2691 = vrot.slane %v2647, 7
    %v2692 = vsel %vm2671, %v2691, %v2646
    %v2693 = vrot.slane %v2648, 6
    %v2694 = vsel %vm2674, %v2693, %v2692
    %v2695 = vrot.slane %v2649, 5
    %v2696 = vsel %vm2677, %v2695, %v2694
    %v2697 = vrot.slane %v2650, 4
    %v2698 = vsel %vm2680, %v2697, %v2696
    %v2699 = vrot.slane %v2651, 3
    %v2700 = vsel %vm2683, %v2699, %v2698
    %v2701 = vrot.slane %v2652, 2
    %v2702 = vsel %vm2686, %v2701, %v2700
    %v2703 = vrot.slane %v2653, 1
    %v2704 = vsel %vm2689, %v2703, %v2702
    %v2707 = vsel %vm538, %v2690, 0.0
    %v2708 = vsel %vm538, %v2704, 0.0
    %v2709 = vadd.f32 %v2707, %v2708
    %v2710 = vrot.slane %v2709, 4
    %v2711 = vadd.f32 %v2709, %v2710
    %v2712 = vrot.slane %v2711, 2
    %v2713 = vadd.f32 %v2711, %v2712
    %v2714 = vrot.slane %v2713, 1
    %v2715 = vadd.f32 %v2713, %v2714
    %v2716 = vrcp.pop 16.0
    %v2717 = vmul.f32 %v2715, %v2716
    %v2718 = vlaneseq
    %v2719 = vshrl.u32 %v2718, 7
    %v2720 = vsub.s32 0, %v2719
    %v2721 = vrot.slane %v2717, %v2720
    %v2722 = vsub.f32 %v2638, %v2721
    %v2723 = vsub.f32 %v2639, %v2721
    %v2724 = vsub.f32 %v2640, %v2721
    %v2725 = vsub.f32 %v2641, %v2721
    %v2726 = vsub.f32 %v2642, %v2721
    %v2727 = vsub.f32 %v2643, %v2721
    %v2728 = vsub.f32 %v2644, %v2721
    %v2729 = vsub.f32 %v2645, %v2721
    %v2730 = vsub.f32 %v2646, %v2721
    %v2731 = vsub.f32 %v2647, %v2721
    %v2732 = vsub.f32 %v2648, %v2721
    %v2733 = vsub.f32 %v2649, %v2721
    %v2734 = vsub.f32 %v2650, %v2721
    %v2735 = vsub.f32 %v2651, %v2721
    %v2736 = vsub.f32 %v2652, %v2721
    %v2737 = vsub.f32 %v2653, %v2721
    %v2738 = vmul.f32 %v2722, %v2722
    %v2739 = vmul.f32 %v2723, %v2723
    %v2740 = vmul.f32 %v2724, %v2724
    %v2741 = vmul.f32 %v2725, %v2725
    %v2742 = vmul.f32 %v2726, %v2726
    %v2743 = vmul.f32 %v2727, %v2727
    %v2744 = vmul.f32 %v2728, %v2728
    %v2745 = vmul.f32 %v2729, %v2729
    %v2746 = vmul.f32 %v2730, %v2730
    %v2747 = vmul.f32 %v2731, %v2731
    %v2748 = vmul.f32 %v2732, %v2732
    %v2749 = vmul.f32 %v2733, %v2733
    %v2750 = vmul.f32 %v2734, %v2734
    %v2751 = vmul.f32 %v2735, %v2735
    %v2752 = vmul.f32 %v2736, %v2736
    %v2753 = vmul.f32 %v2737, %v2737
    %v2770 = vrot.slane %v2739, 7
    %v2771 = vsel %vm2671, %v2770, %v2738
    %v2772 = vrot.slane %v2740, 6
    %v2773 = vsel %vm2674, %v2772, %v2771
    %v2774 = vrot.slane %v2741, 5
    %v2775 = vsel %vm2677, %v2774, %v2773
    %v2776 = vrot.slane %v2742, 4
    %v2777 = vsel %vm2680, %v2776, %v2775
    %v2778 = vrot.slane %v2743, 3
    %v2779 = vsel %vm2683, %v2778, %v2777
    %v2780 = vrot.slane %v2744, 2
    %v2781 = vsel %vm2686, %v2780, %v2779
    %v2782 = vrot.slane %v2745, 1
    %v2783 = vsel %vm2689, %v2782, %v2781
    %v2784 = vrot.slane %v2747, 7
    %v2785 = vsel %vm2671, %v2784, %v2746
    %v2786 = vrot.slane %v2748, 6
    %v2787 = vsel %vm2674, %v2786, %v2785
    %v2788 = vrot.slane %v2749, 5
    %v2789 = vsel %vm2677, %v2788, %v2787
    %v2790 = vrot.slane %v2750, 4
    %v2791 = vsel %vm2680, %v2790, %v2789
    %v2792 = vrot.slane %v2751, 3
    %v2793 = vsel %vm2683, %v2792, %v2791
    %v2794 = vrot.slane %v2752, 2
    %v2795 = vsel %vm2686, %v2794, %v2793
    %v2796 = vrot.slane %v2753, 1
    %v2797 = vsel %vm2689, %v2796, %v2795
    %v2800 = vsel %vm538, %v2783, 0.0
    %v2801 = vsel %vm538, %v2797, 0.0
    %v2802 = vadd.f32 %v2800, %v2801
    %v2803 = vrot.slane %v2802, 4
    %v2804 = vadd.f32 %v2802, %v2803
    %v2805 = vrot.slane %v2804, 2
    %v2806 = vadd.f32 %v2804, %v2805
    %v2807 = vrot.slane %v2806, 1
    %v2808 = vadd.f32 %v2806, %v2807
    %v2809 = vmul.f32 %v2808, %v2716
    %v2810 = vadd.f32 %v2809, 1e-05
    %v2811 = vrsqrt.pop %v2810
    %v2812 = vlaneseq
    %v2813 = vshrl.u32 %v2812, 7
    %v2814 = vsub.s32 0, %v2813
    %v2815 = vrot.slane %v2811, %v2814
    %v2816 = vmul.f32 %v2722, %v2815
    %v2817 = vmul.f32 %v2723, %v2815
    %v2818 = vmul.f32 %v2724, %v2815
    %v2819 = vmul.f32 %v2725, %v2815
    %v2820 = vmul.f32 %v2726, %v2815
    %v2821 = vmul.f32 %v2727, %v2815
    %v2822 = vmul.f32 %v2728, %v2815
    %v2823 = vmul.f32 %v2729, %v2815
    %v2824 = vmul.f32 %v2730, %v2815
    %v2825 = vmul.f32 %v2731, %v2815
    %v2826 = vmul.f32 %v2732, %v2815
    %v2827 = vmul.f32 %v2733, %v2815
    %v2828 = vmul.f32 %v2734, %v2815
    %v2829 = vmul.f32 %v2735, %v2815
    %v2830 = vmul.f32 %v2736, %v2815
    %v2831 = vmul.f32 %v2737, %v2815
    %v2833 = vlaneseq
    %v2834 = vshrl.u32 %v2833, 7
    %v2835 = vsub.s32 0, %v2834
    %v2836 = vrot.slane %v530, %v2835
    %v2838 = vmul.f32 %v2816, %v2836
    %v2839 = vmul.f32 %v2817, %v2836
    %v2840 = vmul.f32 %v2818, %v2836
    %v2841 = vmul.f32 %v2819, %v2836
    %v2842 = vmul.f32 %v2820, %v2836
    %v2843 = vmul.f32 %v2821, %v2836
    %v2844 = vmul.f32 %v2822, %v2836
    %v2845 = vmul.f32 %v2823, %v2836
    %v2846 = vmul.f32 %v2824, %v2836
    %v2847 = vmul.f32 %v2825, %v2836
    %v2848 = vmul.f32 %v2826, %v2836
    %v2849 = vmul.f32 %v2827, %v2836
    %v2850 = vmul.f32 %v2828, %v2836
    %v2851 = vmul.f32 %v2829, %v2836
    %v2852 = vmul.f32 %v2830, %v2836
    %v2853 = vmul.f32 %v2831, %v2836
    %v2855 = vlaneseq
    %v2856 = vshrl.u32 %v2855, 7
    %v2857 = vsub.s32 0, %v2856
    %v2858 = vrot.slane %v531, %v2857
    %v2860 = vadd.f32 %v2838, %v2858
    %v2861 = vadd.f32 %v2839, %v2858
    %v2862 = vadd.f32 %v2840, %v2858
    %v2863 = vadd.f32 %v2841, %v2858
    %v2864 = vadd.f32 %v2842, %v2858
    %v2865 = vadd.f32 %v2843, %v2858
    %v2866 = vadd.f32 %v2844, %v2858
    %v2867 = vadd.f32 %v2845, %v2858
    %v2868 = vadd.f32 %v2846, %v2858
    %v2869 = vadd.f32 %v2847, %v2858
    %v2870 = vadd.f32 %v2848, %v2858
    %v2871 = vadd.f32 %v2849, %v2858
    %v2872 = vadd.f32 %v2850, %v2858
    %v2873 = vadd.f32 %v2851, %v2858
    %v2874 = vadd.f32 %v2852, %v2858
    %v2875 = vadd.f32 %v2853, %v2858
    %vm2876 = vcmp.gt.f32.partialorder %v2860, 0.0
    %vm2877 = vcmp.gt.f32.partialorder %v2861, 0.0
    %vm2878 = vcmp.gt.f32.partialorder %v2862, 0.0
    %vm2879 = vcmp.gt.f32.partialorder %v2863, 0.0
    %vm2880 = vcmp.gt.f32.partialorder %v2864, 0.0
    %vm2881 = vcmp.gt.f32.partialorder %v2865, 0.0
    %vm2882 = vcmp.gt.f32.partialorder %v2866, 0.0
    %vm2883 = vcmp.gt.f32.partialorder %v2867, 0.0
    %vm2884 = vcmp.gt.f32.partialorder %v2868, 0.0
    %vm2885 = vcmp.gt.f32.partialorder %v2869, 0.0
    %vm2886 = vcmp.gt.f32.partialorder %v2870, 0.0
    %vm2887 = vcmp.gt.f32.partialorder %v2871, 0.0
    %vm2888 = vcmp.gt.f32.partialorder %v2872, 0.0
    %vm2889 = vcmp.gt.f32.partialorder %v2873, 0.0
    %vm2890 = vcmp.gt.f32.partialorder %v2874, 0.0
    %vm2891 = vcmp.gt.f32.partialorder %v2875, 0.0
    %v2892 = vmul.f32 %v2860, 0.01
    %v2893 = vmul.f32 %v2861, 0.01
    %v2894 = vmul.f32 %v2862, 0.01
    %v2895 = vmul.f32 %v2863, 0.01
    %v2896 = vmul.f32 %v2864, 0.01
    %v2897 = vmul.f32 %v2865, 0.01
    %v2898 = vmul.f32 %v2866, 0.01
    %v2899 = vmul.f32 %v2867, 0.01
    %v2900 = vmul.f32 %v2868, 0.01
    %v2901 = vmul.f32 %v2869, 0.01
    %v2902 = vmul.f32 %v2870, 0.01
    %v2903 = vmul.f32 %v2871, 0.01
    %v2904 = vmul.f32 %v2872, 0.01
    %v2905 = vmul.f32 %v2873, 0.01
    %v2906 = vmul.f32 %v2874, 0.01
    %v2907 = vmul.f32 %v2875, 0.01
    %v2908 = vsel %vm2876, %v2860, %v2892
    %v2909 = vsel %vm2877, %v2861, %v2893
    %v2910 = vsel %vm2878, %v2862, %v2894
    %v2911 = vsel %vm2879, %v2863, %v2895
    %v2912 = vsel %vm2880, %v2864, %v2896
    %v2913 = vsel %vm2881, %v2865, %v2897
    %v2914 = vsel %vm2882, %v2866, %v2898
    %v2915 = vsel %vm2883, %v2867, %v2899
    %v2916 = vsel %vm2884, %v2868, %v2900
    %v2917 = vsel %vm2885, %v2869, %v2901
    %v2918 = vsel %vm2886, %v2870, %v2902
    %v2919 = vsel %vm2887, %v2871, %v2903
    %v2920 = vsel %vm2888, %v2872, %v2904
    %v2921 = vsel %vm2889, %v2873, %v2905
    %v2922 = vsel %vm2890, %v2874, %v2906
    %v2923 = vsel %vm2891, %v2875, %v2907
    %v2924 = vld [vmem:[%s29] sm:$0xff]
    %v2925 = vld [vmem:[%s29 + $0x8] sm:$0xff]
    %v2926 = vld [vmem:[%s29 + $0x10] sm:$0xff]
    %v2927 = vld [vmem:[%s29 + $0x18] sm:$0xff]
    %v2928 = vld [vmem:[%s31] sm:$0x1]
    %v2929 = vld [vmem:[%s33] sm:$0xff]
    %v2930 = vld [vmem:[%s33 + $0x8] sm:$0xff]
    %v2931 = vld [vmem:[%s35] sm:$0xff]
    %v2932 = vld [vmem:[%s35 + $0x8] sm:$0xff]
    %v2933 = vld [vmem:[%s35 + $0x10] sm:$0xff]
    %v2934 = vld [vmem:[%s35 + $0x18] sm:$0xff]
    %v2935 = vld [vmem:[%s39] sm:$0x1]
    %v2936 = vld [vmem:[%s41] sm:$0x1]
    %v2937 = vld [vmem:[%s43] sm:$0x1]
    %v2939 = vlaneseq
    %v2940 = vshrl.u32 %v2939, 7
    %v2941 = vsub.s32 0, %v2940
    %v2942 = vrot.slane %v2928, %v2941
    %v2960 = vrot.slane %v2909, 7
    %v2961 = vsel %vm2671, %v2960, %v2908
    %v2962 = vrot.slane %v2910, 6
    %v2963 = vsel %vm2674, %v2962, %v2961
    %v2964 = vrot.slane %v2911, 5
    %v2965 = vsel %vm2677, %v2964, %v2963
    %v2966 = vrot.slane %v2912, 4
    %v2967 = vsel %vm2680, %v2966, %v2965
    %v2968 = vrot.slane %v2913, 3
    %v2969 = vsel %vm2683, %v2968, %v2967
    %v2970 = vrot.slane %v2914, 2
    %v2971 = vsel %vm2686, %v2970, %v2969
    %v2972 = vrot.slane %v2915, 1
    %v2973 = vsel %vm2689, %v2972, %v2971
    %v2974 = vrot.slane %v2917, 7
    %v2975 = vsel %vm2671, %v2974, %v2916
    %v2976 = vrot.slane %v2918, 6
    %v2977 = vsel %vm2674, %v2976, %v2975
    %v2978 = vrot.slane %v2919, 5
    %v2979 = vsel %vm2677, %v2978, %v2977
    %v2980 = vrot.slane %v2920, 4
    %v2981 = vsel %vm2680, %v2980, %v2979
    %v2982 = vrot.slane %v2921, 3
    %v2983 = vsel %vm2683, %v2982, %v2981
    %v2984 = vrot.slane %v2922, 2
    %v2985 = vsel %vm2686, %v2984, %v2983
    %v2986 = vrot.slane %v2923, 1
    %v2987 = vsel %vm2689, %v2986, %v2985
    %v2988 = vsel %vm538, %v2973, 0
    %v2990 = vsel %vm538, %v2987, 0
    %2992 = vmatprep.subr.mxu0 0.0
    %2993 = vmatpush1.msra.mxu0 %v2924
    %2994 = vmatprep.subr.mxu0 0.0
    %2995 = vmatpush1.msra.mxu0 %v2925
    %2996 = vmatprep.subr.mxu0 0.0
    %2997 = vmatpush1.msra.mxu0 %v2926
    %2998 = vmatprep.subr.mxu0 0.0
    %2999 = vmatpush1.msra.mxu0 %v2927
    %3000 = vmatprep.subr.mxu0 0.0
    %3001 = vmatpush1.msra.mxu0 0.0
    %3002 = vmatprep.subr.mxu0 0.0
    %3003 = vmatpush1.msra.mxu0 0.0
    %3004 = vmatprep.subr.mxu0 0.0
    %3005 = vmatpush1.msra.mxu0 0.0
    %3006 = vmatprep.subr.mxu0 0.0
    %3007 = vmatpush1.msra.mxu0 0.0
    %3008 = vmatprep.subr.mxu0 0.0
    %3009 = vmatpush1.msra.mxu0 0.0
    %3010 = vmatprep.subr.mxu0 0.0
    %3011 = vmatpush1.msra.mxu0 0.0
    %3012 = vmatprep.subr.mxu0 0.0
    %3013 = vmatpush1.msra.mxu0 0.0
    %3014 = vmatprep.subr.mxu0 0.0
    %3015 = vmatpush1.msra.mxu0 0.0
    %3016 = vmatprep.subr.mxu0 0.0
    %3017 = vmatpush1.msra.mxu0 0.0
    %3018 = vmatprep.subr.mxu0 0.0
    %3019 = vmatpush1.msra.mxu0 0.0
    %3020 = vmatprep.subr.mxu0 0.0
    %3021 = vmatpush1.msra.mxu0 0.0
    %3022 = vmatprep.subr.mxu0 0.0
    %3023 = vmatpush1.msra.mxu0 0.0
    %3024 = vmatprep.subr.mxu0 0.0
    %3025 = vmatpush1.msra.mxu0 0.0
    %3026 = vmatprep.subr.mxu0 0.0
    %3027 = vmatpush1.msra.mxu0 0.0
    %3028 = vmatprep.subr.mxu0 0.0
    %3029 = vmatpush1.msra.mxu0 0.0
    %3030 = vmatprep.subr.mxu0 0.0
    %3031 = vmatpush1.msra.mxu0 0.0
    %3032 = vmatprep.subr.mxu0 0.0
    %3033 = vmatpush1.msra.mxu0 0.0
    %3034 = vmatprep.subr.mxu0 0.0
    %3035 = vmatpush1.msra.mxu0 0.0
    %3036 = vmatprep.subr.mxu0 0.0
    %3037 = vmatpush1.msra.mxu0 0.0
    %3038 = vmatprep.subr.mxu0 0.0
    %3039 = vmatpush1.msra.mxu0 0.0
    %3040 = vmatprep.subr.mxu0 0.0
    %3041 = vmatpush1.msra.mxu0 0.0
    %3042 = vmatprep.subr.mxu0 0.0
    %3043 = vmatpush1.msra.mxu0 0.0
    %3044 = vmatprep.subr.mxu0 0.0
    %3045 = vmatpush1.msra.mxu0 0.0
    %3046 = vmatprep.subr.mxu0 0.0
    %3047 = vmatpush1.msra.mxu0 0.0
    %3048 = vmatprep.subr.mxu0 0.0
    %3049 = vmatpush1.msra.mxu0 0.0
    %3050 = vmatprep.subr.mxu0 0.0
    %3051 = vmatpush1.msra.mxu0 0.0
    %3052 = vmatprep.subr.mxu0 0.0
    %3053 = vmatpush1.msra.mxu0 0.0
    %3054 = vmatprep.subr.mxu0 0.0
    %3055 = vmatpush1.msra.mxu0 0.0
    %3056 = vmatprep.mubr.f32.mxu0 0.0
    %3057 = vmatmul.mubr.f32.gmra.mrb[0].mxu0 %v2988
    %v3058 = vpop.f32.mrb[0].mxu0
    %v3059 = vadd.f32 %v2942, %v3058
    %v3060 = vpop.f32.mrb[0].mxu0
    %3061 = vmatprep.mubr.f32.mxu0 0.0
    %3062 = vmatmul.mubr.f32.gmra.mrb[0].mxu0 %v2990
    %v3063 = vpop.f32.mrb[0].mxu0
    %v3064 = vadd.f32 %v2942, %v3063
    %v3065 = vpop.f32.mrb[0].mxu0
    %3066 = vdwg.mxu0
    %3067 = vmatprep.subr.mxu0 0.0
    %3068 = vmatpush1.msra.mxu0 %v2929
    %3069 = vmatprep.subr.mxu0 0.0
    %3070 = vmatpush1.msra.mxu0 %v2930
    %3071 = vmatprep.subr.mxu0 0.0
    %3072 = vmatpush1.msra.mxu0 0.0
    %3073 = vmatprep.subr.mxu0 0.0
    %3074 = vmatpush1.msra.mxu0 0.0
    %3075 = vmatprep.subr.mxu0 0.0
    %3076 = vmatpush1.msra.mxu0 0.0
    %3077 = vmatprep.subr.mxu0 0.0
    %3078 = vmatpush1.msra.mxu0 0.0
    %3079 = vmatprep.subr.mxu0 0.0
    %3080 = vmatpush1.msra.mxu0 0.0
    %3081 = vmatprep.subr.mxu0 0.0
    %3082 = vmatpush1.msra.mxu0 0.0
    %3083 = vmatprep.subr.mxu0 0.0
    %3084 = vmatpush1.msra.mxu0 0.0
    %3085 = vmatprep.subr.mxu0 0.0
    %3086 = vmatpush1.msra.mxu0 0.0
    %3087 = vmatprep.subr.mxu0 0.0
    %3088 = vmatpush1.msra.mxu0 0.0
    %3089 = vmatprep.subr.mxu0 0.0
    %3090 = vmatpush1.msra.mxu0 0.0
    %3091 = vmatprep.subr.mxu0 0.0
    %3092 = vmatpush1.msra.mxu0 0.0
    %3093 = vmatprep.subr.mxu0 0.0
    %3094 = vmatpush1.msra.mxu0 0.0
    %3095 = vmatprep.subr.mxu0 0.0
    %3096 = vmatpush1.msra.mxu0 0.0
    %3097 = vmatprep.subr.mxu0 0.0
    %3098 = vmatpush1.msra.mxu0 0.0
    %3099 = vmatprep.subr.mxu0 0.0
    %3100 = vmatpush1.msra.mxu0 0.0
    %3101 = vmatprep.subr.mxu0 0.0
    %3102 = vmatpush1.msra.mxu0 0.0
    %3103 = vmatprep.subr.mxu0 0.0
    %3104 = vmatpush1.msra.mxu0 0.0
    %3105 = vmatprep.subr.mxu0 0.0
    %3106 = vmatpush1.msra.mxu0 0.0
    %3107 = vmatprep.subr.mxu0 0.0
    %3108 = vmatpush1.msra.mxu0 0.0
    %3109 = vmatprep.subr.mxu0 0.0
    %3110 = vmatpush1.msra.mxu0 0.0
    %3111 = vmatprep.subr.mxu0 0.0
    %3112 = vmatpush1.msra.mxu0 0.0
    %3113 = vmatprep.subr.mxu0 0.0
    %3114 = vmatpush1.msra.mxu0 0.0
    %3115 = vmatprep.subr.mxu0 0.0
    %3116 = vmatpush1.msra.mxu0 0.0
    %3117 = vmatprep.subr.mxu0 0.0
    %3118 = vmatpush1.msra.mxu0 0.0
    %3119 = vmatprep.subr.mxu0 0.0
    %3120 = vmatpush1.msra.mxu0 0.0
    %3121 = vmatprep.subr.mxu0 0.0
    %3122 = vmatpush1.msra.mxu0 0.0
    %3123 = vmatprep.subr.mxu0 0.0
    %3124 = vmatpush1.msra.mxu0 0.0
    %3125 = vmatprep.subr.mxu0 0.0
    %3126 = vmatpush1.msra.mxu0 0.0
    %3127 = vmatprep.subr.mxu0 0.0
    %3128 = vmatpush1.msra.mxu0 0.0
    %3129 = vmatprep.subr.mxu0 0.0
    %3130 = vmatpush1.msra.mxu0 0.0
    %3131 = vmatprep.mubr.f32.mxu0 0.0
    %3132 = vmatmul.mubr.f32.gmra.mrb[0].mxu0 %v621
    %v3133 = vpop.f32.mrb[0].mxu0
    %v3134 = vadd.f32 0.0, %v3133
    %v3135 = vpop.f32.mrb[0].mxu0
    %3136 = vmatprep.mubr.f32.mxu0 0.0
    %3137 = vmatmul.mubr.f32.gmra.mrb[0].mxu0 %v624
    %v3138 = vpop.f32.mrb[0].mxu0
    %v3139 = vadd.f32 0.0, %v3138
    %v3140 = vpop.f32.mrb[0].mxu0
    %3141 = vmatprep.mubr.f32.mxu0 0.0
    %3142 = vmatmul.mubr.f32.gmra.mrb[0].mxu0 %v627
    %v3143 = vpop.f32.mrb[0].mxu0
    %v3144 = vadd.f32 0.0, %v3143
    %v3145 = vpop.f32.mrb[0].mxu0
    %3146 = vmatprep.mubr.f32.mxu0 0.0
    %3147 = vmatmul.mubr.f32.gmra.mrb[0].mxu0 %v630
    %v3148 = vpop.f32.mrb[0].mxu0
    %v3149 = vadd.f32 0.0, %v3148
    %v3150 = vpop.f32.mrb[0].mxu0
    %3151 = vmatprep.mubr.f32.mxu0 0.0
    %3152 = vmatmul.mubr.f32.gmra.mrb[0].mxu0 %v633
    %v3153 = vpop.f32.mrb[0].mxu0
    %v3154 = vadd.f32 0.0, %v3153
    %v3155 = vpop.f32.mrb[0].mxu0
    %3156 = vmatprep.mubr.f32.mxu0 0.0
    %3157 = vmatmul.mubr.f32.gmra.mrb[0].mxu0 %v636
    %v3158 = vpop.f32.mrb[0].mxu0
    %v3159 = vadd.f32 0.0, %v3158
    %v3160 = vpop.f32.mrb[0].mxu0
    %3161 = vmatprep.mubr.f32.mxu0 0.0
    %3162 = vmatmul.mubr.f32.gmra.mrb[0].mxu0 %v639
    %v3163 = vpop.f32.mrb[0].mxu0
    %v3164 = vadd.f32 0.0, %v3163
    %v3165 = vpop.f32.mrb[0].mxu0
    %3166 = vmatprep.mubr.f32.mxu0 0.0
    %3167 = vmatmul.mubr.f32.gmra.mrb[0].mxu0 %v642
    %v3168 = vpop.f32.mrb[0].mxu0
    %v3169 = vadd.f32 0.0, %v3168
    %v3170 = vpop.f32.mrb[0].mxu0
    %3171 = vmatprep.mubr.f32.mxu0 0.0
    %3172 = vmatmul.mubr.f32.gmra.mrb[0].mxu0 %v645
    %v3173 = vpop.f32.mrb[0].mxu0
    %v3174 = vadd.f32 0.0, %v3173
    %v3175 = vpop.f32.mrb[0].mxu0
    %3176 = vmatprep.mubr.f32.mxu0 0.0
    %3177 = vmatmul.mubr.f32.gmra.mrb[0].mxu0 %v648
    %v3178 = vpop.f32.mrb[0].mxu0
    %v3179 = vadd.f32 0.0, %v3178
    %v3180 = vpop.f32.mrb[0].mxu0
    %3181 = vmatprep.mubr.f32.mxu0 0.0
    %3182 = vmatmul.mubr.f32.gmra.mrb[0].mxu0 %v651
    %v3183 = vpop.f32.mrb[0].mxu0
    %v3184 = vadd.f32 0.0, %v3183
    %v3185 = vpop.f32.mrb[0].mxu0
    %3186 = vmatprep.mubr.f32.mxu0 0.0
    %3187 = vmatmul.mubr.f32.gmra.mrb[0].mxu0 %v654
    %v3188 = vpop.f32.mrb[0].mxu0
    %v3189 = vadd.f32 0.0, %v3188
    %v3190 = vpop.f32.mrb[0].mxu0
    %3191 = vmatprep.mubr.f32.mxu0 0.0
    %3192 = vmatmul.mubr.f32.gmra.mrb[0].mxu0 %v657
    %v3193 = vpop.f32.mrb[0].mxu0
    %v3194 = vadd.f32 0.0, %v3193
    %v3195 = vpop.f32.mrb[0].mxu0
    %3196 = vmatprep.mubr.f32.mxu0 0.0
    %3197 = vmatmul.mubr.f32.gmra.mrb[0].mxu0 %v660
    %v3198 = vpop.f32.mrb[0].mxu0
    %v3199 = vadd.f32 0.0, %v3198
    %v3200 = vpop.f32.mrb[0].mxu0
    %3201 = vmatprep.mubr.f32.mxu0 0.0
    %3202 = vmatmul.mubr.f32.gmra.mrb[0].mxu0 %v663
    %v3203 = vpop.f32.mrb[0].mxu0
    %v3204 = vadd.f32 0.0, %v3203
    %v3205 = vpop.f32.mrb[0].mxu0
    %3206 = vmatprep.mubr.f32.mxu0 0.0
    %3207 = vmatmul.mubr.f32.gmra.mrb[0].mxu0 %v666
    %v3208 = vpop.f32.mrb[0].mxu0
    %v3209 = vadd.f32 0.0, %v3208
    %v3210 = vpop.f32.mrb[0].mxu0
    %3211 = vmatprep.mubr.f32.mxu0 0.0
    %3212 = vmatmul.mubr.f32.gmra.mrb[0].mxu0 %v669
    %v3213 = vpop.f32.mrb[0].mxu0
    %v3214 = vadd.f32 0.0, %v3213
    %v3215 = vpop.f32.mrb[0].mxu0
    %3216 = vmatprep.mubr.f32.mxu0 0.0
    %3217 = vmatmul.mubr.f32.gmra.mrb[0].mxu0 %v672
    %v3218 = vpop.f32.mrb[0].mxu0
    %v3219 = vadd.f32 0.0, %v3218
    %v3220 = vpop.f32.mrb[0].mxu0
    %3221 = vmatprep.mubr.f32.mxu0 0.0
    %3222 = vmatmul.mubr.f32.gmra.mrb[0].mxu0 %v675
    %v3223 = vpop.f32.mrb[0].mxu0
    %v3224 = vadd.f32 0.0, %v3223
    %v3225 = vpop.f32.mrb[0].mxu0
    %3226 = vmatprep.mubr.f32.mxu0 0.0
    %3227 = vmatmul.mubr.f32.gmra.mrb[0].mxu0 %v678
    %v3228 = vpop.f32.mrb[0].mxu0
    %v3229 = vadd.f32 0.0, %v3228
    %v3230 = vpop.f32.mrb[0].mxu0
    %3231 = vmatprep.mubr.f32.mxu0 0.0
    %3232 = vmatmul.mubr.f32.gmra.mrb[0].mxu0 %v681
    %v3233 = vpop.f32.mrb[0].mxu0
    %v3234 = vadd.f32 0.0, %v3233
    %v3235 = vpop.f32.mrb[0].mxu0
    %3236 = vmatprep.mubr.f32.mxu0 0.0
    %3237 = vmatmul.mubr.f32.gmra.mrb[0].mxu0 %v684
    %v3238 = vpop.f32.mrb[0].mxu0
    %v3239 = vadd.f32 0.0, %v3238
    %v3240 = vpop.f32.mrb[0].mxu0
    %3241 = vmatprep.mubr.f32.mxu0 0.0
    %3242 = vmatmul.mubr.f32.gmra.mrb[0].mxu0 %v687
    %v3243 = vpop.f32.mrb[0].mxu0
    %v3244 = vadd.f32 0.0, %v3243
    %v3245 = vpop.f32.mrb[0].mxu0
    %3246 = vmatprep.mubr.f32.mxu0 0.0
    %3247 = vmatmul.mubr.f32.gmra.mrb[0].mxu0 %v690
    %v3248 = vpop.f32.mrb[0].mxu0
    %v3249 = vadd.f32 0.0, %v3248
    %v3250 = vpop.f32.mrb[0].mxu0
    %3251 = vmatprep.mubr.f32.mxu0 0.0
    %3252 = vmatmul.mubr.f32.gmra.mrb[0].mxu0 %v693
    %v3253 = vpop.f32.mrb[0].mxu0
    %v3254 = vadd.f32 0.0, %v3253
    %v3255 = vpop.f32.mrb[0].mxu0
    %3256 = vmatprep.mubr.f32.mxu0 0.0
    %3257 = vmatmul.mubr.f32.gmra.mrb[0].mxu0 %v696
    %v3258 = vpop.f32.mrb[0].mxu0
    %v3259 = vadd.f32 0.0, %v3258
    %v3260 = vpop.f32.mrb[0].mxu0
    %3261 = vmatprep.mubr.f32.mxu0 0.0
    %3262 = vmatmul.mubr.f32.gmra.mrb[0].mxu0 %v699
    %v3263 = vpop.f32.mrb[0].mxu0
    %v3264 = vadd.f32 0.0, %v3263
    %v3265 = vpop.f32.mrb[0].mxu0
    %3266 = vmatprep.mubr.f32.mxu0 0.0
    %3267 = vmatmul.mubr.f32.gmra.mrb[0].mxu0 %v702
    %v3268 = vpop.f32.mrb[0].mxu0
    %v3269 = vadd.f32 0.0, %v3268
    %v3270 = vpop.f32.mrb[0].mxu0
    %3271 = vmatprep.mubr.f32.mxu0 0.0
    %3272 = vmatmul.mubr.f32.gmra.mrb[0].mxu0 %v705
    %v3273 = vpop.f32.mrb[0].mxu0
    %v3274 = vadd.f32 0.0, %v3273
    %v3275 = vpop.f32.mrb[0].mxu0
    %3276 = vmatprep.mubr.f32.mxu0 0.0
    %3277 = vmatmul.mubr.f32.gmra.mrb[0].mxu0 %v708
    %v3278 = vpop.f32.mrb[0].mxu0
    %v3279 = vadd.f32 0.0, %v3278
    %v3280 = vpop.f32.mrb[0].mxu0
    %3281 = vmatprep.mubr.f32.mxu0 0.0
    %3282 = vmatmul.mubr.f32.gmra.mrb[0].mxu0 %v711
    %v3283 = vpop.f32.mrb[0].mxu0
    %v3284 = vadd.f32 0.0, %v3283
    %v3285 = vpop.f32.mrb[0].mxu0
    %3286 = vmatprep.mubr.f32.mxu0 0.0
    %3287 = vmatmul.mubr.f32.gmra.mrb[0].mxu0 %v714
    %v3288 = vpop.f32.mrb[0].mxu0
    %v3289 = vadd.f32 0.0, %v3288
    %v3290 = vpop.f32.mrb[0].mxu0
    %3291 = vdwg.mxu0
    %v3292 = vadd.f32 %v3134, %v3059
    %v3293 = vadd.f32 %v3139, %v3064
    %v3294 = vadd.f32 %v3144, %v3059
    %v3295 = vadd.f32 %v3149, %v3064
    %v3296 = vadd.f32 %v3154, %v3059
    %v3297 = vadd.f32 %v3159, %v3064
    %v3298 = vadd.f32 %v3164, %v3059
    %v3299 = vadd.f32 %v3169, %v3064
    %v3300 = vadd.f32 %v3174, %v3059
    %v3301 = vadd.f32 %v3179, %v3064
    %v3302 = vadd.f32 %v3184, %v3059
    %v3303 = vadd.f32 %v3189, %v3064
    %v3304 = vadd.f32 %v3194, %v3059
    %v3305 = vadd.f32 %v3199, %v3064
    %v3306 = vadd.f32 %v3204, %v3059
    %v3307 = vadd.f32 %v3209, %v3064
    %v3308 = vadd.f32 %v3214, %v3059
    %v3309 = vadd.f32 %v3219, %v3064
    %v3310 = vadd.f32 %v3224, %v3059
    %v3311 = vadd.f32 %v3229, %v3064
    %v3312 = vadd.f32 %v3234, %v3059
    %v3313 = vadd.f32 %v3239, %v3064
    %v3314 = vadd.f32 %v3244, %v3059
    %v3315 = vadd.f32 %v3249, %v3064
    %v3316 = vadd.f32 %v3254, %v3059
    %v3317 = vadd.f32 %v3259, %v3064
    %v3318 = vadd.f32 %v3264, %v3059
    %v3319 = vadd.f32 %v3269, %v3064
    %v3320 = vadd.f32 %v3274, %v3059
    %v3321 = vadd.f32 %v3279, %v3064
    %v3322 = vadd.f32 %v3284, %v3059
    %v3323 = vadd.f32 %v3289, %v3064
    %v3326 = vcombine.high %v3059, %v3059
    %v3328 = vunpack.c.l.s4 1966171168
    %v3329 = vunpack.c.0.s8 %v3328
    %v3330 = vlaneseq
    %v3331 = vshrl.u32 %v3330, 7
    %v3332 = vsub.s32 %v3329, %v3331
    %v3333 = vrot.slane %v3059, %v3332
    %v3335 = vunpack.c.l.s4 1966171168
    %v3336 = vunpack.c.0.s8 %v3335
    %v3337 = vlaneseq
    %v3338 = vshrl.u32 %v3337, 7
    %v3339 = vsub.s32 %v3336, %v3338
    %v3340 = vrot.slane %v3326, %v3339
    %v3341 = vcombine.high %v3333, %v3333
    %v3342 = vcombine.high %v3340, %v3340
    %v3344 = vunpack.c.l.s4 1966171168
    %v3345 = vunpack.c.0.s8 %v3344
    %v3346 = vlaneseq
    %v3347 = vshrl.u32 %v3346, 7
    %v3348 = vsub.s32 %v3345, %v3347
    %v3349 = vrot.slane %v3333, %v3348
    %v3351 = vunpack.c.l.s4 1966171168
    %v3352 = vunpack.c.0.s8 %v3351
    %v3353 = vlaneseq
    %v3354 = vshrl.u32 %v3353, 7
    %v3355 = vsub.s32 %v3352, %v3354
    %v3356 = vrot.slane %v3340, %v3355
    %v3358 = vunpack.c.l.s4 1966171168
    %v3359 = vunpack.c.0.s8 %v3358
    %v3360 = vlaneseq
    %v3361 = vshrl.u32 %v3360, 7
    %v3362 = vsub.s32 %v3359, %v3361
    %v3363 = vrot.slane %v3341, %v3362
    %v3365 = vunpack.c.l.s4 1966171168
    %v3366 = vunpack.c.0.s8 %v3365
    %v3367 = vlaneseq
    %v3368 = vshrl.u32 %v3367, 7
    %v3369 = vsub.s32 %v3366, %v3368
    %v3370 = vrot.slane %v3342, %v3369
    %v3371 = vcombine.high %v3349, %v3349
    %v3372 = vcombine.high %v3356, %v3356
    %v3373 = vcombine.high %v3363, %v3363
    %v3374 = vcombine.high %v3370, %v3370
    %v3375 = vcombine.high %v3064, %v3064
    %v3377 = vunpack.c.l.s4 1966171168
    %v3378 = vunpack.c.0.s8 %v3377
    %v3379 = vlaneseq
    %v3380 = vshrl.u32 %v3379, 7
    %v3381 = vsub.s32 %v3378, %v3380
    %v3382 = vrot.slane %v3064, %v3381
    %v3384 = vunpack.c.l.s4 1966171168
    %v3385 = vunpack.c.0.s8 %v3384
    %v3386 = vlaneseq
    %v3387 = vshrl.u32 %v3386, 7
    %v3388 = vsub.s32 %v3385, %v3387
    %v3389 = vrot.slane %v3375, %v3388
    %v3390 = vcombine.high %v3382, %v3382
    %v3391 = vcombine.high %v3389, %v3389
    %v3393 = vunpack.c.l.s4 1966171168
    %v3394 = vunpack.c.0.s8 %v3393
    %v3395 = vlaneseq
    %v3396 = vshrl.u32 %v3395, 7
    %v3397 = vsub.s32 %v3394, %v3396
    %v3398 = vrot.slane %v3382, %v3397
    %v3400 = vunpack.c.l.s4 1966171168
    %v3401 = vunpack.c.0.s8 %v3400
    %v3402 = vlaneseq
    %v3403 = vshrl.u32 %v3402, 7
    %v3404 = vsub.s32 %v3401, %v3403
    %v3405 = vrot.slane %v3389, %v3404
    %v3407 = vunpack.c.l.s4 1966171168
    %v3408 = vunpack.c.0.s8 %v3407
    %v3409 = vlaneseq
    %v3410 = vshrl.u32 %v3409, 7
    %v3411 = vsub.s32 %v3408, %v3410
    %v3412 = vrot.slane %v3390, %v3411
    %v3414 = vunpack.c.l.s4 1966171168
    %v3415 = vunpack.c.0.s8 %v3414
    %v3416 = vlaneseq
    %v3417 = vshrl.u32 %v3416, 7
    %v3418 = vsub.s32 %v3415, %v3417
    %v3419 = vrot.slane %v3391, %v3418
    %v3420 = vcombine.high %v3398, %v3398
    %v3421 = vcombine.high %v3405, %v3405
    %v3422 = vcombine.high %v3412, %v3412
    %v3423 = vcombine.high %v3419, %v3419
    %v3424 = vlaneseq
    %v3425 = vshrl.u32 %v3424, 7
    %v3426 = vsub.s32 0, %v3425
    %v3427 = vrot.slane %v3349, %v3426
    %v3428 = vlaneseq
    %v3429 = vshrl.u32 %v3428, 7
    %v3430 = vsub.s32 0, %v3429
    %v3431 = vrot.slane %v3363, %v3430
    %v3432 = vlaneseq
    %v3433 = vshrl.u32 %v3432, 7
    %v3434 = vsub.s32 0, %v3433
    %v3435 = vrot.slane %v3371, %v3434
    %v3436 = vlaneseq
    %v3437 = vshrl.u32 %v3436, 7
    %v3438 = vsub.s32 0, %v3437
    %v3439 = vrot.slane %v3373, %v3438
    %v3440 = vlaneseq
    %v3441 = vshrl.u32 %v3440, 7
    %v3442 = vsub.s32 0, %v3441
    %v3443 = vrot.slane %v3356, %v3442
    %v3444 = vlaneseq
    %v3445 = vshrl.u32 %v3444, 7
    %v3446 = vsub.s32 0, %v3445
    %v3447 = vrot.slane %v3370, %v3446
    %v3448 = vlaneseq
    %v3449 = vshrl.u32 %v3448, 7
    %v3450 = vsub.s32 0, %v3449
    %v3451 = vrot.slane %v3372, %v3450
    %v3452 = vlaneseq
    %v3453 = vshrl.u32 %v3452, 7
    %v3454 = vsub.s32 0, %v3453
    %v3455 = vrot.slane %v3374, %v3454
    %v3456 = vlaneseq
    %v3457 = vshrl.u32 %v3456, 7
    %v3458 = vsub.s32 0, %v3457
    %v3459 = vrot.slane %v3398, %v3458
    %v3460 = vlaneseq
    %v3461 = vshrl.u32 %v3460, 7
    %v3462 = vsub.s32 0, %v3461
    %v3463 = vrot.slane %v3412, %v3462
    %v3464 = vlaneseq
    %v3465 = vshrl.u32 %v3464, 7
    %v3466 = vsub.s32 0, %v3465
    %v3467 = vrot.slane %v3420, %v3466
    %v3468 = vlaneseq
    %v3469 = vshrl.u32 %v3468, 7
    %v3470 = vsub.s32 0, %v3469
    %v3471 = vrot.slane %v3422, %v3470
    %v3472 = vlaneseq
    %v3473 = vshrl.u32 %v3472, 7
    %v3474 = vsub.s32 0, %v3473
    %v3475 = vrot.slane %v3405, %v3474
    %v3476 = vlaneseq
    %v3477 = vshrl.u32 %v3476, 7
    %v3478 = vsub.s32 0, %v3477
    %v3479 = vrot.slane %v3419, %v3478
    %v3480 = vlaneseq
    %v3481 = vshrl.u32 %v3480, 7
    %v3482 = vsub.s32 0, %v3481
    %v3483 = vrot.slane %v3421, %v3482
    %v3484 = vlaneseq
    %v3485 = vshrl.u32 %v3484, 7
    %v3486 = vsub.s32 0, %v3485
    %v3487 = vrot.slane %v3423, %v3486
    %3488 = vrot.lane.b32.xlu0 %v3427, 96
    %v3489 = vpop.permute.xlu0 %3488
    %3490 = vrot.lane.b32.xlu0 %v3431, 96
    %v3491 = vpop.permute.xlu0 %3490
    %3492 = vrot.lane.b32.xlu0 %v3435, 96
    %v3493 = vpop.permute.xlu0 %3492
    %3494 = vrot.lane.b32.xlu0 %v3439, 96
    %v3495 = vpop.permute.xlu0 %3494
    %3496 = vrot.lane.b32.xlu0 %v3443, 96
    %v3497 = vpop.permute.xlu0 %3496
    %3498 = vrot.lane.b32.xlu0 %v3447, 96
    %v3499 = vpop.permute.xlu0 %3498
    %3500 = vrot.lane.b32.xlu0 %v3451, 96
    %v3501 = vpop.permute.xlu0 %3500
    %3502 = vrot.lane.b32.xlu0 %v3455, 96
    %v3503 = vpop.permute.xlu0 %3502
    %3504 = vrot.lane.b32.xlu0 %v3459, 96
    %v3505 = vpop.permute.xlu0 %3504
    %3506 = vrot.lane.b32.xlu0 %v3463, 96
    %v3507 = vpop.permute.xlu0 %3506
    %3508 = vrot.lane.b32.xlu0 %v3467, 96
    %v3509 = vpop.permute.xlu0 %3508
    %3510 = vrot.lane.b32.xlu0 %v3471, 96
    %v3511 = vpop.permute.xlu0 %3510
    %3512 = vrot.lane.b32.xlu0 %v3475, 96
    %v3513 = vpop.permute.xlu0 %3512
    %3514 = vrot.lane.b32.xlu0 %v3479, 96
    %v3515 = vpop.permute.xlu0 %3514
    %3516 = vrot.lane.b32.xlu0 %v3483, 96
    %v3517 = vpop.permute.xlu0 %3516
    %3518 = vrot.lane.b32.xlu0 %v3487, 96
    %v3519 = vpop.permute.xlu0 %3518
    %v3536 = vadd.f32 %v3292, %v3489
    %v3537 = vadd.f32 %v3293, %v3489
    %v3538 = vadd.f32 %v3294, %v3491
    %v3539 = vadd.f32 %v3295, %v3491
    %v3540 = vadd.f32 %v3296, %v3493
    %v3541 = vadd.f32 %v3297, %v3493
    %v3542 = vadd.f32 %v3298, %v3495
    %v3543 = vadd.f32 %v3299, %v3495
    %v3544 = vadd.f32 %v3300, %v3497
    %v3545 = vadd.f32 %v3301, %v3497
    %v3546 = vadd.f32 %v3302, %v3499
    %v3547 = vadd.f32 %v3303, %v3499
    %v3548 = vadd.f32 %v3304, %v3501
    %v3549 = vadd.f32 %v3305, %v3501
    %v3550 = vadd.f32 %v3306, %v3503
    %v3551 = vadd.f32 %v3307, %v3503
    %v3552 = vadd.f32 %v3308, %v3505
    %v3553 = vadd.f32 %v3309, %v3505
    %v3554 = vadd.f32 %v3310, %v3507
    %v3555 = vadd.f32 %v3311, %v3507
    %v3556 = vadd.f32 %v3312, %v3509
    %v3557 = vadd.f32 %v3313, %v3509
    %v3558 = vadd.f32 %v3314, %v3511
    %v3559 = vadd.f32 %v3315, %v3511
    %v3560 = vadd.f32 %v3316, %v3513
    %v3561 = vadd.f32 %v3317, %v3513
    %v3562 = vadd.f32 %v3318, %v3515
    %v3563 = vadd.f32 %v3319, %v3515
    %v3564 = vadd.f32 %v3320, %v3517
    %v3565 = vadd.f32 %v3321, %v3517
    %v3566 = vadd.f32 %v3322, %v3519
    %v3567 = vadd.f32 %v3323, %v3519
    %vm3568 = vcmp.gt.f32.partialorder %v3536, 0.0
    %vm3569 = vcmp.gt.f32.partialorder %v3537, 0.0
    %vm3570 = vcmp.gt.f32.partialorder %v3538, 0.0
    %vm3571 = vcmp.gt.f32.partialorder %v3539, 0.0
    %vm3572 = vcmp.gt.f32.partialorder %v3540, 0.0
    %vm3573 = vcmp.gt.f32.partialorder %v3541, 0.0
    %vm3574 = vcmp.gt.f32.partialorder %v3542, 0.0
    %vm3575 = vcmp.gt.f32.partialorder %v3543, 0.0
    %vm3576 = vcmp.gt.f32.partialorder %v3544, 0.0
    %vm3577 = vcmp.gt.f32.partialorder %v3545, 0.0
    %vm3578 = vcmp.gt.f32.partialorder %v3546, 0.0
    %vm3579 = vcmp.gt.f32.partialorder %v3547, 0.0
    %vm3580 = vcmp.gt.f32.partialorder %v3548, 0.0
    %vm3581 = vcmp.gt.f32.partialorder %v3549, 0.0
    %vm3582 = vcmp.gt.f32.partialorder %v3550, 0.0
    %vm3583 = vcmp.gt.f32.partialorder %v3551, 0.0
    %vm3584 = vcmp.gt.f32.partialorder %v3552, 0.0
    %vm3585 = vcmp.gt.f32.partialorder %v3553, 0.0
    %vm3586 = vcmp.gt.f32.partialorder %v3554, 0.0
    %vm3587 = vcmp.gt.f32.partialorder %v3555, 0.0
    %vm3588 = vcmp.gt.f32.partialorder %v3556, 0.0
    %vm3589 = vcmp.gt.f32.partialorder %v3557, 0.0
    %vm3590 = vcmp.gt.f32.partialorder %v3558, 0.0
    %vm3591 = vcmp.gt.f32.partialorder %v3559, 0.0
    %vm3592 = vcmp.gt.f32.partialorder %v3560, 0.0
    %vm3593 = vcmp.gt.f32.partialorder %v3561, 0.0
    %vm3594 = vcmp.gt.f32.partialorder %v3562, 0.0
    %vm3595 = vcmp.gt.f32.partialorder %v3563, 0.0
    %vm3596 = vcmp.gt.f32.partialorder %v3564, 0.0
    %vm3597 = vcmp.gt.f32.partialorder %v3565, 0.0
    %vm3598 = vcmp.gt.f32.partialorder %v3566, 0.0
    %vm3599 = vcmp.gt.f32.partialorder %v3567, 0.0
    %v3600 = vmul.f32 %v3536, 0.2
    %v3601 = vmul.f32 %v3537, 0.2
    %v3602 = vmul.f32 %v3538, 0.2
    %v3603 = vmul.f32 %v3539, 0.2
    %v3604 = vmul.f32 %v3540, 0.2
    %v3605 = vmul.f32 %v3541, 0.2
    %v3606 = vmul.f32 %v3542, 0.2
    %v3607 = vmul.f32 %v3543, 0.2
    %v3608 = vmul.f32 %v3544, 0.2
    %v3609 = vmul.f32 %v3545, 0.2
    %v3610 = vmul.f32 %v3546, 0.2
    %v3611 = vmul.f32 %v3547, 0.2
    %v3612 = vmul.f32 %v3548, 0.2
    %v3613 = vmul.f32 %v3549, 0.2
    %v3614 = vmul.f32 %v3550, 0.2
    %v3615 = vmul.f32 %v3551, 0.2
    %v3616 = vmul.f32 %v3552, 0.2
    %v3617 = vmul.f32 %v3553, 0.2
    %v3618 = vmul.f32 %v3554, 0.2
    %v3619 = vmul.f32 %v3555, 0.2
    %v3620 = vmul.f32 %v3556, 0.2
    %v3621 = vmul.f32 %v3557, 0.2
    %v3622 = vmul.f32 %v3558, 0.2
    %v3623 = vmul.f32 %v3559, 0.2
    %v3624 = vmul.f32 %v3560, 0.2
    %v3625 = vmul.f32 %v3561, 0.2
    %v3626 = vmul.f32 %v3562, 0.2
    %v3627 = vmul.f32 %v3563, 0.2
    %v3628 = vmul.f32 %v3564, 0.2
    %v3629 = vmul.f32 %v3565, 0.2
    %v3630 = vmul.f32 %v3566, 0.2
    %v3631 = vmul.f32 %v3567, 0.2
    %v3632 = vsel %vm3568, %v3536, %v3600
    %v3633 = vsel %vm3569, %v3537, %v3601
    %v3634 = vsel %vm3570, %v3538, %v3602
    %v3635 = vsel %vm3571, %v3539, %v3603
    %v3636 = vsel %vm3572, %v3540, %v3604
    %v3637 = vsel %vm3573, %v3541, %v3605
    %v3638 = vsel %vm3574, %v3542, %v3606
    %v3639 = vsel %vm3575, %v3543, %v3607
    %v3640 = vsel %vm3576, %v3544, %v3608
    %v3641 = vsel %vm3577, %v3545, %v3609
    %v3642 = vsel %vm3578, %v3546, %v3610
    %v3643 = vsel %vm3579, %v3547, %v3611
    %v3644 = vsel %vm3580, %v3548, %v3612
    %v3645 = vsel %vm3581, %v3549, %v3613
    %v3646 = vsel %vm3582, %v3550, %v3614
    %v3647 = vsel %vm3583, %v3551, %v3615
    %v3648 = vsel %vm3584, %v3552, %v3616
    %v3649 = vsel %vm3585, %v3553, %v3617
    %v3650 = vsel %vm3586, %v3554, %v3618
    %v3651 = vsel %vm3587, %v3555, %v3619
    %v3652 = vsel %vm3588, %v3556, %v3620
    %v3653 = vsel %vm3589, %v3557, %v3621
    %v3654 = vsel %vm3590, %v3558, %v3622
    %v3655 = vsel %vm3591, %v3559, %v3623
    %v3656 = vsel %vm3592, %v3560, %v3624
    %v3657 = vsel %vm3593, %v3561, %v3625
    %v3658 = vsel %vm3594, %v3562, %v3626
    %v3659 = vsel %vm3595, %v3563, %v3627
    %v3660 = vsel %vm3596, %v3564, %v3628
    %v3661 = vsel %vm3597, %v3565, %v3629
    %v3662 = vsel %vm3598, %v3566, %v3630
    %v3663 = vsel %vm3599, %v3567, %v3631
    %v3665 = vsel %vm538, %v3632, 0
    %v3668 = vsel %vm538, %v3633, 0
    %v3671 = vsel %vm538, %v3634, 0
    %v3674 = vsel %vm538, %v3635, 0
    %v3677 = vsel %vm538, %v3636, 0
    %v3680 = vsel %vm538, %v3637, 0
    %v3683 = vsel %vm538, %v3638, 0
    %v3686 = vsel %vm538, %v3639, 0
    %v3689 = vsel %vm538, %v3640, 0
    %v3692 = vsel %vm538, %v3641, 0
    %v3695 = vsel %vm538, %v3642, 0
    %v3698 = vsel %vm538, %v3643, 0
    %v3701 = vsel %vm538, %v3644, 0
    %v3704 = vsel %vm538, %v3645, 0
    %v3707 = vsel %vm538, %v3646, 0
    %v3710 = vsel %vm538, %v3647, 0
    %v3713 = vsel %vm538, %v3648, 0
    %v3716 = vsel %vm538, %v3649, 0
    %v3719 = vsel %vm538, %v3650, 0
    %v3722 = vsel %vm538, %v3651, 0
    %v3725 = vsel %vm538, %v3652, 0
    %v3728 = vsel %vm538, %v3653, 0
    %v3731 = vsel %vm538, %v3654, 0
    %v3734 = vsel %vm538, %v3655, 0
    %v3737 = vsel %vm538, %v3656, 0
    %v3740 = vsel %vm538, %v3657, 0
    %v3743 = vsel %vm538, %v3658, 0
    %v3746 = vsel %vm538, %v3659, 0
    %v3749 = vsel %vm538, %v3660, 0
    %v3752 = vsel %vm538, %v3661, 0
    %v3755 = vsel %vm538, %v3662, 0
    %v3758 = vsel %vm538, %v3663, 0
    %3760 = vmatprep.subr.mxu0 0.0
    %3761 = vmatpush1.msra.mxu0 %v2931
    %3762 = vmatprep.subr.mxu0 0.0
    %3763 = vmatpush1.msra.mxu0 %v2932
    %3764 = vmatprep.subr.mxu0 0.0
    %3765 = vmatpush1.msra.mxu0 %v2933
    %3766 = vmatprep.subr.mxu0 0.0
    %3767 = vmatpush1.msra.mxu0 %v2934
    %3768 = vmatprep.subr.mxu0 0.0
    %3769 = vmatpush1.msra.mxu0 0.0
    %3770 = vmatprep.subr.mxu0 0.0
    %3771 = vmatpush1.msra.mxu0 0.0
    %3772 = vmatprep.subr.mxu0 0.0
    %3773 = vmatpush1.msra.mxu0 0.0
    %3774 = vmatprep.subr.mxu0 0.0
    %3775 = vmatpush1.msra.mxu0 0.0
    %3776 = vmatprep.subr.mxu0 0.0
    %3777 = vmatpush1.msra.mxu0 0.0
    %3778 = vmatprep.subr.mxu0 0.0
    %3779 = vmatpush1.msra.mxu0 0.0
    %3780 = vmatprep.subr.mxu0 0.0
    %3781 = vmatpush1.msra.mxu0 0.0
    %3782 = vmatprep.subr.mxu0 0.0
    %3783 = vmatpush1.msra.mxu0 0.0
    %3784 = vmatprep.subr.mxu0 0.0
    %3785 = vmatpush1.msra.mxu0 0.0
    %3786 = vmatprep.subr.mxu0 0.0
    %3787 = vmatpush1.msra.mxu0 0.0
    %3788 = vmatprep.subr.mxu0 0.0
    %3789 = vmatpush1.msra.mxu0 0.0
    %3790 = vmatprep.subr.mxu0 0.0
    %3791 = vmatpush1.msra.mxu0 0.0
    %3792 = vmatprep.subr.mxu0 0.0
    %3793 = vmatpush1.msra.mxu0 0.0
    %3794 = vmatprep.subr.mxu0 0.0
    %3795 = vmatpush1.msra.mxu0 0.0
    %3796 = vmatprep.subr.mxu0 0.0
    %3797 = vmatpush1.msra.mxu0 0.0
    %3798 = vmatprep.subr.mxu0 0.0
    %3799 = vmatpush1.msra.mxu0 0.0
    %3800 = vmatprep.subr.mxu0 0.0
    %3801 = vmatpush1.msra.mxu0 0.0
    %3802 = vmatprep.subr.mxu0 0.0
    %3803 = vmatpush1.msra.mxu0 0.0
    %3804 = vmatprep.subr.mxu0 0.0
    %3805 = vmatpush1.msra.mxu0 0.0
    %3806 = vmatprep.subr.mxu0 0.0
    %3807 = vmatpush1.msra.mxu0 0.0
    %3808 = vmatprep.subr.mxu0 0.0
    %3809 = vmatpush1.msra.mxu0 0.0
    %3810 = vmatprep.subr.mxu0 0.0
    %3811 = vmatpush1.msra.mxu0 0.0
    %3812 = vmatprep.subr.mxu0 0.0
    %3813 = vmatpush1.msra.mxu0 0.0
    %3814 = vmatprep.subr.mxu0 0.0
    %3815 = vmatpush1.msra.mxu0 0.0
    %3816 = vmatprep.subr.mxu0 0.0
    %3817 = vmatpush1.msra.mxu0 0.0
    %3818 = vmatprep.subr.mxu0 0.0
    %3819 = vmatpush1.msra.mxu0 0.0
    %3820 = vmatprep.subr.mxu0 0.0
    %3821 = vmatpush1.msra.mxu0 0.0
    %3822 = vmatprep.subr.mxu0 0.0
    %3823 = vmatpush1.msra.mxu0 0.0
    %3824 = vmatprep.mubr.f32.mxu0 0.0
    %3825 = vmatmul.mubr.f32.gmra.mrb[0].mxu0 %v3665
    %v3826 = vpop.f32.mrb[0].mxu0
    %v3827 = vadd.f32 0.0, %v3826
    %v3828 = vpop.f32.mrb[0].mxu0
    %3829 = vmatprep.mubr.f32.mxu0 0.0
    %3830 = vmatmul.mubr.f32.gmra.mrb[0].mxu0 %v3668
    %v3831 = vpop.f32.mrb[0].mxu0
    %v3832 = vadd.f32 0.0, %v3831
    %v3833 = vpop.f32.mrb[0].mxu0
    %3834 = vmatprep.mubr.f32.mxu0 0.0
    %3835 = vmatmul.mubr.f32.gmra.mrb[0].mxu0 %v3671
    %v3836 = vpop.f32.mrb[0].mxu0
    %v3837 = vadd.f32 0.0, %v3836
    %v3838 = vpop.f32.mrb[0].mxu0
    %3839 = vmatprep.mubr.f32.mxu0 0.0
    %3840 = vmatmul.mubr.f32.gmra.mrb[0].mxu0 %v3674
    %v3841 = vpop.f32.mrb[0].mxu0
    %v3842 = vadd.f32 0.0, %v3841
    %v3843 = vpop.f32.mrb[0].mxu0
    %3844 = vmatprep.mubr.f32.mxu0 0.0
    %3845 = vmatmul.mubr.f32.gmra.mrb[0].mxu0 %v3677
    %v3846 = vpop.f32.mrb[0].mxu0
    %v3847 = vadd.f32 0.0, %v3846
    %v3848 = vpop.f32.mrb[0].mxu0
    %3849 = vmatprep.mubr.f32.mxu0 0.0
    %3850 = vmatmul.mubr.f32.gmra.mrb[0].mxu0 %v3680
    %v3851 = vpop.f32.mrb[0].mxu0
    %v3852 = vadd.f32 0.0, %v3851
    %v3853 = vpop.f32.mrb[0].mxu0
    %3854 = vmatprep.mubr.f32.mxu0 0.0
    %3855 = vmatmul.mubr.f32.gmra.mrb[0].mxu0 %v3683
    %v3856 = vpop.f32.mrb[0].mxu0
    %v3857 = vadd.f32 0.0, %v3856
    %v3858 = vpop.f32.mrb[0].mxu0
    %3859 = vmatprep.mubr.f32.mxu0 0.0
    %3860 = vmatmul.mubr.f32.gmra.mrb[0].mxu0 %v3686
    %v3861 = vpop.f32.mrb[0].mxu0
    %v3862 = vadd.f32 0.0, %v3861
    %v3863 = vpop.f32.mrb[0].mxu0
    %3864 = vmatprep.mubr.f32.mxu0 0.0
    %3865 = vmatmul.mubr.f32.gmra.mrb[0].mxu0 %v3689
    %v3866 = vpop.f32.mrb[0].mxu0
    %v3867 = vadd.f32 0.0, %v3866
    %v3868 = vpop.f32.mrb[0].mxu0
    %3869 = vmatprep.mubr.f32.mxu0 0.0
    %3870 = vmatmul.mubr.f32.gmra.mrb[0].mxu0 %v3692
    %v3871 = vpop.f32.mrb[0].mxu0
    %v3872 = vadd.f32 0.0, %v3871
    %v3873 = vpop.f32.mrb[0].mxu0
    %3874 = vmatprep.mubr.f32.mxu0 0.0
    %3875 = vmatmul.mubr.f32.gmra.mrb[0].mxu0 %v3695
    %v3876 = vpop.f32.mrb[0].mxu0
    %v3877 = vadd.f32 0.0, %v3876
    %v3878 = vpop.f32.mrb[0].mxu0
    %3879 = vmatprep.mubr.f32.mxu0 0.0
    %3880 = vmatmul.mubr.f32.gmra.mrb[0].mxu0 %v3698
    %v3881 = vpop.f32.mrb[0].mxu0
    %v3882 = vadd.f32 0.0, %v3881
    %v3883 = vpop.f32.mrb[0].mxu0
    %3884 = vmatprep.mubr.f32.mxu0 0.0
    %3885 = vmatmul.mubr.f32.gmra.mrb[0].mxu0 %v3701
    %v3886 = vpop.f32.mrb[0].mxu0
    %v3887 = vadd.f32 0.0, %v3886
    %v3888 = vpop.f32.mrb[0].mxu0
    %3889 = vmatprep.mubr.f32.mxu0 0.0
    %3890 = vmatmul.mubr.f32.gmra.mrb[0].mxu0 %v3704
    %v3891 = vpop.f32.mrb[0].mxu0
    %v3892 = vadd.f32 0.0, %v3891
    %v3893 = vpop.f32.mrb[0].mxu0
    %3894 = vmatprep.mubr.f32.mxu0 0.0
    %3895 = vmatmul.mubr.f32.gmra.mrb[0].mxu0 %v3707
    %v3896 = vpop.f32.mrb[0].mxu0
    %v3897 = vadd.f32 0.0, %v3896
    %v3898 = vpop.f32.mrb[0].mxu0
    %3899 = vmatprep.mubr.f32.mxu0 0.0
    %3900 = vmatmul.mubr.f32.gmra.mrb[0].mxu0 %v3710
    %v3901 = vpop.f32.mrb[0].mxu0
    %v3902 = vadd.f32 0.0, %v3901
    %v3903 = vpop.f32.mrb[0].mxu0
    %3904 = vmatprep.mubr.f32.mxu0 0.0
    %3905 = vmatmul.mubr.f32.gmra.mrb[0].mxu0 %v3713
    %v3906 = vpop.f32.mrb[0].mxu0
    %v3907 = vadd.f32 0.0, %v3906
    %v3908 = vpop.f32.mrb[0].mxu0
    %3909 = vmatprep.mubr.f32.mxu0 0.0
    %3910 = vmatmul.mubr.f32.gmra.mrb[0].mxu0 %v3716
    %v3911 = vpop.f32.mrb[0].mxu0
    %v3912 = vadd.f32 0.0, %v3911
    %v3913 = vpop.f32.mrb[0].mxu0
    %3914 = vmatprep.mubr.f32.mxu0 0.0
    %3915 = vmatmul.mubr.f32.gmra.mrb[0].mxu0 %v3719
    %v3916 = vpop.f32.mrb[0].mxu0
    %v3917 = vadd.f32 0.0, %v3916
    %v3918 = vpop.f32.mrb[0].mxu0
    %3919 = vmatprep.mubr.f32.mxu0 0.0
    %3920 = vmatmul.mubr.f32.gmra.mrb[0].mxu0 %v3722
    %v3921 = vpop.f32.mrb[0].mxu0
    %v3922 = vadd.f32 0.0, %v3921
    %v3923 = vpop.f32.mrb[0].mxu0
    %3924 = vmatprep.mubr.f32.mxu0 0.0
    %3925 = vmatmul.mubr.f32.gmra.mrb[0].mxu0 %v3725
    %v3926 = vpop.f32.mrb[0].mxu0
    %v3927 = vadd.f32 0.0, %v3926
    %v3928 = vpop.f32.mrb[0].mxu0
    %3929 = vmatprep.mubr.f32.mxu0 0.0
    %3930 = vmatmul.mubr.f32.gmra.mrb[0].mxu0 %v3728
    %v3931 = vpop.f32.mrb[0].mxu0
    %v3932 = vadd.f32 0.0, %v3931
    %v3933 = vpop.f32.mrb[0].mxu0
    %3934 = vmatprep.mubr.f32.mxu0 0.0
    %3935 = vmatmul.mubr.f32.gmra.mrb[0].mxu0 %v3731
    %v3936 = vpop.f32.mrb[0].mxu0
    %v3937 = vadd.f32 0.0, %v3936
    %v3938 = vpop.f32.mrb[0].mxu0
    %3939 = vmatprep.mubr.f32.mxu0 0.0
    %3940 = vmatmul.mubr.f32.gmra.mrb[0].mxu0 %v3734
    %v3941 = vpop.f32.mrb[0].mxu0
    %v3942 = vadd.f32 0.0, %v3941
    %v3943 = vpop.f32.mrb[0].mxu0
    %3944 = vmatprep.mubr.f32.mxu0 0.0
    %3945 = vmatmul.mubr.f32.gmra.mrb[0].mxu0 %v3737
    %v3946 = vpop.f32.mrb[0].mxu0
    %v3947 = vadd.f32 0.0, %v3946
    %v3948 = vpop.f32.mrb[0].mxu0
    %3949 = vmatprep.mubr.f32.mxu0 0.0
    %3950 = vmatmul.mubr.f32.gmra.mrb[0].mxu0 %v3740
    %v3951 = vpop.f32.mrb[0].mxu0
    %v3952 = vadd.f32 0.0, %v3951
    %v3953 = vpop.f32.mrb[0].mxu0
    %3954 = vmatprep.mubr.f32.mxu0 0.0
    %3955 = vmatmul.mubr.f32.gmra.mrb[0].mxu0 %v3743
    %v3956 = vpop.f32.mrb[0].mxu0
    %v3957 = vadd.f32 0.0, %v3956
    %v3958 = vpop.f32.mrb[0].mxu0
    %3959 = vmatprep.mubr.f32.mxu0 0.0
    %3960 = vmatmul.mubr.f32.gmra.mrb[0].mxu0 %v3746
    %v3961 = vpop.f32.mrb[0].mxu0
    %v3962 = vadd.f32 0.0, %v3961
    %v3963 = vpop.f32.mrb[0].mxu0
    %3964 = vmatprep.mubr.f32.mxu0 0.0
    %3965 = vmatmul.mubr.f32.gmra.mrb[0].mxu0 %v3749
    %v3966 = vpop.f32.mrb[0].mxu0
    %v3967 = vadd.f32 0.0, %v3966
    %v3968 = vpop.f32.mrb[0].mxu0
    %3969 = vmatprep.mubr.f32.mxu0 0.0
    %3970 = vmatmul.mubr.f32.gmra.mrb[0].mxu0 %v3752
    %v3971 = vpop.f32.mrb[0].mxu0
    %v3972 = vadd.f32 0.0, %v3971
    %v3973 = vpop.f32.mrb[0].mxu0
    %3974 = vmatprep.mubr.f32.mxu0 0.0
    %3975 = vmatmul.mubr.f32.gmra.mrb[0].mxu0 %v3755
    %v3976 = vpop.f32.mrb[0].mxu0
    %v3977 = vadd.f32 0.0, %v3976
    %v3978 = vpop.f32.mrb[0].mxu0
    %3979 = vmatprep.mubr.f32.mxu0 0.0
    %3980 = vmatmul.mubr.f32.gmra.mrb[0].mxu0 %v3758
    %v3981 = vpop.f32.mrb[0].mxu0
    %v3982 = vadd.f32 0.0, %v3981
    %v3983 = vpop.f32.mrb[0].mxu0
    %3984 = vdwg.mxu0
    %v3985 = vadd.f32 %v3827, %v453
    %v3986 = vadd.f32 %v3832, %v454
    %v3987 = vadd.f32 %v3837, %v455
    %v3988 = vadd.f32 %v3842, %v456
    %v3989 = vadd.f32 %v3847, %v457
    %v3990 = vadd.f32 %v3852, %v458
    %v3991 = vadd.f32 %v3857, %v459
    %v3992 = vadd.f32 %v3862, %v460
    %v3993 = vadd.f32 %v3867, %v461
    %v3994 = vadd.f32 %v3872, %v462
    %v3995 = vadd.f32 %v3877, %v463
    %v3996 = vadd.f32 %v3882, %v464
    %v3997 = vadd.f32 %v3887, %v465
    %v3998 = vadd.f32 %v3892, %v466
    %v3999 = vadd.f32 %v3897, %v467
    %v4000 = vadd.f32 %v3902, %v468
    %v4001 = vadd.f32 %v3907, %v469
    %v4002 = vadd.f32 %v3912, %v470
    %v4003 = vadd.f32 %v3917, %v471
    %v4004 = vadd.f32 %v3922, %v472
    %v4005 = vadd.f32 %v3927, %v473
    %v4006 = vadd.f32 %v3932, %v474
    %v4007 = vadd.f32 %v3937, %v475
    %v4008 = vadd.f32 %v3942, %v476
    %v4009 = vadd.f32 %v3947, %v477
    %v4010 = vadd.f32 %v3952, %v478
    %v4011 = vadd.f32 %v3957, %v479
    %v4012 = vadd.f32 %v3962, %v480
    %v4013 = vadd.f32 %v3967, %v481
    %v4014 = vadd.f32 %v3972, %v482
    %v4015 = vadd.f32 %v3977, %v483
    %v4016 = vadd.f32 %v3982, %v484
    %vm4017 = vcmask 7168
    %v4018 = vsel %vm4017, %v3985, -inf
    %v4019 = vsel %vm4017, %v3986, -inf
    %v4020 = vmax.f32 %v4018, %v4019
    %v4021 = vrot.slane %v4020, 4
    %v4022 = vmax.f32 %v4020, %v4021
    %v4023 = vrot.slane %v4022, 2
    %v4024 = vmax.f32 %v4022, %v4023
    %v4025 = vrot.slane %v4024, 1
    %v4026 = vmax.f32 %v4024, %v4025
    %v4027 = vsel %vm4017, %v3987, -inf
    %v4028 = vsel %vm4017, %v3988, -inf
    %v4029 = vmax.f32 %v4027, %v4028
    %v4030 = vrot.slane %v4029, 4
    %v4031 = vmax.f32 %v4029, %v4030
    %v4032 = vrot.slane %v4031, 2
    %v4033 = vmax.f32 %v4031, %v4032
    %v4034 = vrot.slane %v4033, 1
    %v4035 = vmax.f32 %v4033, %v4034
    %v4036 = vsel %vm4017, %v3989, -inf
    %v4037 = vsel %vm4017, %v3990, -inf
    %v4038 = vmax.f32 %v4036, %v4037
    %v4039 = vrot.slane %v4038, 4
    %v4040 = vmax.f32 %v4038, %v4039
    %v4041 = vrot.slane %v4040, 2
    %v4042 = vmax.f32 %v4040, %v4041
    %v4043 = vrot.slane %v4042, 1
    %v4044 = vmax.f32 %v4042, %v4043
    %v4045 = vsel %vm4017, %v3991, -inf
    %v4046 = vsel %vm4017, %v3992, -inf
    %v4047 = vmax.f32 %v4045, %v4046
    %v4048 = vrot.slane %v4047, 4
    %v4049 = vmax.f32 %v4047, %v4048
    %v4050 = vrot.slane %v4049, 2
    %v4051 = vmax.f32 %v4049, %v4050
    %v4052 = vrot.slane %v4051, 1
    %v4053 = vmax.f32 %v4051, %v4052
    %v4054 = vsel %vm4017, %v3993, -inf
    %v4055 = vsel %vm4017, %v3994, -inf
    %v4056 = vmax.f32 %v4054, %v4055
    %v4057 = vrot.slane %v4056, 4
    %v4058 = vmax.f32 %v4056, %v4057
    %v4059 = vrot.slane %v4058, 2
    %v4060 = vmax.f32 %v4058, %v4059
    %v4061 = vrot.slane %v4060, 1
    %v4062 = vmax.f32 %v4060, %v4061
    %v4063 = vsel %vm4017, %v3995, -inf
    %v4064 = vsel %vm4017, %v3996, -inf
    %v4065 = vmax.f32 %v4063, %v4064
    %v4066 = vrot.slane %v4065, 4
    %v4067 = vmax.f32 %v4065, %v4066
    %v4068 = vrot.slane %v4067, 2
    %v4069 = vmax.f32 %v4067, %v4068
    %v4070 = vrot.slane %v4069, 1
    %v4071 = vmax.f32 %v4069, %v4070
    %v4072 = vsel %vm4017, %v3997, -inf
    %v4073 = vsel %vm4017, %v3998, -inf
    %v4074 = vmax.f32 %v4072, %v4073
    %v4075 = vrot.slane %v4074, 4
    %v4076 = vmax.f32 %v4074, %v4075
    %v4077 = vrot.slane %v4076, 2
    %v4078 = vmax.f32 %v4076, %v4077
    %v4079 = vrot.slane %v4078, 1
    %v4080 = vmax.f32 %v4078, %v4079
    %v4081 = vsel %vm4017, %v3999, -inf
    %v4082 = vsel %vm4017, %v4000, -inf
    %v4083 = vmax.f32 %v4081, %v4082
    %v4084 = vrot.slane %v4083, 4
    %v4085 = vmax.f32 %v4083, %v4084
    %v4086 = vrot.slane %v4085, 2
    %v4087 = vmax.f32 %v4085, %v4086
    %v4088 = vrot.slane %v4087, 1
    %v4089 = vmax.f32 %v4087, %v4088
    %v4090 = vsel %vm4017, %v4001, -inf
    %v4091 = vsel %vm4017, %v4002, -inf
    %v4092 = vmax.f32 %v4090, %v4091
    %v4093 = vrot.slane %v4092, 4
    %v4094 = vmax.f32 %v4092, %v4093
    %v4095 = vrot.slane %v4094, 2
    %v4096 = vmax.f32 %v4094, %v4095
    %v4097 = vrot.slane %v4096, 1
    %v4098 = vmax.f32 %v4096, %v4097
    %v4099 = vsel %vm4017, %v4003, -inf
    %v4100 = vsel %vm4017, %v4004, -inf
    %v4101 = vmax.f32 %v4099, %v4100
    %v4102 = vrot.slane %v4101, 4
    %v4103 = vmax.f32 %v4101, %v4102
    %v4104 = vrot.slane %v4103, 2
    %v4105 = vmax.f32 %v4103, %v4104
    %v4106 = vrot.slane %v4105, 1
    %v4107 = vmax.f32 %v4105, %v4106
    %v4108 = vsel %vm4017, %v4005, -inf
    %v4109 = vsel %vm4017, %v4006, -inf
    %v4110 = vmax.f32 %v4108, %v4109
    %v4111 = vrot.slane %v4110, 4
    %v4112 = vmax.f32 %v4110, %v4111
    %v4113 = vrot.slane %v4112, 2
    %v4114 = vmax.f32 %v4112, %v4113
    %v4115 = vrot.slane %v4114, 1
    %v4116 = vmax.f32 %v4114, %v4115
    %v4117 = vsel %vm4017, %v4007, -inf
    %v4118 = vsel %vm4017, %v4008, -inf
    %v4119 = vmax.f32 %v4117, %v4118
    %v4120 = vrot.slane %v4119, 4
    %v4121 = vmax.f32 %v4119, %v4120
    %v4122 = vrot.slane %v4121, 2
    %v4123 = vmax.f32 %v4121, %v4122
    %v4124 = vrot.slane %v4123, 1
    %v4125 = vmax.f32 %v4123, %v4124
    %v4126 = vsel %vm4017, %v4009, -inf
    %v4127 = vsel %vm4017, %v4010, -inf
    %v4128 = vmax.f32 %v4126, %v4127
    %v4129 = vrot.slane %v4128, 4
    %v4130 = vmax.f32 %v4128, %v4129
    %v4131 = vrot.slane %v4130, 2
    %v4132 = vmax.f32 %v4130, %v4131
    %v4133 = vrot.slane %v4132, 1
    %v4134 = vmax.f32 %v4132, %v4133
    %v4135 = vsel %vm4017, %v4011, -inf
    %v4136 = vsel %vm4017, %v4012, -inf
    %v4137 = vmax.f32 %v4135, %v4136
    %v4138 = vrot.slane %v4137, 4
    %v4139 = vmax.f32 %v4137, %v4138
    %v4140 = vrot.slane %v4139, 2
    %v4141 = vmax.f32 %v4139, %v4140
    %v4142 = vrot.slane %v4141, 1
    %v4143 = vmax.f32 %v4141, %v4142
    %v4144 = vsel %vm4017, %v4013, -inf
    %v4145 = vsel %vm4017, %v4014, -inf
    %v4146 = vmax.f32 %v4144, %v4145
    %v4147 = vrot.slane %v4146, 4
    %v4148 = vmax.f32 %v4146, %v4147
    %v4149 = vrot.slane %v4148, 2
    %v4150 = vmax.f32 %v4148, %v4149
    %v4151 = vrot.slane %v4150, 1
    %v4152 = vmax.f32 %v4150, %v4151
    %v4153 = vsel %vm4017, %v4015, -inf
    %v4154 = vsel %vm4017, %v4016, -inf
    %v4155 = vmax.f32 %v4153, %v4154
    %v4156 = vrot.slane %v4155, 4
    %v4157 = vmax.f32 %v4155, %v4156
    %v4158 = vrot.slane %v4157, 2
    %v4159 = vmax.f32 %v4157, %v4158
    %v4160 = vrot.slane %v4159, 1
    %v4161 = vmax.f32 %v4159, %v4160
    %v4162 = vsub.f32 %v3985, %v4026
    %v4163 = vsub.f32 %v3986, %v4026
    %v4164 = vsub.f32 %v3987, %v4035
    %v4165 = vsub.f32 %v3988, %v4035
    %v4166 = vsub.f32 %v3989, %v4044
    %v4167 = vsub.f32 %v3990, %v4044
    %v4168 = vsub.f32 %v3991, %v4053
    %v4169 = vsub.f32 %v3992, %v4053
    %v4170 = vsub.f32 %v3993, %v4062
    %v4171 = vsub.f32 %v3994, %v4062
    %v4172 = vsub.f32 %v3995, %v4071
    %v4173 = vsub.f32 %v3996, %v4071
    %v4174 = vsub.f32 %v3997, %v4080
    %v4175 = vsub.f32 %v3998, %v4080
    %v4176 = vsub.f32 %v3999, %v4089
    %v4177 = vsub.f32 %v4000, %v4089
    %v4178 = vsub.f32 %v4001, %v4098
    %v4179 = vsub.f32 %v4002, %v4098
    %v4180 = vsub.f32 %v4003, %v4107
    %v4181 = vsub.f32 %v4004, %v4107
    %v4182 = vsub.f32 %v4005, %v4116
    %v4183 = vsub.f32 %v4006, %v4116
    %v4184 = vsub.f32 %v4007, %v4125
    %v4185 = vsub.f32 %v4008, %v4125
    %v4186 = vsub.f32 %v4009, %v4134
    %v4187 = vsub.f32 %v4010, %v4134
    %v4188 = vsub.f32 %v4011, %v4143
    %v4189 = vsub.f32 %v4012, %v4143
    %v4190 = vsub.f32 %v4013, %v4152
    %v4191 = vsub.f32 %v4014, %v4152
    %v4192 = vsub.f32 %v4015, %v4161
    %v4193 = vsub.f32 %v4016, %v4161
    %v4194 = vmul.f32 %v4162, 1.442695
    %v4195 = vpow.pop %v4194
    %v4196 = vmul.f32 %v4163, 1.442695
    %v4197 = vpow.pop %v4196
    %v4198 = vmul.f32 %v4164, 1.442695
    %v4199 = vpow.pop %v4198
    %v4200 = vmul.f32 %v4165, 1.442695
    %v4201 = vpow.pop %v4200
    %v4202 = vmul.f32 %v4166, 1.442695
    %v4203 = vpow.pop %v4202
    %v4204 = vmul.f32 %v4167, 1.442695
    %v4205 = vpow.pop %v4204
    %v4206 = vmul.f32 %v4168, 1.442695
    %v4207 = vpow.pop %v4206
    %v4208 = vmul.f32 %v4169, 1.442695
    %v4209 = vpow.pop %v4208
    %v4210 = vmul.f32 %v4170, 1.442695
    %v4211 = vpow.pop %v4210
    %v4212 = vmul.f32 %v4171, 1.442695
    %v4213 = vpow.pop %v4212
    %v4214 = vmul.f32 %v4172, 1.442695
    %v4215 = vpow.pop %v4214
    %v4216 = vmul.f32 %v4173, 1.442695
    %v4217 = vpow.pop %v4216
    %v4218 = vmul.f32 %v4174, 1.442695
    %v4219 = vpow.pop %v4218
    %v4220 = vmul.f32 %v4175, 1.442695
    %v4221 = vpow.pop %v4220
    %v4222 = vmul.f32 %v4176, 1.442695
    %v4223 = vpow.pop %v4222
    %v4224 = vmul.f32 %v4177, 1.442695
    %v4225 = vpow.pop %v4224
    %v4226 = vmul.f32 %v4178, 1.442695
    %v4227 = vpow.pop %v4226
    %v4228 = vmul.f32 %v4179, 1.442695
    %v4229 = vpow.pop %v4228
    %v4230 = vmul.f32 %v4180, 1.442695
    %v4231 = vpow.pop %v4230
    %v4232 = vmul.f32 %v4181, 1.442695
    %v4233 = vpow.pop %v4232
    %v4234 = vmul.f32 %v4182, 1.442695
    %v4235 = vpow.pop %v4234
    %v4236 = vmul.f32 %v4183, 1.442695
    %v4237 = vpow.pop %v4236
    %v4238 = vmul.f32 %v4184, 1.442695
    %v4239 = vpow.pop %v4238
    %v4240 = vmul.f32 %v4185, 1.442695
    %v4241 = vpow.pop %v4240
    %v4242 = vmul.f32 %v4186, 1.442695
    %v4243 = vpow.pop %v4242
    %v4244 = vmul.f32 %v4187, 1.442695
    %v4245 = vpow.pop %v4244
    %v4246 = vmul.f32 %v4188, 1.442695
    %v4247 = vpow.pop %v4246
    %v4248 = vmul.f32 %v4189, 1.442695
    %v4249 = vpow.pop %v4248
    %v4250 = vmul.f32 %v4190, 1.442695
    %v4251 = vpow.pop %v4250
    %v4252 = vmul.f32 %v4191, 1.442695
    %v4253 = vpow.pop %v4252
    %v4254 = vmul.f32 %v4192, 1.442695
    %v4255 = vpow.pop %v4254
    %v4256 = vmul.f32 %v4193, 1.442695
    %v4257 = vpow.pop %v4256
    %v4258 = vmul.f32 %v4195, %v251
    %v4259 = vmul.f32 %v4197, %v255
    %v4260 = vmul.f32 %v4199, %v262
    %v4261 = vmul.f32 %v4201, %v266
    %v4262 = vmul.f32 %v4203, %v273
    %v4263 = vmul.f32 %v4205, %v277
    %v4264 = vmul.f32 %v4207, %v284
    %v4265 = vmul.f32 %v4209, %v288
    %v4266 = vmul.f32 %v4211, %v295
    %v4267 = vmul.f32 %v4213, %v299
    %v4268 = vmul.f32 %v4215, %v306
    %v4269 = vmul.f32 %v4217, %v310
    %v4270 = vmul.f32 %v4219, %v317
    %v4271 = vmul.f32 %v4221, %v321
    %v4272 = vmul.f32 %v4223, %v328
    %v4273 = vmul.f32 %v4225, %v332
    %v4274 = vmul.f32 %v4227, %v339
    %v4275 = vmul.f32 %v4229, %v343
    %v4276 = vmul.f32 %v4231, %v350
    %v4277 = vmul.f32 %v4233, %v354
    %v4278 = vmul.f32 %v4235, %v361
    %v4279 = vmul.f32 %v4237, %v365
    %v4280 = vmul.f32 %v4239, %v372
    %v4281 = vmul.f32 %v4241, %v376
    %v4282 = vmul.f32 %v4243, %v383
    %v4283 = vmul.f32 %v4245, %v387
    %v4284 = vmul.f32 %v4247, %v394
    %v4285 = vmul.f32 %v4249, %v398
    %v4286 = vmul.f32 %v4251, %v405
    %v4287 = vmul.f32 %v4253, %v409
    %v4288 = vmul.f32 %v4255, %v416
    %v4289 = vmul.f32 %v4257, %v420
    %v4290 = vsel %vm4017, %v4258, 0.0
    %v4291 = vsel %vm4017, %v4259, 0.0
    %v4292 = vadd.f32 %v4290, %v4291
    %v4293 = vrot.slane %v4292, 4
    %v4294 = vadd.f32 %v4292, %v4293
    %v4295 = vrot.slane %v4294, 2
    %v4296 = vadd.f32 %v4294, %v4295
    %v4297 = vrot.slane %v4296, 1
    %v4298 = vadd.f32 %v4296, %v4297
    %v4299 = vsel %vm4017, %v4260, 0.0
    %v4300 = vsel %vm4017, %v4261, 0.0
    %v4301 = vadd.f32 %v4299, %v4300
    %v4302 = vrot.slane %v4301, 4
    %v4303 = vadd.f32 %v4301, %v4302
    %v4304 = vrot.slane %v4303, 2
    %v4305 = vadd.f32 %v4303, %v4304
    %v4306 = vrot.slane %v4305, 1
    %v4307 = vadd.f32 %v4305, %v4306
    %v4308 = vsel %vm4017, %v4262, 0.0
    %v4309 = vsel %vm4017, %v4263, 0.0
    %v4310 = vadd.f32 %v4308, %v4309
    %v4311 = vrot.slane %v4310, 4
    %v4312 = vadd.f32 %v4310, %v4311
    %v4313 = vrot.slane %v4312, 2
    %v4314 = vadd.f32 %v4312, %v4313
    %v4315 = vrot.slane %v4314, 1
    %v4316 = vadd.f32 %v4314, %v4315
    %v4317 = vsel %vm4017, %v4264, 0.0
    %v4318 = vsel %vm4017, %v4265, 0.0
    %v4319 = vadd.f32 %v4317, %v4318
    %v4320 = vrot.slane %v4319, 4
    %v4321 = vadd.f32 %v4319, %v4320
    %v4322 = vrot.slane %v4321, 2
    %v4323 = vadd.f32 %v4321, %v4322
    %v4324 = vrot.slane %v4323, 1
    %v4325 = vadd.f32 %v4323, %v4324
    %v4326 = vsel %vm4017, %v4266, 0.0
    %v4327 = vsel %vm4017, %v4267, 0.0
    %v4328 = vadd.f32 %v4326, %v4327
    %v4329 = vrot.slane %v4328, 4
    %v4330 = vadd.f32 %v4328, %v4329
    %v4331 = vrot.slane %v4330, 2
    %v4332 = vadd.f32 %v4330, %v4331
    %v4333 = vrot.slane %v4332, 1
    %v4334 = vadd.f32 %v4332, %v4333
    %v4335 = vsel %vm4017, %v4268, 0.0
    %v4336 = vsel %vm4017, %v4269, 0.0
    %v4337 = vadd.f32 %v4335, %v4336
    %v4338 = vrot.slane %v4337, 4
    %v4339 = vadd.f32 %v4337, %v4338
    %v4340 = vrot.slane %v4339, 2
    %v4341 = vadd.f32 %v4339, %v4340
    %v4342 = vrot.slane %v4341, 1
    %v4343 = vadd.f32 %v4341, %v4342
    %v4344 = vsel %vm4017, %v4270, 0.0
    %v4345 = vsel %vm4017, %v4271, 0.0
    %v4346 = vadd.f32 %v4344, %v4345
    %v4347 = vrot.slane %v4346, 4
    %v4348 = vadd.f32 %v4346, %v4347
    %v4349 = vrot.slane %v4348, 2
    %v4350 = vadd.f32 %v4348, %v4349
    %v4351 = vrot.slane %v4350, 1
    %v4352 = vadd.f32 %v4350, %v4351
    %v4353 = vsel %vm4017, %v4272, 0.0
    %v4354 = vsel %vm4017, %v4273, 0.0
    %v4355 = vadd.f32 %v4353, %v4354
    %v4356 = vrot.slane %v4355, 4
    %v4357 = vadd.f32 %v4355, %v4356
    %v4358 = vrot.slane %v4357, 2
    %v4359 = vadd.f32 %v4357, %v4358
    %v4360 = vrot.slane %v4359, 1
    %v4361 = vadd.f32 %v4359, %v4360
    %v4362 = vsel %vm4017, %v4274, 0.0
    %v4363 = vsel %vm4017, %v4275, 0.0
    %v4364 = vadd.f32 %v4362, %v4363
    %v4365 = vrot.slane %v4364, 4
    %v4366 = vadd.f32 %v4364, %v4365
    %v4367 = vrot.slane %v4366, 2
    %v4368 = vadd.f32 %v4366, %v4367
    %v4369 = vrot.slane %v4368, 1
    %v4370 = vadd.f32 %v4368, %v4369
    %v4371 = vsel %vm4017, %v4276, 0.0
    %v4372 = vsel %vm4017, %v4277, 0.0
    %v4373 = vadd.f32 %v4371, %v4372
    %v4374 = vrot.slane %v4373, 4
    %v4375 = vadd.f32 %v4373, %v4374
    %v4376 = vrot.slane %v4375, 2
    %v4377 = vadd.f32 %v4375, %v4376
    %v4378 = vrot.slane %v4377, 1
    %v4379 = vadd.f32 %v4377, %v4378
    %v4380 = vsel %vm4017, %v4278, 0.0
    %v4381 = vsel %vm4017, %v4279, 0.0
    %v4382 = vadd.f32 %v4380, %v4381
    %v4383 = vrot.slane %v4382, 4
    %v4384 = vadd.f32 %v4382, %v4383
    %v4385 = vrot.slane %v4384, 2
    %v4386 = vadd.f32 %v4384, %v4385
    %v4387 = vrot.slane %v4386, 1
    %v4388 = vadd.f32 %v4386, %v4387
    %v4389 = vsel %vm4017, %v4280, 0.0
    %v4390 = vsel %vm4017, %v4281, 0.0
    %v4391 = vadd.f32 %v4389, %v4390
    %v4392 = vrot.slane %v4391, 4
    %v4393 = vadd.f32 %v4391, %v4392
    %v4394 = vrot.slane %v4393, 2
    %v4395 = vadd.f32 %v4393, %v4394
    %v4396 = vrot.slane %v4395, 1
    %v4397 = vadd.f32 %v4395, %v4396
    %v4398 = vsel %vm4017, %v4282, 0.0
    %v4399 = vsel %vm4017, %v4283, 0.0
    %v4400 = vadd.f32 %v4398, %v4399
    %v4401 = vrot.slane %v4400, 4
    %v4402 = vadd.f32 %v4400, %v4401
    %v4403 = vrot.slane %v4402, 2
    %v4404 = vadd.f32 %v4402, %v4403
    %v4405 = vrot.slane %v4404, 1
    %v4406 = vadd.f32 %v4404, %v4405
    %v4407 = vsel %vm4017, %v4284, 0.0
    %v4408 = vsel %vm4017, %v4285, 0.0
    %v4409 = vadd.f32 %v4407, %v4408
    %v4410 = vrot.slane %v4409, 4
    %v4411 = vadd.f32 %v4409, %v4410
    %v4412 = vrot.slane %v4411, 2
    %v4413 = vadd.f32 %v4411, %v4412
    %v4414 = vrot.slane %v4413, 1
    %v4415 = vadd.f32 %v4413, %v4414
    %v4416 = vsel %vm4017, %v4286, 0.0
    %v4417 = vsel %vm4017, %v4287, 0.0
    %v4418 = vadd.f32 %v4416, %v4417
    %v4419 = vrot.slane %v4418, 4
    %v4420 = vadd.f32 %v4418, %v4419
    %v4421 = vrot.slane %v4420, 2
    %v4422 = vadd.f32 %v4420, %v4421
    %v4423 = vrot.slane %v4422, 1
    %v4424 = vadd.f32 %v4422, %v4423
    %v4425 = vsel %vm4017, %v4288, 0.0
    %v4426 = vsel %vm4017, %v4289, 0.0
    %v4427 = vadd.f32 %v4425, %v4426
    %v4428 = vrot.slane %v4427, 4
    %v4429 = vadd.f32 %v4427, %v4428
    %v4430 = vrot.slane %v4429, 2
    %v4431 = vadd.f32 %v4429, %v4430
    %v4432 = vrot.slane %v4431, 1
    %v4433 = vadd.f32 %v4431, %v4432
    %v4434 = vrcp.pop %v4298
    %v4435 = vrcp.pop %v4307
    %v4436 = vrcp.pop %v4316
    %v4437 = vrcp.pop %v4325
    %v4438 = vrcp.pop %v4334
    %v4439 = vrcp.pop %v4343
    %v4440 = vrcp.pop %v4352
    %v4441 = vrcp.pop %v4361
    %v4442 = vrcp.pop %v4370
    %v4443 = vrcp.pop %v4379
    %v4444 = vrcp.pop %v4388
    %v4445 = vrcp.pop %v4397
    %v4446 = vrcp.pop %v4406
    %v4447 = vrcp.pop %v4415
    %v4448 = vrcp.pop %v4424
    %v4449 = vrcp.pop %v4433
    %v4450 = vmul.f32 %v4258, %v4434
    %v4451 = vmul.f32 %v4259, %v4434
    %v4452 = vmul.f32 %v4260, %v4435
    %v4453 = vmul.f32 %v4261, %v4435
    %v4454 = vmul.f32 %v4262, %v4436
    %v4455 = vmul.f32 %v4263, %v4436
    %v4456 = vmul.f32 %v4264, %v4437
    %v4457 = vmul.f32 %v4265, %v4437
    %v4458 = vmul.f32 %v4266, %v4438
    %v4459 = vmul.f32 %v4267, %v4438
    %v4460 = vmul.f32 %v4268, %v4439
    %v4461 = vmul.f32 %v4269, %v4439
    %v4462 = vmul.f32 %v4270, %v4440
    %v4463 = vmul.f32 %v4271, %v4440
    %v4464 = vmul.f32 %v4272, %v4441
    %v4465 = vmul.f32 %v4273, %v4441
    %v4466 = vmul.f32 %v4274, %v4442
    %v4467 = vmul.f32 %v4275, %v4442
    %v4468 = vmul.f32 %v4276, %v4443
    %v4469 = vmul.f32 %v4277, %v4443
    %v4470 = vmul.f32 %v4278, %v4444
    %v4471 = vmul.f32 %v4279, %v4444
    %v4472 = vmul.f32 %v4280, %v4445
    %v4473 = vmul.f32 %v4281, %v4445
    %v4474 = vmul.f32 %v4282, %v4446
    %v4475 = vmul.f32 %v4283, %v4446
    %v4476 = vmul.f32 %v4284, %v4447
    %v4477 = vmul.f32 %v4285, %v4447
    %v4478 = vmul.f32 %v4286, %v4448
    %v4479 = vmul.f32 %v4287, %v4448
    %v4480 = vmul.f32 %v4288, %v4449
    %v4481 = vmul.f32 %v4289, %v4449
    %4483 = vset.pattern.permute.xlu0 0
    %4484 = vperm.xlu0 %4483, %v4450
    %v4485 = vpop.permute.xlu0 %4484
    %4488 = vset.pattern.permute.xlu0 0
    %4489 = vperm.xlu0 %4488, %v4451
    %v4490 = vpop.permute.xlu0 %4489
    %4493 = vset.pattern.permute.xlu0 0
    %4494 = vperm.xlu0 %4493, %v4452
    %v4495 = vpop.permute.xlu0 %4494
    %4498 = vset.pattern.permute.xlu0 0
    %4499 = vperm.xlu0 %4498, %v4453
    %v4500 = vpop.permute.xlu0 %4499
    %4503 = vset.pattern.permute.xlu0 0
    %4504 = vperm.xlu0 %4503, %v4454
    %v4505 = vpop.permute.xlu0 %4504
    %4508 = vset.pattern.permute.xlu0 0
    %4509 = vperm.xlu0 %4508, %v4455
    %v4510 = vpop.permute.xlu0 %4509
    %4513 = vset.pattern.permute.xlu0 0
    %4514 = vperm.xlu0 %4513, %v4456
    %v4515 = vpop.permute.xlu0 %4514
    %4518 = vset.pattern.permute.xlu0 0
    %4519 = vperm.xlu0 %4518, %v4457
    %v4520 = vpop.permute.xlu0 %4519
    %4523 = vset.pattern.permute.xlu0 0
    %4524 = vperm.xlu0 %4523, %v4458
    %v4525 = vpop.permute.xlu0 %4524
    %4528 = vset.pattern.permute.xlu0 0
    %4529 = vperm.xlu0 %4528, %v4459
    %v4530 = vpop.permute.xlu0 %4529
    %4533 = vset.pattern.permute.xlu0 0
    %4534 = vperm.xlu0 %4533, %v4460
    %v4535 = vpop.permute.xlu0 %4534
    %4538 = vset.pattern.permute.xlu0 0
    %4539 = vperm.xlu0 %4538, %v4461
    %v4540 = vpop.permute.xlu0 %4539
    %4543 = vset.pattern.permute.xlu0 0
    %4544 = vperm.xlu0 %4543, %v4462
    %v4545 = vpop.permute.xlu0 %4544
    %4548 = vset.pattern.permute.xlu0 0
    %4549 = vperm.xlu0 %4548, %v4463
    %v4550 = vpop.permute.xlu0 %4549
    %4553 = vset.pattern.permute.xlu0 0
    %4554 = vperm.xlu0 %4553, %v4464
    %v4555 = vpop.permute.xlu0 %4554
    %4558 = vset.pattern.permute.xlu0 0
    %4559 = vperm.xlu0 %4558, %v4465
    %v4560 = vpop.permute.xlu0 %4559
    %4563 = vset.pattern.permute.xlu0 0
    %4564 = vperm.xlu0 %4563, %v4466
    %v4565 = vpop.permute.xlu0 %4564
    %4568 = vset.pattern.permute.xlu0 0
    %4569 = vperm.xlu0 %4568, %v4467
    %v4570 = vpop.permute.xlu0 %4569
    %4573 = vset.pattern.permute.xlu0 0
    %4574 = vperm.xlu0 %4573, %v4468
    %v4575 = vpop.permute.xlu0 %4574
    %4578 = vset.pattern.permute.xlu0 0
    %4579 = vperm.xlu0 %4578, %v4469
    %v4580 = vpop.permute.xlu0 %4579
    %4583 = vset.pattern.permute.xlu0 0
    %4584 = vperm.xlu0 %4583, %v4470
    %v4585 = vpop.permute.xlu0 %4584
    %4588 = vset.pattern.permute.xlu0 0
    %4589 = vperm.xlu0 %4588, %v4471
    %v4590 = vpop.permute.xlu0 %4589
    %4593 = vset.pattern.permute.xlu0 0
    %4594 = vperm.xlu0 %4593, %v4472
    %v4595 = vpop.permute.xlu0 %4594
    %4598 = vset.pattern.permute.xlu0 0
    %4599 = vperm.xlu0 %4598, %v4473
    %v4600 = vpop.permute.xlu0 %4599
    %4603 = vset.pattern.permute.xlu0 0
    %4604 = vperm.xlu0 %4603, %v4474
    %v4605 = vpop.permute.xlu0 %4604
    %4608 = vset.pattern.permute.xlu0 0
    %4609 = vperm.xlu0 %4608, %v4475
    %v4610 = vpop.permute.xlu0 %4609
    %4613 = vset.pattern.permute.xlu0 0
    %4614 = vperm.xlu0 %4613, %v4476
    %v4615 = vpop.permute.xlu0 %4614
    %4618 = vset.pattern.permute.xlu0 0
    %4619 = vperm.xlu0 %4618, %v4477
    %v4620 = vpop.permute.xlu0 %4619
    %4623 = vset.pattern.permute.xlu0 0
    %4624 = vperm.xlu0 %4623, %v4478
    %v4625 = vpop.permute.xlu0 %4624
    %4628 = vset.pattern.permute.xlu0 0
    %4629 = vperm.xlu0 %4628, %v4479
    %v4630 = vpop.permute.xlu0 %4629
    %4633 = vset.pattern.permute.xlu0 0
    %4634 = vperm.xlu0 %4633, %v4480
    %v4635 = vpop.permute.xlu0 %4634
    %4638 = vset.pattern.permute.xlu0 0
    %4639 = vperm.xlu0 %4638, %v4481
    %v4640 = vpop.permute.xlu0 %4639
    %v4642 = vmul.f32 %v4485, %v3059
    %v4643 = vmul.f32 %v4490, %v3064
    %v4644 = vmul.f32 %v4495, %v3059
    %v4645 = vmul.f32 %v4500, %v3064
    %v4646 = vmul.f32 %v4505, %v3059
    %v4647 = vmul.f32 %v4510, %v3064
    %v4648 = vmul.f32 %v4515, %v3059
    %v4649 = vmul.f32 %v4520, %v3064
    %v4650 = vmul.f32 %v4525, %v3059
    %v4651 = vmul.f32 %v4530, %v3064
    %v4652 = vmul.f32 %v4535, %v3059
    %v4653 = vmul.f32 %v4540, %v3064
    %v4654 = vmul.f32 %v4545, %v3059
    %v4655 = vmul.f32 %v4550, %v3064
    %v4656 = vmul.f32 %v4555, %v3059
    %v4657 = vmul.f32 %v4560, %v3064
    %v4658 = vmul.f32 %v4565, %v3059
    %v4659 = vmul.f32 %v4570, %v3064
    %v4660 = vmul.f32 %v4575, %v3059
    %v4661 = vmul.f32 %v4580, %v3064
    %v4662 = vmul.f32 %v4585, %v3059
    %v4663 = vmul.f32 %v4590, %v3064
    %v4664 = vmul.f32 %v4595, %v3059
    %v4665 = vmul.f32 %v4600, %v3064
    %v4666 = vmul.f32 %v4605, %v3059
    %v4667 = vmul.f32 %v4610, %v3064
    %v4668 = vmul.f32 %v4615, %v3059
    %v4669 = vmul.f32 %v4620, %v3064
    %v4670 = vmul.f32 %v4625, %v3059
    %v4671 = vmul.f32 %v4630, %v3064
    %v4672 = vmul.f32 %v4635, %v3059
    %v4673 = vmul.f32 %v4640, %v3064
    %v4674 = vsel %vm538, %v4642, 0.0
    %v4675 = vsel %vm538, %v4643, 0.0
    %v4676 = vadd.f32 %v4674, %v4675
    %v4677 = vrot.slane %v4676, 4
    %v4678 = vadd.f32 %v4676, %v4677
    %v4679 = vrot.slane %v4678, 2
    %v4680 = vadd.f32 %v4678, %v4679
    %v4681 = vrot.slane %v4680, 1
    %v4682 = vadd.f32 %v4680, %v4681
    %v4683 = vsel %vm538, %v4644, 0.0
    %v4684 = vsel %vm538, %v4645, 0.0
    %v4685 = vadd.f32 %v4683, %v4684
    %v4686 = vrot.slane %v4685, 4
    %v4687 = vadd.f32 %v4685, %v4686
    %v4688 = vrot.slane %v4687, 2
    %v4689 = vadd.f32 %v4687, %v4688
    %v4690 = vrot.slane %v4689, 1
    %v4691 = vadd.f32 %v4689, %v4690
    %v4692 = vsel %vm538, %v4646, 0.0
    %v4693 = vsel %vm538, %v4647, 0.0
    %v4694 = vadd.f32 %v4692, %v4693
    %v4695 = vrot.slane %v4694, 4
    %v4696 = vadd.f32 %v4694, %v4695
    %v4697 = vrot.slane %v4696, 2
    %v4698 = vadd.f32 %v4696, %v4697
    %v4699 = vrot.slane %v4698, 1
    %v4700 = vadd.f32 %v4698, %v4699
    %v4701 = vsel %vm538, %v4648, 0.0
    %v4702 = vsel %vm538, %v4649, 0.0
    %v4703 = vadd.f32 %v4701, %v4702
    %v4704 = vrot.slane %v4703, 4
    %v4705 = vadd.f32 %v4703, %v4704
    %v4706 = vrot.slane %v4705, 2
    %v4707 = vadd.f32 %v4705, %v4706
    %v4708 = vrot.slane %v4707, 1
    %v4709 = vadd.f32 %v4707, %v4708
    %v4710 = vsel %vm538, %v4650, 0.0
    %v4711 = vsel %vm538, %v4651, 0.0
    %v4712 = vadd.f32 %v4710, %v4711
    %v4713 = vrot.slane %v4712, 4
    %v4714 = vadd.f32 %v4712, %v4713
    %v4715 = vrot.slane %v4714, 2
    %v4716 = vadd.f32 %v4714, %v4715
    %v4717 = vrot.slane %v4716, 1
    %v4718 = vadd.f32 %v4716, %v4717
    %v4719 = vsel %vm538, %v4652, 0.0
    %v4720 = vsel %vm538, %v4653, 0.0
    %v4721 = vadd.f32 %v4719, %v4720
    %v4722 = vrot.slane %v4721, 4
    %v4723 = vadd.f32 %v4721, %v4722
    %v4724 = vrot.slane %v4723, 2
    %v4725 = vadd.f32 %v4723, %v4724
    %v4726 = vrot.slane %v4725, 1
    %v4727 = vadd.f32 %v4725, %v4726
    %v4728 = vsel %vm538, %v4654, 0.0
    %v4729 = vsel %vm538, %v4655, 0.0
    %v4730 = vadd.f32 %v4728, %v4729
    %v4731 = vrot.slane %v4730, 4
    %v4732 = vadd.f32 %v4730, %v4731
    %v4733 = vrot.slane %v4732, 2
    %v4734 = vadd.f32 %v4732, %v4733
    %v4735 = vrot.slane %v4734, 1
    %v4736 = vadd.f32 %v4734, %v4735
    %v4737 = vsel %vm538, %v4656, 0.0
    %v4738 = vsel %vm538, %v4657, 0.0
    %v4739 = vadd.f32 %v4737, %v4738
    %v4740 = vrot.slane %v4739, 4
    %v4741 = vadd.f32 %v4739, %v4740
    %v4742 = vrot.slane %v4741, 2
    %v4743 = vadd.f32 %v4741, %v4742
    %v4744 = vrot.slane %v4743, 1
    %v4745 = vadd.f32 %v4743, %v4744
    %v4746 = vsel %vm538, %v4658, 0.0
    %v4747 = vsel %vm538, %v4659, 0.0
    %v4748 = vadd.f32 %v4746, %v4747
    %v4749 = vrot.slane %v4748, 4
    %v4750 = vadd.f32 %v4748, %v4749
    %v4751 = vrot.slane %v4750, 2
    %v4752 = vadd.f32 %v4750, %v4751
    %v4753 = vrot.slane %v4752, 1
    %v4754 = vadd.f32 %v4752, %v4753
    %v4755 = vsel %vm538, %v4660, 0.0
    %v4756 = vsel %vm538, %v4661, 0.0
    %v4757 = vadd.f32 %v4755, %v4756
    %v4758 = vrot.slane %v4757, 4
    %v4759 = vadd.f32 %v4757, %v4758
    %v4760 = vrot.slane %v4759, 2
    %v4761 = vadd.f32 %v4759, %v4760
    %v4762 = vrot.slane %v4761, 1
    %v4763 = vadd.f32 %v4761, %v4762
    %v4764 = vsel %vm538, %v4662, 0.0
    %v4765 = vsel %vm538, %v4663, 0.0
    %v4766 = vadd.f32 %v4764, %v4765
    %v4767 = vrot.slane %v4766, 4
    %v4768 = vadd.f32 %v4766, %v4767
    %v4769 = vrot.slane %v4768, 2
    %v4770 = vadd.f32 %v4768, %v4769
    %v4771 = vrot.slane %v4770, 1
    %v4772 = vadd.f32 %v4770, %v4771
    %v4773 = vsel %vm538, %v4664, 0.0
    %v4774 = vsel %vm538, %v4665, 0.0
    %v4775 = vadd.f32 %v4773, %v4774
    %v4776 = vrot.slane %v4775, 4
    %v4777 = vadd.f32 %v4775, %v4776
    %v4778 = vrot.slane %v4777, 2
    %v4779 = vadd.f32 %v4777, %v4778
    %v4780 = vrot.slane %v4779, 1
    %v4781 = vadd.f32 %v4779, %v4780
    %v4782 = vsel %vm538, %v4666, 0.0
    %v4783 = vsel %vm538, %v4667, 0.0
    %v4784 = vadd.f32 %v4782, %v4783
    %v4785 = vrot.slane %v4784, 4
    %v4786 = vadd.f32 %v4784, %v4785
    %v4787 = vrot.slane %v4786, 2
    %v4788 = vadd.f32 %v4786, %v4787
    %v4789 = vrot.slane %v4788, 1
    %v4790 = vadd.f32 %v4788, %v4789
    %v4791 = vsel %vm538, %v4668, 0.0
    %v4792 = vsel %vm538, %v4669, 0.0
    %v4793 = vadd.f32 %v4791, %v4792
    %v4794 = vrot.slane %v4793, 4
    %v4795 = vadd.f32 %v4793, %v4794
    %v4796 = vrot.slane %v4795, 2
    %v4797 = vadd.f32 %v4795, %v4796
    %v4798 = vrot.slane %v4797, 1
    %v4799 = vadd.f32 %v4797, %v4798
    %v4800 = vsel %vm538, %v4670, 0.0
    %v4801 = vsel %vm538, %v4671, 0.0
    %v4802 = vadd.f32 %v4800, %v4801
    %v4803 = vrot.slane %v4802, 4
    %v4804 = vadd.f32 %v4802, %v4803
    %v4805 = vrot.slane %v4804, 2
    %v4806 = vadd.f32 %v4804, %v4805
    %v4807 = vrot.slane %v4806, 1
    %v4808 = vadd.f32 %v4806, %v4807
    %v4809 = vsel %vm538, %v4672, 0.0
    %v4810 = vsel %vm538, %v4673, 0.0
    %v4811 = vadd.f32 %v4809, %v4810
    %v4812 = vrot.slane %v4811, 4
    %v4813 = vadd.f32 %v4811, %v4812
    %v4814 = vrot.slane %v4813, 2
    %v4815 = vadd.f32 %v4813, %v4814
    %v4816 = vrot.slane %v4815, 1
    %v4817 = vadd.f32 %v4815, %v4816
    %v4819 = vlaneseq
    %v4820 = vshrl.u32 %v4819, 7
    %v4821 = vsub.s32 0, %v4820
    %v4822 = vrot.slane %v2935, %v4821
    %v4824 = vadd.f32 %v4682, %v4822
    %v4825 = vadd.f32 %v4691, %v4822
    %v4826 = vadd.f32 %v4700, %v4822
    %v4827 = vadd.f32 %v4709, %v4822
    %v4828 = vadd.f32 %v4718, %v4822
    %v4829 = vadd.f32 %v4727, %v4822
    %v4830 = vadd.f32 %v4736, %v4822
    %v4831 = vadd.f32 %v4745, %v4822
    %v4832 = vadd.f32 %v4754, %v4822
    %v4833 = vadd.f32 %v4763, %v4822
    %v4834 = vadd.f32 %v4772, %v4822
    %v4835 = vadd.f32 %v4781, %v4822
    %v4836 = vadd.f32 %v4790, %v4822
    %v4837 = vadd.f32 %v4799, %v4822
    %v4838 = vadd.f32 %v4808, %v4822
    %v4839 = vadd.f32 %v4817, %v4822
    %v4856 = vrot.slane %v4825, 7
    %v4857 = vsel %vm2671, %v4856, %v4824
    %v4858 = vrot.slane %v4826, 6
    %v4859 = vsel %vm2674, %v4858, %v4857
    %v4860 = vrot.slane %v4827, 5
    %v4861 = vsel %vm2677, %v4860, %v4859
    %v4862 = vrot.slane %v4828, 4
    %v4863 = vsel %vm2680, %v4862, %v4861
    %v4864 = vrot.slane %v4829, 3
    %v4865 = vsel %vm2683, %v4864, %v4863
    %v4866 = vrot.slane %v4830, 2
    %v4867 = vsel %vm2686, %v4866, %v4865
    %v4868 = vrot.slane %v4831, 1
    %v4869 = vsel %vm2689, %v4868, %v4867
    %v4870 = vrot.slane %v4833, 7
    %v4871 = vsel %vm2671, %v4870, %v4832
    %v4872 = vrot.slane %v4834, 6
    %v4873 = vsel %vm2674, %v4872, %v4871
    %v4874 = vrot.slane %v4835, 5
    %v4875 = vsel %vm2677, %v4874, %v4873
    %v4876 = vrot.slane %v4836, 4
    %v4877 = vsel %vm2680, %v4876, %v4875
    %v4878 = vrot.slane %v4837, 3
    %v4879 = vsel %vm2683, %v4878, %v4877
    %v4880 = vrot.slane %v4838, 2
    %v4881 = vsel %vm2686, %v4880, %v4879
    %v4882 = vrot.slane %v4839, 1
    %v4883 = vsel %vm2689, %v4882, %v4881
    %v4886 = vsel %vm538, %v4869, 0.0
    %v4887 = vsel %vm538, %v4883, 0.0
    %v4888 = vadd.f32 %v4886, %v4887
    %v4889 = vrot.slane %v4888, 4
    %v4890 = vadd.f32 %v4888, %v4889
    %v4891 = vrot.slane %v4890, 2
    %v4892 = vadd.f32 %v4890, %v4891
    %v4893 = vrot.slane %v4892, 1
    %v4894 = vadd.f32 %v4892, %v4893
    %v4895 = vmul.f32 %v4894, %v2716
    %v4896 = vlaneseq
    %v4897 = vshrl.u32 %v4896, 7
    %v4898 = vsub.s32 0, %v4897
    %v4899 = vrot.slane %v4895, %v4898
    %v4900 = vsub.f32 %v4824, %v4899
    %v4901 = vsub.f32 %v4825, %v4899
    %v4902 = vsub.f32 %v4826, %v4899
    %v4903 = vsub.f32 %v4827, %v4899
    %v4904 = vsub.f32 %v4828, %v4899
    %v4905 = vsub.f32 %v4829, %v4899
    %v4906 = vsub.f32 %v4830, %v4899
    %v4907 = vsub.f32 %v4831, %v4899
    %v4908 = vsub.f32 %v4832, %v4899
    %v4909 = vsub.f32 %v4833, %v4899
    %v4910 = vsub.f32 %v4834, %v4899
    %v4911 = vsub.f32 %v4835, %v4899
    %v4912 = vsub.f32 %v4836, %v4899
    %v4913 = vsub.f32 %v4837, %v4899
    %v4914 = vsub.f32 %v4838, %v4899
    %v4915 = vsub.f32 %v4839, %v4899
    %v4916 = vmul.f32 %v4900, %v4900
    %v4917 = vmul.f32 %v4901, %v4901
    %v4918 = vmul.f32 %v4902, %v4902
    %v4919 = vmul.f32 %v4903, %v4903
    %v4920 = vmul.f32 %v4904, %v4904
    %v4921 = vmul.f32 %v4905, %v4905
    %v4922 = vmul.f32 %v4906, %v4906
    %v4923 = vmul.f32 %v4907, %v4907
    %v4924 = vmul.f32 %v4908, %v4908
    %v4925 = vmul.f32 %v4909, %v4909
    %v4926 = vmul.f32 %v4910, %v4910
    %v4927 = vmul.f32 %v4911, %v4911
    %v4928 = vmul.f32 %v4912, %v4912
    %v4929 = vmul.f32 %v4913, %v4913
    %v4930 = vmul.f32 %v4914, %v4914
    %v4931 = vmul.f32 %v4915, %v4915
    %v4948 = vrot.slane %v4917, 7
    %v4949 = vsel %vm2671, %v4948, %v4916
    %v4950 = vrot.slane %v4918, 6
    %v4951 = vsel %vm2674, %v4950, %v4949
    %v4952 = vrot.slane %v4919, 5
    %v4953 = vsel %vm2677, %v4952, %v4951
    %v4954 = vrot.slane %v4920, 4
    %v4955 = vsel %vm2680, %v4954, %v4953
    %v4956 = vrot.slane %v4921, 3
    %v4957 = vsel %vm2683, %v4956, %v4955
    %v4958 = vrot.slane %v4922, 2
    %v4959 = vsel %vm2686, %v4958, %v4957
    %v4960 = vrot.slane %v4923, 1
    %v4961 = vsel %vm2689, %v4960, %v4959
    %v4962 = vrot.slane %v4925, 7
    %v4963 = vsel %vm2671, %v4962, %v4924
    %v4964 = vrot.slane %v4926, 6
    %v4965 = vsel %vm2674, %v4964, %v4963
    %v4966 = vrot.slane %v4927, 5
    %v4967 = vsel %vm2677, %v4966, %v4965
    %v4968 = vrot.slane %v4928, 4
    %v4969 = vsel %vm2680, %v4968, %v4967
    %v4970 = vrot.slane %v4929, 3
    %v4971 = vsel %vm2683, %v4970, %v4969
    %v4972 = vrot.slane %v4930, 2
    %v4973 = vsel %vm2686, %v4972, %v4971
    %v4974 = vrot.slane %v4931, 1
    %v4975 = vsel %vm2689, %v4974, %v4973
    %v4978 = vsel %vm538, %v4961, 0.0
    %v4979 = vsel %vm538, %v4975, 0.0
    %v4980 = vadd.f32 %v4978, %v4979
    %v4981 = vrot.slane %v4980, 4
    %v4982 = vadd.f32 %v4980, %v4981
    %v4983 = vrot.slane %v4982, 2
    %v4984 = vadd.f32 %v4982, %v4983
    %v4985 = vrot.slane %v4984, 1
    %v4986 = vadd.f32 %v4984, %v4985
    %v4987 = vmul.f32 %v4986, %v2716
    %v4988 = vadd.f32 %v4987, 1e-05
    %v4989 = vrsqrt.pop %v4988
    %v4990 = vlaneseq
    %v4991 = vshrl.u32 %v4990, 7
    %v4992 = vsub.s32 0, %v4991
    %v4993 = vrot.slane %v4989, %v4992
    %v4994 = vmul.f32 %v4900, %v4993
    %v4995 = vmul.f32 %v4901, %v4993
    %v4996 = vmul.f32 %v4902, %v4993
    %v4997 = vmul.f32 %v4903, %v4993
    %v4998 = vmul.f32 %v4904, %v4993
    %v4999 = vmul.f32 %v4905, %v4993
    %v5000 = vmul.f32 %v4906, %v4993
    %v5001 = vmul.f32 %v4907, %v4993
    %v5002 = vmul.f32 %v4908, %v4993
    %v5003 = vmul.f32 %v4909, %v4993
    %v5004 = vmul.f32 %v4910, %v4993
    %v5005 = vmul.f32 %v4911, %v4993
    %v5006 = vmul.f32 %v4912, %v4993
    %v5007 = vmul.f32 %v4913, %v4993
    %v5008 = vmul.f32 %v4914, %v4993
    %v5009 = vmul.f32 %v4915, %v4993
    %v5011 = vlaneseq
    %v5012 = vshrl.u32 %v5011, 7
    %v5013 = vsub.s32 0, %v5012
    %v5014 = vrot.slane %v2936, %v5013
    %v5016 = vmul.f32 %v4994, %v5014
    %v5017 = vmul.f32 %v4995, %v5014
    %v5018 = vmul.f32 %v4996, %v5014
    %v5019 = vmul.f32 %v4997, %v5014
    %v5020 = vmul.f32 %v4998, %v5014
    %v5021 = vmul.f32 %v4999, %v5014
    %v5022 = vmul.f32 %v5000, %v5014
    %v5023 = vmul.f32 %v5001, %v5014
    %v5024 = vmul.f32 %v5002, %v5014
    %v5025 = vmul.f32 %v5003, %v5014
    %v5026 = vmul.f32 %v5004, %v5014
    %v5027 = vmul.f32 %v5005, %v5014
    %v5028 = vmul.f32 %v5006, %v5014
    %v5029 = vmul.f32 %v5007, %v5014
    %v5030 = vmul.f32 %v5008, %v5014
    %v5031 = vmul.f32 %v5009, %v5014
    %v5033 = vlaneseq
    %v5034 = vshrl.u32 %v5033, 7
    %v5035 = vsub.s32 0, %v5034
    %v5036 = vrot.slane %v2937, %v5035
    %v5038 = vadd.f32 %v5016, %v5036
    %v5039 = vadd.f32 %v5017, %v5036
    %v5040 = vadd.f32 %v5018, %v5036
    %v5041 = vadd.f32 %v5019, %v5036
    %v5042 = vadd.f32 %v5020, %v5036
    %v5043 = vadd.f32 %v5021, %v5036
    %v5044 = vadd.f32 %v5022, %v5036
    %v5045 = vadd.f32 %v5023, %v5036
    %v5046 = vadd.f32 %v5024, %v5036
    %v5047 = vadd.f32 %v5025, %v5036
    %v5048 = vadd.f32 %v5026, %v5036
    %v5049 = vadd.f32 %v5027, %v5036
    %v5050 = vadd.f32 %v5028, %v5036
    %v5051 = vadd.f32 %v5029, %v5036
    %v5052 = vadd.f32 %v5030, %v5036
    %v5053 = vadd.f32 %v5031, %v5036
    %v5054 = vld [vmem:[%s45] sm:$0x3]
    %v5071 = vrot.slane %v5039, 7
    %v5072 = vsel %vm2671, %v5071, %v5038
    %v5073 = vrot.slane %v5040, 6
    %v5074 = vsel %vm2674, %v5073, %v5072
    %v5075 = vrot.slane %v5041, 5
    %v5076 = vsel %vm2677, %v5075, %v5074
    %v5077 = vrot.slane %v5042, 4
    %v5078 = vsel %vm2680, %v5077, %v5076
    %v5079 = vrot.slane %v5043, 3
    %v5080 = vsel %vm2683, %v5079, %v5078
    %v5081 = vrot.slane %v5044, 2
    %v5082 = vsel %vm2686, %v5081, %v5080
    %v5083 = vrot.slane %v5045, 1
    %v5084 = vsel %vm2689, %v5083, %v5082
    %v5085 = vrot.slane %v5047, 7
    %v5086 = vsel %vm2671, %v5085, %v5046
    %v5087 = vrot.slane %v5048, 6
    %v5088 = vsel %vm2674, %v5087, %v5086
    %v5089 = vrot.slane %v5049, 5
    %v5090 = vsel %vm2677, %v5089, %v5088
    %v5091 = vrot.slane %v5050, 4
    %v5092 = vsel %vm2680, %v5091, %v5090
    %v5093 = vrot.slane %v5051, 3
    %v5094 = vsel %vm2683, %v5093, %v5092
    %v5095 = vrot.slane %v5052, 2
    %v5096 = vsel %vm2686, %v5095, %v5094
    %v5097 = vrot.slane %v5053, 1
    %v5098 = vsel %vm2689, %v5097, %v5096
    %v5102 = vsel %vm240, %v5054, 0
    %5104 = vmatprep.subr.mxu0 0.0
    %5105 = vmatpush1.msra.mxu0 %v5084
    %5106 = vmatprep.subr.mxu0 0.0
    %5107 = vmatpush1.msra.mxu0 %v5098
    %5108 = vmatprep.subr.mxu0 0.0
    %5109 = vmatpush1.msra.mxu0 0.0
    %5110 = vmatprep.subr.mxu0 0.0
    %5111 = vmatpush1.msra.mxu0 0.0
    %5112 = vmatprep.subr.mxu0 0.0
    %5113 = vmatpush1.msra.mxu0 0.0
    %5114 = vmatprep.subr.mxu0 0.0
    %5115 = vmatpush1.msra.mxu0 0.0
    %5116 = vmatprep.subr.mxu0 0.0
    %5117 = vmatpush1.msra.mxu0 0.0
    %5118 = vmatprep.subr.mxu0 0.0
    %5119 = vmatpush1.msra.mxu0 0.0
    %5120 = vmatprep.subr.mxu0 0.0
    %5121 = vmatpush1.msra.mxu0 0.0
    %5122 = vmatprep.subr.mxu0 0.0
    %5123 = vmatpush1.msra.mxu0 0.0
    %5124 = vmatprep.subr.mxu0 0.0
    %5125 = vmatpush1.msra.mxu0 0.0
    %5126 = vmatprep.subr.mxu0 0.0
    %5127 = vmatpush1.msra.mxu0 0.0
    %5128 = vmatprep.subr.mxu0 0.0
    %5129 = vmatpush1.msra.mxu0 0.0
    %5130 = vmatprep.subr.mxu0 0.0
    %5131 = vmatpush1.msra.mxu0 0.0
    %5132 = vmatprep.subr.mxu0 0.0
    %5133 = vmatpush1.msra.mxu0 0.0
    %5134 = vmatprep.subr.mxu0 0.0
    %5135 = vmatpush1.msra.mxu0 0.0
    %5136 = vmatprep.subr.mxu0 0.0
    %5137 = vmatpush1.msra.mxu0 0.0
    %5138 = vmatprep.subr.mxu0 0.0
    %5139 = vmatpush1.msra.mxu0 0.0
    %5140 = vmatprep.subr.mxu0 0.0
    %5141 = vmatpush1.msra.mxu0 0.0
    %5142 = vmatprep.subr.mxu0 0.0
    %5143 = vmatpush1.msra.mxu0 0.0
    %5144 = vmatprep.subr.mxu0 0.0
    %5145 = vmatpush1.msra.mxu0 0.0
    %5146 = vmatprep.subr.mxu0 0.0
    %5147 = vmatpush1.msra.mxu0 0.0
    %5148 = vmatprep.subr.mxu0 0.0
    %5149 = vmatpush1.msra.mxu0 0.0
    %5150 = vmatprep.subr.mxu0 0.0
    %5151 = vmatpush1.msra.mxu0 0.0
    %5152 = vmatprep.subr.mxu0 0.0
    %5153 = vmatpush1.msra.mxu0 0.0
    %5154 = vmatprep.subr.mxu0 0.0
    %5155 = vmatpush1.msra.mxu0 0.0
    %5156 = vmatprep.subr.mxu0 0.0
    %5157 = vmatpush1.msra.mxu0 0.0
    %5158 = vmatprep.subr.mxu0 0.0
    %5159 = vmatpush1.msra.mxu0 0.0
    %5160 = vmatprep.subr.mxu0 0.0
    %5161 = vmatpush1.msra.mxu0 0.0
    %5162 = vmatprep.subr.mxu0 0.0
    %5163 = vmatpush1.msra.mxu0 0.0
    %5164 = vmatprep.subr.mxu0 0.0
    %5165 = vmatpush1.msra.mxu0 0.0
    %5166 = vmatprep.subr.mxu0 0.0
    %5167 = vmatpush1.msra.mxu0 0.0
    %5168 = vmatprep.mubr.f32.mxu0 0.0
    %5169 = vmatmul.mubr.f32.gmra.mrb[0].mxu0 %v5102
    %v5170 = vpop.f32.mrb[0].mxu0
    %v5171 = vadd.f32 0.0, %v5170
    %v5172 = vpop.f32.mrb[0].mxu0
    %5173 = vdwg.mxu0
    %v5174 = vpack.c.bf16 %v5171, %v5171
    %v5175 = vld [vmem:[%s47] sm:$0xff]
    %v5176 = vld [vmem:[%s47 + $0x8] sm:$0xff]
    %v5177 = vld [vmem:[%s47 + $0x10] sm:$0xff]
    %v5178 = vld [vmem:[%s47 + $0x18] sm:$0xff]
    %v5179 = vld [vmem:[%s47 + $0x20] sm:$0xff]
    %v5180 = vld [vmem:[%s47 + $0x28] sm:$0xff]
    %v5181 = vld [vmem:[%s47 + $0x30] sm:$0xff]
    %v5182 = vld [vmem:[%s47 + $0x38] sm:$0xff]
    %v5183 = vld [vmem:[%s47 + $0x40] sm:$0xff]
    %v5184 = vld [vmem:[%s47 + $0x48] sm:$0xff]
    %v5185 = vld [vmem:[%s47 + $0x50] sm:$0xff]
    %v5186 = vld [vmem:[%s47 + $0x58] sm:$0xff]
    %v5187 = vld [vmem:[%s47 + $0x60] sm:$0xff]
    %v5188 = vld [vmem:[%s47 + $0x68] sm:$0xff]
    %v5189 = vld [vmem:[%s47 + $0x70] sm:$0xff]
    %v5190 = vld [vmem:[%s47 + $0x78] sm:$0xff]
    %v5191 = vld [vmem:[%s49] sm:$0xff]
    %v5193 = vlaneseq
    %v5194 = vshrl.u32 %v5193, 7
    %v5195 = vsub.s32 0, %v5194
    %v5196 = vrot.slane %v5191, %v5195
    %v5197 = vlaneseq
    %v5198 = vshrl.u32 %v5197, 7
    %v5199 = vsub.s32 1, %v5198
    %v5200 = vrot.slane %v5191, %v5199
    %v5201 = vlaneseq
    %v5202 = vshrl.u32 %v5201, 7
    %v5203 = vsub.s32 2, %v5202
    %v5204 = vrot.slane %v5191, %v5203
    %v5205 = vlaneseq
    %v5206 = vshrl.u32 %v5205, 7
    %v5207 = vsub.s32 3, %v5206
    %v5208 = vrot.slane %v5191, %v5207
    %v5209 = vlaneseq
    %v5210 = vshrl.u32 %v5209, 7
    %v5211 = vsub.s32 4, %v5210
    %v5212 = vrot.slane %v5191, %v5211
    %v5213 = vlaneseq
    %v5214 = vshrl.u32 %v5213, 7
    %v5215 = vsub.s32 5, %v5214
    %v5216 = vrot.slane %v5191, %v5215
    %v5217 = vlaneseq
    %v5218 = vshrl.u32 %v5217, 7
    %v5219 = vsub.s32 6, %v5218
    %v5220 = vrot.slane %v5191, %v5219
    %v5221 = vlaneseq
    %v5222 = vshrl.u32 %v5221, 7
    %v5223 = vsub.s32 7, %v5222
    %v5224 = vrot.slane %v5191, %v5223
    %v5249 = vunpack.c.l.b16 %v5175
    %v5250 = vunpack.c.h.b16 %v5175
    %v5251 = vunpack.c.l.b16 %v5176
    %v5252 = vunpack.c.h.b16 %v5176
    %v5253 = vunpack.c.l.b16 %v5177
    %v5254 = vunpack.c.h.b16 %v5177
    %v5255 = vunpack.c.l.b16 %v5178
    %v5256 = vunpack.c.h.b16 %v5178
    %v5257 = vunpack.c.l.b16 %v5179
    %v5258 = vunpack.c.h.b16 %v5179
    %v5259 = vunpack.c.l.b16 %v5180
    %v5260 = vunpack.c.h.b16 %v5180
    %v5261 = vunpack.c.l.b16 %v5181
    %v5262 = vunpack.c.h.b16 %v5181
    %v5263 = vunpack.c.l.b16 %v5182
    %v5264 = vunpack.c.h.b16 %v5182
    %v5265 = vunpack.c.l.b16 %v5183
    %v5266 = vunpack.c.h.b16 %v5183
    %v5267 = vunpack.c.l.b16 %v5184
    %v5268 = vunpack.c.h.b16 %v5184
    %v5269 = vunpack.c.l.b16 %v5185
    %v5270 = vunpack.c.h.b16 %v5185
    %v5271 = vunpack.c.l.b16 %v5186
    %v5272 = vunpack.c.h.b16 %v5186
    %v5273 = vunpack.c.l.b16 %v5187
    %v5274 = vunpack.c.h.b16 %v5187
    %v5275 = vunpack.c.l.b16 %v5188
    %v5276 = vunpack.c.h.b16 %v5188
    %v5277 = vunpack.c.l.b16 %v5189
    %v5278 = vunpack.c.h.b16 %v5189
    %v5279 = vunpack.c.l.b16 %v5190
    %v5280 = vunpack.c.h.b16 %v5190
    %v5281 = vpack.c.b16 %v5257, %v5249
    %v5282 = vpack.c.b16 %v5258, %v5250
    %v5283 = vpack.c.b16 %v5259, %v5251
    %v5284 = vpack.c.b16 %v5260, %v5252
    %v5285 = vpack.c.b16 %v5261, %v5253
    %v5286 = vpack.c.b16 %v5262, %v5254
    %v5287 = vpack.c.b16 %v5263, %v5255
    %v5288 = vpack.c.b16 %v5264, %v5256
    %v5289 = vpack.c.b16 %v5273, %v5265
    %v5290 = vpack.c.b16 %v5274, %v5266
    %v5291 = vpack.c.b16 %v5275, %v5267
    %v5292 = vpack.c.b16 %v5276, %v5268
    %v5293 = vpack.c.b16 %v5277, %v5269
    %v5294 = vpack.c.b16 %v5278, %v5270
    %v5295 = vpack.c.b16 %v5279, %v5271
    %v5296 = vpack.c.b16 %v5280, %v5272
    %v5314 = vsel %vm538, %v5174, 0
    %5316 = vmatprep.subr.bf16.mxu0 %v5282
    %5317 = vmatpush1.bf16.msra.mxu0 %v5281
    %5318 = vmatprep.subr.bf16.mxu0 %v5290
    %5319 = vmatpush1.bf16.msra.mxu0 %v5289
    %5320 = vmatprep.subr.bf16.mxu0 0
    %5321 = vmatpush1.bf16.msra.mxu0 0
    %5322 = vmatprep.subr.bf16.mxu0 0
    %5323 = vmatpush1.bf16.msra.mxu0 0
    %5324 = vmatprep.subr.bf16.mxu0 0
    %5325 = vmatpush1.bf16.msra.mxu0 0
    %5326 = vmatprep.subr.bf16.mxu0 0
    %5327 = vmatpush1.bf16.msra.mxu0 0
    %5328 = vmatprep.subr.bf16.mxu0 0
    %5329 = vmatpush1.bf16.msra.mxu0 0
    %5330 = vmatprep.subr.bf16.mxu0 0
    %5331 = vmatpush1.bf16.msra.mxu0 0
    %5332 = vmatprep.subr.bf16.mxu0 0
    %5333 = vmatpush1.bf16.msra.mxu0 0
    %5334 = vmatprep.subr.bf16.mxu0 0
    %5335 = vmatpush1.bf16.msra.mxu0 0
    %5336 = vmatprep.subr.bf16.mxu0 0
    %5337 = vmatpush1.bf16.msra.mxu0 0
    %5338 = vmatprep.subr.bf16.mxu0 0
    %5339 = vmatpush1.bf16.msra.mxu0 0
    %5340 = vmatprep.subr.bf16.mxu0 0
    %5341 = vmatpush1.bf16.msra.mxu0 0
    %5342 = vmatprep.subr.bf16.mxu0 0
    %5343 = vmatpush1.bf16.msra.mxu0 0
    %5344 = vmatprep.subr.bf16.mxu0 0
    %5345 = vmatpush1.bf16.msra.mxu0 0
    %5346 = vmatprep.subr.bf16.mxu0 0
    %5347 = vmatpush1.bf16.msra.mxu0 0
    %5348 = vmatprep.mubr.bf16.mxu0 0
    %5349 = vmatmul.mubr.bf16.gmra.mrb[0].mxu0 %v5314
    %v5350 = vpop.f32.mrb[0].mxu0
    %v5351 = vadd.f32 %v5196, %v5350
    %v5352 = vpop.f32.mrb[0].mxu0
    %v5353 = vadd.f32 %v5200, %v5352
    %v5354 = vpop.f32.mrb[0].mxu0
    %v5355 = vpop.f32.mrb[0].mxu0
    %5356 = vdwg.mxu0
    %5357 = vmatprep.subr.bf16.mxu0 %v5284
    %5358 = vmatpush1.bf16.msra.mxu0 %v5283
    %5359 = vmatprep.subr.bf16.mxu0 %v5292
    %5360 = vmatpush1.bf16.msra.mxu0 %v5291
    %5361 = vmatprep.subr.bf16.mxu0 0
    %5362 = vmatpush1.bf16.msra.mxu0 0
    %5363 = vmatprep.subr.bf16.mxu0 0
    %5364 = vmatpush1.bf16.msra.mxu0 0
    %5365 = vmatprep.subr.bf16.mxu0 0
    %5366 = vmatpush1.bf16.msra.mxu0 0
    %5367 = vmatprep.subr.bf16.mxu0 0
    %5368 = vmatpush1.bf16.msra.mxu0 0
    %5369 = vmatprep.subr.bf16.mxu0 0
    %5370 = vmatpush1.bf16.msra.mxu0 0
    %5371 = vmatprep.subr.bf16.mxu0 0
    %5372 = vmatpush1.bf16.msra.mxu0 0
    %5373 = vmatprep.subr.bf16.mxu0 0
    %5374 = vmatpush1.bf16.msra.mxu0 0
    %5375 = vmatprep.subr.bf16.mxu0 0
    %5376 = vmatpush1.bf16.msra.mxu0 0
    %5377 = vmatprep.subr.bf16.mxu0 0
    %5378 = vmatpush1.bf16.msra.mxu0 0
    %5379 = vmatprep.subr.bf16.mxu0 0
    %5380 = vmatpush1.bf16.msra.mxu0 0
    %5381 = vmatprep.subr.bf16.mxu0 0
    %5382 = vmatpush1.bf16.msra.mxu0 0
    %5383 = vmatprep.subr.bf16.mxu0 0
    %5384 = vmatpush1.bf16.msra.mxu0 0
    %5385 = vmatprep.subr.bf16.mxu0 0
    %5386 = vmatpush1.bf16.msra.mxu0 0
    %5387 = vmatprep.subr.bf16.mxu0 0
    %5388 = vmatpush1.bf16.msra.mxu0 0
    %5389 = vmatprep.mubr.bf16.mxu0 0
    %5390 = vmatmul.mubr.bf16.gmra.mrb[0].mxu0 %v5314
    %v5391 = vpop.f32.mrb[0].mxu0
    %v5392 = vadd.f32 %v5204, %v5391
    %v5393 = vpop.f32.mrb[0].mxu0
    %v5394 = vadd.f32 %v5208, %v5393
    %v5395 = vpop.f32.mrb[0].mxu0
    %v5396 = vpop.f32.mrb[0].mxu0
    %5397 = vdwg.mxu0
    %5398 = vmatprep.subr.bf16.mxu0 %v5286
    %5399 = vmatpush1.bf16.msra.mxu0 %v5285
    %5400 = vmatprep.subr.bf16.mxu0 %v5294
    %5401 = vmatpush1.bf16.msra.mxu0 %v5293
    %5402 = vmatprep.subr.bf16.mxu0 0
    %5403 = vmatpush1.bf16.msra.mxu0 0
    %5404 = vmatprep.subr.bf16.mxu0 0
    %5405 = vmatpush1.bf16.msra.mxu0 0
    %5406 = vmatprep.subr.bf16.mxu0 0
    %5407 = vmatpush1.bf16.msra.mxu0 0
    %5408 = vmatprep.subr.bf16.mxu0 0
    %5409 = vmatpush1.bf16.msra.mxu0 0
    %5410 = vmatprep.subr.bf16.mxu0 0
    %5411 = vmatpush1.bf16.msra.mxu0 0
    %5412 = vmatprep.subr.bf16.mxu0 0
    %5413 = vmatpush1.bf16.msra.mxu0 0
    %5414 = vmatprep.subr.bf16.mxu0 0
    %5415 = vmatpush1.bf16.msra.mxu0 0
    %5416 = vmatprep.subr.bf16.mxu0 0
    %5417 = vmatpush1.bf16.msra.mxu0 0
    %5418 = vmatprep.subr.bf16.mxu0 0
    %5419 = vmatpush1.bf16.msra.mxu0 0
    %5420 = vmatprep.subr.bf16.mxu0 0
    %5421 = vmatpush1.bf16.msra.mxu0 0
    %5422 = vmatprep.subr.bf16.mxu0 0
    %5423 = vmatpush1.bf16.msra.mxu0 0
    %5424 = vmatprep.subr.bf16.mxu0 0
    %5425 = vmatpush1.bf16.msra.mxu0 0
    %5426 = vmatprep.subr.bf16.mxu0 0
    %5427 = vmatpush1.bf16.msra.mxu0 0
    %5428 = vmatprep.subr.bf16.mxu0 0
    %5429 = vmatpush1.bf16.msra.mxu0 0
    %5430 = vmatprep.mubr.bf16.mxu0 0
    %5431 = vmatmul.mubr.bf16.gmra.mrb[0].mxu0 %v5314
    %v5432 = vpop.f32.mrb[0].mxu0
    %v5433 = vadd.f32 %v5212, %v5432
    %v5434 = vpop.f32.mrb[0].mxu0
    %v5435 = vadd.f32 %v5216, %v5434
    %v5436 = vpop.f32.mrb[0].mxu0
    %v5437 = vpop.f32.mrb[0].mxu0
    %5438 = vdwg.mxu0
    %5439 = vmatprep.subr.bf16.mxu0 %v5288
    %5440 = vmatpush1.bf16.msra.mxu0 %v5287
    %5441 = vmatprep.subr.bf16.mxu0 %v5296
    %5442 = vmatpush1.bf16.msra.mxu0 %v5295
    %5443 = vmatprep.subr.bf16.mxu0 0
    %5444 = vmatpush1.bf16.msra.mxu0 0
    %5445 = vmatprep.subr.bf16.mxu0 0
    %5446 = vmatpush1.bf16.msra.mxu0 0
    %5447 = vmatprep.subr.bf16.mxu0 0
    %5448 = vmatpush1.bf16.msra.mxu0 0
    %5449 = vmatprep.subr.bf16.mxu0 0
    %5450 = vmatpush1.bf16.msra.mxu0 0
    %5451 = vmatprep.subr.bf16.mxu0 0
    %5452 = vmatpush1.bf16.msra.mxu0 0
    %5453 = vmatprep.subr.bf16.mxu0 0
    %5454 = vmatpush1.bf16.msra.mxu0 0
    %5455 = vmatprep.subr.bf16.mxu0 0
    %5456 = vmatpush1.bf16.msra.mxu0 0
    %5457 = vmatprep.subr.bf16.mxu0 0
    %5458 = vmatpush1.bf16.msra.mxu0 0
    %5459 = vmatprep.subr.bf16.mxu0 0
    %5460 = vmatpush1.bf16.msra.mxu0 0
    %5461 = vmatprep.subr.bf16.mxu0 0
    %5462 = vmatpush1.bf16.msra.mxu0 0
    %5463 = vmatprep.subr.bf16.mxu0 0
    %5464 = vmatpush1.bf16.msra.mxu0 0
    %5465 = vmatprep.subr.bf16.mxu0 0
    %5466 = vmatpush1.bf16.msra.mxu0 0
    %5467 = vmatprep.subr.bf16.mxu0 0
    %5468 = vmatpush1.bf16.msra.mxu0 0
    %5469 = vmatprep.subr.bf16.mxu0 0
    %5470 = vmatpush1.bf16.msra.mxu0 0
    %5471 = vmatprep.mubr.bf16.mxu0 0
    %5472 = vmatmul.mubr.bf16.gmra.mrb[0].mxu0 %v5314
    %v5473 = vpop.f32.mrb[0].mxu0
    %v5474 = vadd.f32 %v5220, %v5473
    %v5475 = vpop.f32.mrb[0].mxu0
    %v5476 = vadd.f32 %v5224, %v5475
    %v5477 = vpop.f32.mrb[0].mxu0
    %v5478 = vpop.f32.mrb[0].mxu0
    %5479 = vdwg.mxu0
    %v5480 = vmax.f32 %v5351, 0.0
    %v5481 = vmax.f32 %v5353, 0.0
    %v5482 = vmax.f32 %v5392, 0.0
    %v5483 = vmax.f32 %v5394, 0.0
    %v5484 = vmax.f32 %v5433, 0.0
    %v5485 = vmax.f32 %v5435, 0.0
    %v5486 = vmax.f32 %v5474, 0.0
    %v5487 = vmax.f32 %v5476, 0.0
    %v5488 = vpack.c.bf16 %v5480, %v5480
    %v5489 = vpack.c.bf16 %v5481, %v5481
    %v5490 = vpack.c.bf16 %v5482, %v5482
    %v5491 = vpack.c.bf16 %v5483, %v5483
    %v5492 = vpack.c.bf16 %v5484, %v5484
    %v5493 = vpack.c.bf16 %v5485, %v5485
    %v5494 = vpack.c.bf16 %v5486, %v5486
    %v5495 = vpack.c.bf16 %v5487, %v5487
    %v5496 = vld [vmem:[%s51] sm:$0xff]
    %v5497 = vld [vmem:[%s51 + $0x8] sm:$0xff]
    %v5498 = vld [vmem:[%s51 + $0x10] sm:$0xff]
    %v5499 = vld [vmem:[%s51 + $0x18] sm:$0xff]
    %v5500 = vld [vmem:[%s51 + $0x20] sm:$0xff]
    %v5501 = vld [vmem:[%s51 + $0x28] sm:$0xff]
    %v5502 = vld [vmem:[%s51 + $0x30] sm:$0xff]
    %v5503 = vld [vmem:[%s51 + $0x38] sm:$0xff]
    %v5504 = vld [vmem:[%s51 + $0x40] sm:$0xff]
    %v5505 = vld [vmem:[%s51 + $0x48] sm:$0xff]
    %v5506 = vld [vmem:[%s51 + $0x50] sm:$0xff]
    %v5507 = vld [vmem:[%s51 + $0x58] sm:$0xff]
    %v5508 = vld [vmem:[%s51 + $0x60] sm:$0xff]
    %v5509 = vld [vmem:[%s51 + $0x68] sm:$0xff]
    %v5510 = vld [vmem:[%s51 + $0x70] sm:$0xff]
    %v5511 = vld [vmem:[%s51 + $0x78] sm:$0xff]
    %v5512 = vld [vmem:[%s51 + $0x80] sm:$0xff]
    %v5513 = vld [vmem:[%s51 + $0x88] sm:$0xff]
    %v5514 = vld [vmem:[%s51 + $0x90] sm:$0xff]
    %v5515 = vld [vmem:[%s51 + $0x98] sm:$0xff]
    %v5516 = vld [vmem:[%s51 + $0xa0] sm:$0xff]
    %v5517 = vld [vmem:[%s51 + $0xa8] sm:$0xff]
    %v5518 = vld [vmem:[%s51 + $0xb0] sm:$0xff]
    %v5519 = vld [vmem:[%s51 + $0xb8] sm:$0xff]
    %v5520 = vld [vmem:[%s51 + $0xc0] sm:$0xff]
    %v5521 = vld [vmem:[%s51 + $0xc8] sm:$0xff]
    %v5522 = vld [vmem:[%s51 + $0xd0] sm:$0xff]
    %v5523 = vld [vmem:[%s51 + $0xd8] sm:$0xff]
    %v5524 = vld [vmem:[%s51 + $0xe0] sm:$0xff]
    %v5525 = vld [vmem:[%s51 + $0xe8] sm:$0xff]
    %v5526 = vld [vmem:[%s51 + $0xf0] sm:$0xff]
    %v5527 = vld [vmem:[%s51 + $0xf8] sm:$0xff]
    %v5528 = vld [vmem:[%s51 + $0x100] sm:$0xff]
    %v5529 = vld [vmem:[%s51 + $0x108] sm:$0xff]
    %v5530 = vld [vmem:[%s51 + $0x110] sm:$0xff]
    %v5531 = vld [vmem:[%s51 + $0x118] sm:$0xff]
    %v5532 = vld [vmem:[%s51 + $0x120] sm:$0xff]
    %v5533 = vld [vmem:[%s51 + $0x128] sm:$0xff]
    %v5534 = vld [vmem:[%s51 + $0x130] sm:$0xff]
    %v5535 = vld [vmem:[%s51 + $0x138] sm:$0xff]
    %v5536 = vld [vmem:[%s51 + $0x140] sm:$0xff]
    %v5537 = vld [vmem:[%s51 + $0x148] sm:$0xff]
    %v5538 = vld [vmem:[%s51 + $0x150] sm:$0xff]
    %v5539 = vld [vmem:[%s51 + $0x158] sm:$0xff]
    %v5540 = vld [vmem:[%s51 + $0x160] sm:$0xff]
    %v5541 = vld [vmem:[%s51 + $0x168] sm:$0xff]
    %v5542 = vld [vmem:[%s51 + $0x170] sm:$0xff]
    %v5543 = vld [vmem:[%s51 + $0x178] sm:$0xff]
    %v5544 = vld [vmem:[%s51 + $0x180] sm:$0xff]
    %v5545 = vld [vmem:[%s51 + $0x188] sm:$0xff]
    %v5546 = vld [vmem:[%s51 + $0x190] sm:$0xff]
    %v5547 = vld [vmem:[%s51 + $0x198] sm:$0xff]
    %v5548 = vld [vmem:[%s51 + $0x1a0] sm:$0xff]
    %v5549 = vld [vmem:[%s51 + $0x1a8] sm:$0xff]
    %v5550 = vld [vmem:[%s51 + $0x1b0] sm:$0xff]
    %v5551 = vld [vmem:[%s51 + $0x1b8] sm:$0xff]
    %v5552 = vld [vmem:[%s51 + $0x1c0] sm:$0xff]
    %v5553 = vld [vmem:[%s51 + $0x1c8] sm:$0xff]
    %v5554 = vld [vmem:[%s51 + $0x1d0] sm:$0xff]
    %v5555 = vld [vmem:[%s51 + $0x1d8] sm:$0xff]
    %v5556 = vld [vmem:[%s51 + $0x1e0] sm:$0xff]
    %v5557 = vld [vmem:[%s51 + $0x1e8] sm:$0xff]
    %v5558 = vld [vmem:[%s51 + $0x1f0] sm:$0xff]
    %v5559 = vld [vmem:[%s51 + $0x1f8] sm:$0xff]
    %v5560 = vld [vmem:[%s51 + $0x200] sm:$0xff]
    %v5561 = vld [vmem:[%s51 + $0x208] sm:$0xff]
    %v5562 = vld [vmem:[%s51 + $0x210] sm:$0xff]
    %v5563 = vld [vmem:[%s51 + $0x218] sm:$0xff]
    %v5564 = vld [vmem:[%s51 + $0x220] sm:$0xff]
    %v5565 = vld [vmem:[%s51 + $0x228] sm:$0xff]
    %v5566 = vld [vmem:[%s51 + $0x230] sm:$0xff]
    %v5567 = vld [vmem:[%s51 + $0x238] sm:$0xff]
    %v5568 = vld [vmem:[%s51 + $0x240] sm:$0xff]
    %v5569 = vld [vmem:[%s51 + $0x248] sm:$0xff]
    %v5570 = vld [vmem:[%s51 + $0x250] sm:$0xff]
    %v5571 = vld [vmem:[%s51 + $0x258] sm:$0xff]
    %v5572 = vld [vmem:[%s51 + $0x260] sm:$0xff]
    %v5573 = vld [vmem:[%s51 + $0x268] sm:$0xff]
    %v5574 = vld [vmem:[%s51 + $0x270] sm:$0xff]
    %v5575 = vld [vmem:[%s51 + $0x278] sm:$0xff]
    %v5576 = vld [vmem:[%s51 + $0x280] sm:$0xff]
    %v5577 = vld [vmem:[%s51 + $0x288] sm:$0xff]
    %v5578 = vld [vmem:[%s51 + $0x290] sm:$0xff]
    %v5579 = vld [vmem:[%s51 + $0x298] sm:$0xff]
    %v5580 = vld [vmem:[%s51 + $0x2a0] sm:$0xff]
    %v5581 = vld [vmem:[%s51 + $0x2a8] sm:$0xff]
    %v5582 = vld [vmem:[%s51 + $0x2b0] sm:$0xff]
    %v5583 = vld [vmem:[%s51 + $0x2b8] sm:$0xff]
    %v5584 = vld [vmem:[%s51 + $0x2c0] sm:$0xff]
    %v5585 = vld [vmem:[%s51 + $0x2c8] sm:$0xff]
    %v5586 = vld [vmem:[%s51 + $0x2d0] sm:$0xff]
    %v5587 = vld [vmem:[%s51 + $0x2d8] sm:$0xff]
    %v5588 = vld [vmem:[%s51 + $0x2e0] sm:$0xff]
    %v5589 = vld [vmem:[%s51 + $0x2e8] sm:$0xff]
    %v5590 = vld [vmem:[%s51 + $0x2f0] sm:$0xff]
    %v5591 = vld [vmem:[%s51 + $0x2f8] sm:$0xff]
    %v5592 = vld [vmem:[%s51 + $0x300] sm:$0xff]
    %v5593 = vld [vmem:[%s51 + $0x308] sm:$0xff]
    %v5594 = vld [vmem:[%s51 + $0x310] sm:$0xff]
    %v5595 = vld [vmem:[%s51 + $0x318] sm:$0xff]
    %v5596 = vld [vmem:[%s51 + $0x320] sm:$0xff]
    %v5597 = vld [vmem:[%s51 + $0x328] sm:$0xff]
    %v5598 = vld [vmem:[%s51 + $0x330] sm:$0xff]
    %v5599 = vld [vmem:[%s51 + $0x338] sm:$0xff]
    %v5600 = vld [vmem:[%s51 + $0x340] sm:$0xff]
    %v5601 = vld [vmem:[%s51 + $0x348] sm:$0xff]
    %v5602 = vld [vmem:[%s51 + $0x350] sm:$0xff]
    %v5603 = vld [vmem:[%s51 + $0x358] sm:$0xff]
    %v5604 = vld [vmem:[%s51 + $0x360] sm:$0xff]
    %v5605 = vld [vmem:[%s51 + $0x368] sm:$0xff]
    %v5606 = vld [vmem:[%s51 + $0x370] sm:$0xff]
    %v5607 = vld [vmem:[%s51 + $0x378] sm:$0xff]
    %v5608 = vld [vmem:[%s51 + $0x380] sm:$0xff]
    %v5609 = vld [vmem:[%s51 + $0x388] sm:$0xff]
    %v5610 = vld [vmem:[%s51 + $0x390] sm:$0xff]
    %v5611 = vld [vmem:[%s51 + $0x398] sm:$0xff]
    %v5612 = vld [vmem:[%s51 + $0x3a0] sm:$0xff]
    %v5613 = vld [vmem:[%s51 + $0x3a8] sm:$0xff]
    %v5614 = vld [vmem:[%s51 + $0x3b0] sm:$0xff]
    %v5615 = vld [vmem:[%s51 + $0x3b8] sm:$0xff]
    %v5616 = vld [vmem:[%s51 + $0x3c0] sm:$0xff]
    %v5617 = vld [vmem:[%s51 + $0x3c8] sm:$0xff]
    %v5618 = vld [vmem:[%s51 + $0x3d0] sm:$0xff]
    %v5619 = vld [vmem:[%s51 + $0x3d8] sm:$0xff]
    %v5620 = vld [vmem:[%s51 + $0x3e0] sm:$0xff]
    %v5621 = vld [vmem:[%s51 + $0x3e8] sm:$0xff]
    %v5622 = vld [vmem:[%s51 + $0x3f0] sm:$0xff]
    %v5623 = vld [vmem:[%s51 + $0x3f8] sm:$0xff]
    %v5624 = vld [vmem:[%s51 + $0x400] sm:$0xff]
    %v5625 = vld [vmem:[%s51 + $0x408] sm:$0xff]
    %v5626 = vld [vmem:[%s51 + $0x410] sm:$0xff]
    %v5627 = vld [vmem:[%s51 + $0x418] sm:$0xff]
    %v5628 = vld [vmem:[%s51 + $0x420] sm:$0xff]
    %v5629 = vld [vmem:[%s51 + $0x428] sm:$0xff]
    %v5630 = vld [vmem:[%s51 + $0x430] sm:$0xff]
    %v5631 = vld [vmem:[%s51 + $0x438] sm:$0xff]
    %v5632 = vld [vmem:[%s51 + $0x440] sm:$0xff]
    %v5633 = vld [vmem:[%s51 + $0x448] sm:$0xff]
    %v5634 = vld [vmem:[%s51 + $0x450] sm:$0xff]
    %v5635 = vld [vmem:[%s51 + $0x458] sm:$0xff]
    %v5636 = vld [vmem:[%s51 + $0x460] sm:$0xff]
    %v5637 = vld [vmem:[%s51 + $0x468] sm:$0xff]
    %v5638 = vld [vmem:[%s51 + $0x470] sm:$0xff]
    %v5639 = vld [vmem:[%s51 + $0x478] sm:$0xff]
    %v5640 = vld [vmem:[%s51 + $0x480] sm:$0xff]
    %v5641 = vld [vmem:[%s51 + $0x488] sm:$0xff]
    %v5642 = vld [vmem:[%s51 + $0x490] sm:$0xff]
    %v5643 = vld [vmem:[%s51 + $0x498] sm:$0xff]
    %v5644 = vld [vmem:[%s51 + $0x4a0] sm:$0xff]
    %v5645 = vld [vmem:[%s51 + $0x4a8] sm:$0xff]
    %v5646 = vld [vmem:[%s51 + $0x4b0] sm:$0xff]
    %v5647 = vld [vmem:[%s51 + $0x4b8] sm:$0xff]
    %v5648 = vld [vmem:[%s51 + $0x4c0] sm:$0xff]
    %v5649 = vld [vmem:[%s51 + $0x4c8] sm:$0xff]
    %v5650 = vld [vmem:[%s51 + $0x4d0] sm:$0xff]
    %v5651 = vld [vmem:[%s51 + $0x4d8] sm:$0xff]
    %v5652 = vld [vmem:[%s51 + $0x4e0] sm:$0xff]
    %v5653 = vld [vmem:[%s51 + $0x4e8] sm:$0xff]
    %v5654 = vld [vmem:[%s51 + $0x4f0] sm:$0xff]
    %v5655 = vld [vmem:[%s51 + $0x4f8] sm:$0xff]
    %v5656 = vld [vmem:[%s51 + $0x500] sm:$0xff]
    %v5657 = vld [vmem:[%s51 + $0x508] sm:$0xff]
    %v5658 = vld [vmem:[%s51 + $0x510] sm:$0xff]
    %v5659 = vld [vmem:[%s51 + $0x518] sm:$0xff]
    %v5660 = vld [vmem:[%s51 + $0x520] sm:$0xff]
    %v5661 = vld [vmem:[%s51 + $0x528] sm:$0xff]
    %v5662 = vld [vmem:[%s51 + $0x530] sm:$0xff]
    %v5663 = vld [vmem:[%s51 + $0x538] sm:$0xff]
    %v5664 = vld [vmem:[%s51 + $0x540] sm:$0xff]
    %v5665 = vld [vmem:[%s51 + $0x548] sm:$0xff]
    %v5666 = vld [vmem:[%s51 + $0x550] sm:$0xff]
    %v5667 = vld [vmem:[%s51 + $0x558] sm:$0xff]
    %v5668 = vld [vmem:[%s51 + $0x560] sm:$0xff]
    %v5669 = vld [vmem:[%s51 + $0x568] sm:$0xff]
    %v5670 = vld [vmem:[%s51 + $0x570] sm:$0xff]
    %v5671 = vld [vmem:[%s51 + $0x578] sm:$0xff]
    %v5672 = vld [vmem:[%s51 + $0x580] sm:$0xff]
    %v5673 = vld [vmem:[%s51 + $0x588] sm:$0xff]
    %v5674 = vld [vmem:[%s51 + $0x590] sm:$0xff]
    %v5675 = vld [vmem:[%s51 + $0x598] sm:$0xff]
    %v5676 = vld [vmem:[%s51 + $0x5a0] sm:$0xff]
    %v5677 = vld [vmem:[%s51 + $0x5a8] sm:$0xff]
    %v5678 = vld [vmem:[%s51 + $0x5b0] sm:$0xff]
    %v5679 = vld [vmem:[%s51 + $0x5b8] sm:$0xff]
    %v5680 = vld [vmem:[%s51 + $0x5c0] sm:$0xff]
    %v5681 = vld [vmem:[%s51 + $0x5c8] sm:$0xff]
    %v5682 = vld [vmem:[%s51 + $0x5d0] sm:$0xff]
    %v5683 = vld [vmem:[%s51 + $0x5d8] sm:$0xff]
    %v5684 = vld [vmem:[%s51 + $0x5e0] sm:$0xff]
    %v5685 = vld [vmem:[%s51 + $0x5e8] sm:$0xff]
    %v5686 = vld [vmem:[%s51 + $0x5f0] sm:$0xff]
    %v5687 = vld [vmem:[%s51 + $0x5f8] sm:$0xff]
    %v5688 = vld [vmem:[%s51 + $0x600] sm:$0xff]
    %v5689 = vld [vmem:[%s51 + $0x608] sm:$0xff]
    %v5690 = vld [vmem:[%s51 + $0x610] sm:$0xff]
    %v5691 = vld [vmem:[%s51 + $0x618] sm:$0xff]
    %v5692 = vld [vmem:[%s51 + $0x620] sm:$0xff]
    %v5693 = vld [vmem:[%s51 + $0x628] sm:$0xff]
    %v5694 = vld [vmem:[%s51 + $0x630] sm:$0xff]
    %v5695 = vld [vmem:[%s51 + $0x638] sm:$0xff]
    %v5696 = vld [vmem:[%s51 + $0x640] sm:$0xff]
    %v5697 = vld [vmem:[%s51 + $0x648] sm:$0xff]
    %v5698 = vld [vmem:[%s51 + $0x650] sm:$0xff]
    %v5699 = vld [vmem:[%s51 + $0x658] sm:$0xff]
    %v5700 = vld [vmem:[%s51 + $0x660] sm:$0xff]
    %v5701 = vld [vmem:[%s51 + $0x668] sm:$0xff]
    %v5702 = vld [vmem:[%s51 + $0x670] sm:$0xff]
    %v5703 = vld [vmem:[%s51 + $0x678] sm:$0xff]
    %v5704 = vld [vmem:[%s51 + $0x680] sm:$0xff]
    %v5705 = vld [vmem:[%s51 + $0x688] sm:$0xff]
    %v5706 = vld [vmem:[%s51 + $0x690] sm:$0xff]
    %v5707 = vld [vmem:[%s51 + $0x698] sm:$0xff]
    %v5708 = vld [vmem:[%s51 + $0x6a0] sm:$0xff]
    %v5709 = vld [vmem:[%s51 + $0x6a8] sm:$0xff]
    %v5710 = vld [vmem:[%s51 + $0x6b0] sm:$0xff]
    %v5711 = vld [vmem:[%s51 + $0x6b8] sm:$0xff]
    %v5712 = vld [vmem:[%s51 + $0x6c0] sm:$0xff]
    %v5713 = vld [vmem:[%s51 + $0x6c8] sm:$0xff]
    %v5714 = vld [vmem:[%s51 + $0x6d0] sm:$0xff]
    %v5715 = vld [vmem:[%s51 + $0x6d8] sm:$0xff]
    %v5716 = vld [vmem:[%s51 + $0x6e0] sm:$0xff]
    %v5717 = vld [vmem:[%s51 + $0x6e8] sm:$0xff]
    %v5718 = vld [vmem:[%s51 + $0x6f0] sm:$0xff]
    %v5719 = vld [vmem:[%s51 + $0x6f8] sm:$0xff]
    %v5720 = vld [vmem:[%s51 + $0x700] sm:$0xff]
    %v5721 = vld [vmem:[%s51 + $0x708] sm:$0xff]
    %v5722 = vld [vmem:[%s51 + $0x710] sm:$0xff]
    %v5723 = vld [vmem:[%s51 + $0x718] sm:$0xff]
    %v5724 = vld [vmem:[%s51 + $0x720] sm:$0xff]
    %v5725 = vld [vmem:[%s51 + $0x728] sm:$0xff]
    %v5726 = vld [vmem:[%s51 + $0x730] sm:$0xff]
    %v5727 = vld [vmem:[%s51 + $0x738] sm:$0xff]
    %v5728 = vld [vmem:[%s51 + $0x740] sm:$0xff]
    %v5729 = vld [vmem:[%s51 + $0x748] sm:$0xff]
    %v5730 = vld [vmem:[%s51 + $0x750] sm:$0xff]
    %v5731 = vld [vmem:[%s51 + $0x758] sm:$0xff]
    %v5732 = vld [vmem:[%s51 + $0x760] sm:$0xff]
    %v5733 = vld [vmem:[%s51 + $0x768] sm:$0xff]
    %v5734 = vld [vmem:[%s51 + $0x770] sm:$0xff]
    %v5735 = vld [vmem:[%s51 + $0x778] sm:$0xff]
    %v5736 = vld [vmem:[%s51 + $0x780] sm:$0xff]
    %v5737 = vld [vmem:[%s51 + $0x788] sm:$0xff]
    %v5738 = vld [vmem:[%s51 + $0x790] sm:$0xff]
    %v5739 = vld [vmem:[%s51 + $0x798] sm:$0xff]
    %v5740 = vld [vmem:[%s51 + $0x7a0] sm:$0xff]
    %v5741 = vld [vmem:[%s51 + $0x7a8] sm:$0xff]
    %v5742 = vld [vmem:[%s51 + $0x7b0] sm:$0xff]
    %v5743 = vld [vmem:[%s51 + $0x7b8] sm:$0xff]
    %v5744 = vld [vmem:[%s51 + $0x7c0] sm:$0xff]
    %v5745 = vld [vmem:[%s51 + $0x7c8] sm:$0xff]
    %v5746 = vld [vmem:[%s51 + $0x7d0] sm:$0xff]
    %v5747 = vld [vmem:[%s51 + $0x7d8] sm:$0xff]
    %v5748 = vld [vmem:[%s51 + $0x7e0] sm:$0xff]
    %v5749 = vld [vmem:[%s51 + $0x7e8] sm:$0xff]
    %v5750 = vld [vmem:[%s51 + $0x7f0] sm:$0xff]
    %v5751 = vld [vmem:[%s51 + $0x7f8] sm:$0xff]
    %v5752 = vld [vmem:[%s51 + $0x800] sm:$0xff]
    %v5753 = vld [vmem:[%s51 + $0x808] sm:$0xff]
    %v5754 = vld [vmem:[%s51 + $0x810] sm:$0xff]
    %v5755 = vld [vmem:[%s51 + $0x818] sm:$0xff]
    %v5756 = vld [vmem:[%s51 + $0x820] sm:$0xff]
    %v5757 = vld [vmem:[%s51 + $0x828] sm:$0xff]
    %v5758 = vld [vmem:[%s51 + $0x830] sm:$0xff]
    %v5759 = vld [vmem:[%s51 + $0x838] sm:$0xff]
    %v5760 = vld [vmem:[%s51 + $0x840] sm:$0xff]
    %v5761 = vld [vmem:[%s51 + $0x848] sm:$0xff]
    %v5762 = vld [vmem:[%s51 + $0x850] sm:$0xff]
    %v5763 = vld [vmem:[%s51 + $0x858] sm:$0xff]
    %v5764 = vld [vmem:[%s51 + $0x860] sm:$0xff]
    %v5765 = vld [vmem:[%s51 + $0x868] sm:$0xff]
    %v5766 = vld [vmem:[%s51 + $0x870] sm:$0xff]
    %v5767 = vld [vmem:[%s51 + $0x878] sm:$0xff]
    %v5768 = vld [vmem:[%s51 + $0x880] sm:$0xff]
    %v5769 = vld [vmem:[%s51 + $0x888] sm:$0xff]
    %v5770 = vld [vmem:[%s51 + $0x890] sm:$0xff]
    %v5771 = vld [vmem:[%s51 + $0x898] sm:$0xff]
    %v5772 = vld [vmem:[%s51 + $0x8a0] sm:$0xff]
    %v5773 = vld [vmem:[%s51 + $0x8a8] sm:$0xff]
    %v5774 = vld [vmem:[%s51 + $0x8b0] sm:$0xff]
    %v5775 = vld [vmem:[%s51 + $0x8b8] sm:$0xff]
    %v5776 = vld [vmem:[%s51 + $0x8c0] sm:$0xff]
    %v5777 = vld [vmem:[%s51 + $0x8c8] sm:$0xff]
    %v5778 = vld [vmem:[%s51 + $0x8d0] sm:$0xff]
    %v5779 = vld [vmem:[%s51 + $0x8d8] sm:$0xff]
    %v5780 = vld [vmem:[%s51 + $0x8e0] sm:$0xff]
    %v5781 = vld [vmem:[%s51 + $0x8e8] sm:$0xff]
    %v5782 = vld [vmem:[%s51 + $0x8f0] sm:$0xff]
    %v5783 = vld [vmem:[%s51 + $0x8f8] sm:$0xff]
    %v5784 = vld [vmem:[%s51 + $0x900] sm:$0xff]
    %v5785 = vld [vmem:[%s51 + $0x908] sm:$0xff]
    %v5786 = vld [vmem:[%s51 + $0x910] sm:$0xff]
    %v5787 = vld [vmem:[%s51 + $0x918] sm:$0xff]
    %v5788 = vld [vmem:[%s51 + $0x920] sm:$0xff]
    %v5789 = vld [vmem:[%s51 + $0x928] sm:$0xff]
    %v5790 = vld [vmem:[%s51 + $0x930] sm:$0xff]
    %v5791 = vld [vmem:[%s51 + $0x938] sm:$0xff]
    %v5792 = vld [vmem:[%s51 + $0x940] sm:$0xff]
    %v5793 = vld [vmem:[%s51 + $0x948] sm:$0xff]
    %v5794 = vld [vmem:[%s51 + $0x950] sm:$0xff]
    %v5795 = vld [vmem:[%s51 + $0x958] sm:$0xff]
    %v5796 = vld [vmem:[%s51 + $0x960] sm:$0xff]
    %v5797 = vld [vmem:[%s51 + $0x968] sm:$0xff]
    %v5798 = vld [vmem:[%s51 + $0x970] sm:$0xff]
    %v5799 = vld [vmem:[%s51 + $0x978] sm:$0xff]
    %v5800 = vld [vmem:[%s51 + $0x980] sm:$0xff]
    %v5801 = vld [vmem:[%s51 + $0x988] sm:$0xff]
    %v5802 = vld [vmem:[%s51 + $0x990] sm:$0xff]
    %v5803 = vld [vmem:[%s51 + $0x998] sm:$0xff]
    %v5804 = vld [vmem:[%s51 + $0x9a0] sm:$0xff]
    %v5805 = vld [vmem:[%s51 + $0x9a8] sm:$0xff]
    %v5806 = vld [vmem:[%s51 + $0x9b0] sm:$0xff]
    %v5807 = vld [vmem:[%s51 + $0x9b8] sm:$0xff]
    %v5808 = vld [vmem:[%s51 + $0x9c0] sm:$0xff]
    %v5809 = vld [vmem:[%s51 + $0x9c8] sm:$0xff]
    %v5810 = vld [vmem:[%s51 + $0x9d0] sm:$0xff]
    %v5811 = vld [vmem:[%s51 + $0x9d8] sm:$0xff]
    %v5812 = vld [vmem:[%s51 + $0x9e0] sm:$0xff]
    %v5813 = vld [vmem:[%s51 + $0x9e8] sm:$0xff]
    %v5814 = vld [vmem:[%s51 + $0x9f0] sm:$0xff]
    %v5815 = vld [vmem:[%s51 + $0x9f8] sm:$0xff]
    %v5816 = vld [vmem:[%s51 + $0xa00] sm:$0xff]
    %v5817 = vld [vmem:[%s51 + $0xa08] sm:$0xff]
    %v5818 = vld [vmem:[%s51 + $0xa10] sm:$0xff]
    %v5819 = vld [vmem:[%s51 + $0xa18] sm:$0xff]
    %v5820 = vld [vmem:[%s51 + $0xa20] sm:$0xff]
    %v5821 = vld [vmem:[%s51 + $0xa28] sm:$0xff]
    %v5822 = vld [vmem:[%s51 + $0xa30] sm:$0xff]
    %v5823 = vld [vmem:[%s51 + $0xa38] sm:$0xff]
    %v5824 = vld [vmem:[%s51 + $0xa40] sm:$0xff]
    %v5825 = vld [vmem:[%s51 + $0xa48] sm:$0xff]
    %v5826 = vld [vmem:[%s51 + $0xa50] sm:$0xff]
    %v5827 = vld [vmem:[%s51 + $0xa58] sm:$0xff]
    %v5828 = vld [vmem:[%s51 + $0xa60] sm:$0xff]
    %v5829 = vld [vmem:[%s51 + $0xa68] sm:$0xff]
    %v5830 = vld [vmem:[%s51 + $0xa70] sm:$0xff]
    %v5831 = vld [vmem:[%s51 + $0xa78] sm:$0xff]
    %v5832 = vld [vmem:[%s51 + $0xa80] sm:$0xff]
    %v5833 = vld [vmem:[%s51 + $0xa88] sm:$0xff]
    %v5834 = vld [vmem:[%s51 + $0xa90] sm:$0xff]
    %v5835 = vld [vmem:[%s51 + $0xa98] sm:$0xff]
    %v5836 = vld [vmem:[%s51 + $0xaa0] sm:$0xff]
    %v5837 = vld [vmem:[%s51 + $0xaa8] sm:$0xff]
    %v5838 = vld [vmem:[%s51 + $0xab0] sm:$0xff]
    %v5839 = vld [vmem:[%s51 + $0xab8] sm:$0xff]
    %v5840 = vld [vmem:[%s51 + $0xac0] sm:$0xff]
    %v5841 = vld [vmem:[%s51 + $0xac8] sm:$0xff]
    %v5842 = vld [vmem:[%s51 + $0xad0] sm:$0xff]
    %v5843 = vld [vmem:[%s51 + $0xad8] sm:$0xff]
    %v5844 = vld [vmem:[%s51 + $0xae0] sm:$0xff]
    %v5845 = vld [vmem:[%s51 + $0xae8] sm:$0xff]
    %v5846 = vld [vmem:[%s51 + $0xaf0] sm:$0xff]
    %v5847 = vld [vmem:[%s51 + $0xaf8] sm:$0xff]
    %v5848 = vld [vmem:[%s51 + $0xb00] sm:$0xff]
    %v5849 = vld [vmem:[%s51 + $0xb08] sm:$0xff]
    %v5850 = vld [vmem:[%s51 + $0xb10] sm:$0xff]
    %v5851 = vld [vmem:[%s51 + $0xb18] sm:$0xff]
    %v5852 = vld [vmem:[%s51 + $0xb20] sm:$0xff]
    %v5853 = vld [vmem:[%s51 + $0xb28] sm:$0xff]
    %v5854 = vld [vmem:[%s51 + $0xb30] sm:$0xff]
    %v5855 = vld [vmem:[%s51 + $0xb38] sm:$0xff]
    %v5856 = vld [vmem:[%s51 + $0xb40] sm:$0xff]
    %v5857 = vld [vmem:[%s51 + $0xb48] sm:$0xff]
    %v5858 = vld [vmem:[%s51 + $0xb50] sm:$0xff]
    %v5859 = vld [vmem:[%s51 + $0xb58] sm:$0xff]
    %v5860 = vld [vmem:[%s51 + $0xb60] sm:$0xff]
    %v5861 = vld [vmem:[%s51 + $0xb68] sm:$0xff]
    %v5862 = vld [vmem:[%s51 + $0xb70] sm:$0xff]
    %v5863 = vld [vmem:[%s51 + $0xb78] sm:$0xff]
    %v5864 = vld [vmem:[%s51 + $0xb80] sm:$0xff]
    %v5865 = vld [vmem:[%s51 + $0xb88] sm:$0xff]
    %v5866 = vld [vmem:[%s51 + $0xb90] sm:$0xff]
    %v5867 = vld [vmem:[%s51 + $0xb98] sm:$0xff]
    %v5868 = vld [vmem:[%s51 + $0xba0] sm:$0xff]
    %v5869 = vld [vmem:[%s51 + $0xba8] sm:$0xff]
    %v5870 = vld [vmem:[%s51 + $0xbb0] sm:$0xff]
    %v5871 = vld [vmem:[%s51 + $0xbb8] sm:$0xff]
    %v5872 = vld [vmem:[%s51 + $0xbc0] sm:$0xff]
    %v5873 = vld [vmem:[%s51 + $0xbc8] sm:$0xff]
    %v5874 = vld [vmem:[%s51 + $0xbd0] sm:$0xff]
    %v5875 = vld [vmem:[%s51 + $0xbd8] sm:$0xff]
    %v5876 = vld [vmem:[%s51 + $0xbe0] sm:$0xff]
    %v5877 = vld [vmem:[%s51 + $0xbe8] sm:$0xff]
    %v5878 = vld [vmem:[%s51 + $0xbf0] sm:$0xff]
    %v5879 = vld [vmem:[%s51 + $0xbf8] sm:$0xff]
    %v5880 = vld [vmem:[%s51 + $0xc00] sm:$0xff]
    %v5881 = vld [vmem:[%s51 + $0xc08] sm:$0xff]
    %v5882 = vld [vmem:[%s51 + $0xc10] sm:$0xff]
    %v5883 = vld [vmem:[%s51 + $0xc18] sm:$0xff]
    %v5884 = vld [vmem:[%s51 + $0xc20] sm:$0xff]
    %v5885 = vld [vmem:[%s51 + $0xc28] sm:$0xff]
    %v5886 = vld [vmem:[%s51 + $0xc30] sm:$0xff]
    %v5887 = vld [vmem:[%s51 + $0xc38] sm:$0xff]
    %v5888 = vld [vmem:[%s51 + $0xc40] sm:$0xff]
    %v5889 = vld [vmem:[%s51 + $0xc48] sm:$0xff]
    %v5890 = vld [vmem:[%s51 + $0xc50] sm:$0xff]
    %v5891 = vld [vmem:[%s51 + $0xc58] sm:$0xff]
    %v5892 = vld [vmem:[%s51 + $0xc60] sm:$0xff]
    %v5893 = vld [vmem:[%s51 + $0xc68] sm:$0xff]
    %v5894 = vld [vmem:[%s51 + $0xc70] sm:$0xff]
    %v5895 = vld [vmem:[%s51 + $0xc78] sm:$0xff]
    %v5896 = vld [vmem:[%s51 + $0xc80] sm:$0xff]
    %v5897 = vld [vmem:[%s51 + $0xc88] sm:$0xff]
    %v5898 = vld [vmem:[%s51 + $0xc90] sm:$0xff]
    %v5899 = vld [vmem:[%s51 + $0xc98] sm:$0xff]
    %v5900 = vld [vmem:[%s51 + $0xca0] sm:$0xff]
    %v5901 = vld [vmem:[%s51 + $0xca8] sm:$0xff]
    %v5902 = vld [vmem:[%s51 + $0xcb0] sm:$0xff]
    %v5903 = vld [vmem:[%s51 + $0xcb8] sm:$0xff]
    %v5904 = vld [vmem:[%s51 + $0xcc0] sm:$0xff]
    %v5905 = vld [vmem:[%s51 + $0xcc8] sm:$0xff]
    %v5906 = vld [vmem:[%s51 + $0xcd0] sm:$0xff]
    %v5907 = vld [vmem:[%s51 + $0xcd8] sm:$0xff]
    %v5908 = vld [vmem:[%s51 + $0xce0] sm:$0xff]
    %v5909 = vld [vmem:[%s51 + $0xce8] sm:$0xff]
    %v5910 = vld [vmem:[%s51 + $0xcf0] sm:$0xff]
    %v5911 = vld [vmem:[%s51 + $0xcf8] sm:$0xff]
    %v5912 = vld [vmem:[%s51 + $0xd00] sm:$0xff]
    %v5913 = vld [vmem:[%s51 + $0xd08] sm:$0xff]
    %v5914 = vld [vmem:[%s51 + $0xd10] sm:$0xff]
    %v5915 = vld [vmem:[%s51 + $0xd18] sm:$0xff]
    %v5916 = vld [vmem:[%s51 + $0xd20] sm:$0xff]
    %v5917 = vld [vmem:[%s51 + $0xd28] sm:$0xff]
    %v5918 = vld [vmem:[%s51 + $0xd30] sm:$0xff]
    %v5919 = vld [vmem:[%s51 + $0xd38] sm:$0xff]
    %v5920 = vld [vmem:[%s51 + $0xd40] sm:$0xff]
    %v5921 = vld [vmem:[%s51 + $0xd48] sm:$0xff]
    %v5922 = vld [vmem:[%s51 + $0xd50] sm:$0xff]
    %v5923 = vld [vmem:[%s51 + $0xd58] sm:$0xff]
    %v5924 = vld [vmem:[%s51 + $0xd60] sm:$0xff]
    %v5925 = vld [vmem:[%s51 + $0xd68] sm:$0xff]
    %v5926 = vld [vmem:[%s51 + $0xd70] sm:$0xff]
    %v5927 = vld [vmem:[%s51 + $0xd78] sm:$0xff]
    %v5928 = vld [vmem:[%s51 + $0xd80] sm:$0xff]
    %v5929 = vld [vmem:[%s51 + $0xd88] sm:$0xff]
    %v5930 = vld [vmem:[%s51 + $0xd90] sm:$0xff]
    %v5931 = vld [vmem:[%s51 + $0xd98] sm:$0xff]
    %v5932 = vld [vmem:[%s51 + $0xda0] sm:$0xff]
    %v5933 = vld [vmem:[%s51 + $0xda8] sm:$0xff]
    %v5934 = vld [vmem:[%s51 + $0xdb0] sm:$0xff]
    %v5935 = vld [vmem:[%s51 + $0xdb8] sm:$0xff]
    %v5936 = vld [vmem:[%s51 + $0xdc0] sm:$0xff]
    %v5937 = vld [vmem:[%s51 + $0xdc8] sm:$0xff]
    %v5938 = vld [vmem:[%s51 + $0xdd0] sm:$0xff]
    %v5939 = vld [vmem:[%s51 + $0xdd8] sm:$0xff]
    %v5940 = vld [vmem:[%s51 + $0xde0] sm:$0xff]
    %v5941 = vld [vmem:[%s51 + $0xde8] sm:$0xff]
    %v5942 = vld [vmem:[%s51 + $0xdf0] sm:$0xff]
    %v5943 = vld [vmem:[%s51 + $0xdf8] sm:$0xff]
    %v5944 = vld [vmem:[%s51 + $0xe00] sm:$0xff]
    %v5945 = vld [vmem:[%s51 + $0xe08] sm:$0xff]
    %v5946 = vld [vmem:[%s51 + $0xe10] sm:$0xff]
    %v5947 = vld [vmem:[%s51 + $0xe18] sm:$0xff]
    %v5948 = vld [vmem:[%s51 + $0xe20] sm:$0xff]
    %v5949 = vld [vmem:[%s51 + $0xe28] sm:$0xff]
    %v5950 = vld [vmem:[%s51 + $0xe30] sm:$0xff]
    %v5951 = vld [vmem:[%s51 + $0xe38] sm:$0xff]
    %v5952 = vld [vmem:[%s51 + $0xe40] sm:$0xff]
    %v5953 = vld [vmem:[%s51 + $0xe48] sm:$0xff]
    %v5954 = vld [vmem:[%s51 + $0xe50] sm:$0xff]
    %v5955 = vld [vmem:[%s51 + $0xe58] sm:$0xff]
    %v5956 = vld [vmem:[%s51 + $0xe60] sm:$0xff]
    %v5957 = vld [vmem:[%s51 + $0xe68] sm:$0xff]
    %v5958 = vld [vmem:[%s51 + $0xe70] sm:$0xff]
    %v5959 = vld [vmem:[%s51 + $0xe78] sm:$0xff]
    %v5960 = vld [vmem:[%s51 + $0xe80] sm:$0xff]
    %v5961 = vld [vmem:[%s51 + $0xe88] sm:$0xff]
    %v5962 = vld [vmem:[%s51 + $0xe90] sm:$0xff]
    %v5963 = vld [vmem:[%s51 + $0xe98] sm:$0xff]
    %v5964 = vld [vmem:[%s51 + $0xea0] sm:$0xff]
    %v5965 = vld [vmem:[%s51 + $0xea8] sm:$0xff]
    %v5966 = vld [vmem:[%s51 + $0xeb0] sm:$0xff]
    %v5967 = vld [vmem:[%s51 + $0xeb8] sm:$0xff]
    %v5968 = vld [vmem:[%s51 + $0xec0] sm:$0xff]
    %v5969 = vld [vmem:[%s51 + $0xec8] sm:$0xff]
    %v5970 = vld [vmem:[%s51 + $0xed0] sm:$0xff]
    %v5971 = vld [vmem:[%s51 + $0xed8] sm:$0xff]
    %v5972 = vld [vmem:[%s51 + $0xee0] sm:$0xff]
    %v5973 = vld [vmem:[%s51 + $0xee8] sm:$0xff]
    %v5974 = vld [vmem:[%s51 + $0xef0] sm:$0xff]
    %v5975 = vld [vmem:[%s51 + $0xef8] sm:$0xff]
    %v5976 = vld [vmem:[%s51 + $0xf00] sm:$0xff]
    %v5977 = vld [vmem:[%s51 + $0xf08] sm:$0xff]
    %v5978 = vld [vmem:[%s51 + $0xf10] sm:$0xff]
    %v5979 = vld [vmem:[%s51 + $0xf18] sm:$0xff]
    %v5980 = vld [vmem:[%s51 + $0xf20] sm:$0xff]
    %v5981 = vld [vmem:[%s51 + $0xf28] sm:$0xff]
    %v5982 = vld [vmem:[%s51 + $0xf30] sm:$0xff]
    %v5983 = vld [vmem:[%s51 + $0xf38] sm:$0xff]
    %v5984 = vld [vmem:[%s51 + $0xf40] sm:$0xff]
    %v5985 = vld [vmem:[%s51 + $0xf48] sm:$0xff]
    %v5986 = vld [vmem:[%s51 + $0xf50] sm:$0xff]
    %v5987 = vld [vmem:[%s51 + $0xf58] sm:$0xff]
    %v5988 = vld [vmem:[%s51 + $0xf60] sm:$0xff]
    %v5989 = vld [vmem:[%s51 + $0xf68] sm:$0xff]
    %v5990 = vld [vmem:[%s51 + $0xf70] sm:$0xff]
    %v5991 = vld [vmem:[%s51 + $0xf78] sm:$0xff]
    %v5992 = vld [vmem:[%s51 + $0xf80] sm:$0xff]
    %v5993 = vld [vmem:[%s51 + $0xf88] sm:$0xff]
    %v5994 = vld [vmem:[%s51 + $0xf90] sm:$0xff]
    %v5995 = vld [vmem:[%s51 + $0xf98] sm:$0xff]
    %v5996 = vld [vmem:[%s51 + $0xfa0] sm:$0xff]
    %v5997 = vld [vmem:[%s51 + $0xfa8] sm:$0xff]
    %v5998 = vld [vmem:[%s51 + $0xfb0] sm:$0xff]
    %v5999 = vld [vmem:[%s51 + $0xfb8] sm:$0xff]
    %v6000 = vld [vmem:[%s51 + $0xfc0] sm:$0xff]
    %v6001 = vld [vmem:[%s51 + $0xfc8] sm:$0xff]
    %v6002 = vld [vmem:[%s51 + $0xfd0] sm:$0xff]
    %v6003 = vld [vmem:[%s51 + $0xfd8] sm:$0xff]
    %v6004 = vld [vmem:[%s51 + $0xfe0] sm:$0xff]
    %v6005 = vld [vmem:[%s51 + $0xfe8] sm:$0xff]
    %v6006 = vld [vmem:[%s51 + $0xff0] sm:$0xff]
    %v6007 = vld [vmem:[%s51 + $0xff8] sm:$0xff]
    %v6008 = vld [vmem:[%s53] sm:$0xff]
    %v6010 = vlaneseq
    %v6011 = vshrl.u32 %v6010, 7
    %v6012 = vsub.s32 0, %v6011
    %v6013 = vrot.slane %v6008, %v6012
    %v6014 = vlaneseq
    %v6015 = vshrl.u32 %v6014, 7
    %v6016 = vsub.s32 1, %v6015
    %v6017 = vrot.slane %v6008, %v6016
    %v6018 = vlaneseq
    %v6019 = vshrl.u32 %v6018, 7
    %v6020 = vsub.s32 2, %v6019
    %v6021 = vrot.slane %v6008, %v6020
    %v6022 = vlaneseq
    %v6023 = vshrl.u32 %v6022, 7
    %v6024 = vsub.s32 3, %v6023
    %v6025 = vrot.slane %v6008, %v6024
    %v6026 = vlaneseq
    %v6027 = vshrl.u32 %v6026, 7
    %v6028 = vsub.s32 4, %v6027
    %v6029 = vrot.slane %v6008, %v6028
    %v6030 = vlaneseq
    %v6031 = vshrl.u32 %v6030, 7
    %v6032 = vsub.s32 5, %v6031
    %v6033 = vrot.slane %v6008, %v6032
    %v6034 = vlaneseq
    %v6035 = vshrl.u32 %v6034, 7
    %v6036 = vsub.s32 6, %v6035
    %v6037 = vrot.slane %v6008, %v6036
    %v6038 = vlaneseq
    %v6039 = vshrl.u32 %v6038, 7
    %v6040 = vsub.s32 7, %v6039
    %v6041 = vrot.slane %v6008, %v6040
    %v6562 = vunpack.c.l.b16 %v5496
    %v6563 = vunpack.c.h.b16 %v5496
    %v6564 = vunpack.c.l.b16 %v5497
    %v6565 = vunpack.c.h.b16 %v5497
    %v6566 = vunpack.c.l.b16 %v5498
    %v6567 = vunpack.c.h.b16 %v5498
    %v6568 = vunpack.c.l.b16 %v5499
    %v6569 = vunpack.c.h.b16 %v5499
    %v6570 = vunpack.c.l.b16 %v5500
    %v6571 = vunpack.c.h.b16 %v5500
    %v6572 = vunpack.c.l.b16 %v5501
    %v6573 = vunpack.c.h.b16 %v5501
    %v6574 = vunpack.c.l.b16 %v5502
    %v6575 = vunpack.c.h.b16 %v5502
    %v6576 = vunpack.c.l.b16 %v5503
    %v6577 = vunpack.c.h.b16 %v5503
    %v6578 = vunpack.c.l.b16 %v5504
    %v6579 = vunpack.c.h.b16 %v5504
    %v6580 = vunpack.c.l.b16 %v5505
    %v6581 = vunpack.c.h.b16 %v5505
    %v6582 = vunpack.c.l.b16 %v5506
    %v6583 = vunpack.c.h.b16 %v5506
    %v6584 = vunpack.c.l.b16 %v5507
    %v6585 = vunpack.c.h.b16 %v5507
    %v6586 = vunpack.c.l.b16 %v5508
    %v6587 = vunpack.c.h.b16 %v5508
    %v6588 = vunpack.c.l.b16 %v5509
    %v6589 = vunpack.c.h.b16 %v5509
    %v6590 = vunpack.c.l.b16 %v5510
    %v6591 = vunpack.c.h.b16 %v5510
    %v6592 = vunpack.c.l.b16 %v5511
    %v6593 = vunpack.c.h.b16 %v5511
    %v6594 = vunpack.c.l.b16 %v5512
    %v6595 = vunpack.c.h.b16 %v5512
    %v6596 = vunpack.c.l.b16 %v5513
    %v6597 = vunpack.c.h.b16 %v5513
    %v6598 = vunpack.c.l.b16 %v5514
    %v6599 = vunpack.c.h.b16 %v5514
    %v6600 = vunpack.c.l.b16 %v5515
    %v6601 = vunpack.c.h.b16 %v5515
    %v6602 = vunpack.c.l.b16 %v5516
    %v6603 = vunpack.c.h.b16 %v5516
    %v6604 = vunpack.c.l.b16 %v5517
    %v6605 = vunpack.c.h.b16 %v5517
    %v6606 = vunpack.c.l.b16 %v5518
    %v6607 = vunpack.c.h.b16 %v5518
    %v6608 = vunpack.c.l.b16 %v5519
    %v6609 = vunpack.c.h.b16 %v5519
    %v6610 = vunpack.c.l.b16 %v5520
    %v6611 = vunpack.c.h.b16 %v5520
    %v6612 = vunpack.c.l.b16 %v5521
    %v6613 = vunpack.c.h.b16 %v5521
    %v6614 = vunpack.c.l.b16 %v5522
    %v6615 = vunpack.c.h.b16 %v5522
    %v6616 = vunpack.c.l.b16 %v5523
    %v6617 = vunpack.c.h.b16 %v5523
    %v6618 = vunpack.c.l.b16 %v5524
    %v6619 = vunpack.c.h.b16 %v5524
    %v6620 = vunpack.c.l.b16 %v5525
    %v6621 = vunpack.c.h.b16 %v5525
    %v6622 = vunpack.c.l.b16 %v5526
    %v6623 = vunpack.c.h.b16 %v5526
    %v6624 = vunpack.c.l.b16 %v5527
    %v6625 = vunpack.c.h.b16 %v5527
    %v6626 = vunpack.c.l.b16 %v5528
    %v6627 = vunpack.c.h.b16 %v5528
    %v6628 = vunpack.c.l.b16 %v5529
    %v6629 = vunpack.c.h.b16 %v5529
    %v6630 = vunpack.c.l.b16 %v5530
    %v6631 = vunpack.c.h.b16 %v5530
    %v6632 = vunpack.c.l.b16 %v5531
    %v6633 = vunpack.c.h.b16 %v5531
    %v6634 = vunpack.c.l.b16 %v5532
    %v6635 = vunpack.c.h.b16 %v5532
    %v6636 = vunpack.c.l.b16 %v5533
    %v6637 = vunpack.c.h.b16 %v5533
    %v6638 = vunpack.c.l.b16 %v5534
    %v6639 = vunpack.c.h.b16 %v5534
    %v6640 = vunpack.c.l.b16 %v5535
    %v6641 = vunpack.c.h.b16 %v5535
    %v6642 = vunpack.c.l.b16 %v5536
    %v6643 = vunpack.c.h.b16 %v5536
    %v6644 = vunpack.c.l.b16 %v5537
    %v6645 = vunpack.c.h.b16 %v5537
    %v6646 = vunpack.c.l.b16 %v5538
    %v6647 = vunpack.c.h.b16 %v5538
    %v6648 = vunpack.c.l.b16 %v5539
    %v6649 = vunpack.c.h.b16 %v5539
    %v6650 = vunpack.c.l.b16 %v5540
    %v6651 = vunpack.c.h.b16 %v5540
    %v6652 = vunpack.c.l.b16 %v5541
    %v6653 = vunpack.c.h.b16 %v5541
    %v6654 = vunpack.c.l.b16 %v5542
    %v6655 = vunpack.c.h.b16 %v5542
    %v6656 = vunpack.c.l.b16 %v5543
    %v6657 = vunpack.c.h.b16 %v5543
    %v6658 = vunpack.c.l.b16 %v5544
    %v6659 = vunpack.c.h.b16 %v5544
    %v6660 = vunpack.c.l.b16 %v5545
    %v6661 = vunpack.c.h.b16 %v5545
    %v6662 = vunpack.c.l.b16 %v5546
    %v6663 = vunpack.c.h.b16 %v5546
    %v6664 = vunpack.c.l.b16 %v5547
    %v6665 = vunpack.c.h.b16 %v5547
    %v6666 = vunpack.c.l.b16 %v5548
    %v6667 = vunpack.c.h.b16 %v5548
    %v6668 = vunpack.c.l.b16 %v5549
    %v6669 = vunpack.c.h.b16 %v5549
    %v6670 = vunpack.c.l.b16 %v5550
    %v6671 = vunpack.c.h.b16 %v5550
    %v6672 = vunpack.c.l.b16 %v5551
    %v6673 = vunpack.c.h.b16 %v5551
    %v6674 = vunpack.c.l.b16 %v5552
    %v6675 = vunpack.c.h.b16 %v5552
    %v6676 = vunpack.c.l.b16 %v5553
    %v6677 = vunpack.c.h.b16 %v5553
    %v6678 = vunpack.c.l.b16 %v5554
    %v6679 = vunpack.c.h.b16 %v5554
    %v6680 = vunpack.c.l.b16 %v5555
    %v6681 = vunpack.c.h.b16 %v5555
    %v6682 = vunpack.c.l.b16 %v5556
    %v6683 = vunpack.c.h.b16 %v5556
    %v6684 = vunpack.c.l.b16 %v5557
    %v6685 = vunpack.c.h.b16 %v5557
    %v6686 = vunpack.c.l.b16 %v5558
    %v6687 = vunpack.c.h.b16 %v5558
    %v6688 = vunpack.c.l.b16 %v5559
    %v6689 = vunpack.c.h.b16 %v5559
    %v6690 = vunpack.c.l.b16 %v5560
    %v6691 = vunpack.c.h.b16 %v5560
    %v6692 = vunpack.c.l.b16 %v5561
    %v6693 = vunpack.c.h.b16 %v5561
    %v6694 = vunpack.c.l.b16 %v5562
    %v6695 = vunpack.c.h.b16 %v5562
    %v6696 = vunpack.c.l.b16 %v5563
    %v6697 = vunpack.c.h.b16 %v5563
    %v6698 = vunpack.c.l.b16 %v5564
    %v6699 = vunpack.c.h.b16 %v5564
    %v6700 = vunpack.c.l.b16 %v5565
    %v6701 = vunpack.c.h.b16 %v5565
    %v6702 = vunpack.c.l.b16 %v5566
    %v6703 = vunpack.c.h.b16 %v5566
    %v6704 = vunpack.c.l.b16 %v5567
    %v6705 = vunpack.c.h.b16 %v5567
    %v6706 = vunpack.c.l.b16 %v5568
    %v6707 = vunpack.c.h.b16 %v5568
    %v6708 = vunpack.c.l.b16 %v5569
    %v6709 = vunpack.c.h.b16 %v5569
    %v6710 = vunpack.c.l.b16 %v5570
    %v6711 = vunpack.c.h.b16 %v5570
    %v6712 = vunpack.c.l.b16 %v5571
    %v6713 = vunpack.c.h.b16 %v5571
    %v6714 = vunpack.c.l.b16 %v5572
    %v6715 = vunpack.c.h.b16 %v5572
    %v6716 = vunpack.c.l.b16 %v5573
    %v6717 = vunpack.c.h.b16 %v5573
    %v6718 = vunpack.c.l.b16 %v5574
    %v6719 = vunpack.c.h.b16 %v5574
    %v6720 = vunpack.c.l.b16 %v5575
    %v6721 = vunpack.c.h.b16 %v5575
    %v6722 = vunpack.c.l.b16 %v5576
    %v6723 = vunpack.c.h.b16 %v5576
    %v6724 = vunpack.c.l.b16 %v5577
    %v6725 = vunpack.c.h.b16 %v5577
    %v6726 = vunpack.c.l.b16 %v5578
    %v6727 = vunpack.c.h.b16 %v5578
    %v6728 = vunpack.c.l.b16 %v5579
    %v6729 = vunpack.c.h.b16 %v5579
    %v6730 = vunpack.c.l.b16 %v5580
    %v6731 = vunpack.c.h.b16 %v5580
    %v6732 = vunpack.c.l.b16 %v5581
    %v6733 = vunpack.c.h.b16 %v5581
    %v6734 = vunpack.c.l.b16 %v5582
    %v6735 = vunpack.c.h.b16 %v5582
    %v6736 = vunpack.c.l.b16 %v5583
    %v6737 = vunpack.c.h.b16 %v5583
    %v6738 = vunpack.c.l.b16 %v5584
    %v6739 = vunpack.c.h.b16 %v5584
    %v6740 = vunpack.c.l.b16 %v5585
    %v6741 = vunpack.c.h.b16 %v5585
    %v6742 = vunpack.c.l.b16 %v5586
    %v6743 = vunpack.c.h.b16 %v5586
    %v6744 = vunpack.c.l.b16 %v5587
    %v6745 = vunpack.c.h.b16 %v5587
    %v6746 = vunpack.c.l.b16 %v5588
    %v6747 = vunpack.c.h.b16 %v5588
    %v6748 = vunpack.c.l.b16 %v5589
    %v6749 = vunpack.c.h.b16 %v5589
    %v6750 = vunpack.c.l.b16 %v5590
    %v6751 = vunpack.c.h.b16 %v5590
    %v6752 = vunpack.c.l.b16 %v5591
    %v6753 = vunpack.c.h.b16 %v5591
    %v6754 = vunpack.c.l.b16 %v5592
    %v6755 = vunpack.c.h.b16 %v5592
    %v6756 = vunpack.c.l.b16 %v5593
    %v6757 = vunpack.c.h.b16 %v5593
    %v6758 = vunpack.c.l.b16 %v5594
    %v6759 = vunpack.c.h.b16 %v5594
    %v6760 = vunpack.c.l.b16 %v5595
    %v6761 = vunpack.c.h.b16 %v5595
    %v6762 = vunpack.c.l.b16 %v5596
    %v6763 = vunpack.c.h.b16 %v5596
    %v6764 = vunpack.c.l.b16 %v5597
    %v6765 = vunpack.c.h.b16 %v5597
    %v6766 = vunpack.c.l.b16 %v5598
    %v6767 = vunpack.c.h.b16 %v5598
    %v6768 = vunpack.c.l.b16 %v5599
    %v6769 = vunpack.c.h.b16 %v5599
    %v6770 = vunpack.c.l.b16 %v5600
    %v6771 = vunpack.c.h.b16 %v5600
    %v6772 = vunpack.c.l.b16 %v5601
    %v6773 = vunpack.c.h.b16 %v5601
    %v6774 = vunpack.c.l.b16 %v5602
    %v6775 = vunpack.c.h.b16 %v5602
    %v6776 = vunpack.c.l.b16 %v5603
    %v6777 = vunpack.c.h.b16 %v5603
    %v6778 = vunpack.c.l.b16 %v5604
    %v6779 = vunpack.c.h.b16 %v5604
    %v6780 = vunpack.c.l.b16 %v5605
    %v6781 = vunpack.c.h.b16 %v5605
    %v6782 = vunpack.c.l.b16 %v5606
    %v6783 = vunpack.c.h.b16 %v5606
    %v6784 = vunpack.c.l.b16 %v5607
    %v6785 = vunpack.c.h.b16 %v5607
    %v6786 = vunpack.c.l.b16 %v5608
    %v6787 = vunpack.c.h.b16 %v5608
    %v6788 = vunpack.c.l.b16 %v5609
    %v6789 = vunpack.c.h.b16 %v5609
    %v6790 = vunpack.c.l.b16 %v5610
    %v6791 = vunpack.c.h.b16 %v5610
    %v6792 = vunpack.c.l.b16 %v5611
    %v6793 = vunpack.c.h.b16 %v5611
    %v6794 = vunpack.c.l.b16 %v5612
    %v6795 = vunpack.c.h.b16 %v5612
    %v6796 = vunpack.c.l.b16 %v5613
    %v6797 = vunpack.c.h.b16 %v5613
    %v6798 = vunpack.c.l.b16 %v5614
    %v6799 = vunpack.c.h.b16 %v5614
    %v6800 = vunpack.c.l.b16 %v5615
    %v6801 = vunpack.c.h.b16 %v5615
    %v6802 = vunpack.c.l.b16 %v5616
    %v6803 = vunpack.c.h.b16 %v5616
    %v6804 = vunpack.c.l.b16 %v5617
    %v6805 = vunpack.c.h.b16 %v5617
    %v6806 = vunpack.c.l.b16 %v5618
    %v6807 = vunpack.c.h.b16 %v5618
    %v6808 = vunpack.c.l.b16 %v5619
    %v6809 = vunpack.c.h.b16 %v5619
    %v6810 = vunpack.c.l.b16 %v5620
    %v6811 = vunpack.c.h.b16 %v5620
    %v6812 = vunpack.c.l.b16 %v5621
    %v6813 = vunpack.c.h.b16 %v5621
    %v6814 = vunpack.c.l.b16 %v5622
    %v6815 = vunpack.c.h.b16 %v5622
    %v6816 = vunpack.c.l.b16 %v5623
    %v6817 = vunpack.c.h.b16 %v5623
    %v6818 = vunpack.c.l.b16 %v5624
    %v6819 = vunpack.c.h.b16 %v5624
    %v6820 = vunpack.c.l.b16 %v5625
    %v6821 = vunpack.c.h.b16 %v5625
    %v6822 = vunpack.c.l.b16 %v5626
    %v6823 = vunpack.c.h.b16 %v5626
    %v6824 = vunpack.c.l.b16 %v5627
    %v6825 = vunpack.c.h.b16 %v5627
    %v6826 = vunpack.c.l.b16 %v5628
    %v6827 = vunpack.c.h.b16 %v5628
    %v6828 = vunpack.c.l.b16 %v5629
    %v6829 = vunpack.c.h.b16 %v5629
    %v6830 = vunpack.c.l.b16 %v5630
    %v6831 = vunpack.c.h.b16 %v5630
    %v6832 = vunpack.c.l.b16 %v5631
    %v6833 = vunpack.c.h.b16 %v5631
    %v6834 = vunpack.c.l.b16 %v5632
    %v6835 = vunpack.c.h.b16 %v5632
    %v6836 = vunpack.c.l.b16 %v5633
    %v6837 = vunpack.c.h.b16 %v5633
    %v6838 = vunpack.c.l.b16 %v5634
    %v6839 = vunpack.c.h.b16 %v5634
    %v6840 = vunpack.c.l.b16 %v5635
    %v6841 = vunpack.c.h.b16 %v5635
    %v6842 = vunpack.c.l.b16 %v5636
    %v6843 = vunpack.c.h.b16 %v5636
    %v6844 = vunpack.c.l.b16 %v5637
    %v6845 = vunpack.c.h.b16 %v5637
    %v6846 = vunpack.c.l.b16 %v5638
    %v6847 = vunpack.c.h.b16 %v5638
    %v6848 = vunpack.c.l.b16 %v5639
    %v6849 = vunpack.c.h.b16 %v5639
    %v6850 = vunpack.c.l.b16 %v5640
    %v6851 = vunpack.c.h.b16 %v5640
    %v6852 = vunpack.c.l.b16 %v5641
    %v6853 = vunpack.c.h.b16 %v5641
    %v6854 = vunpack.c.l.b16 %v5642
    %v6855 = vunpack.c.h.b16 %v5642
    %v6856 = vunpack.c.l.b16 %v5643
    %v6857 = vunpack.c.h.b16 %v5643
    %v6858 = vunpack.c.l.b16 %v5644
    %v6859 = vunpack.c.h.b16 %v5644
    %v6860 = vunpack.c.l.b16 %v5645
    %v6861 = vunpack.c.h.b16 %v5645
    %v6862 = vunpack.c.l.b16 %v5646
    %v6863 = vunpack.c.h.b16 %v5646
    %v6864 = vunpack.c.l.b16 %v5647
    %v6865 = vunpack.c.h.b16 %v5647
    %v6866 = vunpack.c.l.b16 %v5648
    %v6867 = vunpack.c.h.b16 %v5648
    %v6868 = vunpack.c.l.b16 %v5649
    %v6869 = vunpack.c.h.b16 %v5649
    %v6870 = vunpack.c.l.b16 %v5650
    %v6871 = vunpack.c.h.b16 %v5650
    %v6872 = vunpack.c.l.b16 %v5651
    %v6873 = vunpack.c.h.b16 %v5651
    %v6874 = vunpack.c.l.b16 %v5652
    %v6875 = vunpack.c.h.b16 %v5652
    %v6876 = vunpack.c.l.b16 %v5653
    %v6877 = vunpack.c.h.b16 %v5653
    %v6878 = vunpack.c.l.b16 %v5654
    %v6879 = vunpack.c.h.b16 %v5654
    %v6880 = vunpack.c.l.b16 %v5655
    %v6881 = vunpack.c.h.b16 %v5655
    %v6882 = vunpack.c.l.b16 %v5656
    %v6883 = vunpack.c.h.b16 %v5656
    %v6884 = vunpack.c.l.b16 %v5657
    %v6885 = vunpack.c.h.b16 %v5657
    %v6886 = vunpack.c.l.b16 %v5658
    %v6887 = vunpack.c.h.b16 %v5658
    %v6888 = vunpack.c.l.b16 %v5659
    %v6889 = vunpack.c.h.b16 %v5659
    %v6890 = vunpack.c.l.b16 %v5660
    %v6891 = vunpack.c.h.b16 %v5660
    %v6892 = vunpack.c.l.b16 %v5661
    %v6893 = vunpack.c.h.b16 %v5661
    %v6894 = vunpack.c.l.b16 %v5662
    %v6895 = vunpack.c.h.b16 %v5662
    %v6896 = vunpack.c.l.b16 %v5663
    %v6897 = vunpack.c.h.b16 %v5663
    %v6898 = vunpack.c.l.b16 %v5664
    %v6899 = vunpack.c.h.b16 %v5664
    %v6900 = vunpack.c.l.b16 %v5665
    %v6901 = vunpack.c.h.b16 %v5665
    %v6902 = vunpack.c.l.b16 %v5666
    %v6903 = vunpack.c.h.b16 %v5666
    %v6904 = vunpack.c.l.b16 %v5667
    %v6905 = vunpack.c.h.b16 %v5667
    %v6906 = vunpack.c.l.b16 %v5668
    %v6907 = vunpack.c.h.b16 %v5668
    %v6908 = vunpack.c.l.b16 %v5669
    %v6909 = vunpack.c.h.b16 %v5669
    %v6910 = vunpack.c.l.b16 %v5670
    %v6911 = vunpack.c.h.b16 %v5670
    %v6912 = vunpack.c.l.b16 %v5671
    %v6913 = vunpack.c.h.b16 %v5671
    %v6914 = vunpack.c.l.b16 %v5672
    %v6915 = vunpack.c.h.b16 %v5672
    %v6916 = vunpack.c.l.b16 %v5673
    %v6917 = vunpack.c.h.b16 %v5673
    %v6918 = vunpack.c.l.b16 %v5674
    %v6919 = vunpack.c.h.b16 %v5674
    %v6920 = vunpack.c.l.b16 %v5675
    %v6921 = vunpack.c.h.b16 %v5675
    %v6922 = vunpack.c.l.b16 %v5676
    %v6923 = vunpack.c.h.b16 %v5676
    %v6924 = vunpack.c.l.b16 %v5677
    %v6925 = vunpack.c.h.b16 %v5677
    %v6926 = vunpack.c.l.b16 %v5678
    %v6927 = vunpack.c.h.b16 %v5678
    %v6928 = vunpack.c.l.b16 %v5679
    %v6929 = vunpack.c.h.b16 %v5679
    %v6930 = vunpack.c.l.b16 %v5680
    %v6931 = vunpack.c.h.b16 %v5680
    %v6932 = vunpack.c.l.b16 %v5681
    %v6933 = vunpack.c.h.b16 %v5681
    %v6934 = vunpack.c.l.b16 %v5682
    %v6935 = vunpack.c.h.b16 %v5682
    %v6936 = vunpack.c.l.b16 %v5683
    %v6937 = vunpack.c.h.b16 %v5683
    %v6938 = vunpack.c.l.b16 %v5684
    %v6939 = vunpack.c.h.b16 %v5684
    %v6940 = vunpack.c.l.b16 %v5685
    %v6941 = vunpack.c.h.b16 %v5685
    %v6942 = vunpack.c.l.b16 %v5686
    %v6943 = vunpack.c.h.b16 %v5686
    %v6944 = vunpack.c.l.b16 %v5687
    %v6945 = vunpack.c.h.b16 %v5687
    %v6946 = vunpack.c.l.b16 %v5688
    %v6947 = vunpack.c.h.b16 %v5688
    %v6948 = vunpack.c.l.b16 %v5689
    %v6949 = vunpack.c.h.b16 %v5689
    %v6950 = vunpack.c.l.b16 %v5690
    %v6951 = vunpack.c.h.b16 %v5690
    %v6952 = vunpack.c.l.b16 %v5691
    %v6953 = vunpack.c.h.b16 %v5691
    %v6954 = vunpack.c.l.b16 %v5692
    %v6955 = vunpack.c.h.b16 %v5692
    %v6956 = vunpack.c.l.b16 %v5693
    %v6957 = vunpack.c.h.b16 %v5693
    %v6958 = vunpack.c.l.b16 %v5694
    %v6959 = vunpack.c.h.b16 %v5694
    %v6960 = vunpack.c.l.b16 %v5695
    %v6961 = vunpack.c.h.b16 %v5695
    %v6962 = vunpack.c.l.b16 %v5696
    %v6963 = vunpack.c.h.b16 %v5696
    %v6964 = vunpack.c.l.b16 %v5697
    %v6965 = vunpack.c.h.b16 %v5697
    %v6966 = vunpack.c.l.b16 %v5698
    %v6967 = vunpack.c.h.b16 %v5698
    %v6968 = vunpack.c.l.b16 %v5699
    %v6969 = vunpack.c.h.b16 %v5699
    %v6970 = vunpack.c.l.b16 %v5700
    %v6971 = vunpack.c.h.b16 %v5700
    %v6972 = vunpack.c.l.b16 %v5701
    %v6973 = vunpack.c.h.b16 %v5701
    %v6974 = vunpack.c.l.b16 %v5702
    %v6975 = vunpack.c.h.b16 %v5702
    %v6976 = vunpack.c.l.b16 %v5703
    %v6977 = vunpack.c.h.b16 %v5703
    %v6978 = vunpack.c.l.b16 %v5704
    %v6979 = vunpack.c.h.b16 %v5704
    %v6980 = vunpack.c.l.b16 %v5705
    %v6981 = vunpack.c.h.b16 %v5705
    %v6982 = vunpack.c.l.b16 %v5706
    %v6983 = vunpack.c.h.b16 %v5706
    %v6984 = vunpack.c.l.b16 %v5707
    %v6985 = vunpack.c.h.b16 %v5707
    %v6986 = vunpack.c.l.b16 %v5708
    %v6987 = vunpack.c.h.b16 %v5708
    %v6988 = vunpack.c.l.b16 %v5709
    %v6989 = vunpack.c.h.b16 %v5709
    %v6990 = vunpack.c.l.b16 %v5710
    %v6991 = vunpack.c.h.b16 %v5710
    %v6992 = vunpack.c.l.b16 %v5711
    %v6993 = vunpack.c.h.b16 %v5711
    %v6994 = vunpack.c.l.b16 %v5712
    %v6995 = vunpack.c.h.b16 %v5712
    %v6996 = vunpack.c.l.b16 %v5713
    %v6997 = vunpack.c.h.b16 %v5713
    %v6998 = vunpack.c.l.b16 %v5714
    %v6999 = vunpack.c.h.b16 %v5714
    %v7000 = vunpack.c.l.b16 %v5715
    %v7001 = vunpack.c.h.b16 %v5715
    %v7002 = vunpack.c.l.b16 %v5716
    %v7003 = vunpack.c.h.b16 %v5716
    %v7004 = vunpack.c.l.b16 %v5717
    %v7005 = vunpack.c.h.b16 %v5717
    %v7006 = vunpack.c.l.b16 %v5718
    %v7007 = vunpack.c.h.b16 %v5718
    %v7008 = vunpack.c.l.b16 %v5719
    %v7009 = vunpack.c.h.b16 %v5719
    %v7010 = vunpack.c.l.b16 %v5720
    %v7011 = vunpack.c.h.b16 %v5720
    %v7012 = vunpack.c.l.b16 %v5721
    %v7013 = vunpack.c.h.b16 %v5721
    %v7014 = vunpack.c.l.b16 %v5722
    %v7015 = vunpack.c.h.b16 %v5722
    %v7016 = vunpack.c.l.b16 %v5723
    %v7017 = vunpack.c.h.b16 %v5723
    %v7018 = vunpack.c.l.b16 %v5724
    %v7019 = vunpack.c.h.b16 %v5724
    %v7020 = vunpack.c.l.b16 %v5725
    %v7021 = vunpack.c.h.b16 %v5725
    %v7022 = vunpack.c.l.b16 %v5726
    %v7023 = vunpack.c.h.b16 %v5726
    %v7024 = vunpack.c.l.b16 %v5727
    %v7025 = vunpack.c.h.b16 %v5727
    %v7026 = vunpack.c.l.b16 %v5728
    %v7027 = vunpack.c.h.b16 %v5728
    %v7028 = vunpack.c.l.b16 %v5729
    %v7029 = vunpack.c.h.b16 %v5729
    %v7030 = vunpack.c.l.b16 %v5730
    %v7031 = vunpack.c.h.b16 %v5730
    %v7032 = vunpack.c.l.b16 %v5731
    %v7033 = vunpack.c.h.b16 %v5731
    %v7034 = vunpack.c.l.b16 %v5732
    %v7035 = vunpack.c.h.b16 %v5732
    %v7036 = vunpack.c.l.b16 %v5733
    %v7037 = vunpack.c.h.b16 %v5733
    %v7038 = vunpack.c.l.b16 %v5734
    %v7039 = vunpack.c.h.b16 %v5734
    %v7040 = vunpack.c.l.b16 %v5735
    %v7041 = vunpack.c.h.b16 %v5735
    %v7042 = vunpack.c.l.b16 %v5736
    %v7043 = vunpack.c.h.b16 %v5736
    %v7044 = vunpack.c.l.b16 %v5737
    %v7045 = vunpack.c.h.b16 %v5737
    %v7046 = vunpack.c.l.b16 %v5738
    %v7047 = vunpack.c.h.b16 %v5738
    %v7048 = vunpack.c.l.b16 %v5739
    %v7049 = vunpack.c.h.b16 %v5739
    %v7050 = vunpack.c.l.b16 %v5740
    %v7051 = vunpack.c.h.b16 %v5740
    %v7052 = vunpack.c.l.b16 %v5741
    %v7053 = vunpack.c.h.b16 %v5741
    %v7054 = vunpack.c.l.b16 %v5742
    %v7055 = vunpack.c.h.b16 %v5742
    %v7056 = vunpack.c.l.b16 %v5743
    %v7057 = vunpack.c.h.b16 %v5743
    %v7058 = vunpack.c.l.b16 %v5744
    %v7059 = vunpack.c.h.b16 %v5744
    %v7060 = vunpack.c.l.b16 %v5745
    %v7061 = vunpack.c.h.b16 %v5745
    %v7062 = vunpack.c.l.b16 %v5746
    %v7063 = vunpack.c.h.b16 %v5746
    %v7064 = vunpack.c.l.b16 %v5747
    %v7065 = vunpack.c.h.b16 %v5747
    %v7066 = vunpack.c.l.b16 %v5748
    %v7067 = vunpack.c.h.b16 %v5748
    %v7068 = vunpack.c.l.b16 %v5749
    %v7069 = vunpack.c.h.b16 %v5749
    %v7070 = vunpack.c.l.b16 %v5750
    %v7071 = vunpack.c.h.b16 %v5750
    %v7072 = vunpack.c.l.b16 %v5751
    %v7073 = vunpack.c.h.b16 %v5751
    %v7074 = vunpack.c.l.b16 %v5752
    %v7075 = vunpack.c.h.b16 %v5752
    %v7076 = vunpack.c.l.b16 %v5753
    %v7077 = vunpack.c.h.b16 %v5753
    %v7078 = vunpack.c.l.b16 %v5754
    %v7079 = vunpack.c.h.b16 %v5754
    %v7080 = vunpack.c.l.b16 %v5755
    %v7081 = vunpack.c.h.b16 %v5755
    %v7082 = vunpack.c.l.b16 %v5756
    %v7083 = vunpack.c.h.b16 %v5756
    %v7084 = vunpack.c.l.b16 %v5757
    %v7085 = vunpack.c.h.b16 %v5757
    %v7086 = vunpack.c.l.b16 %v5758
    %v7087 = vunpack.c.h.b16 %v5758
    %v7088 = vunpack.c.l.b16 %v5759
    %v7089 = vunpack.c.h.b16 %v5759
    %v7090 = vunpack.c.l.b16 %v5760
    %v7091 = vunpack.c.h.b16 %v5760
    %v7092 = vunpack.c.l.b16 %v5761
    %v7093 = vunpack.c.h.b16 %v5761
    %v7094 = vunpack.c.l.b16 %v5762
    %v7095 = vunpack.c.h.b16 %v5762
    %v7096 = vunpack.c.l.b16 %v5763
    %v7097 = vunpack.c.h.b16 %v5763
    %v7098 = vunpack.c.l.b16 %v5764
    %v7099 = vunpack.c.h.b16 %v5764
    %v7100 = vunpack.c.l.b16 %v5765
    %v7101 = vunpack.c.h.b16 %v5765
    %v7102 = vunpack.c.l.b16 %v5766
    %v7103 = vunpack.c.h.b16 %v5766
    %v7104 = vunpack.c.l.b16 %v5767
    %v7105 = vunpack.c.h.b16 %v5767
    %v7106 = vunpack.c.l.b16 %v5768
    %v7107 = vunpack.c.h.b16 %v5768
    %v7108 = vunpack.c.l.b16 %v5769
    %v7109 = vunpack.c.h.b16 %v5769
    %v7110 = vunpack.c.l.b16 %v5770
    %v7111 = vunpack.c.h.b16 %v5770
    %v7112 = vunpack.c.l.b16 %v5771
    %v7113 = vunpack.c.h.b16 %v5771
    %v7114 = vunpack.c.l.b16 %v5772
    %v7115 = vunpack.c.h.b16 %v5772
    %v7116 = vunpack.c.l.b16 %v5773
    %v7117 = vunpack.c.h.b16 %v5773
    %v7118 = vunpack.c.l.b16 %v5774
    %v7119 = vunpack.c.h.b16 %v5774
    %v7120 = vunpack.c.l.b16 %v5775
    %v7121 = vunpack.c.h.b16 %v5775
    %v7122 = vunpack.c.l.b16 %v5776
    %v7123 = vunpack.c.h.b16 %v5776
    %v7124 = vunpack.c.l.b16 %v5777
    %v7125 = vunpack.c.h.b16 %v5777
    %v7126 = vunpack.c.l.b16 %v5778
    %v7127 = vunpack.c.h.b16 %v5778
    %v7128 = vunpack.c.l.b16 %v5779
    %v7129 = vunpack.c.h.b16 %v5779
    %v7130 = vunpack.c.l.b16 %v5780
    %v7131 = vunpack.c.h.b16 %v5780
    %v7132 = vunpack.c.l.b16 %v5781
    %v7133 = vunpack.c.h.b16 %v5781
    %v7134 = vunpack.c.l.b16 %v5782
    %v7135 = vunpack.c.h.b16 %v5782
    %v7136 = vunpack.c.l.b16 %v5783
    %v7137 = vunpack.c.h.b16 %v5783
    %v7138 = vunpack.c.l.b16 %v5784
    %v7139 = vunpack.c.h.b16 %v5784
    %v7140 = vunpack.c.l.b16 %v5785
    %v7141 = vunpack.c.h.b16 %v5785
    %v7142 = vunpack.c.l.b16 %v5786
    %v7143 = vunpack.c.h.b16 %v5786
    %v7144 = vunpack.c.l.b16 %v5787
    %v7145 = vunpack.c.h.b16 %v5787
    %v7146 = vunpack.c.l.b16 %v5788
    %v7147 = vunpack.c.h.b16 %v5788
    %v7148 = vunpack.c.l.b16 %v5789
    %v7149 = vunpack.c.h.b16 %v5789
    %v7150 = vunpack.c.l.b16 %v5790
    %v7151 = vunpack.c.h.b16 %v5790
    %v7152 = vunpack.c.l.b16 %v5791
    %v7153 = vunpack.c.h.b16 %v5791
    %v7154 = vunpack.c.l.b16 %v5792
    %v7155 = vunpack.c.h.b16 %v5792
    %v7156 = vunpack.c.l.b16 %v5793
    %v7157 = vunpack.c.h.b16 %v5793
    %v7158 = vunpack.c.l.b16 %v5794
    %v7159 = vunpack.c.h.b16 %v5794
    %v7160 = vunpack.c.l.b16 %v5795
    %v7161 = vunpack.c.h.b16 %v5795
    %v7162 = vunpack.c.l.b16 %v5796
    %v7163 = vunpack.c.h.b16 %v5796
    %v7164 = vunpack.c.l.b16 %v5797
    %v7165 = vunpack.c.h.b16 %v5797
    %v7166 = vunpack.c.l.b16 %v5798
    %v7167 = vunpack.c.h.b16 %v5798
    %v7168 = vunpack.c.l.b16 %v5799
    %v7169 = vunpack.c.h.b16 %v5799
    %v7170 = vunpack.c.l.b16 %v5800
    %v7171 = vunpack.c.h.b16 %v5800
    %v7172 = vunpack.c.l.b16 %v5801
    %v7173 = vunpack.c.h.b16 %v5801
    %v7174 = vunpack.c.l.b16 %v5802
    %v7175 = vunpack.c.h.b16 %v5802
    %v7176 = vunpack.c.l.b16 %v5803
    %v7177 = vunpack.c.h.b16 %v5803
    %v7178 = vunpack.c.l.b16 %v5804
    %v7179 = vunpack.c.h.b16 %v5804
    %v7180 = vunpack.c.l.b16 %v5805
    %v7181 = vunpack.c.h.b16 %v5805
    %v7182 = vunpack.c.l.b16 %v5806
    %v7183 = vunpack.c.h.b16 %v5806
    %v7184 = vunpack.c.l.b16 %v5807
    %v7185 = vunpack.c.h.b16 %v5807
    %v7186 = vunpack.c.l.b16 %v5808
    %v7187 = vunpack.c.h.b16 %v5808
    %v7188 = vunpack.c.l.b16 %v5809
    %v7189 = vunpack.c.h.b16 %v5809
    %v7190 = vunpack.c.l.b16 %v5810
    %v7191 = vunpack.c.h.b16 %v5810
    %v7192 = vunpack.c.l.b16 %v5811
    %v7193 = vunpack.c.h.b16 %v5811
    %v7194 = vunpack.c.l.b16 %v5812
    %v7195 = vunpack.c.h.b16 %v5812
    %v7196 = vunpack.c.l.b16 %v5813
    %v7197 = vunpack.c.h.b16 %v5813
    %v7198 = vunpack.c.l.b16 %v5814
    %v7199 = vunpack.c.h.b16 %v5814
    %v7200 = vunpack.c.l.b16 %v5815
    %v7201 = vunpack.c.h.b16 %v5815
    %v7202 = vunpack.c.l.b16 %v5816
    %v7203 = vunpack.c.h.b16 %v5816
    %v7204 = vunpack.c.l.b16 %v5817
    %v7205 = vunpack.c.h.b16 %v5817
    %v7206 = vunpack.c.l.b16 %v5818
    %v7207 = vunpack.c.h.b16 %v5818
    %v7208 = vunpack.c.l.b16 %v5819
    %v7209 = vunpack.c.h.b16 %v5819
    %v7210 = vunpack.c.l.b16 %v5820
    %v7211 = vunpack.c.h.b16 %v5820
    %v7212 = vunpack.c.l.b16 %v5821
    %v7213 = vunpack.c.h.b16 %v5821
    %v7214 = vunpack.c.l.b16 %v5822
    %v7215 = vunpack.c.h.b16 %v5822
    %v7216 = vunpack.c.l.b16 %v5823
    %v7217 = vunpack.c.h.b16 %v5823
    %v7218 = vunpack.c.l.b16 %v5824
    %v7219 = vunpack.c.h.b16 %v5824
    %v7220 = vunpack.c.l.b16 %v5825
    %v7221 = vunpack.c.h.b16 %v5825
    %v7222 = vunpack.c.l.b16 %v5826
    %v7223 = vunpack.c.h.b16 %v5826
    %v7224 = vunpack.c.l.b16 %v5827
    %v7225 = vunpack.c.h.b16 %v5827
    %v7226 = vunpack.c.l.b16 %v5828
    %v7227 = vunpack.c.h.b16 %v5828
    %v7228 = vunpack.c.l.b16 %v5829
    %v7229 = vunpack.c.h.b16 %v5829
    %v7230 = vunpack.c.l.b16 %v5830
    %v7231 = vunpack.c.h.b16 %v5830
    %v7232 = vunpack.c.l.b16 %v5831
    %v7233 = vunpack.c.h.b16 %v5831
    %v7234 = vunpack.c.l.b16 %v5832
    %v7235 = vunpack.c.h.b16 %v5832
    %v7236 = vunpack.c.l.b16 %v5833
    %v7237 = vunpack.c.h.b16 %v5833
    %v7238 = vunpack.c.l.b16 %v5834
    %v7239 = vunpack.c.h.b16 %v5834
    %v7240 = vunpack.c.l.b16 %v5835
    %v7241 = vunpack.c.h.b16 %v5835
    %v7242 = vunpack.c.l.b16 %v5836
    %v7243 = vunpack.c.h.b16 %v5836
    %v7244 = vunpack.c.l.b16 %v5837
    %v7245 = vunpack.c.h.b16 %v5837
    %v7246 = vunpack.c.l.b16 %v5838
    %v7247 = vunpack.c.h.b16 %v5838
    %v7248 = vunpack.c.l.b16 %v5839
    %v7249 = vunpack.c.h.b16 %v5839
    %v7250 = vunpack.c.l.b16 %v5840
    %v7251 = vunpack.c.h.b16 %v5840
    %v7252 = vunpack.c.l.b16 %v5841
    %v7253 = vunpack.c.h.b16 %v5841
    %v7254 = vunpack.c.l.b16 %v5842
    %v7255 = vunpack.c.h.b16 %v5842
    %v7256 = vunpack.c.l.b16 %v5843
    %v7257 = vunpack.c.h.b16 %v5843
    %v7258 = vunpack.c.l.b16 %v5844
    %v7259 = vunpack.c.h.b16 %v5844
    %v7260 = vunpack.c.l.b16 %v5845
    %v7261 = vunpack.c.h.b16 %v5845
    %v7262 = vunpack.c.l.b16 %v5846
    %v7263 = vunpack.c.h.b16 %v5846
    %v7264 = vunpack.c.l.b16 %v5847
    %v7265 = vunpack.c.h.b16 %v5847
    %v7266 = vunpack.c.l.b16 %v5848
    %v7267 = vunpack.c.h.b16 %v5848
    %v7268 = vunpack.c.l.b16 %v5849
    %v7269 = vunpack.c.h.b16 %v5849
    %v7270 = vunpack.c.l.b16 %v5850
    %v7271 = vunpack.c.h.b16 %v5850
    %v7272 = vunpack.c.l.b16 %v5851
    %v7273 = vunpack.c.h.b16 %v5851
    %v7274 = vunpack.c.l.b16 %v5852
    %v7275 = vunpack.c.h.b16 %v5852
    %v7276 = vunpack.c.l.b16 %v5853
    %v7277 = vunpack.c.h.b16 %v5853
    %v7278 = vunpack.c.l.b16 %v5854
    %v7279 = vunpack.c.h.b16 %v5854
    %v7280 = vunpack.c.l.b16 %v5855
    %v7281 = vunpack.c.h.b16 %v5855
    %v7282 = vunpack.c.l.b16 %v5856
    %v7283 = vunpack.c.h.b16 %v5856
    %v7284 = vunpack.c.l.b16 %v5857
    %v7285 = vunpack.c.h.b16 %v5857
    %v7286 = vunpack.c.l.b16 %v5858
    %v7287 = vunpack.c.h.b16 %v5858
    %v7288 = vunpack.c.l.b16 %v5859
    %v7289 = vunpack.c.h.b16 %v5859
    %v7290 = vunpack.c.l.b16 %v5860
    %v7291 = vunpack.c.h.b16 %v5860
    %v7292 = vunpack.c.l.b16 %v5861
    %v7293 = vunpack.c.h.b16 %v5861
    %v7294 = vunpack.c.l.b16 %v5862
    %v7295 = vunpack.c.h.b16 %v5862
    %v7296 = vunpack.c.l.b16 %v5863
    %v7297 = vunpack.c.h.b16 %v5863
    %v7298 = vunpack.c.l.b16 %v5864
    %v7299 = vunpack.c.h.b16 %v5864
    %v7300 = vunpack.c.l.b16 %v5865
    %v7301 = vunpack.c.h.b16 %v5865
    %v7302 = vunpack.c.l.b16 %v5866
    %v7303 = vunpack.c.h.b16 %v5866
    %v7304 = vunpack.c.l.b16 %v5867
    %v7305 = vunpack.c.h.b16 %v5867
    %v7306 = vunpack.c.l.b16 %v5868
    %v7307 = vunpack.c.h.b16 %v5868
    %v7308 = vunpack.c.l.b16 %v5869
    %v7309 = vunpack.c.h.b16 %v5869
    %v7310 = vunpack.c.l.b16 %v5870
    %v7311 = vunpack.c.h.b16 %v5870
    %v7312 = vunpack.c.l.b16 %v5871
    %v7313 = vunpack.c.h.b16 %v5871
    %v7314 = vunpack.c.l.b16 %v5872
    %v7315 = vunpack.c.h.b16 %v5872
    %v7316 = vunpack.c.l.b16 %v5873
    %v7317 = vunpack.c.h.b16 %v5873
    %v7318 = vunpack.c.l.b16 %v5874
    %v7319 = vunpack.c.h.b16 %v5874
    %v7320 = vunpack.c.l.b16 %v5875
    %v7321 = vunpack.c.h.b16 %v5875
    %v7322 = vunpack.c.l.b16 %v5876
    %v7323 = vunpack.c.h.b16 %v5876
    %v7324 = vunpack.c.l.b16 %v5877
    %v7325 = vunpack.c.h.b16 %v5877
    %v7326 = vunpack.c.l.b16 %v5878
    %v7327 = vunpack.c.h.b16 %v5878
    %v7328 = vunpack.c.l.b16 %v5879
    %v7329 = vunpack.c.h.b16 %v5879
    %v7330 = vunpack.c.l.b16 %v5880
    %v7331 = vunpack.c.h.b16 %v5880
    %v7332 = vunpack.c.l.b16 %v5881
    %v7333 = vunpack.c.h.b16 %v5881
    %v7334 = vunpack.c.l.b16 %v5882
    %v7335 = vunpack.c.h.b16 %v5882
    %v7336 = vunpack.c.l.b16 %v5883
    %v7337 = vunpack.c.h.b16 %v5883
    %v7338 = vunpack.c.l.b16 %v5884
    %v7339 = vunpack.c.h.b16 %v5884
    %v7340 = vunpack.c.l.b16 %v5885
    %v7341 = vunpack.c.h.b16 %v5885
    %v7342 = vunpack.c.l.b16 %v5886
    %v7343 = vunpack.c.h.b16 %v5886
    %v7344 = vunpack.c.l.b16 %v5887
    %v7345 = vunpack.c.h.b16 %v5887
    %v7346 = vunpack.c.l.b16 %v5888
    %v7347 = vunpack.c.h.b16 %v5888
    %v7348 = vunpack.c.l.b16 %v5889
    %v7349 = vunpack.c.h.b16 %v5889
    %v7350 = vunpack.c.l.b16 %v5890
    %v7351 = vunpack.c.h.b16 %v5890
    %v7352 = vunpack.c.l.b16 %v5891
    %v7353 = vunpack.c.h.b16 %v5891
    %v7354 = vunpack.c.l.b16 %v5892
    %v7355 = vunpack.c.h.b16 %v5892
    %v7356 = vunpack.c.l.b16 %v5893
    %v7357 = vunpack.c.h.b16 %v5893
    %v7358 = vunpack.c.l.b16 %v5894
    %v7359 = vunpack.c.h.b16 %v5894
    %v7360 = vunpack.c.l.b16 %v5895
    %v7361 = vunpack.c.h.b16 %v5895
    %v7362 = vunpack.c.l.b16 %v5896
    %v7363 = vunpack.c.h.b16 %v5896
    %v7364 = vunpack.c.l.b16 %v5897
    %v7365 = vunpack.c.h.b16 %v5897
    %v7366 = vunpack.c.l.b16 %v5898
    %v7367 = vunpack.c.h.b16 %v5898
    %v7368 = vunpack.c.l.b16 %v5899
    %v7369 = vunpack.c.h.b16 %v5899
    %v7370 = vunpack.c.l.b16 %v5900
    %v7371 = vunpack.c.h.b16 %v5900
    %v7372 = vunpack.c.l.b16 %v5901
    %v7373 = vunpack.c.h.b16 %v5901
    %v7374 = vunpack.c.l.b16 %v5902
    %v7375 = vunpack.c.h.b16 %v5902
    %v7376 = vunpack.c.l.b16 %v5903
    %v7377 = vunpack.c.h.b16 %v5903
    %v7378 = vunpack.c.l.b16 %v5904
    %v7379 = vunpack.c.h.b16 %v5904
    %v7380 = vunpack.c.l.b16 %v5905
    %v7381 = vunpack.c.h.b16 %v5905
    %v7382 = vunpack.c.l.b16 %v5906
    %v7383 = vunpack.c.h.b16 %v5906
    %v7384 = vunpack.c.l.b16 %v5907
    %v7385 = vunpack.c.h.b16 %v5907
    %v7386 = vunpack.c.l.b16 %v5908
    %v7387 = vunpack.c.h.b16 %v5908
    %v7388 = vunpack.c.l.b16 %v5909
    %v7389 = vunpack.c.h.b16 %v5909
    %v7390 = vunpack.c.l.b16 %v5910
    %v7391 = vunpack.c.h.b16 %v5910
    %v7392 = vunpack.c.l.b16 %v5911
    %v7393 = vunpack.c.h.b16 %v5911
    %v7394 = vunpack.c.l.b16 %v5912
    %v7395 = vunpack.c.h.b16 %v5912
    %v7396 = vunpack.c.l.b16 %v5913
    %v7397 = vunpack.c.h.b16 %v5913
    %v7398 = vunpack.c.l.b16 %v5914
    %v7399 = vunpack.c.h.b16 %v5914
    %v7400 = vunpack.c.l.b16 %v5915
    %v7401 = vunpack.c.h.b16 %v5915
    %v7402 = vunpack.c.l.b16 %v5916
    %v7403 = vunpack.c.h.b16 %v5916
    %v7404 = vunpack.c.l.b16 %v5917
    %v7405 = vunpack.c.h.b16 %v5917
    %v7406 = vunpack.c.l.b16 %v5918
    %v7407 = vunpack.c.h.b16 %v5918
    %v7408 = vunpack.c.l.b16 %v5919
    %v7409 = vunpack.c.h.b16 %v5919
    %v7410 = vunpack.c.l.b16 %v5920
    %v7411 = vunpack.c.h.b16 %v5920
    %v7412 = vunpack.c.l.b16 %v5921
    %v7413 = vunpack.c.h.b16 %v5921
    %v7414 = vunpack.c.l.b16 %v5922
    %v7415 = vunpack.c.h.b16 %v5922
    %v7416 = vunpack.c.l.b16 %v5923
    %v7417 = vunpack.c.h.b16 %v5923
    %v7418 = vunpack.c.l.b16 %v5924
    %v7419 = vunpack.c.h.b16 %v5924
    %v7420 = vunpack.c.l.b16 %v5925
    %v7421 = vunpack.c.h.b16 %v5925
    %v7422 = vunpack.c.l.b16 %v5926
    %v7423 = vunpack.c.h.b16 %v5926
    %v7424 = vunpack.c.l.b16 %v5927
    %v7425 = vunpack.c.h.b16 %v5927
    %v7426 = vunpack.c.l.b16 %v5928
    %v7427 = vunpack.c.h.b16 %v5928
    %v7428 = vunpack.c.l.b16 %v5929
    %v7429 = vunpack.c.h.b16 %v5929
    %v7430 = vunpack.c.l.b16 %v5930
    %v7431 = vunpack.c.h.b16 %v5930
    %v7432 = vunpack.c.l.b16 %v5931
    %v7433 = vunpack.c.h.b16 %v5931
    %v7434 = vunpack.c.l.b16 %v5932
    %v7435 = vunpack.c.h.b16 %v5932
    %v7436 = vunpack.c.l.b16 %v5933
    %v7437 = vunpack.c.h.b16 %v5933
    %v7438 = vunpack.c.l.b16 %v5934
    %v7439 = vunpack.c.h.b16 %v5934
    %v7440 = vunpack.c.l.b16 %v5935
    %v7441 = vunpack.c.h.b16 %v5935
    %v7442 = vunpack.c.l.b16 %v5936
    %v7443 = vunpack.c.h.b16 %v5936
    %v7444 = vunpack.c.l.b16 %v5937
    %v7445 = vunpack.c.h.b16 %v5937
    %v7446 = vunpack.c.l.b16 %v5938
    %v7447 = vunpack.c.h.b16 %v5938
    %v7448 = vunpack.c.l.b16 %v5939
    %v7449 = vunpack.c.h.b16 %v5939
    %v7450 = vunpack.c.l.b16 %v5940
    %v7451 = vunpack.c.h.b16 %v5940
    %v7452 = vunpack.c.l.b16 %v5941
    %v7453 = vunpack.c.h.b16 %v5941
    %v7454 = vunpack.c.l.b16 %v5942
    %v7455 = vunpack.c.h.b16 %v5942
    %v7456 = vunpack.c.l.b16 %v5943
    %v7457 = vunpack.c.h.b16 %v5943
    %v7458 = vunpack.c.l.b16 %v5944
    %v7459 = vunpack.c.h.b16 %v5944
    %v7460 = vunpack.c.l.b16 %v5945
    %v7461 = vunpack.c.h.b16 %v5945
    %v7462 = vunpack.c.l.b16 %v5946
    %v7463 = vunpack.c.h.b16 %v5946
    %v7464 = vunpack.c.l.b16 %v5947
    %v7465 = vunpack.c.h.b16 %v5947
    %v7466 = vunpack.c.l.b16 %v5948
    %v7467 = vunpack.c.h.b16 %v5948
    %v7468 = vunpack.c.l.b16 %v5949
    %v7469 = vunpack.c.h.b16 %v5949
    %v7470 = vunpack.c.l.b16 %v5950
    %v7471 = vunpack.c.h.b16 %v5950
    %v7472 = vunpack.c.l.b16 %v5951
    %v7473 = vunpack.c.h.b16 %v5951
    %v7474 = vunpack.c.l.b16 %v5952
    %v7475 = vunpack.c.h.b16 %v5952
    %v7476 = vunpack.c.l.b16 %v5953
    %v7477 = vunpack.c.h.b16 %v5953
    %v7478 = vunpack.c.l.b16 %v5954
    %v7479 = vunpack.c.h.b16 %v5954
    %v7480 = vunpack.c.l.b16 %v5955
    %v7481 = vunpack.c.h.b16 %v5955
    %v7482 = vunpack.c.l.b16 %v5956
    %v7483 = vunpack.c.h.b16 %v5956
    %v7484 = vunpack.c.l.b16 %v5957
    %v7485 = vunpack.c.h.b16 %v5957
    %v7486 = vunpack.c.l.b16 %v5958
    %v7487 = vunpack.c.h.b16 %v5958
    %v7488 = vunpack.c.l.b16 %v5959
    %v7489 = vunpack.c.h.b16 %v5959
    %v7490 = vunpack.c.l.b16 %v5960
    %v7491 = vunpack.c.h.b16 %v5960
    %v7492 = vunpack.c.l.b16 %v5961
    %v7493 = vunpack.c.h.b16 %v5961
    %v7494 = vunpack.c.l.b16 %v5962
    %v7495 = vunpack.c.h.b16 %v5962
    %v7496 = vunpack.c.l.b16 %v5963
    %v7497 = vunpack.c.h.b16 %v5963
    %v7498 = vunpack.c.l.b16 %v5964
    %v7499 = vunpack.c.h.b16 %v5964
    %v7500 = vunpack.c.l.b16 %v5965
    %v7501 = vunpack.c.h.b16 %v5965
    %v7502 = vunpack.c.l.b16 %v5966
    %v7503 = vunpack.c.h.b16 %v5966
    %v7504 = vunpack.c.l.b16 %v5967
    %v7505 = vunpack.c.h.b16 %v5967
    %v7506 = vunpack.c.l.b16 %v5968
    %v7507 = vunpack.c.h.b16 %v5968
    %v7508 = vunpack.c.l.b16 %v5969
    %v7509 = vunpack.c.h.b16 %v5969
    %v7510 = vunpack.c.l.b16 %v5970
    %v7511 = vunpack.c.h.b16 %v5970
    %v7512 = vunpack.c.l.b16 %v5971
    %v7513 = vunpack.c.h.b16 %v5971
    %v7514 = vunpack.c.l.b16 %v5972
    %v7515 = vunpack.c.h.b16 %v5972
    %v7516 = vunpack.c.l.b16 %v5973
    %v7517 = vunpack.c.h.b16 %v5973
    %v7518 = vunpack.c.l.b16 %v5974
    %v7519 = vunpack.c.h.b16 %v5974
    %v7520 = vunpack.c.l.b16 %v5975
    %v7521 = vunpack.c.h.b16 %v5975
    %v7522 = vunpack.c.l.b16 %v5976
    %v7523 = vunpack.c.h.b16 %v5976
    %v7524 = vunpack.c.l.b16 %v5977
    %v7525 = vunpack.c.h.b16 %v5977
    %v7526 = vunpack.c.l.b16 %v5978
    %v7527 = vunpack.c.h.b16 %v5978
    %v7528 = vunpack.c.l.b16 %v5979
    %v7529 = vunpack.c.h.b16 %v5979
    %v7530 = vunpack.c.l.b16 %v5980
    %v7531 = vunpack.c.h.b16 %v5980
    %v7532 = vunpack.c.l.b16 %v5981
    %v7533 = vunpack.c.h.b16 %v5981
    %v7534 = vunpack.c.l.b16 %v5982
    %v7535 = vunpack.c.h.b16 %v5982
    %v7536 = vunpack.c.l.b16 %v5983
    %v7537 = vunpack.c.h.b16 %v5983
    %v7538 = vunpack.c.l.b16 %v5984
    %v7539 = vunpack.c.h.b16 %v5984
    %v7540 = vunpack.c.l.b16 %v5985
    %v7541 = vunpack.c.h.b16 %v5985
    %v7542 = vunpack.c.l.b16 %v5986
    %v7543 = vunpack.c.h.b16 %v5986
    %v7544 = vunpack.c.l.b16 %v5987
    %v7545 = vunpack.c.h.b16 %v5987
    %v7546 = vunpack.c.l.b16 %v5988
    %v7547 = vunpack.c.h.b16 %v5988
    %v7548 = vunpack.c.l.b16 %v5989
    %v7549 = vunpack.c.h.b16 %v5989
    %v7550 = vunpack.c.l.b16 %v5990
    %v7551 = vunpack.c.h.b16 %v5990
    %v7552 = vunpack.c.l.b16 %v5991
    %v7553 = vunpack.c.h.b16 %v5991
    %v7554 = vunpack.c.l.b16 %v5992
    %v7555 = vunpack.c.h.b16 %v5992
    %v7556 = vunpack.c.l.b16 %v5993
    %v7557 = vunpack.c.h.b16 %v5993
    %v7558 = vunpack.c.l.b16 %v5994
    %v7559 = vunpack.c.h.b16 %v5994
    %v7560 = vunpack.c.l.b16 %v5995
    %v7561 = vunpack.c.h.b16 %v5995
    %v7562 = vunpack.c.l.b16 %v5996
    %v7563 = vunpack.c.h.b16 %v5996
    %v7564 = vunpack.c.l.b16 %v5997
    %v7565 = vunpack.c.h.b16 %v5997
    %v7566 = vunpack.c.l.b16 %v5998
    %v7567 = vunpack.c.h.b16 %v5998
    %v7568 = vunpack.c.l.b16 %v5999
    %v7569 = vunpack.c.h.b16 %v5999
    %v7570 = vunpack.c.l.b16 %v6000
    %v7571 = vunpack.c.h.b16 %v6000
    %v7572 = vunpack.c.l.b16 %v6001
    %v7573 = vunpack.c.h.b16 %v6001
    %v7574 = vunpack.c.l.b16 %v6002
    %v7575 = vunpack.c.h.b16 %v6002
    %v7576 = vunpack.c.l.b16 %v6003
    %v7577 = vunpack.c.h.b16 %v6003
    %v7578 = vunpack.c.l.b16 %v6004
    %v7579 = vunpack.c.h.b16 %v6004
    %v7580 = vunpack.c.l.b16 %v6005
    %v7581 = vunpack.c.h.b16 %v6005
    %v7582 = vunpack.c.l.b16 %v6006
    %v7583 = vunpack.c.h.b16 %v6006
    %v7584 = vunpack.c.l.b16 %v6007
    %v7585 = vunpack.c.h.b16 %v6007
    %v7586 = vpack.c.b16 %v6570, %v6562
    %v7587 = vpack.c.b16 %v6571, %v6563
    %v7588 = vpack.c.b16 %v6572, %v6564
    %v7589 = vpack.c.b16 %v6573, %v6565
    %v7590 = vpack.c.b16 %v6574, %v6566
    %v7591 = vpack.c.b16 %v6575, %v6567
    %v7592 = vpack.c.b16 %v6576, %v6568
    %v7593 = vpack.c.b16 %v6577, %v6569
    %v7594 = vpack.c.b16 %v6586, %v6578
    %v7595 = vpack.c.b16 %v6587, %v6579
    %v7596 = vpack.c.b16 %v6588, %v6580
    %v7597 = vpack.c.b16 %v6589, %v6581
    %v7598 = vpack.c.b16 %v6590, %v6582
    %v7599 = vpack.c.b16 %v6591, %v6583
    %v7600 = vpack.c.b16 %v6592, %v6584
    %v7601 = vpack.c.b16 %v6593, %v6585
    %v7602 = vpack.c.b16 %v6602, %v6594
    %v7603 = vpack.c.b16 %v6603, %v6595
    %v7604 = vpack.c.b16 %v6604, %v6596
    %v7605 = vpack.c.b16 %v6605, %v6597
    %v7606 = vpack.c.b16 %v6606, %v6598
    %v7607 = vpack.c.b16 %v6607, %v6599
    %v7608 = vpack.c.b16 %v6608, %v6600
    %v7609 = vpack.c.b16 %v6609, %v6601
    %v7610 = vpack.c.b16 %v6618, %v6610
    %v7611 = vpack.c.b16 %v6619, %v6611
    %v7612 = vpack.c.b16 %v6620, %v6612
    %v7613 = vpack.c.b16 %v6621, %v6613
    %v7614 = vpack.c.b16 %v6622, %v6614
    %v7615 = vpack.c.b16 %v6623, %v6615
    %v7616 = vpack.c.b16 %v6624, %v6616
    %v7617 = vpack.c.b16 %v6625, %v6617
    %v7618 = vpack.c.b16 %v6634, %v6626
    %v7619 = vpack.c.b16 %v6635, %v6627
    %v7620 = vpack.c.b16 %v6636, %v6628
    %v7621 = vpack.c.b16 %v6637, %v6629
    %v7622 = vpack.c.b16 %v6638, %v6630
    %v7623 = vpack.c.b16 %v6639, %v6631
    %v7624 = vpack.c.b16 %v6640, %v6632
    %v7625 = vpack.c.b16 %v6641, %v6633
    %v7626 = vpack.c.b16 %v6650, %v6642
    %v7627 = vpack.c.b16 %v6651, %v6643
    %v7628 = vpack.c.b16 %v6652, %v6644
    %v7629 = vpack.c.b16 %v6653, %v6645
    %v7630 = vpack.c.b16 %v6654, %v6646
    %v7631 = vpack.c.b16 %v6655, %v6647
    %v7632 = vpack.c.b16 %v6656, %v6648
    %v7633 = vpack.c.b16 %v6657, %v6649
    %v7634 = vpack.c.b16 %v6666, %v6658
    %v7635 = vpack.c.b16 %v6667, %v6659
    %v7636 = vpack.c.b16 %v6668, %v6660
    %v7637 = vpack.c.b16 %v6669, %v6661
    %v7638 = vpack.c.b16 %v6670, %v6662
    %v7639 = vpack.c.b16 %v6671, %v6663
    %v7640 = vpack.c.b16 %v6672, %v6664
    %v7641 = vpack.c.b16 %v6673, %v6665
    %v7642 = vpack.c.b16 %v6682, %v6674
    %v7643 = vpack.c.b16 %v6683, %v6675
    %v7644 = vpack.c.b16 %v6684, %v6676
    %v7645 = vpack.c.b16 %v6685, %v6677
    %v7646 = vpack.c.b16 %v6686, %v6678
    %v7647 = vpack.c.b16 %v6687, %v6679
    %v7648 = vpack.c.b16 %v6688, %v6680
    %v7649 = vpack.c.b16 %v6689, %v6681
    %v7650 = vpack.c.b16 %v6698, %v6690
    %v7651 = vpack.c.b16 %v6699, %v6691
    %v7652 = vpack.c.b16 %v6700, %v6692
    %v7653 = vpack.c.b16 %v6701, %v6693
    %v7654 = vpack.c.b16 %v6702, %v6694
    %v7655 = vpack.c.b16 %v6703, %v6695
    %v7656 = vpack.c.b16 %v6704, %v6696
    %v7657 = vpack.c.b16 %v6705, %v6697
    %v7658 = vpack.c.b16 %v6714, %v6706
    %v7659 = vpack.c.b16 %v6715, %v6707
    %v7660 = vpack.c.b16 %v6716, %v6708
    %v7661 = vpack.c.b16 %v6717, %v6709
    %v7662 = vpack.c.b16 %v6718, %v6710
    %v7663 = vpack.c.b16 %v6719, %v6711
    %v7664 = vpack.c.b16 %v6720, %v6712
    %v7665 = vpack.c.b16 %v6721, %v6713
    %v7666 = vpack.c.b16 %v6730, %v6722
    %v7667 = vpack.c.b16 %v6731, %v6723
    %v7668 = vpack.c.b16 %v6732, %v6724
    %v7669 = vpack.c.b16 %v6733, %v6725
    %v7670 = vpack.c.b16 %v6734, %v6726
    %v7671 = vpack.c.b16 %v6735, %v6727
    %v7672 = vpack.c.b16 %v6736, %v6728
    %v7673 = vpack.c.b16 %v6737, %v6729
    %v7674 = vpack.c.b16 %v6746, %v6738
    %v7675 = vpack.c.b16 %v6747, %v6739
    %v7676 = vpack.c.b16 %v6748, %v6740
    %v7677 = vpack.c.b16 %v6749, %v6741
    %v7678 = vpack.c.b16 %v6750, %v6742
    %v7679 = vpack.c.b16 %v6751, %v6743
    %v7680 = vpack.c.b16 %v6752, %v6744
    %v7681 = vpack.c.b16 %v6753, %v6745
    %v7682 = vpack.c.b16 %v6762, %v6754
    %v7683 = vpack.c.b16 %v6763, %v6755
    %v7684 = vpack.c.b16 %v6764, %v6756
    %v7685 = vpack.c.b16 %v6765, %v6757
    %v7686 = vpack.c.b16 %v6766, %v6758
    %v7687 = vpack.c.b16 %v6767, %v6759
    %v7688 = vpack.c.b16 %v6768, %v6760
    %v7689 = vpack.c.b16 %v6769, %v6761
    %v7690 = vpack.c.b16 %v6778, %v6770
    %v7691 = vpack.c.b16 %v6779, %v6771
    %v7692 = vpack.c.b16 %v6780, %v6772
    %v7693 = vpack.c.b16 %v6781, %v6773
    %v7694 = vpack.c.b16 %v6782, %v6774
    %v7695 = vpack.c.b16 %v6783, %v6775
    %v7696 = vpack.c.b16 %v6784, %v6776
    %v7697 = vpack.c.b16 %v6785, %v6777
    %v7698 = vpack.c.b16 %v6794, %v6786
    %v7699 = vpack.c.b16 %v6795, %v6787
    %v7700 = vpack.c.b16 %v6796, %v6788
    %v7701 = vpack.c.b16 %v6797, %v6789
    %v7702 = vpack.c.b16 %v6798, %v6790
    %v7703 = vpack.c.b16 %v6799, %v6791
    %v7704 = vpack.c.b16 %v6800, %v6792
    %v7705 = vpack.c.b16 %v6801, %v6793
    %v7706 = vpack.c.b16 %v6810, %v6802
    %v7707 = vpack.c.b16 %v6811, %v6803
    %v7708 = vpack.c.b16 %v6812, %v6804
    %v7709 = vpack.c.b16 %v6813, %v6805
    %v7710 = vpack.c.b16 %v6814, %v6806
    %v7711 = vpack.c.b16 %v6815, %v6807
    %v7712 = vpack.c.b16 %v6816, %v6808
    %v7713 = vpack.c.b16 %v6817, %v6809
    %v7714 = vpack.c.b16 %v6826, %v6818
    %v7715 = vpack.c.b16 %v6827, %v6819
    %v7716 = vpack.c.b16 %v6828, %v6820
    %v7717 = vpack.c.b16 %v6829, %v6821
    %v7718 = vpack.c.b16 %v6830, %v6822
    %v7719 = vpack.c.b16 %v6831, %v6823
    %v7720 = vpack.c.b16 %v6832, %v6824
    %v7721 = vpack.c.b16 %v6833, %v6825
    %v7722 = vpack.c.b16 %v6842, %v6834
    %v7723 = vpack.c.b16 %v6843, %v6835
    %v7724 = vpack.c.b16 %v6844, %v6836
    %v7725 = vpack.c.b16 %v6845, %v6837
    %v7726 = vpack.c.b16 %v6846, %v6838
    %v7727 = vpack.c.b16 %v6847, %v6839
    %v7728 = vpack.c.b16 %v6848, %v6840
    %v7729 = vpack.c.b16 %v6849, %v6841
    %v7730 = vpack.c.b16 %v6858, %v6850
    %v7731 = vpack.c.b16 %v6859, %v6851
    %v7732 = vpack.c.b16 %v6860, %v6852
    %v7733 = vpack.c.b16 %v6861, %v6853
    %v7734 = vpack.c.b16 %v6862, %v6854
    %v7735 = vpack.c.b16 %v6863, %v6855
    %v7736 = vpack.c.b16 %v6864, %v6856
    %v7737 = vpack.c.b16 %v6865, %v6857
    %v7738 = vpack.c.b16 %v6874, %v6866
    %v7739 = vpack.c.b16 %v6875, %v6867
    %v7740 = vpack.c.b16 %v6876, %v6868
    %v7741 = vpack.c.b16 %v6877, %v6869
    %v7742 = vpack.c.b16 %v6878, %v6870
    %v7743 = vpack.c.b16 %v6879, %v6871
    %v7744 = vpack.c.b16 %v6880, %v6872
    %v7745 = vpack.c.b16 %v6881, %v6873
    %v7746 = vpack.c.b16 %v6890, %v6882
    %v7747 = vpack.c.b16 %v6891, %v6883
    %v7748 = vpack.c.b16 %v6892, %v6884
    %v7749 = vpack.c.b16 %v6893, %v6885
    %v7750 = vpack.c.b16 %v6894, %v6886
    %v7751 = vpack.c.b16 %v6895, %v6887
    %v7752 = vpack.c.b16 %v6896, %v6888
    %v7753 = vpack.c.b16 %v6897, %v6889
    %v7754 = vpack.c.b16 %v6906, %v6898
    %v7755 = vpack.c.b16 %v6907, %v6899
    %v7756 = vpack.c.b16 %v6908, %v6900
    %v7757 = vpack.c.b16 %v6909, %v6901
    %v7758 = vpack.c.b16 %v6910, %v6902
    %v7759 = vpack.c.b16 %v6911, %v6903
    %v7760 = vpack.c.b16 %v6912, %v6904
    %v7761 = vpack.c.b16 %v6913, %v6905
    %v7762 = vpack.c.b16 %v6922, %v6914
    %v7763 = vpack.c.b16 %v6923, %v6915
    %v7764 = vpack.c.b16 %v6924, %v6916
    %v7765 = vpack.c.b16 %v6925, %v6917
    %v7766 = vpack.c.b16 %v6926, %v6918
    %v7767 = vpack.c.b16 %v6927, %v6919
    %v7768 = vpack.c.b16 %v6928, %v6920
    %v7769 = vpack.c.b16 %v6929, %v6921
    %v7770 = vpack.c.b16 %v6938, %v6930
    %v7771 = vpack.c.b16 %v6939, %v6931
    %v7772 = vpack.c.b16 %v6940, %v6932
    %v7773 = vpack.c.b16 %v6941, %v6933
    %v7774 = vpack.c.b16 %v6942, %v6934
    %v7775 = vpack.c.b16 %v6943, %v6935
    %v7776 = vpack.c.b16 %v6944, %v6936
    %v7777 = vpack.c.b16 %v6945, %v6937
    %v7778 = vpack.c.b16 %v6954, %v6946
    %v7779 = vpack.c.b16 %v6955, %v6947
    %v7780 = vpack.c.b16 %v6956, %v6948
    %v7781 = vpack.c.b16 %v6957, %v6949
    %v7782 = vpack.c.b16 %v6958, %v6950
    %v7783 = vpack.c.b16 %v6959, %v6951
    %v7784 = vpack.c.b16 %v6960, %v6952
    %v7785 = vpack.c.b16 %v6961, %v6953
    %v7786 = vpack.c.b16 %v6970, %v6962
    %v7787 = vpack.c.b16 %v6971, %v6963
    %v7788 = vpack.c.b16 %v6972, %v6964
    %v7789 = vpack.c.b16 %v6973, %v6965
    %v7790 = vpack.c.b16 %v6974, %v6966
    %v7791 = vpack.c.b16 %v6975, %v6967
    %v7792 = vpack.c.b16 %v6976, %v6968
    %v7793 = vpack.c.b16 %v6977, %v6969
    %v7794 = vpack.c.b16 %v6986, %v6978
    %v7795 = vpack.c.b16 %v6987, %v6979
    %v7796 = vpack.c.b16 %v6988, %v6980
    %v7797 = vpack.c.b16 %v6989, %v6981
    %v7798 = vpack.c.b16 %v6990, %v6982
    %v7799 = vpack.c.b16 %v6991, %v6983
    %v7800 = vpack.c.b16 %v6992, %v6984
    %v7801 = vpack.c.b16 %v6993, %v6985
    %v7802 = vpack.c.b16 %v7002, %v6994
    %v7803 = vpack.c.b16 %v7003, %v6995
    %v7804 = vpack.c.b16 %v7004, %v6996
    %v7805 = vpack.c.b16 %v7005, %v6997
    %v7806 = vpack.c.b16 %v7006, %v6998
    %v7807 = vpack.c.b16 %v7007, %v6999
    %v7808 = vpack.c.b16 %v7008, %v7000
    %v7809 = vpack.c.b16 %v7009, %v7001
    %v7810 = vpack.c.b16 %v7018, %v7010
    %v7811 = vpack.c.b16 %v7019, %v7011
    %v7812 = vpack.c.b16 %v7020, %v7012
    %v7813 = vpack.c.b16 %v7021, %v7013
    %v7814 = vpack.c.b16 %v7022, %v7014
    %v7815 = vpack.c.b16 %v7023, %v7015
    %v7816 = vpack.c.b16 %v7024, %v7016
    %v7817 = vpack.c.b16 %v7025, %v7017
    %v7818 = vpack.c.b16 %v7034, %v7026
    %v7819 = vpack.c.b16 %v7035, %v7027
    %v7820 = vpack.c.b16 %v7036, %v7028
    %v7821 = vpack.c.b16 %v7037, %v7029
    %v7822 = vpack.c.b16 %v7038, %v7030
    %v7823 = vpack.c.b16 %v7039, %v7031
    %v7824 = vpack.c.b16 %v7040, %v7032
    %v7825 = vpack.c.b16 %v7041, %v7033
    %v7826 = vpack.c.b16 %v7050, %v7042
    %v7827 = vpack.c.b16 %v7051, %v7043
    %v7828 = vpack.c.b16 %v7052, %v7044
    %v7829 = vpack.c.b16 %v7053, %v7045
    %v7830 = vpack.c.b16 %v7054, %v7046
    %v7831 = vpack.c.b16 %v7055, %v7047
    %v7832 = vpack.c.b16 %v7056, %v7048
    %v7833 = vpack.c.b16 %v7057, %v7049
    %v7834 = vpack.c.b16 %v7066, %v7058
    %v7835 = vpack.c.b16 %v7067, %v7059
    %v7836 = vpack.c.b16 %v7068, %v7060
    %v7837 = vpack.c.b16 %v7069, %v7061
    %v7838 = vpack.c.b16 %v7070, %v7062
    %v7839 = vpack.c.b16 %v7071, %v7063
    %v7840 = vpack.c.b16 %v7072, %v7064
    %v7841 = vpack.c.b16 %v7073, %v7065
    %v7842 = vpack.c.b16 %v7082, %v7074
    %v7843 = vpack.c.b16 %v7083, %v7075
    %v7844 = vpack.c.b16 %v7084, %v7076
    %v7845 = vpack.c.b16 %v7085, %v7077
    %v7846 = vpack.c.b16 %v7086, %v7078
    %v7847 = vpack.c.b16 %v7087, %v7079
    %v7848 = vpack.c.b16 %v7088, %v7080
    %v7849 = vpack.c.b16 %v7089, %v7081
    %v7850 = vpack.c.b16 %v7098, %v7090
    %v7851 = vpack.c.b16 %v7099, %v7091
    %v7852 = vpack.c.b16 %v7100, %v7092
    %v7853 = vpack.c.b16 %v7101, %v7093
    %v7854 = vpack.c.b16 %v7102, %v7094
    %v7855 = vpack.c.b16 %v7103, %v7095
    %v7856 = vpack.c.b16 %v7104, %v7096
    %v7857 = vpack.c.b16 %v7105, %v7097
    %v7858 = vpack.c.b16 %v7114, %v7106
    %v7859 = vpack.c.b16 %v7115, %v7107
    %v7860 = vpack.c.b16 %v7116, %v7108
    %v7861 = vpack.c.b16 %v7117, %v7109
    %v7862 = vpack.c.b16 %v7118, %v7110
    %v7863 = vpack.c.b16 %v7119, %v7111
    %v7864 = vpack.c.b16 %v7120, %v7112
    %v7865 = vpack.c.b16 %v7121, %v7113
    %v7866 = vpack.c.b16 %v7130, %v7122
    %v7867 = vpack.c.b16 %v7131, %v7123
    %v7868 = vpack.c.b16 %v7132, %v7124
    %v7869 = vpack.c.b16 %v7133, %v7125
    %v7870 = vpack.c.b16 %v7134, %v7126
    %v7871 = vpack.c.b16 %v7135, %v7127
    %v7872 = vpack.c.b16 %v7136, %v7128
    %v7873 = vpack.c.b16 %v7137, %v7129
    %v7874 = vpack.c.b16 %v7146, %v7138
    %v7875 = vpack.c.b16 %v7147, %v7139
    %v7876 = vpack.c.b16 %v7148, %v7140
    %v7877 = vpack.c.b16 %v7149, %v7141
    %v7878 = vpack.c.b16 %v7150, %v7142
    %v7879 = vpack.c.b16 %v7151, %v7143
    %v7880 = vpack.c.b16 %v7152, %v7144
    %v7881 = vpack.c.b16 %v7153, %v7145
    %v7882 = vpack.c.b16 %v7162, %v7154
    %v7883 = vpack.c.b16 %v7163, %v7155
    %v7884 = vpack.c.b16 %v7164, %v7156
    %v7885 = vpack.c.b16 %v7165, %v7157
    %v7886 = vpack.c.b16 %v7166, %v7158
    %v7887 = vpack.c.b16 %v7167, %v7159
    %v7888 = vpack.c.b16 %v7168, %v7160
    %v7889 = vpack.c.b16 %v7169, %v7161
    %v7890 = vpack.c.b16 %v7178, %v7170
    %v7891 = vpack.c.b16 %v7179, %v7171
    %v7892 = vpack.c.b16 %v7180, %v7172
    %v7893 = vpack.c.b16 %v7181, %v7173
    %v7894 = vpack.c.b16 %v7182, %v7174
    %v7895 = vpack.c.b16 %v7183, %v7175
    %v7896 = vpack.c.b16 %v7184, %v7176
    %v7897 = vpack.c.b16 %v7185, %v7177
    %v7898 = vpack.c.b16 %v7194, %v7186
    %v7899 = vpack.c.b16 %v7195, %v7187
    %v7900 = vpack.c.b16 %v7196, %v7188
    %v7901 = vpack.c.b16 %v7197, %v7189
    %v7902 = vpack.c.b16 %v7198, %v7190
    %v7903 = vpack.c.b16 %v7199, %v7191
    %v7904 = vpack.c.b16 %v7200, %v7192
    %v7905 = vpack.c.b16 %v7201, %v7193
    %v7906 = vpack.c.b16 %v7210, %v7202
    %v7907 = vpack.c.b16 %v7211, %v7203
    %v7908 = vpack.c.b16 %v7212, %v7204
    %v7909 = vpack.c.b16 %v7213, %v7205
    %v7910 = vpack.c.b16 %v7214, %v7206
    %v7911 = vpack.c.b16 %v7215, %v7207
    %v7912 = vpack.c.b16 %v7216, %v7208
    %v7913 = vpack.c.b16 %v7217, %v7209
    %v7914 = vpack.c.b16 %v7226, %v7218
    %v7915 = vpack.c.b16 %v7227, %v7219
    %v7916 = vpack.c.b16 %v7228, %v7220
    %v7917 = vpack.c.b16 %v7229, %v7221
    %v7918 = vpack.c.b16 %v7230, %v7222
    %v7919 = vpack.c.b16 %v7231, %v7223
    %v7920 = vpack.c.b16 %v7232, %v7224
    %v7921 = vpack.c.b16 %v7233, %v7225
    %v7922 = vpack.c.b16 %v7242, %v7234
    %v7923 = vpack.c.b16 %v7243, %v7235
    %v7924 = vpack.c.b16 %v7244, %v7236
    %v7925 = vpack.c.b16 %v7245, %v7237
    %v7926 = vpack.c.b16 %v7246, %v7238
    %v7927 = vpack.c.b16 %v7247, %v7239
    %v7928 = vpack.c.b16 %v7248, %v7240
    %v7929 = vpack.c.b16 %v7249, %v7241
    %v7930 = vpack.c.b16 %v7258, %v7250
    %v7931 = vpack.c.b16 %v7259, %v7251
    %v7932 = vpack.c.b16 %v7260, %v7252
    %v7933 = vpack.c.b16 %v7261, %v7253
    %v7934 = vpack.c.b16 %v7262, %v7254
    %v7935 = vpack.c.b16 %v7263, %v7255
    %v7936 = vpack.c.b16 %v7264, %v7256
    %v7937 = vpack.c.b16 %v7265, %v7257
    %v7938 = vpack.c.b16 %v7274, %v7266
    %v7939 = vpack.c.b16 %v7275, %v7267
    %v7940 = vpack.c.b16 %v7276, %v7268
    %v7941 = vpack.c.b16 %v7277, %v7269
    %v7942 = vpack.c.b16 %v7278, %v7270
    %v7943 = vpack.c.b16 %v7279, %v7271
    %v7944 = vpack.c.b16 %v7280, %v7272
    %v7945 = vpack.c.b16 %v7281, %v7273
    %v7946 = vpack.c.b16 %v7290, %v7282
    %v7947 = vpack.c.b16 %v7291, %v7283
    %v7948 = vpack.c.b16 %v7292, %v7284
    %v7949 = vpack.c.b16 %v7293, %v7285
    %v7950 = vpack.c.b16 %v7294, %v7286
    %v7951 = vpack.c.b16 %v7295, %v7287
    %v7952 = vpack.c.b16 %v7296, %v7288
    %v7953 = vpack.c.b16 %v7297, %v7289
    %v7954 = vpack.c.b16 %v7306, %v7298
    %v7955 = vpack.c.b16 %v7307, %v7299
    %v7956 = vpack.c.b16 %v7308, %v7300
    %v7957 = vpack.c.b16 %v7309, %v7301
    %v7958 = vpack.c.b16 %v7310, %v7302
    %v7959 = vpack.c.b16 %v7311, %v7303
    %v7960 = vpack.c.b16 %v7312, %v7304
    %v7961 = vpack.c.b16 %v7313, %v7305
    %v7962 = vpack.c.b16 %v7322, %v7314
    %v7963 = vpack.c.b16 %v7323, %v7315
    %v7964 = vpack.c.b16 %v7324, %v7316
    %v7965 = vpack.c.b16 %v7325, %v7317
    %v7966 = vpack.c.b16 %v7326, %v7318
    %v7967 = vpack.c.b16 %v7327, %v7319
    %v7968 = vpack.c.b16 %v7328, %v7320
    %v7969 = vpack.c.b16 %v7329, %v7321
    %v7970 = vpack.c.b16 %v7338, %v7330
    %v7971 = vpack.c.b16 %v7339, %v7331
    %v7972 = vpack.c.b16 %v7340, %v7332
    %v7973 = vpack.c.b16 %v7341, %v7333
    %v7974 = vpack.c.b16 %v7342, %v7334
    %v7975 = vpack.c.b16 %v7343, %v7335
    %v7976 = vpack.c.b16 %v7344, %v7336
    %v7977 = vpack.c.b16 %v7345, %v7337
    %v7978 = vpack.c.b16 %v7354, %v7346
    %v7979 = vpack.c.b16 %v7355, %v7347
    %v7980 = vpack.c.b16 %v7356, %v7348
    %v7981 = vpack.c.b16 %v7357, %v7349
    %v7982 = vpack.c.b16 %v7358, %v7350
    %v7983 = vpack.c.b16 %v7359, %v7351
    %v7984 = vpack.c.b16 %v7360, %v7352
    %v7985 = vpack.c.b16 %v7361, %v7353
    %v7986 = vpack.c.b16 %v7370, %v7362
    %v7987 = vpack.c.b16 %v7371, %v7363
    %v7988 = vpack.c.b16 %v7372, %v7364
    %v7989 = vpack.c.b16 %v7373, %v7365
    %v7990 = vpack.c.b16 %v7374, %v7366
    %v7991 = vpack.c.b16 %v7375, %v7367
    %v7992 = vpack.c.b16 %v7376, %v7368
    %v7993 = vpack.c.b16 %v7377, %v7369
    %v7994 = vpack.c.b16 %v7386, %v7378
    %v7995 = vpack.c.b16 %v7387, %v7379
    %v7996 = vpack.c.b16 %v7388, %v7380
    %v7997 = vpack.c.b16 %v7389, %v7381
    %v7998 = vpack.c.b16 %v7390, %v7382
    %v7999 = vpack.c.b16 %v7391, %v7383
    %v8000 = vpack.c.b16 %v7392, %v7384
    %v8001 = vpack.c.b16 %v7393, %v7385
    %v8002 = vpack.c.b16 %v7402, %v7394
    %v8003 = vpack.c.b16 %v7403, %v7395
    %v8004 = vpack.c.b16 %v7404, %v7396
    %v8005 = vpack.c.b16 %v7405, %v7397
    %v8006 = vpack.c.b16 %v7406, %v7398
    %v8007 = vpack.c.b16 %v7407, %v7399
    %v8008 = vpack.c.b16 %v7408, %v7400
    %v8009 = vpack.c.b16 %v7409, %v7401
    %v8010 = vpack.c.b16 %v7418, %v7410
    %v8011 = vpack.c.b16 %v7419, %v7411
    %v8012 = vpack.c.b16 %v7420, %v7412
    %v8013 = vpack.c.b16 %v7421, %v7413
    %v8014 = vpack.c.b16 %v7422, %v7414
    %v8015 = vpack.c.b16 %v7423, %v7415
    %v8016 = vpack.c.b16 %v7424, %v7416
    %v8017 = vpack.c.b16 %v7425, %v7417
    %v8018 = vpack.c.b16 %v7434, %v7426
    %v8019 = vpack.c.b16 %v7435, %v7427
    %v8020 = vpack.c.b16 %v7436, %v7428
    %v8021 = vpack.c.b16 %v7437, %v7429
    %v8022 = vpack.c.b16 %v7438, %v7430
    %v8023 = vpack.c.b16 %v7439, %v7431
    %v8024 = vpack.c.b16 %v7440, %v7432
    %v8025 = vpack.c.b16 %v7441, %v7433
    %v8026 = vpack.c.b16 %v7450, %v7442
    %v8027 = vpack.c.b16 %v7451, %v7443
    %v8028 = vpack.c.b16 %v7452, %v7444
    %v8029 = vpack.c.b16 %v7453, %v7445
    %v8030 = vpack.c.b16 %v7454, %v7446
    %v8031 = vpack.c.b16 %v7455, %v7447
    %v8032 = vpack.c.b16 %v7456, %v7448
    %v8033 = vpack.c.b16 %v7457, %v7449
    %v8034 = vpack.c.b16 %v7466, %v7458
    %v8035 = vpack.c.b16 %v7467, %v7459
    %v8036 = vpack.c.b16 %v7468, %v7460
    %v8037 = vpack.c.b16 %v7469, %v7461
    %v8038 = vpack.c.b16 %v7470, %v7462
    %v8039 = vpack.c.b16 %v7471, %v7463
    %v8040 = vpack.c.b16 %v7472, %v7464
    %v8041 = vpack.c.b16 %v7473, %v7465
    %v8042 = vpack.c.b16 %v7482, %v7474
    %v8043 = vpack.c.b16 %v7483, %v7475
    %v8044 = vpack.c.b16 %v7484, %v7476
    %v8045 = vpack.c.b16 %v7485, %v7477
    %v8046 = vpack.c.b16 %v7486, %v7478
    %v8047 = vpack.c.b16 %v7487, %v7479
    %v8048 = vpack.c.b16 %v7488, %v7480
    %v8049 = vpack.c.b16 %v7489, %v7481
    %v8050 = vpack.c.b16 %v7498, %v7490
    %v8051 = vpack.c.b16 %v7499, %v7491
    %v8052 = vpack.c.b16 %v7500, %v7492
    %v8053 = vpack.c.b16 %v7501, %v7493
    %v8054 = vpack.c.b16 %v7502, %v7494
    %v8055 = vpack.c.b16 %v7503, %v7495
    %v8056 = vpack.c.b16 %v7504, %v7496
    %v8057 = vpack.c.b16 %v7505, %v7497
    %v8058 = vpack.c.b16 %v7514, %v7506
    %v8059 = vpack.c.b16 %v7515, %v7507
    %v8060 = vpack.c.b16 %v7516, %v7508
    %v8061 = vpack.c.b16 %v7517, %v7509
    %v8062 = vpack.c.b16 %v7518, %v7510
    %v8063 = vpack.c.b16 %v7519, %v7511
    %v8064 = vpack.c.b16 %v7520, %v7512
    %v8065 = vpack.c.b16 %v7521, %v7513
    %v8066 = vpack.c.b16 %v7530, %v7522
    %v8067 = vpack.c.b16 %v7531, %v7523
    %v8068 = vpack.c.b16 %v7532, %v7524
    %v8069 = vpack.c.b16 %v7533, %v7525
    %v8070 = vpack.c.b16 %v7534, %v7526
    %v8071 = vpack.c.b16 %v7535, %v7527
    %v8072 = vpack.c.b16 %v7536, %v7528
    %v8073 = vpack.c.b16 %v7537, %v7529
    %v8074 = vpack.c.b16 %v7546, %v7538
    %v8075 = vpack.c.b16 %v7547, %v7539
    %v8076 = vpack.c.b16 %v7548, %v7540
    %v8077 = vpack.c.b16 %v7549, %v7541
    %v8078 = vpack.c.b16 %v7550, %v7542
    %v8079 = vpack.c.b16 %v7551, %v7543
    %v8080 = vpack.c.b16 %v7552, %v7544
    %v8081 = vpack.c.b16 %v7553, %v7545
    %v8082 = vpack.c.b16 %v7562, %v7554
    %v8083 = vpack.c.b16 %v7563, %v7555
    %v8084 = vpack.c.b16 %v7564, %v7556
    %v8085 = vpack.c.b16 %v7565, %v7557
    %v8086 = vpack.c.b16 %v7566, %v7558
    %v8087 = vpack.c.b16 %v7567, %v7559
    %v8088 = vpack.c.b16 %v7568, %v7560
    %v8089 = vpack.c.b16 %v7569, %v7561
    %v8090 = vpack.c.b16 %v7578, %v7570
    %v8091 = vpack.c.b16 %v7579, %v7571
    %v8092 = vpack.c.b16 %v7580, %v7572
    %v8093 = vpack.c.b16 %v7581, %v7573
    %v8094 = vpack.c.b16 %v7582, %v7574
    %v8095 = vpack.c.b16 %v7583, %v7575
    %v8096 = vpack.c.b16 %v7584, %v7576
    %v8097 = vpack.c.b16 %v7585, %v7577
    %8610 = vmatprep.subr.bf16.mxu0 %v7587
    %8611 = vmatpush1.bf16.msra.mxu0 %v7586
    %8612 = vmatprep.subr.bf16.mxu0 %v7595
    %8613 = vmatpush1.bf16.msra.mxu0 %v7594
    %8614 = vmatprep.subr.bf16.mxu0 %v7603
    %8615 = vmatpush1.bf16.msra.mxu0 %v7602
    %8616 = vmatprep.subr.bf16.mxu0 %v7611
    %8617 = vmatpush1.bf16.msra.mxu0 %v7610
    %8618 = vmatprep.subr.bf16.mxu0 %v7619
    %8619 = vmatpush1.bf16.msra.mxu0 %v7618
    %8620 = vmatprep.subr.bf16.mxu0 %v7627
    %8621 = vmatpush1.bf16.msra.mxu0 %v7626
    %8622 = vmatprep.subr.bf16.mxu0 %v7635
    %8623 = vmatpush1.bf16.msra.mxu0 %v7634
    %8624 = vmatprep.subr.bf16.mxu0 %v7643
    %8625 = vmatpush1.bf16.msra.mxu0 %v7642
    %8626 = vmatprep.subr.bf16.mxu0 %v7651
    %8627 = vmatpush1.bf16.msra.mxu0 %v7650
    %8628 = vmatprep.subr.bf16.mxu0 %v7659
    %8629 = vmatpush1.bf16.msra.mxu0 %v7658
    %8630 = vmatprep.subr.bf16.mxu0 %v7667
    %8631 = vmatpush1.bf16.msra.mxu0 %v7666
    %8632 = vmatprep.subr.bf16.mxu0 %v7675
    %8633 = vmatpush1.bf16.msra.mxu0 %v7674
    %8634 = vmatprep.subr.bf16.mxu0 %v7683
    %8635 = vmatpush1.bf16.msra.mxu0 %v7682
    %8636 = vmatprep.subr.bf16.mxu0 %v7691
    %8637 = vmatpush1.bf16.msra.mxu0 %v7690
    %8638 = vmatprep.subr.bf16.mxu0 %v7699
    %8639 = vmatpush1.bf16.msra.mxu0 %v7698
    %8640 = vmatprep.subr.bf16.mxu0 %v7707
    %8641 = vmatpush1.bf16.msra.mxu0 %v7706
    %8642 = vmatprep.mubr.bf16.mxu0 %v5489
    %8643 = vmatmul.mubr.bf16.gmra.mrb[0].mxu0 %v5488
    %v8644 = vpop.f32.mrb[0].mxu0
    %v8645 = vadd.f32 %v6013, %v8644
    %v8646 = vpop.f32.mrb[0].mxu0
    %v8647 = vadd.f32 %v6017, %v8646
    %v8648 = vpop.f32.mrb[0].mxu0
    %v8649 = vpop.f32.mrb[0].mxu0
    %8650 = vdwg.mxu0
    %8651 = vmatprep.subr.bf16.mxu0 %v7715
    %8652 = vmatpush1.bf16.msra.mxu0 %v7714
    %8653 = vmatprep.subr.bf16.mxu0 %v7723
    %8654 = vmatpush1.bf16.msra.mxu0 %v7722
    %8655 = vmatprep.subr.bf16.mxu0 %v7731
    %8656 = vmatpush1.bf16.msra.mxu0 %v7730
    %8657 = vmatprep.subr.bf16.mxu0 %v7739
    %8658 = vmatpush1.bf16.msra.mxu0 %v7738
    %8659 = vmatprep.subr.bf16.mxu0 %v7747
    %8660 = vmatpush1.bf16.msra.mxu0 %v7746
    %8661 = vmatprep.subr.bf16.mxu0 %v7755
    %8662 = vmatpush1.bf16.msra.mxu0 %v7754
    %8663 = vmatprep.subr.bf16.mxu0 %v7763
    %8664 = vmatpush1.bf16.msra.mxu0 %v7762
    %8665 = vmatprep.subr.bf16.mxu0 %v7771
    %8666 = vmatpush1.bf16.msra.mxu0 %v7770
    %8667 = vmatprep.subr.bf16.mxu0 %v7779
    %8668 = vmatpush1.bf16.msra.mxu0 %v7778
    %8669 = vmatprep.subr.bf16.mxu0 %v7787
    %8670 = vmatpush1.bf16.msra.mxu0 %v7786
    %8671 = vmatprep.subr.bf16.mxu0 %v7795
    %8672 = vmatpush1.bf16.msra.mxu0 %v7794
    %8673 = vmatprep.subr.bf16.mxu0 %v7803
    %8674 = vmatpush1.bf16.msra.mxu0 %v7802
    %8675 = vmatprep.subr.bf16.mxu0 %v7811
    %8676 = vmatpush1.bf16.msra.mxu0 %v7810
    %8677 = vmatprep.subr.bf16.mxu0 %v7819
    %8678 = vmatpush1.bf16.msra.mxu0 %v7818
    %8679 = vmatprep.subr.bf16.mxu0 %v7827
    %8680 = vmatpush1.bf16.msra.mxu0 %v7826
    %8681 = vmatprep.subr.bf16.mxu0 %v7835
    %8682 = vmatpush1.bf16.msra.mxu0 %v7834
    %8683 = vmatprep.mubr.bf16.mxu0 %v5491
    %8684 = vmatmul.mubr.bf16.gmra.mrb[0].mxu0 %v5490
    %v8685 = vpop.f32.mrb[0].mxu0
    %v8686 = vadd.f32 %v8645, %v8685
    %v8687 = vpop.f32.mrb[0].mxu0
    %v8688 = vadd.f32 %v8647, %v8687
    %v8689 = vpop.f32.mrb[0].mxu0
    %v8690 = vpop.f32.mrb[0].mxu0
    %8691 = vdwg.mxu0
    %8692 = vmatprep.subr.bf16.mxu0 %v7843
    %8693 = vmatpush1.bf16.msra.mxu0 %v7842
    %8694 = vmatprep.subr.bf16.mxu0 %v7851
    %8695 = vmatpush1.bf16.msra.mxu0 %v7850
    %8696 = vmatprep.subr.bf16.mxu0 %v7859
    %8697 = vmatpush1.bf16.msra.mxu0 %v7858
    %8698 = vmatprep.subr.bf16.mxu0 %v7867
    %8699 = vmatpush1.bf16.msra.mxu0 %v7866
    %8700 = vmatprep.subr.bf16.mxu0 %v7875
    %8701 = vmatpush1.bf16.msra.mxu0 %v7874
    %8702 = vmatprep.subr.bf16.mxu0 %v7883
    %8703 = vmatpush1.bf16.msra.mxu0 %v7882
    %8704 = vmatprep.subr.bf16.mxu0 %v7891
    %8705 = vmatpush1.bf16.msra.mxu0 %v7890
    %8706 = vmatprep.subr.bf16.mxu0 %v7899
    %8707 = vmatpush1.bf16.msra.mxu0 %v7898
    %8708 = vmatprep.subr.bf16.mxu0 %v7907
    %8709 = vmatpush1.bf16.msra.mxu0 %v7906
    %8710 = vmatprep.subr.bf16.mxu0 %v7915
    %8711 = vmatpush1.bf16.msra.mxu0 %v7914
    %8712 = vmatprep.subr.bf16.mxu0 %v7923
    %8713 = vmatpush1.bf16.msra.mxu0 %v7922
    %8714 = vmatprep.subr.bf16.mxu0 %v7931
    %8715 = vmatpush1.bf16.msra.mxu0 %v7930
    %8716 = vmatprep.subr.bf16.mxu0 %v7939
    %8717 = vmatpush1.bf16.msra.mxu0 %v7938
    %8718 = vmatprep.subr.bf16.mxu0 %v7947
    %8719 = vmatpush1.bf16.msra.mxu0 %v7946
    %8720 = vmatprep.subr.bf16.mxu0 %v7955
    %8721 = vmatpush1.bf16.msra.mxu0 %v7954
    %8722 = vmatprep.subr.bf16.mxu0 %v7963
    %8723 = vmatpush1.bf16.msra.mxu0 %v7962
    %8724 = vmatprep.mubr.bf16.mxu0 %v5493
    %8725 = vmatmul.mubr.bf16.gmra.mrb[0].mxu0 %v5492
    %v8726 = vpop.f32.mrb[0].mxu0
    %v8727 = vadd.f32 %v8686, %v8726
    %v8728 = vpop.f32.mrb[0].mxu0
    %v8729 = vadd.f32 %v8688, %v8728
    %v8730 = vpop.f32.mrb[0].mxu0
    %v8731 = vpop.f32.mrb[0].mxu0
    %8732 = vdwg.mxu0
    %8733 = vmatprep.subr.bf16.mxu0 %v7971
    %8734 = vmatpush1.bf16.msra.mxu0 %v7970
    %8735 = vmatprep.subr.bf16.mxu0 %v7979
    %8736 = vmatpush1.bf16.msra.mxu0 %v7978
    %8737 = vmatprep.subr.bf16.mxu0 %v7987
    %8738 = vmatpush1.bf16.msra.mxu0 %v7986
    %8739 = vmatprep.subr.bf16.mxu0 %v7995
    %8740 = vmatpush1.bf16.msra.mxu0 %v7994
    %8741 = vmatprep.subr.bf16.mxu0 %v8003
    %8742 = vmatpush1.bf16.msra.mxu0 %v8002
    %8743 = vmatprep.subr.bf16.mxu0 %v8011
    %8744 = vmatpush1.bf16.msra.mxu0 %v8010
    %8745 = vmatprep.subr.bf16.mxu0 %v8019
    %8746 = vmatpush1.bf16.msra.mxu0 %v8018
    %8747 = vmatprep.subr.bf16.mxu0 %v8027
    %8748 = vmatpush1.bf16.msra.mxu0 %v8026
    %8749 = vmatprep.subr.bf16.mxu0 %v8035
    %8750 = vmatpush1.bf16.msra.mxu0 %v8034
    %8751 = vmatprep.subr.bf16.mxu0 %v8043
    %8752 = vmatpush1.bf16.msra.mxu0 %v8042
    %8753 = vmatprep.subr.bf16.mxu0 %v8051
    %8754 = vmatpush1.bf16.msra.mxu0 %v8050
    %8755 = vmatprep.subr.bf16.mxu0 %v8059
    %8756 = vmatpush1.bf16.msra.mxu0 %v8058
    %8757 = vmatprep.subr.bf16.mxu0 %v8067
    %8758 = vmatpush1.bf16.msra.mxu0 %v8066
    %8759 = vmatprep.subr.bf16.mxu0 %v8075
    %8760 = vmatpush1.bf16.msra.mxu0 %v8074
    %8761 = vmatprep.subr.bf16.mxu0 %v8083
    %8762 = vmatpush1.bf16.msra.mxu0 %v8082
    %8763 = vmatprep.subr.bf16.mxu0 %v8091
    %8764 = vmatpush1.bf16.msra.mxu0 %v8090
    %8765 = vmatprep.mubr.bf16.mxu0 %v5495
    %8766 = vmatmul.mubr.bf16.gmra.mrb[0].mxu0 %v5494
    %v8767 = vpop.f32.mrb[0].mxu0
    %v8768 = vadd.f32 %v8727, %v8767
    %v8769 = vpop.f32.mrb[0].mxu0
    %v8770 = vadd.f32 %v8729, %v8769
    %v8771 = vpop.f32.mrb[0].mxu0
    %v8772 = vpop.f32.mrb[0].mxu0
    %8773 = vdwg.mxu0
    %8774 = vmatprep.subr.bf16.mxu0 %v7589
    %8775 = vmatpush1.bf16.msra.mxu0 %v7588
    %8776 = vmatprep.subr.bf16.mxu0 %v7597
    %8777 = vmatpush1.bf16.msra.mxu0 %v7596
    %8778 = vmatprep.subr.bf16.mxu0 %v7605
    %8779 = vmatpush1.bf16.msra.mxu0 %v7604
    %8780 = vmatprep.subr.bf16.mxu0 %v7613
    %8781 = vmatpush1.bf16.msra.mxu0 %v7612
    %8782 = vmatprep.subr.bf16.mxu0 %v7621
    %8783 = vmatpush1.bf16.msra.mxu0 %v7620
    %8784 = vmatprep.subr.bf16.mxu0 %v7629
    %8785 = vmatpush1.bf16.msra.mxu0 %v7628
    %8786 = vmatprep.subr.bf16.mxu0 %v7637
    %8787 = vmatpush1.bf16.msra.mxu0 %v7636
    %8788 = vmatprep.subr.bf16.mxu0 %v7645
    %8789 = vmatpush1.bf16.msra.mxu0 %v7644
    %8790 = vmatprep.subr.bf16.mxu0 %v7653
    %8791 = vmatpush1.bf16.msra.mxu0 %v7652
    %8792 = vmatprep.subr.bf16.mxu0 %v7661
    %8793 = vmatpush1.bf16.msra.mxu0 %v7660
    %8794 = vmatprep.subr.bf16.mxu0 %v7669
    %8795 = vmatpush1.bf16.msra.mxu0 %v7668
    %8796 = vmatprep.subr.bf16.mxu0 %v7677
    %8797 = vmatpush1.bf16.msra.mxu0 %v7676
    %8798 = vmatprep.subr.bf16.mxu0 %v7685
    %8799 = vmatpush1.bf16.msra.mxu0 %v7684
    %8800 = vmatprep.subr.bf16.mxu0 %v7693
    %8801 = vmatpush1.bf16.msra.mxu0 %v7692
    %8802 = vmatprep.subr.bf16.mxu0 %v7701
    %8803 = vmatpush1.bf16.msra.mxu0 %v7700
    %8804 = vmatprep.subr.bf16.mxu0 %v7709
    %8805 = vmatpush1.bf16.msra.mxu0 %v7708
    %8806 = vmatprep.mubr.bf16.mxu0 %v5489
    %8807 = vmatmul.mubr.bf16.gmra.mrb[0].mxu0 %v5488
    %v8808 = vpop.f32.mrb[0].mxu0
    %v8809 = vadd.f32 %v6021, %v8808
    %v8810 = vpop.f32.mrb[0].mxu0
    %v8811 = vadd.f32 %v6025, %v8810
    %v8812 = vpop.f32.mrb[0].mxu0
    %v8813 = vpop.f32.mrb[0].mxu0
    %8814 = vdwg.mxu0
    %8815 = vmatprep.subr.bf16.mxu0 %v7717
    %8816 = vmatpush1.bf16.msra.mxu0 %v7716
    %8817 = vmatprep.subr.bf16.mxu0 %v7725
    %8818 = vmatpush1.bf16.msra.mxu0 %v7724
    %8819 = vmatprep.subr.bf16.mxu0 %v7733
    %8820 = vmatpush1.bf16.msra.mxu0 %v7732
    %8821 = vmatprep.subr.bf16.mxu0 %v7741
    %8822 = vmatpush1.bf16.msra.mxu0 %v7740
    %8823 = vmatprep.subr.bf16.mxu0 %v7749
    %8824 = vmatpush1.bf16.msra.mxu0 %v7748
    %8825 = vmatprep.subr.bf16.mxu0 %v7757
    %8826 = vmatpush1.bf16.msra.mxu0 %v7756
    %8827 = vmatprep.subr.bf16.mxu0 %v7765
    %8828 = vmatpush1.bf16.msra.mxu0 %v7764
    %8829 = vmatprep.subr.bf16.mxu0 %v7773
    %8830 = vmatpush1.bf16.msra.mxu0 %v7772
    %8831 = vmatprep.subr.bf16.mxu0 %v7781
    %8832 = vmatpush1.bf16.msra.mxu0 %v7780
    %8833 = vmatprep.subr.bf16.mxu0 %v7789
    %8834 = vmatpush1.bf16.msra.mxu0 %v7788
    %8835 = vmatprep.subr.bf16.mxu0 %v7797
    %8836 = vmatpush1.bf16.msra.mxu0 %v7796
    %8837 = vmatprep.subr.bf16.mxu0 %v7805
    %8838 = vmatpush1.bf16.msra.mxu0 %v7804
    %8839 = vmatprep.subr.bf16.mxu0 %v7813
    %8840 = vmatpush1.bf16.msra.mxu0 %v7812
    %8841 = vmatprep.subr.bf16.mxu0 %v7821
    %8842 = vmatpush1.bf16.msra.mxu0 %v7820
    %8843 = vmatprep.subr.bf16.mxu0 %v7829
    %8844 = vmatpush1.bf16.msra.mxu0 %v7828
    %8845 = vmatprep.subr.bf16.mxu0 %v7837
    %8846 = vmatpush1.bf16.msra.mxu0 %v7836
    %8847 = vmatprep.mubr.bf16.mxu0 %v5491
    %8848 = vmatmul.mubr.bf16.gmra.mrb[0].mxu0 %v5490
    %v8849 = vpop.f32.mrb[0].mxu0
    %v8850 = vadd.f32 %v8809, %v8849
    %v8851 = vpop.f32.mrb[0].mxu0
    %v8852 = vadd.f32 %v8811, %v8851
    %v8853 = vpop.f32.mrb[0].mxu0
    %v8854 = vpop.f32.mrb[0].mxu0
    %8855 = vdwg.mxu0
    %8856 = vmatprep.subr.bf16.mxu0 %v7845
    %8857 = vmatpush1.bf16.msra.mxu0 %v7844
    %8858 = vmatprep.subr.bf16.mxu0 %v7853
    %8859 = vmatpush1.bf16.msra.mxu0 %v7852
    %8860 = vmatprep.subr.bf16.mxu0 %v7861
    %8861 = vmatpush1.bf16.msra.mxu0 %v7860
    %8862 = vmatprep.subr.bf16.mxu0 %v7869
    %8863 = vmatpush1.bf16.msra.mxu0 %v7868
    %8864 = vmatprep.subr.bf16.mxu0 %v7877
    %8865 = vmatpush1.bf16.msra.mxu0 %v7876
    %8866 = vmatprep.subr.bf16.mxu0 %v7885
    %8867 = vmatpush1.bf16.msra.mxu0 %v7884
    %8868 = vmatprep.subr.bf16.mxu0 %v7893
    %8869 = vmatpush1.bf16.msra.mxu0 %v7892
    %8870 = vmatprep.subr.bf16.mxu0 %v7901
    %8871 = vmatpush1.bf16.msra.mxu0 %v7900
    %8872 = vmatprep.subr.bf16.mxu0 %v7909
    %8873 = vmatpush1.bf16.msra.mxu0 %v7908
    %8874 = vmatprep.subr.bf16.mxu0 %v7917
    %8875 = vmatpush1.bf16.msra.mxu0 %v7916
    %8876 = vmatprep.subr.bf16.mxu0 %v7925
    %8877 = vmatpush1.bf16.msra.mxu0 %v7924
    %8878 = vmatprep.subr.bf16.mxu0 %v7933
    %8879 = vmatpush1.bf16.msra.mxu0 %v7932
    %8880 = vmatprep.subr.bf16.mxu0 %v7941
    %8881 = vmatpush1.bf16.msra.mxu0 %v7940
    %8882 = vmatprep.subr.bf16.mxu0 %v7949
    %8883 = vmatpush1.bf16.msra.mxu0 %v7948
    %8884 = vmatprep.subr.bf16.mxu0 %v7957
    %8885 = vmatpush1.bf16.msra.mxu0 %v7956
    %8886 = vmatprep.subr.bf16.mxu0 %v7965
    %8887 = vmatpush1.bf16.msra.mxu0 %v7964
    %8888 = vmatprep.mubr.bf16.mxu0 %v5493
    %8889 = vmatmul.mubr.bf16.gmra.mrb[0].mxu0 %v5492
    %v8890 = vpop.f32.mrb[0].mxu0
    %v8891 = vadd.f32 %v8850, %v8890
    %v8892 = vpop.f32.mrb[0].mxu0
    %v8893 = vadd.f32 %v8852, %v8892
    %v8894 = vpop.f32.mrb[0].mxu0
    %v8895 = vpop.f32.mrb[0].mxu0
    %8896 = vdwg.mxu0
    %8897 = vmatprep.subr.bf16.mxu0 %v7973
    %8898 = vmatpush1.bf16.msra.mxu0 %v7972
    %8899 = vmatprep.subr.bf16.mxu0 %v7981
    %8900 = vmatpush1.bf16.msra.mxu0 %v7980
    %8901 = vmatprep.subr.bf16.mxu0 %v7989
    %8902 = vmatpush1.bf16.msra.mxu0 %v7988
    %8903 = vmatprep.subr.bf16.mxu0 %v7997
    %8904 = vmatpush1.bf16.msra.mxu0 %v7996
    %8905 = vmatprep.subr.bf16.mxu0 %v8005
    %8906 = vmatpush1.bf16.msra.mxu0 %v8004
    %8907 = vmatprep.subr.bf16.mxu0 %v8013
    %8908 = vmatpush1.bf16.msra.mxu0 %v8012
    %8909 = vmatprep.subr.bf16.mxu0 %v8021
    %8910 = vmatpush1.bf16.msra.mxu0 %v8020
    %8911 = vmatprep.subr.bf16.mxu0 %v8029
    %8912 = vmatpush1.bf16.msra.mxu0 %v8028
    %8913 = vmatprep.subr.bf16.mxu0 %v8037
    %8914 = vmatpush1.bf16.msra.mxu0 %v8036
    %8915 = vmatprep.subr.bf16.mxu0 %v8045
    %8916 = vmatpush1.bf16.msra.mxu0 %v8044
    %8917 = vmatprep.subr.bf16.mxu0 %v8053
    %8918 = vmatpush1.bf16.msra.mxu0 %v8052
    %8919 = vmatprep.subr.bf16.mxu0 %v8061
    %8920 = vmatpush1.bf16.msra.mxu0 %v8060
    %8921 = vmatprep.subr.bf16.mxu0 %v8069
    %8922 = vmatpush1.bf16.msra.mxu0 %v8068
    %8923 = vmatprep.subr.bf16.mxu0 %v8077
    %8924 = vmatpush1.bf16.msra.mxu0 %v8076
    %8925 = vmatprep.subr.bf16.mxu0 %v8085
    %8926 = vmatpush1.bf16.msra.mxu0 %v8084
    %8927 = vmatprep.subr.bf16.mxu0 %v8093
    %8928 = vmatpush1.bf16.msra.mxu0 %v8092
    %8929 = vmatprep.mubr.bf16.mxu0 %v5495
    %8930 = vmatmul.mubr.bf16.gmra.mrb[0].mxu0 %v5494
    %v8931 = vpop.f32.mrb[0].mxu0
    %v8932 = vadd.f32 %v8891, %v8931
    %v8933 = vpop.f32.mrb[0].mxu0
    %v8934 = vadd.f32 %v8893, %v8933
    %v8935 = vpop.f32.mrb[0].mxu0
    %v8936 = vpop.f32.mrb[0].mxu0
    %8937 = vdwg.mxu0
    %8938 = vmatprep.subr.bf16.mxu0 %v7591
    %8939 = vmatpush1.bf16.msra.mxu0 %v7590
    %8940 = vmatprep.subr.bf16.mxu0 %v7599
    %8941 = vmatpush1.bf16.msra.mxu0 %v7598
    %8942 = vmatprep.subr.bf16.mxu0 %v7607
    %8943 = vmatpush1.bf16.msra.mxu0 %v7606
    %8944 = vmatprep.subr.bf16.mxu0 %v7615
    %8945 = vmatpush1.bf16.msra.mxu0 %v7614
    %8946 = vmatprep.subr.bf16.mxu0 %v7623
    %8947 = vmatpush1.bf16.msra.mxu0 %v7622
    %8948 = vmatprep.subr.bf16.mxu0 %v7631
    %8949 = vmatpush1.bf16.msra.mxu0 %v7630
    %8950 = vmatprep.subr.bf16.mxu0 %v7639
    %8951 = vmatpush1.bf16.msra.mxu0 %v7638
    %8952 = vmatprep.subr.bf16.mxu0 %v7647
    %8953 = vmatpush1.bf16.msra.mxu0 %v7646
    %8954 = vmatprep.subr.bf16.mxu0 %v7655
    %8955 = vmatpush1.bf16.msra.mxu0 %v7654
    %8956 = vmatprep.subr.bf16.mxu0 %v7663
    %8957 = vmatpush1.bf16.msra.mxu0 %v7662
    %8958 = vmatprep.subr.bf16.mxu0 %v7671
    %8959 = vmatpush1.bf16.msra.mxu0 %v7670
    %8960 = vmatprep.subr.bf16.mxu0 %v7679
    %8961 = vmatpush1.bf16.msra.mxu0 %v7678
    %8962 = vmatprep.subr.bf16.mxu0 %v7687
    %8963 = vmatpush1.bf16.msra.mxu0 %v7686
    %8964 = vmatprep.subr.bf16.mxu0 %v7695
    %8965 = vmatpush1.bf16.msra.mxu0 %v7694
    %8966 = vmatprep.subr.bf16.mxu0 %v7703
    %8967 = vmatpush1.bf16.msra.mxu0 %v7702
    %8968 = vmatprep.subr.bf16.mxu0 %v7711
    %8969 = vmatpush1.bf16.msra.mxu0 %v7710
    %8970 = vmatprep.mubr.bf16.mxu0 %v5489
    %8971 = vmatmul.mubr.bf16.gmra.mrb[0].mxu0 %v5488
    %v8972 = vpop.f32.mrb[0].mxu0
    %v8973 = vadd.f32 %v6029, %v8972
    %v8974 = vpop.f32.mrb[0].mxu0
    %v8975 = vadd.f32 %v6033, %v8974
    %v8976 = vpop.f32.mrb[0].mxu0
    %v8977 = vpop.f32.mrb[0].mxu0
    %8978 = vdwg.mxu0
    %8979 = vmatprep.subr.bf16.mxu0 %v7719
    %8980 = vmatpush1.bf16.msra.mxu0 %v7718
    %8981 = vmatprep.subr.bf16.mxu0 %v7727
    %8982 = vmatpush1.bf16.msra.mxu0 %v7726
    %8983 = vmatprep.subr.bf16.mxu0 %v7735
    %8984 = vmatpush1.bf16.msra.mxu0 %v7734
    %8985 = vmatprep.subr.bf16.mxu0 %v7743
    %8986 = vmatpush1.bf16.msra.mxu0 %v7742
    %8987 = vmatprep.subr.bf16.mxu0 %v7751
    %8988 = vmatpush1.bf16.msra.mxu0 %v7750
    %8989 = vmatprep.subr.bf16.mxu0 %v7759
    %8990 = vmatpush1.bf16.msra.mxu0 %v7758
    %8991 = vmatprep.subr.bf16.mxu0 %v7767
    %8992 = vmatpush1.bf16.msra.mxu0 %v7766
    %8993 = vmatprep.subr.bf16.mxu0 %v7775
    %8994 = vmatpush1.bf16.msra.mxu0 %v7774
    %8995 = vmatprep.subr.bf16.mxu0 %v7783
    %8996 = vmatpush1.bf16.msra.mxu0 %v7782
    %8997 = vmatprep.subr.bf16.mxu0 %v7791
    %8998 = vmatpush1.bf16.msra.mxu0 %v7790
    %8999 = vmatprep.subr.bf16.mxu0 %v7799
    %9000 = vmatpush1.bf16.msra.mxu0 %v7798
    %9001 = vmatprep.subr.bf16.mxu0 %v7807
    %9002 = vmatpush1.bf16.msra.mxu0 %v7806
    %9003 = vmatprep.subr.bf16.mxu0 %v7815
    %9004 = vmatpush1.bf16.msra.mxu0 %v7814
    %9005 = vmatprep.subr.bf16.mxu0 %v7823
    %9006 = vmatpush1.bf16.msra.mxu0 %v7822
    %9007 = vmatprep.subr.bf16.mxu0 %v7831
    %9008 = vmatpush1.bf16.msra.mxu0 %v7830
    %9009 = vmatprep.subr.bf16.mxu0 %v7839
    %9010 = vmatpush1.bf16.msra.mxu0 %v7838
    %9011 = vmatprep.mubr.bf16.mxu0 %v5491
    %9012 = vmatmul.mubr.bf16.gmra.mrb[0].mxu0 %v5490
    %v9013 = vpop.f32.mrb[0].mxu0
    %v9014 = vadd.f32 %v8973, %v9013
    %v9015 = vpop.f32.mrb[0].mxu0
    %v9016 = vadd.f32 %v8975, %v9015
    %v9017 = vpop.f32.mrb[0].mxu0
    %v9018 = vpop.f32.mrb[0].mxu0
    %9019 = vdwg.mxu0
    %9020 = vmatprep.subr.bf16.mxu0 %v7847
    %9021 = vmatpush1.bf16.msra.mxu0 %v7846
    %9022 = vmatprep.subr.bf16.mxu0 %v7855
    %9023 = vmatpush1.bf16.msra.mxu0 %v7854
    %9024 = vmatprep.subr.bf16.mxu0 %v7863
    %9025 = vmatpush1.bf16.msra.mxu0 %v7862
    %9026 = vmatprep.subr.bf16.mxu0 %v7871
    %9027 = vmatpush1.bf16.msra.mxu0 %v7870
    %9028 = vmatprep.subr.bf16.mxu0 %v7879
    %9029 = vmatpush1.bf16.msra.mxu0 %v7878
    %9030 = vmatprep.subr.bf16.mxu0 %v7887
    %9031 = vmatpush1.bf16.msra.mxu0 %v7886
    %9032 = vmatprep.subr.bf16.mxu0 %v7895
    %9033 = vmatpush1.bf16.msra.mxu0 %v7894
    %9034 = vmatprep.subr.bf16.mxu0 %v7903
    %9035 = vmatpush1.bf16.msra.mxu0 %v7902
    %9036 = vmatprep.subr.bf16.mxu0 %v7911
    %9037 = vmatpush1.bf16.msra.mxu0 %v7910
    %9038 = vmatprep.subr.bf16.mxu0 %v7919
    %9039 = vmatpush1.bf16.msra.mxu0 %v7918
    %9040 = vmatprep.subr.bf16.mxu0 %v7927
    %9041 = vmatpush1.bf16.msra.mxu0 %v7926
    %9042 = vmatprep.subr.bf16.mxu0 %v7935
    %9043 = vmatpush1.bf16.msra.mxu0 %v7934
    %9044 = vmatprep.subr.bf16.mxu0 %v7943
    %9045 = vmatpush1.bf16.msra.mxu0 %v7942
    %9046 = vmatprep.subr.bf16.mxu0 %v7951
    %9047 = vmatpush1.bf16.msra.mxu0 %v7950
    %9048 = vmatprep.subr.bf16.mxu0 %v7959
    %9049 = vmatpush1.bf16.msra.mxu0 %v7958
    %9050 = vmatprep.subr.bf16.mxu0 %v7967
    %9051 = vmatpush1.bf16.msra.mxu0 %v7966
    %9052 = vmatprep.mubr.bf16.mxu0 %v5493
    %9053 = vmatmul.mubr.bf16.gmra.mrb[0].mxu0 %v5492
    %v9054 = vpop.f32.mrb[0].mxu0
    %v9055 = vadd.f32 %v9014, %v9054
    %v9056 = vpop.f32.mrb[0].mxu0
    %v9057 = vadd.f32 %v9016, %v9056
    %v9058 = vpop.f32.mrb[0].mxu0
    %v9059 = vpop.f32.mrb[0].mxu0
    %9060 = vdwg.mxu0
    %9061 = vmatprep.subr.bf16.mxu0 %v7975
    %9062 = vmatpush1.bf16.msra.mxu0 %v7974
    %9063 = vmatprep.subr.bf16.mxu0 %v7983
    %9064 = vmatpush1.bf16.msra.mxu0 %v7982
    %9065 = vmatprep.subr.bf16.mxu0 %v7991
    %9066 = vmatpush1.bf16.msra.mxu0 %v7990
    %9067 = vmatprep.subr.bf16.mxu0 %v7999
    %9068 = vmatpush1.bf16.msra.mxu0 %v7998
    %9069 = vmatprep.subr.bf16.mxu0 %v8007
    %9070 = vmatpush1.bf16.msra.mxu0 %v8006
    %9071 = vmatprep.subr.bf16.mxu0 %v8015
    %9072 = vmatpush1.bf16.msra.mxu0 %v8014
    %9073 = vmatprep.subr.bf16.mxu0 %v8023
    %9074 = vmatpush1.bf16.msra.mxu0 %v8022
    %9075 = vmatprep.subr.bf16.mxu0 %v8031
    %9076 = vmatpush1.bf16.msra.mxu0 %v8030
    %9077 = vmatprep.subr.bf16.mxu0 %v8039
    %9078 = vmatpush1.bf16.msra.mxu0 %v8038
    %9079 = vmatprep.subr.bf16.mxu0 %v8047
    %9080 = vmatpush1.bf16.msra.mxu0 %v8046
    %9081 = vmatprep.subr.bf16.mxu0 %v8055
    %9082 = vmatpush1.bf16.msra.mxu0 %v8054
    %9083 = vmatprep.subr.bf16.mxu0 %v8063
    %9084 = vmatpush1.bf16.msra.mxu0 %v8062
    %9085 = vmatprep.subr.bf16.mxu0 %v8071
    %9086 = vmatpush1.bf16.msra.mxu0 %v8070
    %9087 = vmatprep.subr.bf16.mxu0 %v8079
    %9088 = vmatpush1.bf16.msra.mxu0 %v8078
    %9089 = vmatprep.subr.bf16.mxu0 %v8087
    %9090 = vmatpush1.bf16.msra.mxu0 %v8086
    %9091 = vmatprep.subr.bf16.mxu0 %v8095
    %9092 = vmatpush1.bf16.msra.mxu0 %v8094
    %9093 = vmatprep.mubr.bf16.mxu0 %v5495
    %9094 = vmatmul.mubr.bf16.gmra.mrb[0].mxu0 %v5494
    %v9095 = vpop.f32.mrb[0].mxu0
    %v9096 = vadd.f32 %v9055, %v9095
    %v9097 = vpop.f32.mrb[0].mxu0
    %v9098 = vadd.f32 %v9057, %v9097
    %v9099 = vpop.f32.mrb[0].mxu0
    %v9100 = vpop.f32.mrb[0].mxu0
    %9101 = vdwg.mxu0
    %9102 = vmatprep.subr.bf16.mxu0 %v7593
    %9103 = vmatpush1.bf16.msra.mxu0 %v7592
    %9104 = vmatprep.subr.bf16.mxu0 %v7601
    %9105 = vmatpush1.bf16.msra.mxu0 %v7600
    %9106 = vmatprep.subr.bf16.mxu0 %v7609
    %9107 = vmatpush1.bf16.msra.mxu0 %v7608
    %9108 = vmatprep.subr.bf16.mxu0 %v7617
    %9109 = vmatpush1.bf16.msra.mxu0 %v7616
    %9110 = vmatprep.subr.bf16.mxu0 %v7625
    %9111 = vmatpush1.bf16.msra.mxu0 %v7624
    %9112 = vmatprep.subr.bf16.mxu0 %v7633
    %9113 = vmatpush1.bf16.msra.mxu0 %v7632
    %9114 = vmatprep.subr.bf16.mxu0 %v7641
    %9115 = vmatpush1.bf16.msra.mxu0 %v7640
    %9116 = vmatprep.subr.bf16.mxu0 %v7649
    %9117 = vmatpush1.bf16.msra.mxu0 %v7648
    %9118 = vmatprep.subr.bf16.mxu0 %v7657
    %9119 = vmatpush1.bf16.msra.mxu0 %v7656
    %9120 = vmatprep.subr.bf16.mxu0 %v7665
    %9121 = vmatpush1.bf16.msra.mxu0 %v7664
    %9122 = vmatprep.subr.bf16.mxu0 %v7673
    %9123 = vmatpush1.bf16.msra.mxu0 %v7672
    %9124 = vmatprep.subr.bf16.mxu0 %v7681
    %9125 = vmatpush1.bf16.msra.mxu0 %v7680
    %9126 = vmatprep.subr.bf16.mxu0 %v7689
    %9127 = vmatpush1.bf16.msra.mxu0 %v7688
    %9128 = vmatprep.subr.bf16.mxu0 %v7697
    %9129 = vmatpush1.bf16.msra.mxu0 %v7696
    %9130 = vmatprep.subr.bf16.mxu0 %v7705
    %9131 = vmatpush1.bf16.msra.mxu0 %v7704
    %9132 = vmatprep.subr.bf16.mxu0 %v7713
    %9133 = vmatpush1.bf16.msra.mxu0 %v7712
    %9134 = vmatprep.mubr.bf16.mxu0 %v5489
    %9135 = vmatmul.mubr.bf16.gmra.mrb[0].mxu0 %v5488
    %v9136 = vpop.f32.mrb[0].mxu0
    %v9137 = vadd.f32 %v6037, %v9136
    %v9138 = vpop.f32.mrb[0].mxu0
    %v9139 = vadd.f32 %v6041, %v9138
    %v9140 = vpop.f32.mrb[0].mxu0
    %v9141 = vpop.f32.mrb[0].mxu0
    %9142 = vdwg.mxu0
    %9143 = vmatprep.subr.bf16.mxu0 %v7721
    %9144 = vmatpush1.bf16.msra.mxu0 %v7720
    %9145 = vmatprep.subr.bf16.mxu0 %v7729
    %9146 = vmatpush1.bf16.msra.mxu0 %v7728
    %9147 = vmatprep.subr.bf16.mxu0 %v7737
    %9148 = vmatpush1.bf16.msra.mxu0 %v7736
    %9149 = vmatprep.subr.bf16.mxu0 %v7745
    %9150 = vmatpush1.bf16.msra.mxu0 %v7744
    %9151 = vmatprep.subr.bf16.mxu0 %v7753
    %9152 = vmatpush1.bf16.msra.mxu0 %v7752
    %9153 = vmatprep.subr.bf16.mxu0 %v7761
    %9154 = vmatpush1.bf16.msra.mxu0 %v7760
    %9155 = vmatprep.subr.bf16.mxu0 %v7769
    %9156 = vmatpush1.bf16.msra.mxu0 %v7768
    %9157 = vmatprep.subr.bf16.mxu0 %v7777
    %9158 = vmatpush1.bf16.msra.mxu0 %v7776
    %9159 = vmatprep.subr.bf16.mxu0 %v7785
    %9160 = vmatpush1.bf16.msra.mxu0 %v7784
    %9161 = vmatprep.subr.bf16.mxu0 %v7793
    %9162 = vmatpush1.bf16.msra.mxu0 %v7792
    %9163 = vmatprep.subr.bf16.mxu0 %v7801
    %9164 = vmatpush1.bf16.msra.mxu0 %v7800
    %9165 = vmatprep.subr.bf16.mxu0 %v7809
    %9166 = vmatpush1.bf16.msra.mxu0 %v7808
    %9167 = vmatprep.subr.bf16.mxu0 %v7817
    %9168 = vmatpush1.bf16.msra.mxu0 %v7816
    %9169 = vmatprep.subr.bf16.mxu0 %v7825
    %9170 = vmatpush1.bf16.msra.mxu0 %v7824
    %9171 = vmatprep.subr.bf16.mxu0 %v7833
    %9172 = vmatpush1.bf16.msra.mxu0 %v7832
    %9173 = vmatprep.subr.bf16.mxu0 %v7841
    %9174 = vmatpush1.bf16.msra.mxu0 %v7840
    %9175 = vmatprep.mubr.bf16.mxu0 %v5491
    %9176 = vmatmul.mubr.bf16.gmra.mrb[0].mxu0 %v5490
    %v9177 = vpop.f32.mrb[0].mxu0
    %v9178 = vadd.f32 %v9137, %v9177
    %v9179 = vpop.f32.mrb[0].mxu0
    %v9180 = vadd.f32 %v9139, %v9179
    %v9181 = vpop.f32.mrb[0].mxu0
    %v9182 = vpop.f32.mrb[0].mxu0
    %9183 = vdwg.mxu0
    %9184 = vmatprep.subr.bf16.mxu0 %v7849
    %9185 = vmatpush1.bf16.msra.mxu0 %v7848
    %9186 = vmatprep.subr.bf16.mxu0 %v7857
    %9187 = vmatpush1.bf16.msra.mxu0 %v7856
    %9188 = vmatprep.subr.bf16.mxu0 %v7865
    %9189 = vmatpush1.bf16.msra.mxu0 %v7864
    %9190 = vmatprep.subr.bf16.mxu0 %v7873
    %9191 = vmatpush1.bf16.msra.mxu0 %v7872
    %9192 = vmatprep.subr.bf16.mxu0 %v7881
    %9193 = vmatpush1.bf16.msra.mxu0 %v7880
    %9194 = vmatprep.subr.bf16.mxu0 %v7889
    %9195 = vmatpush1.bf16.msra.mxu0 %v7888
    %9196 = vmatprep.subr.bf16.mxu0 %v7897
    %9197 = vmatpush1.bf16.msra.mxu0 %v7896
    %9198 = vmatprep.subr.bf16.mxu0 %v7905
    %9199 = vmatpush1.bf16.msra.mxu0 %v7904
    %9200 = vmatprep.subr.bf16.mxu0 %v7913
    %9201 = vmatpush1.bf16.msra.mxu0 %v7912
    %9202 = vmatprep.subr.bf16.mxu0 %v7921
    %9203 = vmatpush1.bf16.msra.mxu0 %v7920
    %9204 = vmatprep.subr.bf16.mxu0 %v7929
    %9205 = vmatpush1.bf16.msra.mxu0 %v7928
    %9206 = vmatprep.subr.bf16.mxu0 %v7937
    %9207 = vmatpush1.bf16.msra.mxu0 %v7936
    %9208 = vmatprep.subr.bf16.mxu0 %v7945
    %9209 = vmatpush1.bf16.msra.mxu0 %v7944
    %9210 = vmatprep.subr.bf16.mxu0 %v7953
    %9211 = vmatpush1.bf16.msra.mxu0 %v7952
    %9212 = vmatprep.subr.bf16.mxu0 %v7961
    %9213 = vmatpush1.bf16.msra.mxu0 %v7960
    %9214 = vmatprep.subr.bf16.mxu0 %v7969
    %9215 = vmatpush1.bf16.msra.mxu0 %v7968
    %9216 = vmatprep.mubr.bf16.mxu0 %v5493
    %9217 = vmatmul.mubr.bf16.gmra.mrb[0].mxu0 %v5492
    %v9218 = vpop.f32.mrb[0].mxu0
    %v9219 = vadd.f32 %v9178, %v9218
    %v9220 = vpop.f32.mrb[0].mxu0
    %v9221 = vadd.f32 %v9180, %v9220
    %v9222 = vpop.f32.mrb[0].mxu0
    %v9223 = vpop.f32.mrb[0].mxu0
    %9224 = vdwg.mxu0
    %9225 = vmatprep.subr.bf16.mxu0 %v7977
    %9226 = vmatpush1.bf16.msra.mxu0 %v7976
    %9227 = vmatprep.subr.bf16.mxu0 %v7985
    %9228 = vmatpush1.bf16.msra.mxu0 %v7984
    %9229 = vmatprep.subr.bf16.mxu0 %v7993
    %9230 = vmatpush1.bf16.msra.mxu0 %v7992
    %9231 = vmatprep.subr.bf16.mxu0 %v8001
    %9232 = vmatpush1.bf16.msra.mxu0 %v8000
    %9233 = vmatprep.subr.bf16.mxu0 %v8009
    %9234 = vmatpush1.bf16.msra.mxu0 %v8008
    %9235 = vmatprep.subr.bf16.mxu0 %v8017
    %9236 = vmatpush1.bf16.msra.mxu0 %v8016
    %9237 = vmatprep.subr.bf16.mxu0 %v8025
    %9238 = vmatpush1.bf16.msra.mxu0 %v8024
    %9239 = vmatprep.subr.bf16.mxu0 %v8033
    %9240 = vmatpush1.bf16.msra.mxu0 %v8032
    %9241 = vmatprep.subr.bf16.mxu0 %v8041
    %9242 = vmatpush1.bf16.msra.mxu0 %v8040
    %9243 = vmatprep.subr.bf16.mxu0 %v8049
    %9244 = vmatpush1.bf16.msra.mxu0 %v8048
    %9245 = vmatprep.subr.bf16.mxu0 %v8057
    %9246 = vmatpush1.bf16.msra.mxu0 %v8056
    %9247 = vmatprep.subr.bf16.mxu0 %v8065
    %9248 = vmatpush1.bf16.msra.mxu0 %v8064
    %9249 = vmatprep.subr.bf16.mxu0 %v8073
    %9250 = vmatpush1.bf16.msra.mxu0 %v8072
    %9251 = vmatprep.subr.bf16.mxu0 %v8081
    %9252 = vmatpush1.bf16.msra.mxu0 %v8080
    %9253 = vmatprep.subr.bf16.mxu0 %v8089
    %9254 = vmatpush1.bf16.msra.mxu0 %v8088
    %9255 = vmatprep.subr.bf16.mxu0 %v8097
    %9256 = vmatpush1.bf16.msra.mxu0 %v8096
    %9257 = vmatprep.mubr.bf16.mxu0 %v5495
    %9258 = vmatmul.mubr.bf16.gmra.mrb[0].mxu0 %v5494
    %v9259 = vpop.f32.mrb[0].mxu0
    %v9260 = vadd.f32 %v9219, %v9259
    %v9261 = vpop.f32.mrb[0].mxu0
    %v9262 = vadd.f32 %v9221, %v9261
    %v9263 = vpop.f32.mrb[0].mxu0
    %v9264 = vpop.f32.mrb[0].mxu0
    %9265 = vdwg.mxu0
    %v9266 = vmax.f32 %v8768, 0.0
    %v9267 = vmax.f32 %v8770, 0.0
    %v9268 = vmax.f32 %v8932, 0.0
    %v9269 = vmax.f32 %v8934, 0.0
    %v9270 = vmax.f32 %v9096, 0.0
    %v9271 = vmax.f32 %v9098, 0.0
    %v9272 = vmax.f32 %v9260, 0.0
    %v9273 = vmax.f32 %v9262, 0.0
    %v9274 = vpack.c.bf16 %v9266, %v9266
    %v9275 = vpack.c.bf16 %v9267, %v9267
    %v9276 = vpack.c.bf16 %v9268, %v9268
    %v9277 = vpack.c.bf16 %v9269, %v9269
    %v9278 = vpack.c.bf16 %v9270, %v9270
    %v9279 = vpack.c.bf16 %v9271, %v9271
    %v9280 = vpack.c.bf16 %v9272, %v9272
    %v9281 = vpack.c.bf16 %v9273, %v9273
    %v9282 = vld [vmem:[%s55] sm:$0xff]
    %v9283 = vld [vmem:[%s55 + $0x8] sm:$0xff]
    %v9284 = vld [vmem:[%s55 + $0x10] sm:$0xff]
    %v9285 = vld [vmem:[%s55 + $0x18] sm:$0xff]
    %v9286 = vld [vmem:[%s55 + $0x20] sm:$0xff]
    %v9287 = vld [vmem:[%s55 + $0x28] sm:$0xff]
    %v9288 = vld [vmem:[%s55 + $0x30] sm:$0xff]
    %v9289 = vld [vmem:[%s55 + $0x38] sm:$0xff]
    %v9290 = vld [vmem:[%s55 + $0x40] sm:$0xff]
    %v9291 = vld [vmem:[%s55 + $0x48] sm:$0xff]
    %v9292 = vld [vmem:[%s55 + $0x50] sm:$0xff]
    %v9293 = vld [vmem:[%s55 + $0x58] sm:$0xff]
    %v9294 = vld [vmem:[%s55 + $0x60] sm:$0xff]
    %v9295 = vld [vmem:[%s55 + $0x68] sm:$0xff]
    %v9296 = vld [vmem:[%s55 + $0x70] sm:$0xff]
    %v9297 = vld [vmem:[%s55 + $0x78] sm:$0xff]
    %v9298 = vld [vmem:[%s55 + $0x80] sm:$0xff]
    %v9299 = vld [vmem:[%s55 + $0x88] sm:$0xff]
    %v9300 = vld [vmem:[%s55 + $0x90] sm:$0xff]
    %v9301 = vld [vmem:[%s55 + $0x98] sm:$0xff]
    %v9302 = vld [vmem:[%s55 + $0xa0] sm:$0xff]
    %v9303 = vld [vmem:[%s55 + $0xa8] sm:$0xff]
    %v9304 = vld [vmem:[%s55 + $0xb0] sm:$0xff]
    %v9305 = vld [vmem:[%s55 + $0xb8] sm:$0xff]
    %v9306 = vld [vmem:[%s55 + $0xc0] sm:$0xff]
    %v9307 = vld [vmem:[%s55 + $0xc8] sm:$0xff]
    %v9308 = vld [vmem:[%s55 + $0xd0] sm:$0xff]
    %v9309 = vld [vmem:[%s55 + $0xd8] sm:$0xff]
    %v9310 = vld [vmem:[%s55 + $0xe0] sm:$0xff]
    %v9311 = vld [vmem:[%s55 + $0xe8] sm:$0xff]
    %v9312 = vld [vmem:[%s55 + $0xf0] sm:$0xff]
    %v9313 = vld [vmem:[%s55 + $0xf8] sm:$0xff]
    %v9314 = vld [vmem:[%s55 + $0x100] sm:$0xff]
    %v9315 = vld [vmem:[%s55 + $0x108] sm:$0xff]
    %v9316 = vld [vmem:[%s55 + $0x110] sm:$0xff]
    %v9317 = vld [vmem:[%s55 + $0x118] sm:$0xff]
    %v9318 = vld [vmem:[%s55 + $0x120] sm:$0xff]
    %v9319 = vld [vmem:[%s55 + $0x128] sm:$0xff]
    %v9320 = vld [vmem:[%s55 + $0x130] sm:$0xff]
    %v9321 = vld [vmem:[%s55 + $0x138] sm:$0xff]
    %v9322 = vld [vmem:[%s55 + $0x140] sm:$0xff]
    %v9323 = vld [vmem:[%s55 + $0x148] sm:$0xff]
    %v9324 = vld [vmem:[%s55 + $0x150] sm:$0xff]
    %v9325 = vld [vmem:[%s55 + $0x158] sm:$0xff]
    %v9326 = vld [vmem:[%s55 + $0x160] sm:$0xff]
    %v9327 = vld [vmem:[%s55 + $0x168] sm:$0xff]
    %v9328 = vld [vmem:[%s55 + $0x170] sm:$0xff]
    %v9329 = vld [vmem:[%s55 + $0x178] sm:$0xff]
    %v9330 = vld [vmem:[%s55 + $0x180] sm:$0xff]
    %v9331 = vld [vmem:[%s55 + $0x188] sm:$0xff]
    %v9332 = vld [vmem:[%s55 + $0x190] sm:$0xff]
    %v9333 = vld [vmem:[%s55 + $0x198] sm:$0xff]
    %v9334 = vld [vmem:[%s55 + $0x1a0] sm:$0xff]
    %v9335 = vld [vmem:[%s55 + $0x1a8] sm:$0xff]
    %v9336 = vld [vmem:[%s55 + $0x1b0] sm:$0xff]
    %v9337 = vld [vmem:[%s55 + $0x1b8] sm:$0xff]
    %v9338 = vld [vmem:[%s55 + $0x1c0] sm:$0xff]
    %v9339 = vld [vmem:[%s55 + $0x1c8] sm:$0xff]
    %v9340 = vld [vmem:[%s55 + $0x1d0] sm:$0xff]
    %v9341 = vld [vmem:[%s55 + $0x1d8] sm:$0xff]
    %v9342 = vld [vmem:[%s55 + $0x1e0] sm:$0xff]
    %v9343 = vld [vmem:[%s55 + $0x1e8] sm:$0xff]
    %v9344 = vld [vmem:[%s55 + $0x1f0] sm:$0xff]
    %v9345 = vld [vmem:[%s55 + $0x1f8] sm:$0xff]
    %v9346 = vld [vmem:[%s55 + $0x200] sm:$0xff]
    %v9347 = vld [vmem:[%s55 + $0x208] sm:$0xff]
    %v9348 = vld [vmem:[%s55 + $0x210] sm:$0xff]
    %v9349 = vld [vmem:[%s55 + $0x218] sm:$0xff]
    %v9350 = vld [vmem:[%s55 + $0x220] sm:$0xff]
    %v9351 = vld [vmem:[%s55 + $0x228] sm:$0xff]
    %v9352 = vld [vmem:[%s55 + $0x230] sm:$0xff]
    %v9353 = vld [vmem:[%s55 + $0x238] sm:$0xff]
    %v9354 = vld [vmem:[%s55 + $0x240] sm:$0xff]
    %v9355 = vld [vmem:[%s55 + $0x248] sm:$0xff]
    %v9356 = vld [vmem:[%s55 + $0x250] sm:$0xff]
    %v9357 = vld [vmem:[%s55 + $0x258] sm:$0xff]
    %v9358 = vld [vmem:[%s55 + $0x260] sm:$0xff]
    %v9359 = vld [vmem:[%s55 + $0x268] sm:$0xff]
    %v9360 = vld [vmem:[%s55 + $0x270] sm:$0xff]
    %v9361 = vld [vmem:[%s55 + $0x278] sm:$0xff]
    %v9362 = vld [vmem:[%s55 + $0x280] sm:$0xff]
    %v9363 = vld [vmem:[%s55 + $0x288] sm:$0xff]
    %v9364 = vld [vmem:[%s55 + $0x290] sm:$0xff]
    %v9365 = vld [vmem:[%s55 + $0x298] sm:$0xff]
    %v9366 = vld [vmem:[%s55 + $0x2a0] sm:$0xff]
    %v9367 = vld [vmem:[%s55 + $0x2a8] sm:$0xff]
    %v9368 = vld [vmem:[%s55 + $0x2b0] sm:$0xff]
    %v9369 = vld [vmem:[%s55 + $0x2b8] sm:$0xff]
    %v9370 = vld [vmem:[%s55 + $0x2c0] sm:$0xff]
    %v9371 = vld [vmem:[%s55 + $0x2c8] sm:$0xff]
    %v9372 = vld [vmem:[%s55 + $0x2d0] sm:$0xff]
    %v9373 = vld [vmem:[%s55 + $0x2d8] sm:$0xff]
    %v9374 = vld [vmem:[%s55 + $0x2e0] sm:$0xff]
    %v9375 = vld [vmem:[%s55 + $0x2e8] sm:$0xff]
    %v9376 = vld [vmem:[%s55 + $0x2f0] sm:$0xff]
    %v9377 = vld [vmem:[%s55 + $0x2f8] sm:$0xff]
    %v9378 = vld [vmem:[%s55 + $0x300] sm:$0xff]
    %v9379 = vld [vmem:[%s55 + $0x308] sm:$0xff]
    %v9380 = vld [vmem:[%s55 + $0x310] sm:$0xff]
    %v9381 = vld [vmem:[%s55 + $0x318] sm:$0xff]
    %v9382 = vld [vmem:[%s55 + $0x320] sm:$0xff]
    %v9383 = vld [vmem:[%s55 + $0x328] sm:$0xff]
    %v9384 = vld [vmem:[%s55 + $0x330] sm:$0xff]
    %v9385 = vld [vmem:[%s55 + $0x338] sm:$0xff]
    %v9386 = vld [vmem:[%s55 + $0x340] sm:$0xff]
    %v9387 = vld [vmem:[%s55 + $0x348] sm:$0xff]
    %v9388 = vld [vmem:[%s55 + $0x350] sm:$0xff]
    %v9389 = vld [vmem:[%s55 + $0x358] sm:$0xff]
    %v9390 = vld [vmem:[%s55 + $0x360] sm:$0xff]
    %v9391 = vld [vmem:[%s55 + $0x368] sm:$0xff]
    %v9392 = vld [vmem:[%s55 + $0x370] sm:$0xff]
    %v9393 = vld [vmem:[%s55 + $0x378] sm:$0xff]
    %v9394 = vld [vmem:[%s55 + $0x380] sm:$0xff]
    %v9395 = vld [vmem:[%s55 + $0x388] sm:$0xff]
    %v9396 = vld [vmem:[%s55 + $0x390] sm:$0xff]
    %v9397 = vld [vmem:[%s55 + $0x398] sm:$0xff]
    %v9398 = vld [vmem:[%s55 + $0x3a0] sm:$0xff]
    %v9399 = vld [vmem:[%s55 + $0x3a8] sm:$0xff]
    %v9400 = vld [vmem:[%s55 + $0x3b0] sm:$0xff]
    %v9401 = vld [vmem:[%s55 + $0x3b8] sm:$0xff]
    %v9402 = vld [vmem:[%s55 + $0x3c0] sm:$0xff]
    %v9403 = vld [vmem:[%s55 + $0x3c8] sm:$0xff]
    %v9404 = vld [vmem:[%s55 + $0x3d0] sm:$0xff]
    %v9405 = vld [vmem:[%s55 + $0x3d8] sm:$0xff]
    %v9406 = vld [vmem:[%s55 + $0x3e0] sm:$0xff]
    %v9407 = vld [vmem:[%s55 + $0x3e8] sm:$0xff]
    %v9408 = vld [vmem:[%s55 + $0x3f0] sm:$0xff]
    %v9409 = vld [vmem:[%s55 + $0x3f8] sm:$0xff]
    %v9410 = vld [vmem:[%s55 + $0x400] sm:$0xff]
    %v9411 = vld [vmem:[%s55 + $0x408] sm:$0xff]
    %v9412 = vld [vmem:[%s55 + $0x410] sm:$0xff]
    %v9413 = vld [vmem:[%s55 + $0x418] sm:$0xff]
    %v9414 = vld [vmem:[%s55 + $0x420] sm:$0xff]
    %v9415 = vld [vmem:[%s55 + $0x428] sm:$0xff]
    %v9416 = vld [vmem:[%s55 + $0x430] sm:$0xff]
    %v9417 = vld [vmem:[%s55 + $0x438] sm:$0xff]
    %v9418 = vld [vmem:[%s55 + $0x440] sm:$0xff]
    %v9419 = vld [vmem:[%s55 + $0x448] sm:$0xff]
    %v9420 = vld [vmem:[%s55 + $0x450] sm:$0xff]
    %v9421 = vld [vmem:[%s55 + $0x458] sm:$0xff]
    %v9422 = vld [vmem:[%s55 + $0x460] sm:$0xff]
    %v9423 = vld [vmem:[%s55 + $0x468] sm:$0xff]
    %v9424 = vld [vmem:[%s55 + $0x470] sm:$0xff]
    %v9425 = vld [vmem:[%s55 + $0x478] sm:$0xff]
    %v9426 = vld [vmem:[%s55 + $0x480] sm:$0xff]
    %v9427 = vld [vmem:[%s55 + $0x488] sm:$0xff]
    %v9428 = vld [vmem:[%s55 + $0x490] sm:$0xff]
    %v9429 = vld [vmem:[%s55 + $0x498] sm:$0xff]
    %v9430 = vld [vmem:[%s55 + $0x4a0] sm:$0xff]
    %v9431 = vld [vmem:[%s55 + $0x4a8] sm:$0xff]
    %v9432 = vld [vmem:[%s55 + $0x4b0] sm:$0xff]
    %v9433 = vld [vmem:[%s55 + $0x4b8] sm:$0xff]
    %v9434 = vld [vmem:[%s55 + $0x4c0] sm:$0xff]
    %v9435 = vld [vmem:[%s55 + $0x4c8] sm:$0xff]
    %v9436 = vld [vmem:[%s55 + $0x4d0] sm:$0xff]
    %v9437 = vld [vmem:[%s55 + $0x4d8] sm:$0xff]
    %v9438 = vld [vmem:[%s55 + $0x4e0] sm:$0xff]
    %v9439 = vld [vmem:[%s55 + $0x4e8] sm:$0xff]
    %v9440 = vld [vmem:[%s55 + $0x4f0] sm:$0xff]
    %v9441 = vld [vmem:[%s55 + $0x4f8] sm:$0xff]
    %v9442 = vld [vmem:[%s55 + $0x500] sm:$0xff]
    %v9443 = vld [vmem:[%s55 + $0x508] sm:$0xff]
    %v9444 = vld [vmem:[%s55 + $0x510] sm:$0xff]
    %v9445 = vld [vmem:[%s55 + $0x518] sm:$0xff]
    %v9446 = vld [vmem:[%s55 + $0x520] sm:$0xff]
    %v9447 = vld [vmem:[%s55 + $0x528] sm:$0xff]
    %v9448 = vld [vmem:[%s55 + $0x530] sm:$0xff]
    %v9449 = vld [vmem:[%s55 + $0x538] sm:$0xff]
    %v9450 = vld [vmem:[%s55 + $0x540] sm:$0xff]
    %v9451 = vld [vmem:[%s55 + $0x548] sm:$0xff]
    %v9452 = vld [vmem:[%s55 + $0x550] sm:$0xff]
    %v9453 = vld [vmem:[%s55 + $0x558] sm:$0xff]
    %v9454 = vld [vmem:[%s55 + $0x560] sm:$0xff]
    %v9455 = vld [vmem:[%s55 + $0x568] sm:$0xff]
    %v9456 = vld [vmem:[%s55 + $0x570] sm:$0xff]
    %v9457 = vld [vmem:[%s55 + $0x578] sm:$0xff]
    %v9458 = vld [vmem:[%s55 + $0x580] sm:$0xff]
    %v9459 = vld [vmem:[%s55 + $0x588] sm:$0xff]
    %v9460 = vld [vmem:[%s55 + $0x590] sm:$0xff]
    %v9461 = vld [vmem:[%s55 + $0x598] sm:$0xff]
    %v9462 = vld [vmem:[%s55 + $0x5a0] sm:$0xff]
    %v9463 = vld [vmem:[%s55 + $0x5a8] sm:$0xff]
    %v9464 = vld [vmem:[%s55 + $0x5b0] sm:$0xff]
    %v9465 = vld [vmem:[%s55 + $0x5b8] sm:$0xff]
    %v9466 = vld [vmem:[%s55 + $0x5c0] sm:$0xff]
    %v9467 = vld [vmem:[%s55 + $0x5c8] sm:$0xff]
    %v9468 = vld [vmem:[%s55 + $0x5d0] sm:$0xff]
    %v9469 = vld [vmem:[%s55 + $0x5d8] sm:$0xff]
    %v9470 = vld [vmem:[%s55 + $0x5e0] sm:$0xff]
    %v9471 = vld [vmem:[%s55 + $0x5e8] sm:$0xff]
    %v9472 = vld [vmem:[%s55 + $0x5f0] sm:$0xff]
    %v9473 = vld [vmem:[%s55 + $0x5f8] sm:$0xff]
    %v9474 = vld [vmem:[%s55 + $0x600] sm:$0xff]
    %v9475 = vld [vmem:[%s55 + $0x608] sm:$0xff]
    %v9476 = vld [vmem:[%s55 + $0x610] sm:$0xff]
    %v9477 = vld [vmem:[%s55 + $0x618] sm:$0xff]
    %v9478 = vld [vmem:[%s55 + $0x620] sm:$0xff]
    %v9479 = vld [vmem:[%s55 + $0x628] sm:$0xff]
    %v9480 = vld [vmem:[%s55 + $0x630] sm:$0xff]
    %v9481 = vld [vmem:[%s55 + $0x638] sm:$0xff]
    %v9482 = vld [vmem:[%s55 + $0x640] sm:$0xff]
    %v9483 = vld [vmem:[%s55 + $0x648] sm:$0xff]
    %v9484 = vld [vmem:[%s55 + $0x650] sm:$0xff]
    %v9485 = vld [vmem:[%s55 + $0x658] sm:$0xff]
    %v9486 = vld [vmem:[%s55 + $0x660] sm:$0xff]
    %v9487 = vld [vmem:[%s55 + $0x668] sm:$0xff]
    %v9488 = vld [vmem:[%s55 + $0x670] sm:$0xff]
    %v9489 = vld [vmem:[%s55 + $0x678] sm:$0xff]
    %v9490 = vld [vmem:[%s55 + $0x680] sm:$0xff]
    %v9491 = vld [vmem:[%s55 + $0x688] sm:$0xff]
    %v9492 = vld [vmem:[%s55 + $0x690] sm:$0xff]
    %v9493 = vld [vmem:[%s55 + $0x698] sm:$0xff]
    %v9494 = vld [vmem:[%s55 + $0x6a0] sm:$0xff]
    %v9495 = vld [vmem:[%s55 + $0x6a8] sm:$0xff]
    %v9496 = vld [vmem:[%s55 + $0x6b0] sm:$0xff]
    %v9497 = vld [vmem:[%s55 + $0x6b8] sm:$0xff]
    %v9498 = vld [vmem:[%s55 + $0x6c0] sm:$0xff]
    %v9499 = vld [vmem:[%s55 + $0x6c8] sm:$0xff]
    %v9500 = vld [vmem:[%s55 + $0x6d0] sm:$0xff]
    %v9501 = vld [vmem:[%s55 + $0x6d8] sm:$0xff]
    %v9502 = vld [vmem:[%s55 + $0x6e0] sm:$0xff]
    %v9503 = vld [vmem:[%s55 + $0x6e8] sm:$0xff]
    %v9504 = vld [vmem:[%s55 + $0x6f0] sm:$0xff]
    %v9505 = vld [vmem:[%s55 + $0x6f8] sm:$0xff]
    %v9506 = vld [vmem:[%s55 + $0x700] sm:$0xff]
    %v9507 = vld [vmem:[%s55 + $0x708] sm:$0xff]
    %v9508 = vld [vmem:[%s55 + $0x710] sm:$0xff]
    %v9509 = vld [vmem:[%s55 + $0x718] sm:$0xff]
    %v9510 = vld [vmem:[%s55 + $0x720] sm:$0xff]
    %v9511 = vld [vmem:[%s55 + $0x728] sm:$0xff]
    %v9512 = vld [vmem:[%s55 + $0x730] sm:$0xff]
    %v9513 = vld [vmem:[%s55 + $0x738] sm:$0xff]
    %v9514 = vld [vmem:[%s55 + $0x740] sm:$0xff]
    %v9515 = vld [vmem:[%s55 + $0x748] sm:$0xff]
    %v9516 = vld [vmem:[%s55 + $0x750] sm:$0xff]
    %v9517 = vld [vmem:[%s55 + $0x758] sm:$0xff]
    %v9518 = vld [vmem:[%s55 + $0x760] sm:$0xff]
    %v9519 = vld [vmem:[%s55 + $0x768] sm:$0xff]
    %v9520 = vld [vmem:[%s55 + $0x770] sm:$0xff]
    %v9521 = vld [vmem:[%s55 + $0x778] sm:$0xff]
    %v9522 = vld [vmem:[%s55 + $0x780] sm:$0xff]
    %v9523 = vld [vmem:[%s55 + $0x788] sm:$0xff]
    %v9524 = vld [vmem:[%s55 + $0x790] sm:$0xff]
    %v9525 = vld [vmem:[%s55 + $0x798] sm:$0xff]
    %v9526 = vld [vmem:[%s55 + $0x7a0] sm:$0xff]
    %v9527 = vld [vmem:[%s55 + $0x7a8] sm:$0xff]
    %v9528 = vld [vmem:[%s55 + $0x7b0] sm:$0xff]
    %v9529 = vld [vmem:[%s55 + $0x7b8] sm:$0xff]
    %v9530 = vld [vmem:[%s55 + $0x7c0] sm:$0xff]
    %v9531 = vld [vmem:[%s55 + $0x7c8] sm:$0xff]
    %v9532 = vld [vmem:[%s55 + $0x7d0] sm:$0xff]
    %v9533 = vld [vmem:[%s55 + $0x7d8] sm:$0xff]
    %v9534 = vld [vmem:[%s55 + $0x7e0] sm:$0xff]
    %v9535 = vld [vmem:[%s55 + $0x7e8] sm:$0xff]
    %v9536 = vld [vmem:[%s55 + $0x7f0] sm:$0xff]
    %v9537 = vld [vmem:[%s55 + $0x7f8] sm:$0xff]
    %v9538 = vld [vmem:[%s57] sm:$0xf]
    %v9540 = vlaneseq
    %v9541 = vshrl.u32 %v9540, 7
    %v9542 = vsub.s32 0, %v9541
    %v9543 = vrot.slane %v9538, %v9542
    %v9544 = vlaneseq
    %v9545 = vshrl.u32 %v9544, 7
    %v9546 = vsub.s32 1, %v9545
    %v9547 = vrot.slane %v9538, %v9546
    %v9548 = vlaneseq
    %v9549 = vshrl.u32 %v9548, 7
    %v9550 = vsub.s32 2, %v9549
    %v9551 = vrot.slane %v9538, %v9550
    %v9552 = vlaneseq
    %v9553 = vshrl.u32 %v9552, 7
    %v9554 = vsub.s32 3, %v9553
    %v9555 = vrot.slane %v9538, %v9554
    %v9816 = vunpack.c.l.b16 %v9282
    %v9817 = vunpack.c.h.b16 %v9282
    %v9818 = vunpack.c.l.b16 %v9283
    %v9819 = vunpack.c.h.b16 %v9283
    %v9820 = vunpack.c.l.b16 %v9284
    %v9821 = vunpack.c.h.b16 %v9284
    %v9822 = vunpack.c.l.b16 %v9285
    %v9823 = vunpack.c.h.b16 %v9285
    %v9824 = vunpack.c.l.b16 %v9286
    %v9825 = vunpack.c.h.b16 %v9286
    %v9826 = vunpack.c.l.b16 %v9287
    %v9827 = vunpack.c.h.b16 %v9287
    %v9828 = vunpack.c.l.b16 %v9288
    %v9829 = vunpack.c.h.b16 %v9288
    %v9830 = vunpack.c.l.b16 %v9289
    %v9831 = vunpack.c.h.b16 %v9289
    %v9832 = vunpack.c.l.b16 %v9290
    %v9833 = vunpack.c.h.b16 %v9290
    %v9834 = vunpack.c.l.b16 %v9291
    %v9835 = vunpack.c.h.b16 %v9291
    %v9836 = vunpack.c.l.b16 %v9292
    %v9837 = vunpack.c.h.b16 %v9292
    %v9838 = vunpack.c.l.b16 %v9293
    %v9839 = vunpack.c.h.b16 %v9293
    %v9840 = vunpack.c.l.b16 %v9294
    %v9841 = vunpack.c.h.b16 %v9294
    %v9842 = vunpack.c.l.b16 %v9295
    %v9843 = vunpack.c.h.b16 %v9295
    %v9844 = vunpack.c.l.b16 %v9296
    %v9845 = vunpack.c.h.b16 %v9296
    %v9846 = vunpack.c.l.b16 %v9297
    %v9847 = vunpack.c.h.b16 %v9297
    %v9848 = vunpack.c.l.b16 %v9298
    %v9849 = vunpack.c.h.b16 %v9298
    %v9850 = vunpack.c.l.b16 %v9299
    %v9851 = vunpack.c.h.b16 %v9299
    %v9852 = vunpack.c.l.b16 %v9300
    %v9853 = vunpack.c.h.b16 %v9300
    %v9854 = vunpack.c.l.b16 %v9301
    %v9855 = vunpack.c.h.b16 %v9301
    %v9856 = vunpack.c.l.b16 %v9302
    %v9857 = vunpack.c.h.b16 %v9302
    %v9858 = vunpack.c.l.b16 %v9303
    %v9859 = vunpack.c.h.b16 %v9303
    %v9860 = vunpack.c.l.b16 %v9304
    %v9861 = vunpack.c.h.b16 %v9304
    %v9862 = vunpack.c.l.b16 %v9305
    %v9863 = vunpack.c.h.b16 %v9305
    %v9864 = vunpack.c.l.b16 %v9306
    %v9865 = vunpack.c.h.b16 %v9306
    %v9866 = vunpack.c.l.b16 %v9307
    %v9867 = vunpack.c.h.b16 %v9307
    %v9868 = vunpack.c.l.b16 %v9308
    %v9869 = vunpack.c.h.b16 %v9308
    %v9870 = vunpack.c.l.b16 %v9309
    %v9871 = vunpack.c.h.b16 %v9309
    %v9872 = vunpack.c.l.b16 %v9310
    %v9873 = vunpack.c.h.b16 %v9310
    %v9874 = vunpack.c.l.b16 %v9311
    %v9875 = vunpack.c.h.b16 %v9311
    %v9876 = vunpack.c.l.b16 %v9312
    %v9877 = vunpack.c.h.b16 %v9312
    %v9878 = vunpack.c.l.b16 %v9313
    %v9879 = vunpack.c.h.b16 %v9313
    %v9880 = vunpack.c.l.b16 %v9314
    %v9881 = vunpack.c.h.b16 %v9314
    %v9882 = vunpack.c.l.b16 %v9315
    %v9883 = vunpack.c.h.b16 %v9315
    %v9884 = vunpack.c.l.b16 %v9316
    %v9885 = vunpack.c.h.b16 %v9316
    %v9886 = vunpack.c.l.b16 %v9317
    %v9887 = vunpack.c.h.b16 %v9317
    %v9888 = vunpack.c.l.b16 %v9318
    %v9889 = vunpack.c.h.b16 %v9318
    %v9890 = vunpack.c.l.b16 %v9319
    %v9891 = vunpack.c.h.b16 %v9319
    %v9892 = vunpack.c.l.b16 %v9320
    %v9893 = vunpack.c.h.b16 %v9320
    %v9894 = vunpack.c.l.b16 %v9321
    %v9895 = vunpack.c.h.b16 %v9321
    %v9896 = vunpack.c.l.b16 %v9322
    %v9897 = vunpack.c.h.b16 %v9322
    %v9898 = vunpack.c.l.b16 %v9323
    %v9899 = vunpack.c.h.b16 %v9323
    %v9900 = vunpack.c.l.b16 %v9324
    %v9901 = vunpack.c.h.b16 %v9324
    %v9902 = vunpack.c.l.b16 %v9325
    %v9903 = vunpack.c.h.b16 %v9325
    %v9904 = vunpack.c.l.b16 %v9326
    %v9905 = vunpack.c.h.b16 %v9326
    %v9906 = vunpack.c.l.b16 %v9327
    %v9907 = vunpack.c.h.b16 %v9327
    %v9908 = vunpack.c.l.b16 %v9328
    %v9909 = vunpack.c.h.b16 %v9328
    %v9910 = vunpack.c.l.b16 %v9329
    %v9911 = vunpack.c.h.b16 %v9329
    %v9912 = vunpack.c.l.b16 %v9330
    %v9913 = vunpack.c.h.b16 %v9330
    %v9914 = vunpack.c.l.b16 %v9331
    %v9915 = vunpack.c.h.b16 %v9331
    %v9916 = vunpack.c.l.b16 %v9332
    %v9917 = vunpack.c.h.b16 %v9332
    %v9918 = vunpack.c.l.b16 %v9333
    %v9919 = vunpack.c.h.b16 %v9333
    %v9920 = vunpack.c.l.b16 %v9334
    %v9921 = vunpack.c.h.b16 %v9334
    %v9922 = vunpack.c.l.b16 %v9335
    %v9923 = vunpack.c.h.b16 %v9335
    %v9924 = vunpack.c.l.b16 %v9336
    %v9925 = vunpack.c.h.b16 %v9336
    %v9926 = vunpack.c.l.b16 %v9337
    %v9927 = vunpack.c.h.b16 %v9337
    %v9928 = vunpack.c.l.b16 %v9338
    %v9929 = vunpack.c.h.b16 %v9338
    %v9930 = vunpack.c.l.b16 %v9339
    %v9931 = vunpack.c.h.b16 %v9339
    %v9932 = vunpack.c.l.b16 %v9340
    %v9933 = vunpack.c.h.b16 %v9340
    %v9934 = vunpack.c.l.b16 %v9341
    %v9935 = vunpack.c.h.b16 %v9341
    %v9936 = vunpack.c.l.b16 %v9342
    %v9937 = vunpack.c.h.b16 %v9342
    %v9938 = vunpack.c.l.b16 %v9343
    %v9939 = vunpack.c.h.b16 %v9343
    %v9940 = vunpack.c.l.b16 %v9344
    %v9941 = vunpack.c.h.b16 %v9344
    %v9942 = vunpack.c.l.b16 %v9345
    %v9943 = vunpack.c.h.b16 %v9345
    %v9944 = vunpack.c.l.b16 %v9346
    %v9945 = vunpack.c.h.b16 %v9346
    %v9946 = vunpack.c.l.b16 %v9347
    %v9947 = vunpack.c.h.b16 %v9347
    %v9948 = vunpack.c.l.b16 %v9348
    %v9949 = vunpack.c.h.b16 %v9348
    %v9950 = vunpack.c.l.b16 %v9349
    %v9951 = vunpack.c.h.b16 %v9349
    %v9952 = vunpack.c.l.b16 %v9350
    %v9953 = vunpack.c.h.b16 %v9350
    %v9954 = vunpack.c.l.b16 %v9351
    %v9955 = vunpack.c.h.b16 %v9351
    %v9956 = vunpack.c.l.b16 %v9352
    %v9957 = vunpack.c.h.b16 %v9352
    %v9958 = vunpack.c.l.b16 %v9353
    %v9959 = vunpack.c.h.b16 %v9353
    %v9960 = vunpack.c.l.b16 %v9354
    %v9961 = vunpack.c.h.b16 %v9354
    %v9962 = vunpack.c.l.b16 %v9355
    %v9963 = vunpack.c.h.b16 %v9355
    %v9964 = vunpack.c.l.b16 %v9356
    %v9965 = vunpack.c.h.b16 %v9356
    %v9966 = vunpack.c.l.b16 %v9357
    %v9967 = vunpack.c.h.b16 %v9357
    %v9968 = vunpack.c.l.b16 %v9358
    %v9969 = vunpack.c.h.b16 %v9358
    %v9970 = vunpack.c.l.b16 %v9359
    %v9971 = vunpack.c.h.b16 %v9359
    %v9972 = vunpack.c.l.b16 %v9360
    %v9973 = vunpack.c.h.b16 %v9360
    %v9974 = vunpack.c.l.b16 %v9361
    %v9975 = vunpack.c.h.b16 %v9361
    %v9976 = vunpack.c.l.b16 %v9362
    %v9977 = vunpack.c.h.b16 %v9362
    %v9978 = vunpack.c.l.b16 %v9363
    %v9979 = vunpack.c.h.b16 %v9363
    %v9980 = vunpack.c.l.b16 %v9364
    %v9981 = vunpack.c.h.b16 %v9364
    %v9982 = vunpack.c.l.b16 %v9365
    %v9983 = vunpack.c.h.b16 %v9365
    %v9984 = vunpack.c.l.b16 %v9366
    %v9985 = vunpack.c.h.b16 %v9366
    %v9986 = vunpack.c.l.b16 %v9367
    %v9987 = vunpack.c.h.b16 %v9367
    %v9988 = vunpack.c.l.b16 %v9368
    %v9989 = vunpack.c.h.b16 %v9368
    %v9990 = vunpack.c.l.b16 %v9369
    %v9991 = vunpack.c.h.b16 %v9369
    %v9992 = vunpack.c.l.b16 %v9370
    %v9993 = vunpack.c.h.b16 %v9370
    %v9994 = vunpack.c.l.b16 %v9371
    %v9995 = vunpack.c.h.b16 %v9371
    %v9996 = vunpack.c.l.b16 %v9372
    %v9997 = vunpack.c.h.b16 %v9372
    %v9998 = vunpack.c.l.b16 %v9373
    %v9999 = vunpack.c.h.b16 %v9373
    %v10000 = vunpack.c.l.b16 %v9374
    %v10001 = vunpack.c.h.b16 %v9374
    %v10002 = vunpack.c.l.b16 %v9375
    %v10003 = vunpack.c.h.b16 %v9375
    %v10004 = vunpack.c.l.b16 %v9376
    %v10005 = vunpack.c.h.b16 %v9376
    %v10006 = vunpack.c.l.b16 %v9377
    %v10007 = vunpack.c.h.b16 %v9377
    %v10008 = vunpack.c.l.b16 %v9378
    %v10009 = vunpack.c.h.b16 %v9378
    %v10010 = vunpack.c.l.b16 %v9379
    %v10011 = vunpack.c.h.b16 %v9379
    %v10012 = vunpack.c.l.b16 %v9380
    %v10013 = vunpack.c.h.b16 %v9380
    %v10014 = vunpack.c.l.b16 %v9381
    %v10015 = vunpack.c.h.b16 %v9381
    %v10016 = vunpack.c.l.b16 %v9382
    %v10017 = vunpack.c.h.b16 %v9382
    %v10018 = vunpack.c.l.b16 %v9383
    %v10019 = vunpack.c.h.b16 %v9383
    %v10020 = vunpack.c.l.b16 %v9384
    %v10021 = vunpack.c.h.b16 %v9384
    %v10022 = vunpack.c.l.b16 %v9385
    %v10023 = vunpack.c.h.b16 %v9385
    %v10024 = vunpack.c.l.b16 %v9386
    %v10025 = vunpack.c.h.b16 %v9386
    %v10026 = vunpack.c.l.b16 %v9387
    %v10027 = vunpack.c.h.b16 %v9387
    %v10028 = vunpack.c.l.b16 %v9388
    %v10029 = vunpack.c.h.b16 %v9388
    %v10030 = vunpack.c.l.b16 %v9389
    %v10031 = vunpack.c.h.b16 %v9389
    %v10032 = vunpack.c.l.b16 %v9390
    %v10033 = vunpack.c.h.b16 %v9390
    %v10034 = vunpack.c.l.b16 %v9391
    %v10035 = vunpack.c.h.b16 %v9391
    %v10036 = vunpack.c.l.b16 %v9392
    %v10037 = vunpack.c.h.b16 %v9392
    %v10038 = vunpack.c.l.b16 %v9393
    %v10039 = vunpack.c.h.b16 %v9393
    %v10040 = vunpack.c.l.b16 %v9394
    %v10041 = vunpack.c.h.b16 %v9394
    %v10042 = vunpack.c.l.b16 %v9395
    %v10043 = vunpack.c.h.b16 %v9395
    %v10044 = vunpack.c.l.b16 %v9396
    %v10045 = vunpack.c.h.b16 %v9396
    %v10046 = vunpack.c.l.b16 %v9397
    %v10047 = vunpack.c.h.b16 %v9397
    %v10048 = vunpack.c.l.b16 %v9398
    %v10049 = vunpack.c.h.b16 %v9398
    %v10050 = vunpack.c.l.b16 %v9399
    %v10051 = vunpack.c.h.b16 %v9399
    %v10052 = vunpack.c.l.b16 %v9400
    %v10053 = vunpack.c.h.b16 %v9400
    %v10054 = vunpack.c.l.b16 %v9401
    %v10055 = vunpack.c.h.b16 %v9401
    %v10056 = vunpack.c.l.b16 %v9402
    %v10057 = vunpack.c.h.b16 %v9402
    %v10058 = vunpack.c.l.b16 %v9403
    %v10059 = vunpack.c.h.b16 %v9403
    %v10060 = vunpack.c.l.b16 %v9404
    %v10061 = vunpack.c.h.b16 %v9404
    %v10062 = vunpack.c.l.b16 %v9405
    %v10063 = vunpack.c.h.b16 %v9405
    %v10064 = vunpack.c.l.b16 %v9406
    %v10065 = vunpack.c.h.b16 %v9406
    %v10066 = vunpack.c.l.b16 %v9407
    %v10067 = vunpack.c.h.b16 %v9407
    %v10068 = vunpack.c.l.b16 %v9408
    %v10069 = vunpack.c.h.b16 %v9408
    %v10070 = vunpack.c.l.b16 %v9409
    %v10071 = vunpack.c.h.b16 %v9409
    %v10072 = vunpack.c.l.b16 %v9410
    %v10073 = vunpack.c.h.b16 %v9410
    %v10074 = vunpack.c.l.b16 %v9411
    %v10075 = vunpack.c.h.b16 %v9411
    %v10076 = vunpack.c.l.b16 %v9412
    %v10077 = vunpack.c.h.b16 %v9412
    %v10078 = vunpack.c.l.b16 %v9413
    %v10079 = vunpack.c.h.b16 %v9413
    %v10080 = vunpack.c.l.b16 %v9414
    %v10081 = vunpack.c.h.b16 %v9414
    %v10082 = vunpack.c.l.b16 %v9415
    %v10083 = vunpack.c.h.b16 %v9415
    %v10084 = vunpack.c.l.b16 %v9416
    %v10085 = vunpack.c.h.b16 %v9416
    %v10086 = vunpack.c.l.b16 %v9417
    %v10087 = vunpack.c.h.b16 %v9417
    %v10088 = vunpack.c.l.b16 %v9418
    %v10089 = vunpack.c.h.b16 %v9418
    %v10090 = vunpack.c.l.b16 %v9419
    %v10091 = vunpack.c.h.b16 %v9419
    %v10092 = vunpack.c.l.b16 %v9420
    %v10093 = vunpack.c.h.b16 %v9420
    %v10094 = vunpack.c.l.b16 %v9421
    %v10095 = vunpack.c.h.b16 %v9421
    %v10096 = vunpack.c.l.b16 %v9422
    %v10097 = vunpack.c.h.b16 %v9422
    %v10098 = vunpack.c.l.b16 %v9423
    %v10099 = vunpack.c.h.b16 %v9423
    %v10100 = vunpack.c.l.b16 %v9424
    %v10101 = vunpack.c.h.b16 %v9424
    %v10102 = vunpack.c.l.b16 %v9425
    %v10103 = vunpack.c.h.b16 %v9425
    %v10104 = vunpack.c.l.b16 %v9426
    %v10105 = vunpack.c.h.b16 %v9426
    %v10106 = vunpack.c.l.b16 %v9427
    %v10107 = vunpack.c.h.b16 %v9427
    %v10108 = vunpack.c.l.b16 %v9428
    %v10109 = vunpack.c.h.b16 %v9428
    %v10110 = vunpack.c.l.b16 %v9429
    %v10111 = vunpack.c.h.b16 %v9429
    %v10112 = vunpack.c.l.b16 %v9430
    %v10113 = vunpack.c.h.b16 %v9430
    %v10114 = vunpack.c.l.b16 %v9431
    %v10115 = vunpack.c.h.b16 %v9431
    %v10116 = vunpack.c.l.b16 %v9432
    %v10117 = vunpack.c.h.b16 %v9432
    %v10118 = vunpack.c.l.b16 %v9433
    %v10119 = vunpack.c.h.b16 %v9433
    %v10120 = vunpack.c.l.b16 %v9434
    %v10121 = vunpack.c.h.b16 %v9434
    %v10122 = vunpack.c.l.b16 %v9435
    %v10123 = vunpack.c.h.b16 %v9435
    %v10124 = vunpack.c.l.b16 %v9436
    %v10125 = vunpack.c.h.b16 %v9436
    %v10126 = vunpack.c.l.b16 %v9437
    %v10127 = vunpack.c.h.b16 %v9437
    %v10128 = vunpack.c.l.b16 %v9438
    %v10129 = vunpack.c.h.b16 %v9438
    %v10130 = vunpack.c.l.b16 %v9439
    %v10131 = vunpack.c.h.b16 %v9439
    %v10132 = vunpack.c.l.b16 %v9440
    %v10133 = vunpack.c.h.b16 %v9440
    %v10134 = vunpack.c.l.b16 %v9441
    %v10135 = vunpack.c.h.b16 %v9441
    %v10136 = vunpack.c.l.b16 %v9442
    %v10137 = vunpack.c.h.b16 %v9442
    %v10138 = vunpack.c.l.b16 %v9443
    %v10139 = vunpack.c.h.b16 %v9443
    %v10140 = vunpack.c.l.b16 %v9444
    %v10141 = vunpack.c.h.b16 %v9444
    %v10142 = vunpack.c.l.b16 %v9445
    %v10143 = vunpack.c.h.b16 %v9445
    %v10144 = vunpack.c.l.b16 %v9446
    %v10145 = vunpack.c.h.b16 %v9446
    %v10146 = vunpack.c.l.b16 %v9447
    %v10147 = vunpack.c.h.b16 %v9447
    %v10148 = vunpack.c.l.b16 %v9448
    %v10149 = vunpack.c.h.b16 %v9448
    %v10150 = vunpack.c.l.b16 %v9449
    %v10151 = vunpack.c.h.b16 %v9449
    %v10152 = vunpack.c.l.b16 %v9450
    %v10153 = vunpack.c.h.b16 %v9450
    %v10154 = vunpack.c.l.b16 %v9451
    %v10155 = vunpack.c.h.b16 %v9451
    %v10156 = vunpack.c.l.b16 %v9452
    %v10157 = vunpack.c.h.b16 %v9452
    %v10158 = vunpack.c.l.b16 %v9453
    %v10159 = vunpack.c.h.b16 %v9453
    %v10160 = vunpack.c.l.b16 %v9454
    %v10161 = vunpack.c.h.b16 %v9454
    %v10162 = vunpack.c.l.b16 %v9455
    %v10163 = vunpack.c.h.b16 %v9455
    %v10164 = vunpack.c.l.b16 %v9456
    %v10165 = vunpack.c.h.b16 %v9456
    %v10166 = vunpack.c.l.b16 %v9457
    %v10167 = vunpack.c.h.b16 %v9457
    %v10168 = vunpack.c.l.b16 %v9458
    %v10169 = vunpack.c.h.b16 %v9458
    %v10170 = vunpack.c.l.b16 %v9459
    %v10171 = vunpack.c.h.b16 %v9459
    %v10172 = vunpack.c.l.b16 %v9460
    %v10173 = vunpack.c.h.b16 %v9460
    %v10174 = vunpack.c.l.b16 %v9461
    %v10175 = vunpack.c.h.b16 %v9461
    %v10176 = vunpack.c.l.b16 %v9462
    %v10177 = vunpack.c.h.b16 %v9462
    %v10178 = vunpack.c.l.b16 %v9463
    %v10179 = vunpack.c.h.b16 %v9463
    %v10180 = vunpack.c.l.b16 %v9464
    %v10181 = vunpack.c.h.b16 %v9464
    %v10182 = vunpack.c.l.b16 %v9465
    %v10183 = vunpack.c.h.b16 %v9465
    %v10184 = vunpack.c.l.b16 %v9466
    %v10185 = vunpack.c.h.b16 %v9466
    %v10186 = vunpack.c.l.b16 %v9467
    %v10187 = vunpack.c.h.b16 %v9467
    %v10188 = vunpack.c.l.b16 %v9468
    %v10189 = vunpack.c.h.b16 %v9468
    %v10190 = vunpack.c.l.b16 %v9469
    %v10191 = vunpack.c.h.b16 %v9469
    %v10192 = vunpack.c.l.b16 %v9470
    %v10193 = vunpack.c.h.b16 %v9470
    %v10194 = vunpack.c.l.b16 %v9471
    %v10195 = vunpack.c.h.b16 %v9471
    %v10196 = vunpack.c.l.b16 %v9472
    %v10197 = vunpack.c.h.b16 %v9472
    %v10198 = vunpack.c.l.b16 %v9473
    %v10199 = vunpack.c.h.b16 %v9473
    %v10200 = vunpack.c.l.b16 %v9474
    %v10201 = vunpack.c.h.b16 %v9474
    %v10202 = vunpack.c.l.b16 %v9475
    %v10203 = vunpack.c.h.b16 %v9475
    %v10204 = vunpack.c.l.b16 %v9476
    %v10205 = vunpack.c.h.b16 %v9476
    %v10206 = vunpack.c.l.b16 %v9477
    %v10207 = vunpack.c.h.b16 %v9477
    %v10208 = vunpack.c.l.b16 %v9478
    %v10209 = vunpack.c.h.b16 %v9478
    %v10210 = vunpack.c.l.b16 %v9479
    %v10211 = vunpack.c.h.b16 %v9479
    %v10212 = vunpack.c.l.b16 %v9480
    %v10213 = vunpack.c.h.b16 %v9480
    %v10214 = vunpack.c.l.b16 %v9481
    %v10215 = vunpack.c.h.b16 %v9481
    %v10216 = vunpack.c.l.b16 %v9482
    %v10217 = vunpack.c.h.b16 %v9482
    %v10218 = vunpack.c.l.b16 %v9483
    %v10219 = vunpack.c.h.b16 %v9483
    %v10220 = vunpack.c.l.b16 %v9484
    %v10221 = vunpack.c.h.b16 %v9484
    %v10222 = vunpack.c.l.b16 %v9485
    %v10223 = vunpack.c.h.b16 %v9485
    %v10224 = vunpack.c.l.b16 %v9486
    %v10225 = vunpack.c.h.b16 %v9486
    %v10226 = vunpack.c.l.b16 %v9487
    %v10227 = vunpack.c.h.b16 %v9487
    %v10228 = vunpack.c.l.b16 %v9488
    %v10229 = vunpack.c.h.b16 %v9488
    %v10230 = vunpack.c.l.b16 %v9489
    %v10231 = vunpack.c.h.b16 %v9489
    %v10232 = vunpack.c.l.b16 %v9490
    %v10233 = vunpack.c.h.b16 %v9490
    %v10234 = vunpack.c.l.b16 %v9491
    %v10235 = vunpack.c.h.b16 %v9491
    %v10236 = vunpack.c.l.b16 %v9492
    %v10237 = vunpack.c.h.b16 %v9492
    %v10238 = vunpack.c.l.b16 %v9493
    %v10239 = vunpack.c.h.b16 %v9493
    %v10240 = vunpack.c.l.b16 %v9494
    %v10241 = vunpack.c.h.b16 %v9494
    %v10242 = vunpack.c.l.b16 %v9495
    %v10243 = vunpack.c.h.b16 %v9495
    %v10244 = vunpack.c.l.b16 %v9496
    %v10245 = vunpack.c.h.b16 %v9496
    %v10246 = vunpack.c.l.b16 %v9497
    %v10247 = vunpack.c.h.b16 %v9497
    %v10248 = vunpack.c.l.b16 %v9498
    %v10249 = vunpack.c.h.b16 %v9498
    %v10250 = vunpack.c.l.b16 %v9499
    %v10251 = vunpack.c.h.b16 %v9499
    %v10252 = vunpack.c.l.b16 %v9500
    %v10253 = vunpack.c.h.b16 %v9500
    %v10254 = vunpack.c.l.b16 %v9501
    %v10255 = vunpack.c.h.b16 %v9501
    %v10256 = vunpack.c.l.b16 %v9502
    %v10257 = vunpack.c.h.b16 %v9502
    %v10258 = vunpack.c.l.b16 %v9503
    %v10259 = vunpack.c.h.b16 %v9503
    %v10260 = vunpack.c.l.b16 %v9504
    %v10261 = vunpack.c.h.b16 %v9504
    %v10262 = vunpack.c.l.b16 %v9505
    %v10263 = vunpack.c.h.b16 %v9505
    %v10264 = vunpack.c.l.b16 %v9506
    %v10265 = vunpack.c.h.b16 %v9506
    %v10266 = vunpack.c.l.b16 %v9507
    %v10267 = vunpack.c.h.b16 %v9507
    %v10268 = vunpack.c.l.b16 %v9508
    %v10269 = vunpack.c.h.b16 %v9508
    %v10270 = vunpack.c.l.b16 %v9509
    %v10271 = vunpack.c.h.b16 %v9509
    %v10272 = vunpack.c.l.b16 %v9510
    %v10273 = vunpack.c.h.b16 %v9510
    %v10274 = vunpack.c.l.b16 %v9511
    %v10275 = vunpack.c.h.b16 %v9511
    %v10276 = vunpack.c.l.b16 %v9512
    %v10277 = vunpack.c.h.b16 %v9512
    %v10278 = vunpack.c.l.b16 %v9513
    %v10279 = vunpack.c.h.b16 %v9513
    %v10280 = vunpack.c.l.b16 %v9514
    %v10281 = vunpack.c.h.b16 %v9514
    %v10282 = vunpack.c.l.b16 %v9515
    %v10283 = vunpack.c.h.b16 %v9515
    %v10284 = vunpack.c.l.b16 %v9516
    %v10285 = vunpack.c.h.b16 %v9516
    %v10286 = vunpack.c.l.b16 %v9517
    %v10287 = vunpack.c.h.b16 %v9517
    %v10288 = vunpack.c.l.b16 %v9518
    %v10289 = vunpack.c.h.b16 %v9518
    %v10290 = vunpack.c.l.b16 %v9519
    %v10291 = vunpack.c.h.b16 %v9519
    %v10292 = vunpack.c.l.b16 %v9520
    %v10293 = vunpack.c.h.b16 %v9520
    %v10294 = vunpack.c.l.b16 %v9521
    %v10295 = vunpack.c.h.b16 %v9521
    %v10296 = vunpack.c.l.b16 %v9522
    %v10297 = vunpack.c.h.b16 %v9522
    %v10298 = vunpack.c.l.b16 %v9523
    %v10299 = vunpack.c.h.b16 %v9523
    %v10300 = vunpack.c.l.b16 %v9524
    %v10301 = vunpack.c.h.b16 %v9524
    %v10302 = vunpack.c.l.b16 %v9525
    %v10303 = vunpack.c.h.b16 %v9525
    %v10304 = vunpack.c.l.b16 %v9526
    %v10305 = vunpack.c.h.b16 %v9526
    %v10306 = vunpack.c.l.b16 %v9527
    %v10307 = vunpack.c.h.b16 %v9527
    %v10308 = vunpack.c.l.b16 %v9528
    %v10309 = vunpack.c.h.b16 %v9528
    %v10310 = vunpack.c.l.b16 %v9529
    %v10311 = vunpack.c.h.b16 %v9529
    %v10312 = vunpack.c.l.b16 %v9530
    %v10313 = vunpack.c.h.b16 %v9530
    %v10314 = vunpack.c.l.b16 %v9531
    %v10315 = vunpack.c.h.b16 %v9531
    %v10316 = vunpack.c.l.b16 %v9532
    %v10317 = vunpack.c.h.b16 %v9532
    %v10318 = vunpack.c.l.b16 %v9533
    %v10319 = vunpack.c.h.b16 %v9533
    %v10320 = vunpack.c.l.b16 %v9534
    %v10321 = vunpack.c.h.b16 %v9534
    %v10322 = vunpack.c.l.b16 %v9535
    %v10323 = vunpack.c.h.b16 %v9535
    %v10324 = vunpack.c.l.b16 %v9536
    %v10325 = vunpack.c.h.b16 %v9536
    %v10326 = vunpack.c.l.b16 %v9537
    %v10327 = vunpack.c.h.b16 %v9537
    %v10328 = vpack.c.b16 %v9820, %v9816
    %v10329 = vpack.c.b16 %v9821, %v9817
    %v10330 = vpack.c.b16 %v9822, %v9818
    %v10331 = vpack.c.b16 %v9823, %v9819
    %v10332 = vpack.c.b16 %v9828, %v9824
    %v10333 = vpack.c.b16 %v9829, %v9825
    %v10334 = vpack.c.b16 %v9830, %v9826
    %v10335 = vpack.c.b16 %v9831, %v9827
    %v10336 = vpack.c.b16 %v9836, %v9832
    %v10337 = vpack.c.b16 %v9837, %v9833
    %v10338 = vpack.c.b16 %v9838, %v9834
    %v10339 = vpack.c.b16 %v9839, %v9835
    %v10340 = vpack.c.b16 %v9844, %v9840
    %v10341 = vpack.c.b16 %v9845, %v9841
    %v10342 = vpack.c.b16 %v9846, %v9842
    %v10343 = vpack.c.b16 %v9847, %v9843
    %v10344 = vpack.c.b16 %v9852, %v9848
    %v10345 = vpack.c.b16 %v9853, %v9849
    %v10346 = vpack.c.b16 %v9854, %v9850
    %v10347 = vpack.c.b16 %v9855, %v9851
    %v10348 = vpack.c.b16 %v9860, %v9856
    %v10349 = vpack.c.b16 %v9861, %v9857
    %v10350 = vpack.c.b16 %v9862, %v9858
    %v10351 = vpack.c.b16 %v9863, %v9859
    %v10352 = vpack.c.b16 %v9868, %v9864
    %v10353 = vpack.c.b16 %v9869, %v9865
    %v10354 = vpack.c.b16 %v9870, %v9866
    %v10355 = vpack.c.b16 %v9871, %v9867
    %v10356 = vpack.c.b16 %v9876, %v9872
    %v10357 = vpack.c.b16 %v9877, %v9873
    %v10358 = vpack.c.b16 %v9878, %v9874
    %v10359 = vpack.c.b16 %v9879, %v9875
    %v10360 = vpack.c.b16 %v9884, %v9880
    %v10361 = vpack.c.b16 %v9885, %v9881
    %v10362 = vpack.c.b16 %v9886, %v9882
    %v10363 = vpack.c.b16 %v9887, %v9883
    %v10364 = vpack.c.b16 %v9892, %v9888
    %v10365 = vpack.c.b16 %v9893, %v9889
    %v10366 = vpack.c.b16 %v9894, %v9890
    %v10367 = vpack.c.b16 %v9895, %v9891
    %v10368 = vpack.c.b16 %v9900, %v9896
    %v10369 = vpack.c.b16 %v9901, %v9897
    %v10370 = vpack.c.b16 %v9902, %v9898
    %v10371 = vpack.c.b16 %v9903, %v9899
    %v10372 = vpack.c.b16 %v9908, %v9904
    %v10373 = vpack.c.b16 %v9909, %v9905
    %v10374 = vpack.c.b16 %v9910, %v9906
    %v10375 = vpack.c.b16 %v9911, %v9907
    %v10376 = vpack.c.b16 %v9916, %v9912
    %v10377 = vpack.c.b16 %v9917, %v9913
    %v10378 = vpack.c.b16 %v9918, %v9914
    %v10379 = vpack.c.b16 %v9919, %v9915
    %v10380 = vpack.c.b16 %v9924, %v9920
    %v10381 = vpack.c.b16 %v9925, %v9921
    %v10382 = vpack.c.b16 %v9926, %v9922
    %v10383 = vpack.c.b16 %v9927, %v9923
    %v10384 = vpack.c.b16 %v9932, %v9928
    %v10385 = vpack.c.b16 %v9933, %v9929
    %v10386 = vpack.c.b16 %v9934, %v9930
    %v10387 = vpack.c.b16 %v9935, %v9931
    %v10388 = vpack.c.b16 %v9940, %v9936
    %v10389 = vpack.c.b16 %v9941, %v9937
    %v10390 = vpack.c.b16 %v9942, %v9938
    %v10391 = vpack.c.b16 %v9943, %v9939
    %v10392 = vpack.c.b16 %v9948, %v9944
    %v10393 = vpack.c.b16 %v9949, %v9945
    %v10394 = vpack.c.b16 %v9950, %v9946
    %v10395 = vpack.c.b16 %v9951, %v9947
    %v10396 = vpack.c.b16 %v9956, %v9952
    %v10397 = vpack.c.b16 %v9957, %v9953
    %v10398 = vpack.c.b16 %v9958, %v9954
    %v10399 = vpack.c.b16 %v9959, %v9955
    %v10400 = vpack.c.b16 %v9964, %v9960
    %v10401 = vpack.c.b16 %v9965, %v9961
    %v10402 = vpack.c.b16 %v9966, %v9962
    %v10403 = vpack.c.b16 %v9967, %v9963
    %v10404 = vpack.c.b16 %v9972, %v9968
    %v10405 = vpack.c.b16 %v9973, %v9969
    %v10406 = vpack.c.b16 %v9974, %v9970
    %v10407 = vpack.c.b16 %v9975, %v9971
    %v10408 = vpack.c.b16 %v9980, %v9976
    %v10409 = vpack.c.b16 %v9981, %v9977
    %v10410 = vpack.c.b16 %v9982, %v9978
    %v10411 = vpack.c.b16 %v9983, %v9979
    %v10412 = vpack.c.b16 %v9988, %v9984
    %v10413 = vpack.c.b16 %v9989, %v9985
    %v10414 = vpack.c.b16 %v9990, %v9986
    %v10415 = vpack.c.b16 %v9991, %v9987
    %v10416 = vpack.c.b16 %v9996, %v9992
    %v10417 = vpack.c.b16 %v9997, %v9993
    %v10418 = vpack.c.b16 %v9998, %v9994
    %v10419 = vpack.c.b16 %v9999, %v9995
    %v10420 = vpack.c.b16 %v10004, %v10000
    %v10421 = vpack.c.b16 %v10005, %v10001
    %v10422 = vpack.c.b16 %v10006, %v10002
    %v10423 = vpack.c.b16 %v10007, %v10003
    %v10424 = vpack.c.b16 %v10012, %v10008
    %v10425 = vpack.c.b16 %v10013, %v10009
    %v10426 = vpack.c.b16 %v10014, %v10010
    %v10427 = vpack.c.b16 %v10015, %v10011
    %v10428 = vpack.c.b16 %v10020, %v10016
    %v10429 = vpack.c.b16 %v10021, %v10017
    %v10430 = vpack.c.b16 %v10022, %v10018
    %v10431 = vpack.c.b16 %v10023, %v10019
    %v10432 = vpack.c.b16 %v10028, %v10024
    %v10433 = vpack.c.b16 %v10029, %v10025
    %v10434 = vpack.c.b16 %v10030, %v10026
    %v10435 = vpack.c.b16 %v10031, %v10027
    %v10436 = vpack.c.b16 %v10036, %v10032
    %v10437 = vpack.c.b16 %v10037, %v10033
    %v10438 = vpack.c.b16 %v10038, %v10034
    %v10439 = vpack.c.b16 %v10039, %v10035
    %v10440 = vpack.c.b16 %v10044, %v10040
    %v10441 = vpack.c.b16 %v10045, %v10041
    %v10442 = vpack.c.b16 %v10046, %v10042
    %v10443 = vpack.c.b16 %v10047, %v10043
    %v10444 = vpack.c.b16 %v10052, %v10048
    %v10445 = vpack.c.b16 %v10053, %v10049
    %v10446 = vpack.c.b16 %v10054, %v10050
    %v10447 = vpack.c.b16 %v10055, %v10051
    %v10448 = vpack.c.b16 %v10060, %v10056
    %v10449 = vpack.c.b16 %v10061, %v10057
    %v10450 = vpack.c.b16 %v10062, %v10058
    %v10451 = vpack.c.b16 %v10063, %v10059
    %v10452 = vpack.c.b16 %v10068, %v10064
    %v10453 = vpack.c.b16 %v10069, %v10065
    %v10454 = vpack.c.b16 %v10070, %v10066
    %v10455 = vpack.c.b16 %v10071, %v10067
    %v10456 = vpack.c.b16 %v10076, %v10072
    %v10457 = vpack.c.b16 %v10077, %v10073
    %v10458 = vpack.c.b16 %v10078, %v10074
    %v10459 = vpack.c.b16 %v10079, %v10075
    %v10460 = vpack.c.b16 %v10084, %v10080
    %v10461 = vpack.c.b16 %v10085, %v10081
    %v10462 = vpack.c.b16 %v10086, %v10082
    %v10463 = vpack.c.b16 %v10087, %v10083
    %v10464 = vpack.c.b16 %v10092, %v10088
    %v10465 = vpack.c.b16 %v10093, %v10089
    %v10466 = vpack.c.b16 %v10094, %v10090
    %v10467 = vpack.c.b16 %v10095, %v10091
    %v10468 = vpack.c.b16 %v10100, %v10096
    %v10469 = vpack.c.b16 %v10101, %v10097
    %v10470 = vpack.c.b16 %v10102, %v10098
    %v10471 = vpack.c.b16 %v10103, %v10099
    %v10472 = vpack.c.b16 %v10108, %v10104
    %v10473 = vpack.c.b16 %v10109, %v10105
    %v10474 = vpack.c.b16 %v10110, %v10106
    %v10475 = vpack.c.b16 %v10111, %v10107
    %v10476 = vpack.c.b16 %v10116, %v10112
    %v10477 = vpack.c.b16 %v10117, %v10113
    %v10478 = vpack.c.b16 %v10118, %v10114
    %v10479 = vpack.c.b16 %v10119, %v10115
    %v10480 = vpack.c.b16 %v10124, %v10120
    %v10481 = vpack.c.b16 %v10125, %v10121
    %v10482 = vpack.c.b16 %v10126, %v10122
    %v10483 = vpack.c.b16 %v10127, %v10123
    %v10484 = vpack.c.b16 %v10132, %v10128
    %v10485 = vpack.c.b16 %v10133, %v10129
    %v10486 = vpack.c.b16 %v10134, %v10130
    %v10487 = vpack.c.b16 %v10135, %v10131
    %v10488 = vpack.c.b16 %v10140, %v10136
    %v10489 = vpack.c.b16 %v10141, %v10137
    %v10490 = vpack.c.b16 %v10142, %v10138
    %v10491 = vpack.c.b16 %v10143, %v10139
    %v10492 = vpack.c.b16 %v10148, %v10144
    %v10493 = vpack.c.b16 %v10149, %v10145
    %v10494 = vpack.c.b16 %v10150, %v10146
    %v10495 = vpack.c.b16 %v10151, %v10147
    %v10496 = vpack.c.b16 %v10156, %v10152
    %v10497 = vpack.c.b16 %v10157, %v10153
    %v10498 = vpack.c.b16 %v10158, %v10154
    %v10499 = vpack.c.b16 %v10159, %v10155
    %v10500 = vpack.c.b16 %v10164, %v10160
    %v10501 = vpack.c.b16 %v10165, %v10161
    %v10502 = vpack.c.b16 %v10166, %v10162
    %v10503 = vpack.c.b16 %v10167, %v10163
    %v10504 = vpack.c.b16 %v10172, %v10168
    %v10505 = vpack.c.b16 %v10173, %v10169
    %v10506 = vpack.c.b16 %v10174, %v10170
    %v10507 = vpack.c.b16 %v10175, %v10171
    %v10508 = vpack.c.b16 %v10180, %v10176
    %v10509 = vpack.c.b16 %v10181, %v10177
    %v10510 = vpack.c.b16 %v10182, %v10178
    %v10511 = vpack.c.b16 %v10183, %v10179
    %v10512 = vpack.c.b16 %v10188, %v10184
    %v10513 = vpack.c.b16 %v10189, %v10185
    %v10514 = vpack.c.b16 %v10190, %v10186
    %v10515 = vpack.c.b16 %v10191, %v10187
    %v10516 = vpack.c.b16 %v10196, %v10192
    %v10517 = vpack.c.b16 %v10197, %v10193
    %v10518 = vpack.c.b16 %v10198, %v10194
    %v10519 = vpack.c.b16 %v10199, %v10195
    %v10520 = vpack.c.b16 %v10204, %v10200
    %v10521 = vpack.c.b16 %v10205, %v10201
    %v10522 = vpack.c.b16 %v10206, %v10202
    %v10523 = vpack.c.b16 %v10207, %v10203
    %v10524 = vpack.c.b16 %v10212, %v10208
    %v10525 = vpack.c.b16 %v10213, %v10209
    %v10526 = vpack.c.b16 %v10214, %v10210
    %v10527 = vpack.c.b16 %v10215, %v10211
    %v10528 = vpack.c.b16 %v10220, %v10216
    %v10529 = vpack.c.b16 %v10221, %v10217
    %v10530 = vpack.c.b16 %v10222, %v10218
    %v10531 = vpack.c.b16 %v10223, %v10219
    %v10532 = vpack.c.b16 %v10228, %v10224
    %v10533 = vpack.c.b16 %v10229, %v10225
    %v10534 = vpack.c.b16 %v10230, %v10226
    %v10535 = vpack.c.b16 %v10231, %v10227
    %v10536 = vpack.c.b16 %v10236, %v10232
    %v10537 = vpack.c.b16 %v10237, %v10233
    %v10538 = vpack.c.b16 %v10238, %v10234
    %v10539 = vpack.c.b16 %v10239, %v10235
    %v10540 = vpack.c.b16 %v10244, %v10240
    %v10541 = vpack.c.b16 %v10245, %v10241
    %v10542 = vpack.c.b16 %v10246, %v10242
    %v10543 = vpack.c.b16 %v10247, %v10243
    %v10544 = vpack.c.b16 %v10252, %v10248
    %v10545 = vpack.c.b16 %v10253, %v10249
    %v10546 = vpack.c.b16 %v10254, %v10250
    %v10547 = vpack.c.b16 %v10255, %v10251
    %v10548 = vpack.c.b16 %v10260, %v10256
    %v10549 = vpack.c.b16 %v10261, %v10257
    %v10550 = vpack.c.b16 %v10262, %v10258
    %v10551 = vpack.c.b16 %v10263, %v10259
    %v10552 = vpack.c.b16 %v10268, %v10264
    %v10553 = vpack.c.b16 %v10269, %v10265
    %v10554 = vpack.c.b16 %v10270, %v10266
    %v10555 = vpack.c.b16 %v10271, %v10267
    %v10556 = vpack.c.b16 %v10276, %v10272
    %v10557 = vpack.c.b16 %v10277, %v10273
    %v10558 = vpack.c.b16 %v10278, %v10274
    %v10559 = vpack.c.b16 %v10279, %v10275
    %v10560 = vpack.c.b16 %v10284, %v10280
    %v10561 = vpack.c.b16 %v10285, %v10281
    %v10562 = vpack.c.b16 %v10286, %v10282
    %v10563 = vpack.c.b16 %v10287, %v10283
    %v10564 = vpack.c.b16 %v10292, %v10288
    %v10565 = vpack.c.b16 %v10293, %v10289
    %v10566 = vpack.c.b16 %v10294, %v10290
    %v10567 = vpack.c.b16 %v10295, %v10291
    %v10568 = vpack.c.b16 %v10300, %v10296
    %v10569 = vpack.c.b16 %v10301, %v10297
    %v10570 = vpack.c.b16 %v10302, %v10298
    %v10571 = vpack.c.b16 %v10303, %v10299
    %v10572 = vpack.c.b16 %v10308, %v10304
    %v10573 = vpack.c.b16 %v10309, %v10305
    %v10574 = vpack.c.b16 %v10310, %v10306
    %v10575 = vpack.c.b16 %v10311, %v10307
    %v10576 = vpack.c.b16 %v10316, %v10312
    %v10577 = vpack.c.b16 %v10317, %v10313
    %v10578 = vpack.c.b16 %v10318, %v10314
    %v10579 = vpack.c.b16 %v10319, %v10315
    %v10580 = vpack.c.b16 %v10324, %v10320
    %v10581 = vpack.c.b16 %v10325, %v10321
    %v10582 = vpack.c.b16 %v10326, %v10322
    %v10583 = vpack.c.b16 %v10327, %v10323
    %10840 = vmatprep.subr.bf16.mxu0 %v10329
    %10841 = vmatpush1.bf16.msra.mxu0 %v10328
    %10842 = vmatprep.subr.bf16.mxu0 %v10333
    %10843 = vmatpush1.bf16.msra.mxu0 %v10332
    %10844 = vmatprep.subr.bf16.mxu0 %v10337
    %10845 = vmatpush1.bf16.msra.mxu0 %v10336
    %10846 = vmatprep.subr.bf16.mxu0 %v10341
    %10847 = vmatpush1.bf16.msra.mxu0 %v10340
    %10848 = vmatprep.subr.bf16.mxu0 %v10345
    %10849 = vmatpush1.bf16.msra.mxu0 %v10344
    %10850 = vmatprep.subr.bf16.mxu0 %v10349
    %10851 = vmatpush1.bf16.msra.mxu0 %v10348
    %10852 = vmatprep.subr.bf16.mxu0 %v10353
    %10853 = vmatpush1.bf16.msra.mxu0 %v10352
    %10854 = vmatprep.subr.bf16.mxu0 %v10357
    %10855 = vmatpush1.bf16.msra.mxu0 %v10356
    %10856 = vmatprep.subr.bf16.mxu0 %v10361
    %10857 = vmatpush1.bf16.msra.mxu0 %v10360
    %10858 = vmatprep.subr.bf16.mxu0 %v10365
    %10859 = vmatpush1.bf16.msra.mxu0 %v10364
    %10860 = vmatprep.subr.bf16.mxu0 %v10369
    %10861 = vmatpush1.bf16.msra.mxu0 %v10368
    %10862 = vmatprep.subr.bf16.mxu0 %v10373
    %10863 = vmatpush1.bf16.msra.mxu0 %v10372
    %10864 = vmatprep.subr.bf16.mxu0 %v10377
    %10865 = vmatpush1.bf16.msra.mxu0 %v10376
    %10866 = vmatprep.subr.bf16.mxu0 %v10381
    %10867 = vmatpush1.bf16.msra.mxu0 %v10380
    %10868 = vmatprep.subr.bf16.mxu0 %v10385
    %10869 = vmatpush1.bf16.msra.mxu0 %v10384
    %10870 = vmatprep.subr.bf16.mxu0 %v10389
    %10871 = vmatpush1.bf16.msra.mxu0 %v10388
    %10872 = vmatprep.mubr.bf16.mxu0 %v9275
    %10873 = vmatmul.mubr.bf16.gmra.mrb[0].mxu0 %v9274
    %v10874 = vpop.f32.mrb[0].mxu0
    %v10875 = vadd.f32 %v9543, %v10874
    %v10876 = vpop.f32.mrb[0].mxu0
    %v10877 = vadd.f32 %v9547, %v10876
    %v10878 = vpop.f32.mrb[0].mxu0
    %v10879 = vpop.f32.mrb[0].mxu0
    %10880 = vdwg.mxu0
    %10881 = vmatprep.subr.bf16.mxu0 %v10393
    %10882 = vmatpush1.bf16.msra.mxu0 %v10392
    %10883 = vmatprep.subr.bf16.mxu0 %v10397
    %10884 = vmatpush1.bf16.msra.mxu0 %v10396
    %10885 = vmatprep.subr.bf16.mxu0 %v10401
    %10886 = vmatpush1.bf16.msra.mxu0 %v10400
    %10887 = vmatprep.subr.bf16.mxu0 %v10405
    %10888 = vmatpush1.bf16.msra.mxu0 %v10404
    %10889 = vmatprep.subr.bf16.mxu0 %v10409
    %10890 = vmatpush1.bf16.msra.mxu0 %v10408
    %10891 = vmatprep.subr.bf16.mxu0 %v10413
    %10892 = vmatpush1.bf16.msra.mxu0 %v10412
    %10893 = vmatprep.subr.bf16.mxu0 %v10417
    %10894 = vmatpush1.bf16.msra.mxu0 %v10416
    %10895 = vmatprep.subr.bf16.mxu0 %v10421
    %10896 = vmatpush1.bf16.msra.mxu0 %v10420
    %10897 = vmatprep.subr.bf16.mxu0 %v10425
    %10898 = vmatpush1.bf16.msra.mxu0 %v10424
    %10899 = vmatprep.subr.bf16.mxu0 %v10429
    %10900 = vmatpush1.bf16.msra.mxu0 %v10428
    %10901 = vmatprep.subr.bf16.mxu0 %v10433
    %10902 = vmatpush1.bf16.msra.mxu0 %v10432
    %10903 = vmatprep.subr.bf16.mxu0 %v10437
    %10904 = vmatpush1.bf16.msra.mxu0 %v10436
    %10905 = vmatprep.subr.bf16.mxu0 %v10441
    %10906 = vmatpush1.bf16.msra.mxu0 %v10440
    %10907 = vmatprep.subr.bf16.mxu0 %v10445
    %10908 = vmatpush1.bf16.msra.mxu0 %v10444
    %10909 = vmatprep.subr.bf16.mxu0 %v10449
    %10910 = vmatpush1.bf16.msra.mxu0 %v10448
    %10911 = vmatprep.subr.bf16.mxu0 %v10453
    %10912 = vmatpush1.bf16.msra.mxu0 %v10452
    %10913 = vmatprep.mubr.bf16.mxu0 %v9277
    %10914 = vmatmul.mubr.bf16.gmra.mrb[0].mxu0 %v9276
    %v10915 = vpop.f32.mrb[0].mxu0
    %v10916 = vadd.f32 %v10875, %v10915
    %v10917 = vpop.f32.mrb[0].mxu0
    %v10918 = vadd.f32 %v10877, %v10917
    %v10919 = vpop.f32.mrb[0].mxu0
    %v10920 = vpop.f32.mrb[0].mxu0
    %10921 = vdwg.mxu0
    %10922 = vmatprep.subr.bf16.mxu0 %v10457
    %10923 = vmatpush1.bf16.msra.mxu0 %v10456
    %10924 = vmatprep.subr.bf16.mxu0 %v10461
    %10925 = vmatpush1.bf16.msra.mxu0 %v10460
    %10926 = vmatprep.subr.bf16.mxu0 %v10465
    %10927 = vmatpush1.bf16.msra.mxu0 %v10464
    %10928 = vmatprep.subr.bf16.mxu0 %v10469
    %10929 = vmatpush1.bf16.msra.mxu0 %v10468
    %10930 = vmatprep.subr.bf16.mxu0 %v10473
    %10931 = vmatpush1.bf16.msra.mxu0 %v10472
    %10932 = vmatprep.subr.bf16.mxu0 %v10477
    %10933 = vmatpush1.bf16.msra.mxu0 %v10476
    %10934 = vmatprep.subr.bf16.mxu0 %v10481
    %10935 = vmatpush1.bf16.msra.mxu0 %v10480
    %10936 = vmatprep.subr.bf16.mxu0 %v10485
    %10937 = vmatpush1.bf16.msra.mxu0 %v10484
    %10938 = vmatprep.subr.bf16.mxu0 %v10489
    %10939 = vmatpush1.bf16.msra.mxu0 %v10488
    %10940 = vmatprep.subr.bf16.mxu0 %v10493
    %10941 = vmatpush1.bf16.msra.mxu0 %v10492
    %10942 = vmatprep.subr.bf16.mxu0 %v10497
    %10943 = vmatpush1.bf16.msra.mxu0 %v10496
    %10944 = vmatprep.subr.bf16.mxu0 %v10501
    %10945 = vmatpush1.bf16.msra.mxu0 %v10500
    %10946 = vmatprep.subr.bf16.mxu0 %v10505
    %10947 = vmatpush1.bf16.msra.mxu0 %v10504
    %10948 = vmatprep.subr.bf16.mxu0 %v10509
    %10949 = vmatpush1.bf16.msra.mxu0 %v10508
    %10950 = vmatprep.subr.bf16.mxu0 %v10513
    %10951 = vmatpush1.bf16.msra.mxu0 %v10512
    %10952 = vmatprep.subr.bf16.mxu0 %v10517
    %10953 = vmatpush1.bf16.msra.mxu0 %v10516
    %10954 = vmatprep.mubr.bf16.mxu0 %v9279
    %10955 = vmatmul.mubr.bf16.gmra.mrb[0].mxu0 %v9278
    %v10956 = vpop.f32.mrb[0].mxu0
    %v10957 = vadd.f32 %v10916, %v10956
    %v10958 = vpop.f32.mrb[0].mxu0
    %v10959 = vadd.f32 %v10918, %v10958
    %v10960 = vpop.f32.mrb[0].mxu0
    %v10961 = vpop.f32.mrb[0].mxu0
    %10962 = vdwg.mxu0
    %10963 = vmatprep.subr.bf16.mxu0 %v10521
    %10964 = vmatpush1.bf16.msra.mxu0 %v10520
    %10965 = vmatprep.subr.bf16.mxu0 %v10525
    %10966 = vmatpush1.bf16.msra.mxu0 %v10524
    %10967 = vmatprep.subr.bf16.mxu0 %v10529
    %10968 = vmatpush1.bf16.msra.mxu0 %v10528
    %10969 = vmatprep.subr.bf16.mxu0 %v10533
    %10970 = vmatpush1.bf16.msra.mxu0 %v10532
    %10971 = vmatprep.subr.bf16.mxu0 %v10537
    %10972 = vmatpush1.bf16.msra.mxu0 %v10536
    %10973 = vmatprep.subr.bf16.mxu0 %v10541
    %10974 = vmatpush1.bf16.msra.mxu0 %v10540
    %10975 = vmatprep.subr.bf16.mxu0 %v10545
    %10976 = vmatpush1.bf16.msra.mxu0 %v10544
    %10977 = vmatprep.subr.bf16.mxu0 %v10549
    %10978 = vmatpush1.bf16.msra.mxu0 %v10548
    %10979 = vmatprep.subr.bf16.mxu0 %v10553
    %10980 = vmatpush1.bf16.msra.mxu0 %v10552
    %10981 = vmatprep.subr.bf16.mxu0 %v10557
    %10982 = vmatpush1.bf16.msra.mxu0 %v10556
    %10983 = vmatprep.subr.bf16.mxu0 %v10561
    %10984 = vmatpush1.bf16.msra.mxu0 %v10560
    %10985 = vmatprep.subr.bf16.mxu0 %v10565
    %10986 = vmatpush1.bf16.msra.mxu0 %v10564
    %10987 = vmatprep.subr.bf16.mxu0 %v10569
    %10988 = vmatpush1.bf16.msra.mxu0 %v10568
    %10989 = vmatprep.subr.bf16.mxu0 %v10573
    %10990 = vmatpush1.bf16.msra.mxu0 %v10572
    %10991 = vmatprep.subr.bf16.mxu0 %v10577
    %10992 = vmatpush1.bf16.msra.mxu0 %v10576
    %10993 = vmatprep.subr.bf16.mxu0 %v10581
    %10994 = vmatpush1.bf16.msra.mxu0 %v10580
    %10995 = vmatprep.mubr.bf16.mxu0 %v9281
    %10996 = vmatmul.mubr.bf16.gmra.mrb[0].mxu0 %v9280
    %v10997 = vpop.f32.mrb[0].mxu0
    %v10998 = vadd.f32 %v10957, %v10997
    %v10999 = vpop.f32.mrb[0].mxu0
    %v11000 = vadd.f32 %v10959, %v10999
    %v11001 = vpop.f32.mrb[0].mxu0
    %v11002 = vpop.f32.mrb[0].mxu0
    %11003 = vdwg.mxu0
    %11004 = vmatprep.subr.bf16.mxu0 %v10331
    %11005 = vmatpush1.bf16.msra.mxu0 %v10330
    %11006 = vmatprep.subr.bf16.mxu0 %v10335
    %11007 = vmatpush1.bf16.msra.mxu0 %v10334
    %11008 = vmatprep.subr.bf16.mxu0 %v10339
    %11009 = vmatpush1.bf16.msra.mxu0 %v10338
    %11010 = vmatprep.subr.bf16.mxu0 %v10343
    %11011 = vmatpush1.bf16.msra.mxu0 %v10342
    %11012 = vmatprep.subr.bf16.mxu0 %v10347
    %11013 = vmatpush1.bf16.msra.mxu0 %v10346
    %11014 = vmatprep.subr.bf16.mxu0 %v10351
    %11015 = vmatpush1.bf16.msra.mxu0 %v10350
    %11016 = vmatprep.subr.bf16.mxu0 %v10355
    %11017 = vmatpush1.bf16.msra.mxu0 %v10354
    %11018 = vmatprep.subr.bf16.mxu0 %v10359
    %11019 = vmatpush1.bf16.msra.mxu0 %v10358
    %11020 = vmatprep.subr.bf16.mxu0 %v10363
    %11021 = vmatpush1.bf16.msra.mxu0 %v10362
    %11022 = vmatprep.subr.bf16.mxu0 %v10367
    %11023 = vmatpush1.bf16.msra.mxu0 %v10366
    %11024 = vmatprep.subr.bf16.mxu0 %v10371
    %11025 = vmatpush1.bf16.msra.mxu0 %v10370
    %11026 = vmatprep.subr.bf16.mxu0 %v10375
    %11027 = vmatpush1.bf16.msra.mxu0 %v10374
    %11028 = vmatprep.subr.bf16.mxu0 %v10379
    %11029 = vmatpush1.bf16.msra.mxu0 %v10378
    %11030 = vmatprep.subr.bf16.mxu0 %v10383
    %11031 = vmatpush1.bf16.msra.mxu0 %v10382
    %11032 = vmatprep.subr.bf16.mxu0 %v10387
    %11033 = vmatpush1.bf16.msra.mxu0 %v10386
    %11034 = vmatprep.subr.bf16.mxu0 %v10391
    %11035 = vmatpush1.bf16.msra.mxu0 %v10390
    %11036 = vmatprep.mubr.bf16.mxu0 %v9275
    %11037 = vmatmul.mubr.bf16.gmra.mrb[0].mxu0 %v9274
    %v11038 = vpop.f32.mrb[0].mxu0
    %v11039 = vadd.f32 %v9551, %v11038
    %v11040 = vpop.f32.mrb[0].mxu0
    %v11041 = vadd.f32 %v9555, %v11040
    %v11042 = vpop.f32.mrb[0].mxu0
    %v11043 = vpop.f32.mrb[0].mxu0
    %11044 = vdwg.mxu0
    %11045 = vmatprep.subr.bf16.mxu0 %v10395
    %11046 = vmatpush1.bf16.msra.mxu0 %v10394
    %11047 = vmatprep.subr.bf16.mxu0 %v10399
    %11048 = vmatpush1.bf16.msra.mxu0 %v10398
    %11049 = vmatprep.subr.bf16.mxu0 %v10403
    %11050 = vmatpush1.bf16.msra.mxu0 %v10402
    %11051 = vmatprep.subr.bf16.mxu0 %v10407
    %11052 = vmatpush1.bf16.msra.mxu0 %v10406
    %11053 = vmatprep.subr.bf16.mxu0 %v10411
    %11054 = vmatpush1.bf16.msra.mxu0 %v10410
    %11055 = vmatprep.subr.bf16.mxu0 %v10415
    %11056 = vmatpush1.bf16.msra.mxu0 %v10414
    %11057 = vmatprep.subr.bf16.mxu0 %v10419
    %11058 = vmatpush1.bf16.msra.mxu0 %v10418
    %11059 = vmatprep.subr.bf16.mxu0 %v10423
    %11060 = vmatpush1.bf16.msra.mxu0 %v10422
    %11061 = vmatprep.subr.bf16.mxu0 %v10427
    %11062 = vmatpush1.bf16.msra.mxu0 %v10426
    %11063 = vmatprep.subr.bf16.mxu0 %v10431
    %11064 = vmatpush1.bf16.msra.mxu0 %v10430
    %11065 = vmatprep.subr.bf16.mxu0 %v10435
    %11066 = vmatpush1.bf16.msra.mxu0 %v10434
    %11067 = vmatprep.subr.bf16.mxu0 %v10439
    %11068 = vmatpush1.bf16.msra.mxu0 %v10438
    %11069 = vmatprep.subr.bf16.mxu0 %v10443
    %11070 = vmatpush1.bf16.msra.mxu0 %v10442
    %11071 = vmatprep.subr.bf16.mxu0 %v10447
    %11072 = vmatpush1.bf16.msra.mxu0 %v10446
    %11073 = vmatprep.subr.bf16.mxu0 %v10451
    %11074 = vmatpush1.bf16.msra.mxu0 %v10450
    %11075 = vmatprep.subr.bf16.mxu0 %v10455
    %11076 = vmatpush1.bf16.msra.mxu0 %v10454
    %11077 = vmatprep.mubr.bf16.mxu0 %v9277
    %11078 = vmatmul.mubr.bf16.gmra.mrb[0].mxu0 %v9276
    %v11079 = vpop.f32.mrb[0].mxu0
    %v11080 = vadd.f32 %v11039, %v11079
    %v11081 = vpop.f32.mrb[0].mxu0
    %v11082 = vadd.f32 %v11041, %v11081
    %v11083 = vpop.f32.mrb[0].mxu0
    %v11084 = vpop.f32.mrb[0].mxu0
    %11085 = vdwg.mxu0
    %11086 = vmatprep.subr.bf16.mxu0 %v10459
    %11087 = vmatpush1.bf16.msra.mxu0 %v10458
    %11088 = vmatprep.subr.bf16.mxu0 %v10463
    %11089 = vmatpush1.bf16.msra.mxu0 %v10462
    %11090 = vmatprep.subr.bf16.mxu0 %v10467
    %11091 = vmatpush1.bf16.msra.mxu0 %v10466
    %11092 = vmatprep.subr.bf16.mxu0 %v10471
    %11093 = vmatpush1.bf16.msra.mxu0 %v10470
    %11094 = vmatprep.subr.bf16.mxu0 %v10475
    %11095 = vmatpush1.bf16.msra.mxu0 %v10474
    %11096 = vmatprep.subr.bf16.mxu0 %v10479
    %11097 = vmatpush1.bf16.msra.mxu0 %v10478
    %11098 = vmatprep.subr.bf16.mxu0 %v10483
    %11099 = vmatpush1.bf16.msra.mxu0 %v10482
    %11100 = vmatprep.subr.bf16.mxu0 %v10487
    %11101 = vmatpush1.bf16.msra.mxu0 %v10486
    %11102 = vmatprep.subr.bf16.mxu0 %v10491
    %11103 = vmatpush1.bf16.msra.mxu0 %v10490
    %11104 = vmatprep.subr.bf16.mxu0 %v10495
    %11105 = vmatpush1.bf16.msra.mxu0 %v10494
    %11106 = vmatprep.subr.bf16.mxu0 %v10499
    %11107 = vmatpush1.bf16.msra.mxu0 %v10498
    %11108 = vmatprep.subr.bf16.mxu0 %v10503
    %11109 = vmatpush1.bf16.msra.mxu0 %v10502
    %11110 = vmatprep.subr.bf16.mxu0 %v10507
    %11111 = vmatpush1.bf16.msra.mxu0 %v10506
    %11112 = vmatprep.subr.bf16.mxu0 %v10511
    %11113 = vmatpush1.bf16.msra.mxu0 %v10510
    %11114 = vmatprep.subr.bf16.mxu0 %v10515
    %11115 = vmatpush1.bf16.msra.mxu0 %v10514
    %11116 = vmatprep.subr.bf16.mxu0 %v10519
    %11117 = vmatpush1.bf16.msra.mxu0 %v10518
    %11118 = vmatprep.mubr.bf16.mxu0 %v9279
    %11119 = vmatmul.mubr.bf16.gmra.mrb[0].mxu0 %v9278
    %v11120 = vpop.f32.mrb[0].mxu0
    %v11121 = vadd.f32 %v11080, %v11120
    %v11122 = vpop.f32.mrb[0].mxu0
    %v11123 = vadd.f32 %v11082, %v11122
    %v11124 = vpop.f32.mrb[0].mxu0
    %v11125 = vpop.f32.mrb[0].mxu0
    %11126 = vdwg.mxu0
    %11127 = vmatprep.subr.bf16.mxu0 %v10523
    %11128 = vmatpush1.bf16.msra.mxu0 %v10522
    %11129 = vmatprep.subr.bf16.mxu0 %v10527
    %11130 = vmatpush1.bf16.msra.mxu0 %v10526
    %11131 = vmatprep.subr.bf16.mxu0 %v10531
    %11132 = vmatpush1.bf16.msra.mxu0 %v10530
    %11133 = vmatprep.subr.bf16.mxu0 %v10535
    %11134 = vmatpush1.bf16.msra.mxu0 %v10534
    %11135 = vmatprep.subr.bf16.mxu0 %v10539
    %11136 = vmatpush1.bf16.msra.mxu0 %v10538
    %11137 = vmatprep.subr.bf16.mxu0 %v10543
    %11138 = vmatpush1.bf16.msra.mxu0 %v10542
    %11139 = vmatprep.subr.bf16.mxu0 %v10547
    %11140 = vmatpush1.bf16.msra.mxu0 %v10546
    %11141 = vmatprep.subr.bf16.mxu0 %v10551
    %11142 = vmatpush1.bf16.msra.mxu0 %v10550
    %11143 = vmatprep.subr.bf16.mxu0 %v10555
    %11144 = vmatpush1.bf16.msra.mxu0 %v10554
    %11145 = vmatprep.subr.bf16.mxu0 %v10559
    %11146 = vmatpush1.bf16.msra.mxu0 %v10558
    %11147 = vmatprep.subr.bf16.mxu0 %v10563
    %11148 = vmatpush1.bf16.msra.mxu0 %v10562
    %11149 = vmatprep.subr.bf16.mxu0 %v10567
    %11150 = vmatpush1.bf16.msra.mxu0 %v10566
    %11151 = vmatprep.subr.bf16.mxu0 %v10571
    %11152 = vmatpush1.bf16.msra.mxu0 %v10570
    %11153 = vmatprep.subr.bf16.mxu0 %v10575
    %11154 = vmatpush1.bf16.msra.mxu0 %v10574
    %11155 = vmatprep.subr.bf16.mxu0 %v10579
    %11156 = vmatpush1.bf16.msra.mxu0 %v10578
    %11157 = vmatprep.subr.bf16.mxu0 %v10583
    %11158 = vmatpush1.bf16.msra.mxu0 %v10582
    %11159 = vmatprep.mubr.bf16.mxu0 %v9281
    %11160 = vmatmul.mubr.bf16.gmra.mrb[0].mxu0 %v9280
    %v11161 = vpop.f32.mrb[0].mxu0
    %v11162 = vadd.f32 %v11121, %v11161
    %v11163 = vpop.f32.mrb[0].mxu0
    %v11164 = vadd.f32 %v11123, %v11163
    %v11165 = vpop.f32.mrb[0].mxu0
    %v11166 = vpop.f32.mrb[0].mxu0
    %11167 = vdwg.mxu0
    %v11168 = vmax.f32 %v10998, 0.0
    %v11169 = vmax.f32 %v11000, 0.0
    %v11170 = vmax.f32 %v11162, 0.0
    %v11171 = vmax.f32 %v11164, 0.0
    %v11172 = vpack.c.bf16 %v11168, %v11168
    %v11173 = vpack.c.bf16 %v11169, %v11169
    %v11174 = vpack.c.bf16 %v11170, %v11170
    %v11175 = vpack.c.bf16 %v11171, %v11171
    %v11176 = vld [vmem:[%s59] sm:$0xf]
    %v11177 = vld [vmem:[%s59 + $0x4] sm:$0xf]
    %v11178 = vld [vmem:[%s59 + $0x8] sm:$0xf]
    %v11179 = vld [vmem:[%s59 + $0xc] sm:$0xf]
    %v11180 = vld [vmem:[%s59 + $0x10] sm:$0xf]
    %v11181 = vld [vmem:[%s59 + $0x14] sm:$0xf]
    %v11182 = vld [vmem:[%s59 + $0x18] sm:$0xf]
    %v11183 = vld [vmem:[%s59 + $0x1c] sm:$0xf]
    %v11184 = vld [vmem:[%s59 + $0x20] sm:$0xf]
    %v11185 = vld [vmem:[%s59 + $0x24] sm:$0xf]
    %v11186 = vld [vmem:[%s59 + $0x28] sm:$0xf]
    %v11187 = vld [vmem:[%s59 + $0x2c] sm:$0xf]
    %v11188 = vld [vmem:[%s59 + $0x30] sm:$0xf]
    %v11189 = vld [vmem:[%s59 + $0x34] sm:$0xf]
    %v11190 = vld [vmem:[%s59 + $0x38] sm:$0xf]
    %v11191 = vld [vmem:[%s59 + $0x3c] sm:$0xf]
    %v11192 = vld [vmem:[%s59 + $0x40] sm:$0xf]
    %v11193 = vld [vmem:[%s59 + $0x44] sm:$0xf]
    %v11194 = vld [vmem:[%s59 + $0x48] sm:$0xf]
    %v11195 = vld [vmem:[%s59 + $0x4c] sm:$0xf]
    %v11196 = vld [vmem:[%s59 + $0x50] sm:$0xf]
    %v11197 = vld [vmem:[%s59 + $0x54] sm:$0xf]
    %v11198 = vld [vmem:[%s59 + $0x58] sm:$0xf]
    %v11199 = vld [vmem:[%s59 + $0x5c] sm:$0xf]
    %v11200 = vld [vmem:[%s59 + $0x60] sm:$0xf]
    %v11201 = vld [vmem:[%s59 + $0x64] sm:$0xf]
    %v11202 = vld [vmem:[%s59 + $0x68] sm:$0xf]
    %v11203 = vld [vmem:[%s59 + $0x6c] sm:$0xf]
    %v11204 = vld [vmem:[%s59 + $0x70] sm:$0xf]
    %v11205 = vld [vmem:[%s59 + $0x74] sm:$0xf]
    %v11206 = vld [vmem:[%s59 + $0x78] sm:$0xf]
    %v11207 = vld [vmem:[%s59 + $0x7c] sm:$0xf]
    %v11208 = vld [vmem:[%s59 + $0x80] sm:$0xf]
    %v11209 = vld [vmem:[%s59 + $0x84] sm:$0xf]
    %v11210 = vld [vmem:[%s59 + $0x88] sm:$0xf]
    %v11211 = vld [vmem:[%s59 + $0x8c] sm:$0xf]
    %v11212 = vld [vmem:[%s59 + $0x90] sm:$0xf]
    %v11213 = vld [vmem:[%s59 + $0x94] sm:$0xf]
    %v11214 = vld [vmem:[%s59 + $0x98] sm:$0xf]
    %v11215 = vld [vmem:[%s59 + $0x9c] sm:$0xf]
    %v11216 = vld [vmem:[%s59 + $0xa0] sm:$0xf]
    %v11217 = vld [vmem:[%s59 + $0xa4] sm:$0xf]
    %v11218 = vld [vmem:[%s59 + $0xa8] sm:$0xf]
    %v11219 = vld [vmem:[%s59 + $0xac] sm:$0xf]
    %v11220 = vld [vmem:[%s59 + $0xb0] sm:$0xf]
    %v11221 = vld [vmem:[%s59 + $0xb4] sm:$0xf]
    %v11222 = vld [vmem:[%s59 + $0xb8] sm:$0xf]
    %v11223 = vld [vmem:[%s59 + $0xbc] sm:$0xf]
    %v11224 = vld [vmem:[%s59 + $0xc0] sm:$0xf]
    %v11225 = vld [vmem:[%s59 + $0xc4] sm:$0xf]
    %v11226 = vld [vmem:[%s59 + $0xc8] sm:$0xf]
    %v11227 = vld [vmem:[%s59 + $0xcc] sm:$0xf]
    %v11228 = vld [vmem:[%s59 + $0xd0] sm:$0xf]
    %v11229 = vld [vmem:[%s59 + $0xd4] sm:$0xf]
    %v11230 = vld [vmem:[%s59 + $0xd8] sm:$0xf]
    %v11231 = vld [vmem:[%s59 + $0xdc] sm:$0xf]
    %v11232 = vld [vmem:[%s59 + $0xe0] sm:$0xf]
    %v11233 = vld [vmem:[%s59 + $0xe4] sm:$0xf]
    %v11234 = vld [vmem:[%s59 + $0xe8] sm:$0xf]
    %v11235 = vld [vmem:[%s59 + $0xec] sm:$0xf]
    %v11236 = vld [vmem:[%s59 + $0xf0] sm:$0xf]
    %v11237 = vld [vmem:[%s59 + $0xf4] sm:$0xf]
    %v11238 = vld [vmem:[%s59 + $0xf8] sm:$0xf]
    %v11239 = vld [vmem:[%s59 + $0xfc] sm:$0xf]
    %v11240 = vld [vmem:[%s61] sm:$0x1]
    %v11242 = vlaneseq
    %v11243 = vshrl.u32 %v11242, 7
    %v11244 = vsub.s32 0, %v11243
    %v11245 = vrot.slane %v11240, %v11244
    %v11311 = vunpack.c.l.b16 %v11176
    %v11312 = vunpack.c.l.b16 %v11177
    %v11313 = vunpack.c.l.b16 %v11178
    %v11314 = vunpack.c.l.b16 %v11179
    %v11315 = vunpack.c.l.b16 %v11180
    %v11316 = vunpack.c.l.b16 %v11181
    %v11317 = vunpack.c.l.b16 %v11182
    %v11318 = vunpack.c.l.b16 %v11183
    %v11319 = vunpack.c.l.b16 %v11184
    %v11320 = vunpack.c.l.b16 %v11185
    %v11321 = vunpack.c.l.b16 %v11186
    %v11322 = vunpack.c.l.b16 %v11187
    %v11323 = vunpack.c.l.b16 %v11188
    %v11324 = vunpack.c.l.b16 %v11189
    %v11325 = vunpack.c.l.b16 %v11190
    %v11326 = vunpack.c.l.b16 %v11191
    %v11327 = vunpack.c.l.b16 %v11192
    %v11328 = vunpack.c.l.b16 %v11193
    %v11329 = vunpack.c.l.b16 %v11194
    %v11330 = vunpack.c.l.b16 %v11195
    %v11331 = vunpack.c.l.b16 %v11196
    %v11332 = vunpack.c.l.b16 %v11197
    %v11333 = vunpack.c.l.b16 %v11198
    %v11334 = vunpack.c.l.b16 %v11199
    %v11335 = vunpack.c.l.b16 %v11200
    %v11336 = vunpack.c.l.b16 %v11201
    %v11337 = vunpack.c.l.b16 %v11202
    %v11338 = vunpack.c.l.b16 %v11203
    %v11339 = vunpack.c.l.b16 %v11204
    %v11340 = vunpack.c.l.b16 %v11205
    %v11341 = vunpack.c.l.b16 %v11206
    %v11342 = vunpack.c.l.b16 %v11207
    %v11343 = vunpack.c.l.b16 %v11208
    %v11344 = vunpack.c.l.b16 %v11209
    %v11345 = vunpack.c.l.b16 %v11210
    %v11346 = vunpack.c.l.b16 %v11211
    %v11347 = vunpack.c.l.b16 %v11212
    %v11348 = vunpack.c.l.b16 %v11213
    %v11349 = vunpack.c.l.b16 %v11214
    %v11350 = vunpack.c.l.b16 %v11215
    %v11351 = vunpack.c.l.b16 %v11216
    %v11352 = vunpack.c.l.b16 %v11217
    %v11353 = vunpack.c.l.b16 %v11218
    %v11354 = vunpack.c.l.b16 %v11219
    %v11355 = vunpack.c.l.b16 %v11220
    %v11356 = vunpack.c.l.b16 %v11221
    %v11357 = vunpack.c.l.b16 %v11222
    %v11358 = vunpack.c.l.b16 %v11223
    %v11359 = vunpack.c.l.b16 %v11224
    %v11360 = vunpack.c.l.b16 %v11225
    %v11361 = vunpack.c.l.b16 %v11226
    %v11362 = vunpack.c.l.b16 %v11227
    %v11363 = vunpack.c.l.b16 %v11228
    %v11364 = vunpack.c.l.b16 %v11229
    %v11365 = vunpack.c.l.b16 %v11230
    %v11366 = vunpack.c.l.b16 %v11231
    %v11367 = vunpack.c.l.b16 %v11232
    %v11368 = vunpack.c.l.b16 %v11233
    %v11369 = vunpack.c.l.b16 %v11234
    %v11370 = vunpack.c.l.b16 %v11235
    %v11371 = vunpack.c.l.b16 %v11236
    %v11372 = vunpack.c.l.b16 %v11237
    %v11373 = vunpack.c.l.b16 %v11238
    %v11374 = vunpack.c.l.b16 %v11239
    %v11375 = vpack.c.b16 %v11312, %v11311
    %v11376 = vpack.c.b16 %v11314, %v11313
    %v11377 = vpack.c.b16 %v11316, %v11315
    %v11378 = vpack.c.b16 %v11318, %v11317
    %v11379 = vpack.c.b16 %v11320, %v11319
    %v11380 = vpack.c.b16 %v11322, %v11321
    %v11381 = vpack.c.b16 %v11324, %v11323
    %v11382 = vpack.c.b16 %v11326, %v11325
    %v11383 = vpack.c.b16 %v11328, %v11327
    %v11384 = vpack.c.b16 %v11330, %v11329
    %v11385 = vpack.c.b16 %v11332, %v11331
    %v11386 = vpack.c.b16 %v11334, %v11333
    %v11387 = vpack.c.b16 %v11336, %v11335
    %v11388 = vpack.c.b16 %v11338, %v11337
    %v11389 = vpack.c.b16 %v11340, %v11339
    %v11390 = vpack.c.b16 %v11342, %v11341
    %v11391 = vpack.c.b16 %v11344, %v11343
    %v11392 = vpack.c.b16 %v11346, %v11345
    %v11393 = vpack.c.b16 %v11348, %v11347
    %v11394 = vpack.c.b16 %v11350, %v11349
    %v11395 = vpack.c.b16 %v11352, %v11351
    %v11396 = vpack.c.b16 %v11354, %v11353
    %v11397 = vpack.c.b16 %v11356, %v11355
    %v11398 = vpack.c.b16 %v11358, %v11357
    %v11399 = vpack.c.b16 %v11360, %v11359
    %v11400 = vpack.c.b16 %v11362, %v11361
    %v11401 = vpack.c.b16 %v11364, %v11363
    %v11402 = vpack.c.b16 %v11366, %v11365
    %v11403 = vpack.c.b16 %v11368, %v11367
    %v11404 = vpack.c.b16 %v11370, %v11369
    %v11405 = vpack.c.b16 %v11372, %v11371
    %v11406 = vpack.c.b16 %v11374, %v11373
    %11439 = vmatprep.subr.bf16.mxu0 0
    %11440 = vmatpush1.bf16.msra.mxu0 %v11375
    %11441 = vmatprep.subr.bf16.mxu0 0
    %11442 = vmatpush1.bf16.msra.mxu0 %v11376
    %11443 = vmatprep.subr.bf16.mxu0 0
    %11444 = vmatpush1.bf16.msra.mxu0 %v11377
    %11445 = vmatprep.subr.bf16.mxu0 0
    %11446 = vmatpush1.bf16.msra.mxu0 %v11378
    %11447 = vmatprep.subr.bf16.mxu0 0
    %11448 = vmatpush1.bf16.msra.mxu0 %v11379
    %11449 = vmatprep.subr.bf16.mxu0 0
    %11450 = vmatpush1.bf16.msra.mxu0 %v11380
    %11451 = vmatprep.subr.bf16.mxu0 0
    %11452 = vmatpush1.bf16.msra.mxu0 %v11381
    %11453 = vmatprep.subr.bf16.mxu0 0
    %11454 = vmatpush1.bf16.msra.mxu0 %v11382
    %11455 = vmatprep.subr.bf16.mxu0 0
    %11456 = vmatpush1.bf16.msra.mxu0 %v11383
    %11457 = vmatprep.subr.bf16.mxu0 0
    %11458 = vmatpush1.bf16.msra.mxu0 %v11384
    %11459 = vmatprep.subr.bf16.mxu0 0
    %11460 = vmatpush1.bf16.msra.mxu0 %v11385
    %11461 = vmatprep.subr.bf16.mxu0 0
    %11462 = vmatpush1.bf16.msra.mxu0 %v11386
    %11463 = vmatprep.subr.bf16.mxu0 0
    %11464 = vmatpush1.bf16.msra.mxu0 %v11387
    %11465 = vmatprep.subr.bf16.mxu0 0
    %11466 = vmatpush1.bf16.msra.mxu0 %v11388
    %11467 = vmatprep.subr.bf16.mxu0 0
    %11468 = vmatpush1.bf16.msra.mxu0 %v11389
    %11469 = vmatprep.subr.bf16.mxu0 0
    %11470 = vmatpush1.bf16.msra.mxu0 %v11390
    %11471 = vmatprep.mubr.bf16.mxu0 %v11173
    %11472 = vmatmul.mubr.bf16.gmra.mrb[0].mxu0 %v11172
    %v11473 = vpop.f32.mrb[0].mxu0
    %v11474 = vadd.f32 %v11245, %v11473
    %v11475 = vpop.f32.mrb[0].mxu0
    %v11476 = vpop.f32.mrb[0].mxu0
    %v11477 = vpop.f32.mrb[0].mxu0
    %11478 = vdwg.mxu0
    %11479 = vmatprep.subr.bf16.mxu0 0
    %11480 = vmatpush1.bf16.msra.mxu0 %v11391
    %11481 = vmatprep.subr.bf16.mxu0 0
    %11482 = vmatpush1.bf16.msra.mxu0 %v11392
    %11483 = vmatprep.subr.bf16.mxu0 0
    %11484 = vmatpush1.bf16.msra.mxu0 %v11393
    %11485 = vmatprep.subr.bf16.mxu0 0
    %11486 = vmatpush1.bf16.msra.mxu0 %v11394
    %11487 = vmatprep.subr.bf16.mxu0 0
    %11488 = vmatpush1.bf16.msra.mxu0 %v11395
    %11489 = vmatprep.subr.bf16.mxu0 0
    %11490 = vmatpush1.bf16.msra.mxu0 %v11396
    %11491 = vmatprep.subr.bf16.mxu0 0
    %11492 = vmatpush1.bf16.msra.mxu0 %v11397
    %11493 = vmatprep.subr.bf16.mxu0 0
    %11494 = vmatpush1.bf16.msra.mxu0 %v11398
    %11495 = vmatprep.subr.bf16.mxu0 0
    %11496 = vmatpush1.bf16.msra.mxu0 %v11399
    %11497 = vmatprep.subr.bf16.mxu0 0
    %11498 = vmatpush1.bf16.msra.mxu0 %v11400
    %11499 = vmatprep.subr.bf16.mxu0 0
    %11500 = vmatpush1.bf16.msra.mxu0 %v11401
    %11501 = vmatprep.subr.bf16.mxu0 0
    %11502 = vmatpush1.bf16.msra.mxu0 %v11402
    %11503 = vmatprep.subr.bf16.mxu0 0
    %11504 = vmatpush1.bf16.msra.mxu0 %v11403
    %11505 = vmatprep.subr.bf16.mxu0 0
    %11506 = vmatpush1.bf16.msra.mxu0 %v11404
    %11507 = vmatprep.subr.bf16.mxu0 0
    %11508 = vmatpush1.bf16.msra.mxu0 %v11405
    %11509 = vmatprep.subr.bf16.mxu0 0
    %11510 = vmatpush1.bf16.msra.mxu0 %v11406
    %11511 = vmatprep.mubr.bf16.mxu0 %v11175
    %11512 = vmatmul.mubr.bf16.gmra.mrb[0].mxu0 %v11174
    %v11513 = vpop.f32.mrb[0].mxu0
    %v11514 = vadd.f32 %v11474, %v11513
    %v11515 = vpop.f32.mrb[0].mxu0
    %v11516 = vpop.f32.mrb[0].mxu0
    %v11517 = vpop.f32.mrb[0].mxu0
    %11518 = vdwg.mxu0
    %vm11519 = vcmask 17408
    %11520 = vst.msk [vmem:[#allocation2] sm:$0x3] %vm11519, %v11514
    // Predicated region
    $region126: #{gat_forward.3} parent=1 // pred_check
      _
    $region127: #{gat_forward.3} parent=1 // pred_check_branch
      %11522 = sbr.rel (0) target = $region129
    $region128: #{gat_forward.3} parent=1 // pred_region
      %s11524 = ssub.s32 32, 32
      %11525 = vsyncadd [#allocation3], %s11524
      %s11527 = sshll.u32 [#allocation2], 4
      %s11528 = int_to_ptr.vmem [resolvable:$true] %s11527
      %11530 = dma.vmem_to_hbm [thread:$0]  %s11528, 32, %s63, [#allocation3]
    $region129: #{gat_forward.3} parent=1 // pred_fallthru
      _
    // Predicated region
    $region130: #{gat_forward.3} parent=1 // pred_check
      _
    $region131: #{gat_forward.3} parent=1 // pred_check_branch
      %11532 = sbr.rel (0) target = $region133
    $region132: #{gat_forward.3} parent=1 // pred_region
      %11533 = dma.done [#allocation3], 32
    $region133: #{gat_forward.3} parent=1 // pred_fallthru
      _
    %11534 = vsyncpa [#allocation3], 1

</llo_original>
